<compile_context>
chip_gen: v6e
topology: v6e:2x2x1
jax: 0.10.0
libtpu: 0.0.40
codegen_flags: <defaults>
</compile_context>

<pallas_src>
import jax
import jax.numpy as jnp
from jax.experimental import pallas as pl
from jax.experimental.pallas import tpu as pltpu


# ---------------------------------------------------------------------------
# Trace-time weight repacking helpers (run once in prepare_params)
# ---------------------------------------------------------------------------
def _conv_tap_matrix(w_kh, w_in, pad):
    """Stride-1 conv, one kh tap: (Co,Ci,KW) -> (W*Ci, Wo*Co) lane-encoded matrix."""
    co, ci, kw = w_kh.shape
    wo = w_in + 2 * pad - kw + 1
    w_idx = jnp.arange(w_in)[:, None]
    v_idx = jnp.arange(wo)[None, :]
    kwi = w_idx - v_idx + pad                      # required kw for (w, v)
    valid = (kwi >= 0) & (kwi < kw)
    wt = jnp.transpose(w_kh, (2, 1, 0))            # (KW, Ci, Co)
    t = wt[jnp.clip(kwi, 0, kw - 1)] * valid[..., None, None]   # (W, Wo, Ci, Co)
    return jnp.transpose(t, (0, 2, 1, 3)).reshape(w_in * ci, wo * co)


def _pooled_conv_tap_matrix(w_kh, w_in, half_cols):
    """Valid conv + width-pool, one kh tap: columns ordered (dw, s, co), each
    dw-half zero-padded to `half_cols` lanes -> (W*Ci, 2*half_cols)."""
    co, ci, kw = w_kh.shape
    s_out = (w_in - kw + 1) // 2
    halves = []
    for dw in (0, 1):
        w_idx = jnp.arange(w_in)[:, None]
        s_idx = jnp.arange(s_out)[None, :]
        kwi = w_idx - 2 * s_idx - dw
        valid = (kwi >= 0) & (kwi < kw)
        wt = jnp.transpose(w_kh, (2, 1, 0))
        t = wt[jnp.clip(kwi, 0, kw - 1)] * valid[..., None, None]  # (W, S, Ci, Co)
        a = jnp.transpose(t, (0, 2, 1, 3)).reshape(w_in * ci, s_out * co)
        halves.append(jnp.pad(a, ((0, 0), (0, half_cols - s_out * co))))
    return jnp.concatenate(halves, axis=1)


def prepare_params(p):
    """One-time repack of PyTorch-layout params into kernel-layout operands."""
    bf = jnp.bfloat16
    f32 = jnp.float32

    # conv1: 1->16ch, 5x5, valid, fused 2x2 pool.  A1: (5, 28, 512)
    a1 = jnp.stack([_pooled_conv_tap_matrix(p["conv1_w"][:, :, kh, :], 28, 256)
                    for kh in range(5)]).astype(bf)
    b1 = jnp.pad(jnp.tile(p["conv1_b"], 12), (0, 64)).reshape(1, 256).astype(f32)

    # res block 1: 16ch, 3x3, pad 1 on a 12-wide activation.  (3, 256, 256) each.
    def res12_w(w):
        mats = [jnp.pad(_conv_tap_matrix(w[:, :, kh, :], 12, 1), ((0, 64), (0, 64)))
                for kh in range(3)]
        return jnp.stack(mats).astype(bf)

    def res12_b(bv):
        return jnp.pad(jnp.tile(bv, 12), (0, 64)).reshape(1, 256).astype(f32)

    r1w1, r1b1 = res12_w(p["res1_c1_w"]), res12_b(p["res1_c1_b"])
    r1w2, r1b2 = res12_w(p["res1_c2_w"]), res12_b(p["res1_c2_b"])

    # conv2: 16->32ch, 5x5, valid, fused 2x2 pool.  A2: (5, 256, 256)
    a2 = jnp.stack([jnp.pad(_pooled_conv_tap_matrix(p["conv2_w"][:, :, kh, :], 12, 128),
                            ((0, 64), (0, 0)))
                    for kh in range(5)]).astype(bf)
    b2 = jnp.tile(p["conv2_b"], 4).reshape(1, 128).astype(f32)

    # res block 2: 32ch, 3x3, pad 1 on a 4-wide activation.  (3, 128, 128) each.
    def res4_w(w):
        return jnp.stack([_conv_tap_matrix(w[:, :, kh, :], 4, 1)
                          for kh in range(3)]).astype(bf)

    def res4_b(bv):
        return jnp.tile(bv, 4).reshape(1, 128).astype(f32)

    r2w1, r2b1 = res4_w(p["res2_c1_w"]), res4_b(p["res2_c1_b"])
    r2w2, r2b2 = res4_w(p["res2_c2_w"]), res4_b(p["res2_c2_b"])

    # fc1: PyTorch flattens NCHW; activations are carried as [h, w*32+c], so
    # permute the weight rows once here instead of transposing activations.
    wfc = jnp.transpose(p["fc1_w"].reshape(10, 32, 4, 4), (2, 3, 1, 0))   # (h,w,c,o)
    wfc = jnp.pad(wfc.reshape(4, 128, 10), ((0, 0), (0, 0), (0, 118))).astype(bf)
    bfc = jnp.pad(p["fc1_b"], (0, 118)).reshape(1, 128).astype(f32)

    return dict(a1=a1, b1=b1, r1w1=r1w1, r1b1=r1b1, r1w2=r1w2, r1b2=r1b2,
                a2=a2, b2=b2, r2w1=r2w1, r2b1=r2b1, r2w2=r2w2, r2b2=r2b2,
                wfc=wfc, bfc=bfc)


# ---------------------------------------------------------------------------
# Fused forward kernel (one grid step per image)
# ---------------------------------------------------------------------------
def _net_kernel(x_ref, a1_ref, b1_ref, r1w1_ref, r1b1_ref, r1w2_ref, r1b2_ref,
                a2_ref, b2_ref, r2w1_ref, r2b1_ref, r2w2_ref, r2b2_ref,
                wfc_ref, bfc_ref, out_ref, pe_ref, po_ref, q_ref):
    bf16 = jnp.bfloat16

    def mm(a, b):
        return jnp.dot(a, b, preferred_element_type=jnp.float32)

    # ---- conv1 (5x5 valid) + relu + 2x2 max-pool; pooled rows parity-split ----
    # x_ref: image rows split mod 4 -> (4, 7, 28).  Image row 4*q + c lives at
    # x_ref[c % 4, q + c//4].
    p1 = []
    for p_out in (0, 1):                 # parity of the pooled output row
        best = None
        for dh in (0, 1):                # height phase inside the 2x2 window
            acc = None
            for kh in range(5):
                c = 2 * p_out + dh + kh
                lhs = x_ref[c % 4, c // 4:c // 4 + 6, :]     # (6, 28)
                t = mm(lhs, a1_ref[kh])                       # (6, 512)
                acc = t if acc is None else acc + t
            m = jnp.maximum(acc[:, 0:256], acc[:, 256:512])   # width-pair max
            best = m if best is None else jnp.maximum(best, m)
        p1.append(jnp.maximum(best + b1_ref[...], 0.0).astype(bf16))   # (6, 256)
    p1_e, p1_o = p1                      # even / odd pooled rows (12 real lanes x16ch)

    # ---- residual block 1 (16 ch, 12x12), rows kept parity-split ----
    zrow = jnp.zeros((1, 256), bf16)
    pe_ref[0:1, :] = zrow
    pe_ref[7:8, :] = zrow
    po_ref[0:1, :] = zrow
    po_ref[7:8, :] = zrow

    def res12_conv(w_ref, b_ref):
        # even output rows 2m : xfull[2m-1]@B0 + xfull[2m]@B1 + xfull[2m+1]@B2
        y_e = (mm(po_ref[0:6, :], w_ref[0]) + mm(pe_ref[1:7, :], w_ref[1])
               + mm(po_ref[1:7, :], w_ref[2]) + b_ref[...])
        # odd output rows 2m+1 : xfull[2m]@B0 + xfull[2m+1]@B1 + xfull[2m+2]@B2
        y_o = (mm(pe_ref[1:7, :], w_ref[0]) + mm(po_ref[1:7, :], w_ref[1])
               + mm(pe_ref[2:8, :], w_ref[2]) + b_ref[...])
        return y_e, y_o

    pe_ref[1:7, :] = p1_e
    po_ref[1:7, :] = p1_o
    y_e, y_o = res12_conv(r1w1_ref, r1b1_ref)
    pe_ref[1:7, :] = jnp.maximum(y_e, 0.0).astype(bf16)
    po_ref[1:7, :] = jnp.maximum(y_o, 0.0).astype(bf16)
    z_e, z_o = res12_conv(r1w2_ref, r1b2_ref)
    r1_e = jnp.maximum(z_e + p1_e.astype(jnp.float32), 0.0).astype(bf16)   # (6, 256)
    r1_o = jnp.maximum(z_o + p1_o.astype(jnp.float32), 0.0).astype(bf16)

    # ---- conv2 (5x5 valid, 16->32) + relu + 2x2 max-pool -> (4, 128) ----
    best = None
    for dh in (0, 1):
        acc = None
        for kh in range(5):
            c = dh + kh                              # r1 row = 2*r + c
            src = r1_e if (c % 2 == 0) else r1_o
            lhs = src[c // 2:c // 2 + 4, :]          # (4, 256)
            t = mm(lhs, a2_ref[kh])                  # (4, 256)
            acc = t if acc is None else acc + t
        m = jnp.maximum(acc[:, 0:128], acc[:, 128:256])
        best = m if best is None else jnp.maximum(best, m)
    p2 = jnp.maximum(best + b2_ref[...], 0.0).astype(bf16)                 # (4, 128)

    # ---- residual block 2 (32 ch, 4x4) ----
    zq = jnp.zeros((1, 128), bf16)
    q_ref[0:1, :] = zq
    q_ref[5:6, :] = zq

    def res4_conv(w_ref, b_ref):
        return (mm(q_ref[0:4, :], w_ref[0]) + mm(q_ref[1:5, :], w_ref[1])
                + mm(q_ref[2:6, :], w_ref[2]) + b_ref[...])

    q_ref[1:5, :] = p2
    y = res4_conv(r2w1_ref, r2b1_ref)
    q_ref[1:5, :] = jnp.maximum(y, 0.0).astype(bf16)
    z = res4_conv(r2w2_ref, r2b2_ref)
    r2 = jnp.maximum(z + p2.astype(jnp.float32), 0.0).astype(bf16)         # (4, 128)

    # ---- fc1 + log_softmax (classes padded 10 -> 128 lanes, lane-dense) ----
    logits = None
    for h in range(4):
        t = mm(r2[h:h + 1, :], wfc_ref[h])           # (1, 128)
        logits = t if logits is None else logits + t
    logits = logits + bfc_ref[...]
    col = jax.lax.broadcasted_iota(jnp.int32, (1, 128), 1)
    logits = jnp.where(col < 10, logits, -1e30)      # mask padded classes
    mx = jnp.max(logits, axis=-1, keepdims=True)
    sh = logits - mx
    lse = jnp.log(jnp.sum(jnp.exp(sh), axis=-1, keepdims=True))
    out_ref[...] = jnp.broadcast_to(sh - lse, (8, 128))


def _full_spec(shape):
    zeros = (0,) * len(shape)
    return pl.BlockSpec(shape, lambda i: zeros)      # resident (fetched once)


def fused_forward(prepped, x_nchw):
    b = x_nchw.shape[0]
    x = x_nchw.reshape(b, 28, 28).astype(jnp.bfloat16)
    # Split image rows mod 4 (free/cheap XLA permutation of the raw input) so
    # every in-kernel LHS slice for the pooled conv1 is contiguous.
    xs = jnp.stack([x[:, c::4, :] for c in range(4)], axis=1)   # (B, 4, 7, 28)

    out = pl.pallas_call(
        _net_kernel,
        grid=(b,),
        in_specs=[
            pl.BlockSpec((None, 4, 7, 28), lambda i: (i, 0, 0, 0)),   # image
            _full_spec((5, 28, 512)), _full_spec((1, 256)),           # conv1
            _full_spec((3, 256, 256)), _full_spec((1, 256)),          # res1 conv1
            _full_spec((3, 256, 256)), _full_spec((1, 256)),          # res1 conv2
            _full_spec((5, 256, 256)), _full_spec((1, 128)),          # conv2
            _full_spec((3, 128, 128)), _full_spec((1, 128)),          # res2 conv1
            _full_spec((3, 128, 128)), _full_spec((1, 128)),          # res2 conv2
            _full_spec((4, 128, 128)), _full_spec((1, 128)),          # fc1
        ],
        out_specs=pl.BlockSpec((None, 8, 128), lambda i: (i, 0, 0)),
        out_shape=jax.ShapeDtypeStruct((b, 8, 128), jnp.float32),
        scratch_shapes=[
            pltpu.VMEM((8, 256), jnp.bfloat16),   # even-row slab (+ zero halo)
            pltpu.VMEM((8, 256), jnp.bfloat16),   # odd-row slab  (+ zero halo)
            pltpu.VMEM((6, 128), jnp.bfloat16),   # res-block-2 padded slab
        ],
        compiler_params=pltpu.CompilerParams(
            dimension_semantics=("parallel",),
            vmem_limit_bytes=32 * 1024 * 1024,
        ),
    )(xs,
      prepped["a1"], prepped["b1"],
      prepped["r1w1"], prepped["r1b1"], prepped["r1w2"], prepped["r1b2"],
      prepped["a2"], prepped["b2"],
      prepped["r2w1"], prepped["r2b1"], prepped["r2w2"], prepped["r2b2"],
      prepped["wfc"], prepped["bfc"])
    return out[:, 0, :10]


def net_forward(params, x_nchw):
    """Convenience API taking PyTorch-layout params (repacking is traced)."""
    return fused_forward(prepare_params(params), x_nchw)


# ---------------------------------------------------------------------------
# PyTorch-layout parameter init (uniform +/- 1/sqrt(fan_in), like nn defaults)
# ---------------------------------------------------------------------------
def init_params(key):
    ks = jax.random.split(key, 14)

    def u(k, shape, fan_in):
        bound = 1.0 / jnp.sqrt(float(fan_in))
        return jax.random.uniform(k, shape, jnp.float32, -bound, bound)

    return {
        "conv1_w":   u(ks[0],  (16, 1, 5, 5),   1 * 25),
        "conv1_b":   u(ks[1],  (16,),           1 * 25),
        "res1_c1_w": u(ks[2],  (16, 16, 3, 3), 16 * 9),
        "res1_c1_b": u(ks[3],  (16,),          16 * 9),
        "res1_c2_w": u(ks[4],  (16, 16, 3, 3), 16 * 9),
        "res1_c2_b": u(ks[5],  (16,),          16 * 9),
        "conv2_w":   u(ks[6],  (32, 16, 5, 5), 16 * 25),
        "conv2_b":   u(ks[7],  (32,),          16 * 25),
        "res2_c1_w": u(ks[8],  (32, 32, 3, 3), 32 * 9),
        "res2_c1_b": u(ks[9],  (32,),          32 * 9),
        "res2_c2_w": u(ks[10], (32, 32, 3, 3), 32 * 9),
        "res2_c2_b": u(ks[11], (32,),          32 * 9),
        "fc1_w":     u(ks[12], (10, 512),      512),
        "fc1_b":     u(ks[13], (10,),          512),
    }


if __name__ == "__main__":
    key = jax.random.PRNGKey(0)
    pkey, xkey = jax.random.split(key)
    params = init_params(pkey)
    prepped = prepare_params(params)          # one-time weight repacking (hoisted)
    # MNIST-shaped input: (batch=2, channels=1, 28, 28) -> 32*4*4 = 512 before fc1.
    x = jax.random.normal(xkey, (2, 1, 28, 28), dtype=jnp.float32)

    out = jax.block_until_ready(jax.jit(fused_forward)(prepped, x))
    assert out.shape == (2, 10)
    assert bool(jnp.all(jnp.isfinite(out)))
    print("KERNEL_OK")
</pallas_src>

<mosaic_0001>
module attributes {stable_mosaic.version = 11 : i64} {
  func.func @_net_kernel(%arg0: i32, %arg1: memref<1x4x7x28xbf16, #tpu.memory_space<vmem>>, %arg2: memref<5x28x512xbf16, #tpu.memory_space<vmem>>, %arg3: memref<1x256xf32, #tpu.memory_space<vmem>>, %arg4: memref<3x256x256xbf16, #tpu.memory_space<vmem>>, %arg5: memref<1x256xf32, #tpu.memory_space<vmem>>, %arg6: memref<3x256x256xbf16, #tpu.memory_space<vmem>>, %arg7: memref<1x256xf32, #tpu.memory_space<vmem>>, %arg8: memref<5x256x256xbf16, #tpu.memory_space<vmem>>, %arg9: memref<1x128xf32, #tpu.memory_space<vmem>>, %arg10: memref<3x128x128xbf16, #tpu.memory_space<vmem>>, %arg11: memref<1x128xf32, #tpu.memory_space<vmem>>, %arg12: memref<3x128x128xbf16, #tpu.memory_space<vmem>>, %arg13: memref<1x128xf32, #tpu.memory_space<vmem>>, %arg14: memref<4x128x128xbf16, #tpu.memory_space<vmem>>, %arg15: memref<1x128xf32, #tpu.memory_space<vmem>>, %arg16: memref<1x8x128xf32, #tpu.memory_space<vmem>>, %arg17: memref<8x256xbf16, #tpu.memory_space<vmem>>, %arg18: memref<8x256xbf16, #tpu.memory_space<vmem>>, %arg19: memref<6x128xbf16, #tpu.memory_space<vmem>>) attributes {dimension_semantics = [#tpu.dimension_semantics<parallel>], iteration_bounds = array<i64: 2>, scalar_prefetch = 0 : i64, scratch_operands = 3 : i64, tpu.core_type = #tpu.core_type<tc>, window_params = [{transform_indices = @transform_0, window_bounds = array<i64: 1, 4, 7, 28>}, {pipeline_mode = #tpu.pipeline_mode<synchronous>, transform_indices = @transform_1, window_bounds = array<i64: 5, 28, 512>}, {pipeline_mode = #tpu.pipeline_mode<synchronous>, transform_indices = @transform_2, window_bounds = array<i64: 1, 256>}, {pipeline_mode = #tpu.pipeline_mode<synchronous>, transform_indices = @transform_3, window_bounds = array<i64: 3, 256, 256>}, {pipeline_mode = #tpu.pipeline_mode<synchronous>, transform_indices = @transform_4, window_bounds = array<i64: 1, 256>}, {pipeline_mode = #tpu.pipeline_mode<synchronous>, transform_indices = @transform_5, window_bounds = array<i64: 3, 256, 256>}, {pipeline_mode = #tpu.pipeline_mode<synchronous>, transform_indices = @transform_6, window_bounds = array<i64: 1, 256>}, {pipeline_mode = #tpu.pipeline_mode<synchronous>, transform_indices = @transform_7, window_bounds = array<i64: 5, 256, 256>}, {pipeline_mode = #tpu.pipeline_mode<synchronous>, transform_indices = @transform_8, window_bounds = array<i64: 1, 128>}, {pipeline_mode = #tpu.pipeline_mode<synchronous>, transform_indices = @transform_9, window_bounds = array<i64: 3, 128, 128>}, {pipeline_mode = #tpu.pipeline_mode<synchronous>, transform_indices = @transform_10, window_bounds = array<i64: 1, 128>}, {pipeline_mode = #tpu.pipeline_mode<synchronous>, transform_indices = @transform_11, window_bounds = array<i64: 3, 128, 128>}, {pipeline_mode = #tpu.pipeline_mode<synchronous>, transform_indices = @transform_12, window_bounds = array<i64: 1, 128>}, {pipeline_mode = #tpu.pipeline_mode<synchronous>, transform_indices = @transform_13, window_bounds = array<i64: 4, 128, 128>}, {pipeline_mode = #tpu.pipeline_mode<synchronous>, transform_indices = @transform_14, window_bounds = array<i64: 1, 128>}, {transform_indices = @transform_15, window_bounds = array<i64: 1, 8, 128>}]} {
    %c0 = arith.constant 0 : index
    %c0_0 = arith.constant 0 : index
    %c0_1 = arith.constant 0 : index
    %c0_2 = arith.constant 0 : index
    %0 = vector.load %arg1[%c0, %c0_0, %c0_1, %c0_2] : memref<1x4x7x28xbf16, #tpu.memory_space<vmem>>, vector<1x1x6x28xbf16>
    %1 = vector.shape_cast %0 : vector<1x1x6x28xbf16> to vector<6x28xbf16>
    %c0_3 = arith.constant 0 : index
    %c0_4 = arith.constant 0 : index
    %c0_5 = arith.constant 0 : index
    %2 = vector.load %arg2[%c0_3, %c0_4, %c0_5] : memref<5x28x512xbf16, #tpu.memory_space<vmem>>, vector<1x28x512xbf16>
    %3 = vector.shape_cast %2 : vector<1x28x512xbf16> to vector<28x512xbf16>
    %cst = arith.constant dense<0.000000e+00> : vector<6x512xf32>
    %4 = tpu.matmul %1, %3, %cst {dimension_numbers = #tpu.dot_dimension_numbers<[1], [0], [0], [1], [0, 0, 1, 1], [], []>} : vector<6x28xbf16>, vector<28x512xbf16>, vector<6x512xf32> -> vector<6x512xf32>
    %c0_6 = arith.constant 0 : index
    %c1 = arith.constant 1 : index
    %c0_7 = arith.constant 0 : index
    %c0_8 = arith.constant 0 : index
    %5 = vector.load %arg1[%c0_6, %c1, %c0_7, %c0_8] : memref<1x4x7x28xbf16, #tpu.memory_space<vmem>>, vector<1x1x6x28xbf16>
    %6 = vector.shape_cast %5 : vector<1x1x6x28xbf16> to vector<6x28xbf16>
    %c1_9 = arith.constant 1 : index
    %c0_10 = arith.constant 0 : index
    %c0_11 = arith.constant 0 : index
    %7 = vector.load %arg2[%c1_9, %c0_10, %c0_11] : memref<5x28x512xbf16, #tpu.memory_space<vmem>>, vector<1x28x512xbf16>
    %8 = vector.shape_cast %7 : vector<1x28x512xbf16> to vector<28x512xbf16>
    %cst_12 = arith.constant dense<0.000000e+00> : vector<6x512xf32>
    %9 = tpu.matmul %6, %8, %cst_12 {dimension_numbers = #tpu.dot_dimension_numbers<[1], [0], [0], [1], [0, 0, 1, 1], [], []>} : vector<6x28xbf16>, vector<28x512xbf16>, vector<6x512xf32> -> vector<6x512xf32>
    %10 = arith.addf %4, %9 : vector<6x512xf32>
    %c0_13 = arith.constant 0 : index
    %c2 = arith.constant 2 : index
    %c0_14 = arith.constant 0 : index
    %c0_15 = arith.constant 0 : index
    %11 = vector.load %arg1[%c0_13, %c2, %c0_14, %c0_15] : memref<1x4x7x28xbf16, #tpu.memory_space<vmem>>, vector<1x1x6x28xbf16>
    %12 = vector.shape_cast %11 : vector<1x1x6x28xbf16> to vector<6x28xbf16>
    %c2_16 = arith.constant 2 : index
    %c0_17 = arith.constant 0 : index
    %c0_18 = arith.constant 0 : index
    %13 = vector.load %arg2[%c2_16, %c0_17, %c0_18] : memref<5x28x512xbf16, #tpu.memory_space<vmem>>, vector<1x28x512xbf16>
    %14 = vector.shape_cast %13 : vector<1x28x512xbf16> to vector<28x512xbf16>
    %cst_19 = arith.constant dense<0.000000e+00> : vector<6x512xf32>
    %15 = tpu.matmul %12, %14, %cst_19 {dimension_numbers = #tpu.dot_dimension_numbers<[1], [0], [0], [1], [0, 0, 1, 1], [], []>} : vector<6x28xbf16>, vector<28x512xbf16>, vector<6x512xf32> -> vector<6x512xf32>
    %16 = arith.addf %10, %15 : vector<6x512xf32>
    %c0_20 = arith.constant 0 : index
    %c3 = arith.constant 3 : index
    %c0_21 = arith.constant 0 : index
    %c0_22 = arith.constant 0 : index
    %17 = vector.load %arg1[%c0_20, %c3, %c0_21, %c0_22] : memref<1x4x7x28xbf16, #tpu.memory_space<vmem>>, vector<1x1x6x28xbf16>
    %18 = vector.shape_cast %17 : vector<1x1x6x28xbf16> to vector<6x28xbf16>
    %c3_23 = arith.constant 3 : index
    %c0_24 = arith.constant 0 : index
    %c0_25 = arith.constant 0 : index
    %19 = vector.load %arg2[%c3_23, %c0_24, %c0_25] : memref<5x28x512xbf16, #tpu.memory_space<vmem>>, vector<1x28x512xbf16>
    %20 = vector.shape_cast %19 : vector<1x28x512xbf16> to vector<28x512xbf16>
    %cst_26 = arith.constant dense<0.000000e+00> : vector<6x512xf32>
    %21 = tpu.matmul %18, %20, %cst_26 {dimension_numbers = #tpu.dot_dimension_numbers<[1], [0], [0], [1], [0, 0, 1, 1], [], []>} : vector<6x28xbf16>, vector<28x512xbf16>, vector<6x512xf32> -> vector<6x512xf32>
    %22 = arith.addf %16, %21 : vector<6x512xf32>
    %c0_27 = arith.constant 0 : index
    %c0_28 = arith.constant 0 : index
    %c1_29 = arith.constant 1 : index
    %c0_30 = arith.constant 0 : index
    %23 = vector.load %arg1[%c0_27, %c0_28, %c1_29, %c0_30] : memref<1x4x7x28xbf16, #tpu.memory_space<vmem>>, vector<1x1x6x28xbf16>
    %24 = vector.shape_cast %23 : vector<1x1x6x28xbf16> to vector<6x28xbf16>
    %c4 = arith.constant 4 : index
    %c0_31 = arith.constant 0 : index
    %c0_32 = arith.constant 0 : index
    %25 = vector.load %arg2[%c4, %c0_31, %c0_32] : memref<5x28x512xbf16, #tpu.memory_space<vmem>>, vector<1x28x512xbf16>
    %26 = vector.shape_cast %25 : vector<1x28x512xbf16> to vector<28x512xbf16>
    %cst_33 = arith.constant dense<0.000000e+00> : vector<6x512xf32>
    %27 = tpu.matmul %24, %26, %cst_33 {dimension_numbers = #tpu.dot_dimension_numbers<[1], [0], [0], [1], [0, 0, 1, 1], [], []>} : vector<6x28xbf16>, vector<28x512xbf16>, vector<6x512xf32> -> vector<6x512xf32>
    %28 = arith.addf %22, %27 : vector<6x512xf32>
    %29 = vector.extract_strided_slice %28 {offsets = [0, 0], sizes = [6, 256], strides = [1, 1]} : vector<6x512xf32> to vector<6x256xf32>
    %30 = vector.extract_strided_slice %28 {offsets = [0, 256], sizes = [6, 256], strides = [1, 1]} : vector<6x512xf32> to vector<6x256xf32>
    %31 = arith.maximumf %29, %30 : vector<6x256xf32>
    %c0_34 = arith.constant 0 : index
    %c1_35 = arith.constant 1 : index
    %c0_36 = arith.constant 0 : index
    %c0_37 = arith.constant 0 : index
    %32 = vector.load %arg1[%c0_34, %c1_35, %c0_36, %c0_37] : memref<1x4x7x28xbf16, #tpu.memory_space<vmem>>, vector<1x1x6x28xbf16>
    %33 = vector.shape_cast %32 : vector<1x1x6x28xbf16> to vector<6x28xbf16>
    %c0_38 = arith.constant 0 : index
    %c0_39 = arith.constant 0 : index
    %c0_40 = arith.constant 0 : index
    %34 = vector.load %arg2[%c0_38, %c0_39, %c0_40] : memref<5x28x512xbf16, #tpu.memory_space<vmem>>, vector<1x28x512xbf16>
    %35 = vector.shape_cast %34 : vector<1x28x512xbf16> to vector<28x512xbf16>
    %cst_41 = arith.constant dense<0.000000e+00> : vector<6x512xf32>
    %36 = tpu.matmul %33, %35, %cst_41 {dimension_numbers = #tpu.dot_dimension_numbers<[1], [0], [0], [1], [0, 0, 1, 1], [], []>} : vector<6x28xbf16>, vector<28x512xbf16>, vector<6x512xf32> -> vector<6x512xf32>
    %c0_42 = arith.constant 0 : index
    %c2_43 = arith.constant 2 : index
    %c0_44 = arith.constant 0 : index
    %c0_45 = arith.constant 0 : index
    %37 = vector.load %arg1[%c0_42, %c2_43, %c0_44, %c0_45] : memref<1x4x7x28xbf16, #tpu.memory_space<vmem>>, vector<1x1x6x28xbf16>
    %38 = vector.shape_cast %37 : vector<1x1x6x28xbf16> to vector<6x28xbf16>
    %c1_46 = arith.constant 1 : index
    %c0_47 = arith.constant 0 : index
    %c0_48 = arith.constant 0 : index
    %39 = vector.load %arg2[%c1_46, %c0_47, %c0_48] : memref<5x28x512xbf16, #tpu.memory_space<vmem>>, vector<1x28x512xbf16>
    %40 = vector.shape_cast %39 : vector<1x28x512xbf16> to vector<28x512xbf16>
    %cst_49 = arith.constant dense<0.000000e+00> : vector<6x512xf32>
    %41 = tpu.matmul %38, %40, %cst_49 {dimension_numbers = #tpu.dot_dimension_numbers<[1], [0], [0], [1], [0, 0, 1, 1], [], []>} : vector<6x28xbf16>, vector<28x512xbf16>, vector<6x512xf32> -> vector<6x512xf32>
    %42 = arith.addf %36, %41 : vector<6x512xf32>
    %c0_50 = arith.constant 0 : index
    %c3_51 = arith.constant 3 : index
    %c0_52 = arith.constant 0 : index
    %c0_53 = arith.constant 0 : index
    %43 = vector.load %arg1[%c0_50, %c3_51, %c0_52, %c0_53] : memref<1x4x7x28xbf16, #tpu.memory_space<vmem>>, vector<1x1x6x28xbf16>
    %44 = vector.shape_cast %43 : vector<1x1x6x28xbf16> to vector<6x28xbf16>
    %c2_54 = arith.constant 2 : index
    %c0_55 = arith.constant 0 : index
    %c0_56 = arith.constant 0 : index
    %45 = vector.load %arg2[%c2_54, %c0_55, %c0_56] : memref<5x28x512xbf16, #tpu.memory_space<vmem>>, vector<1x28x512xbf16>
    %46 = vector.shape_cast %45 : vector<1x28x512xbf16> to vector<28x512xbf16>
    %cst_57 = arith.constant dense<0.000000e+00> : vector<6x512xf32>
    %47 = tpu.matmul %44, %46, %cst_57 {dimension_numbers = #tpu.dot_dimension_numbers<[1], [0], [0], [1], [0, 0, 1, 1], [], []>} : vector<6x28xbf16>, vector<28x512xbf16>, vector<6x512xf32> -> vector<6x512xf32>
    %48 = arith.addf %42, %47 : vector<6x512xf32>
    %c0_58 = arith.constant 0 : index
    %c0_59 = arith.constant 0 : index
    %c1_60 = arith.constant 1 : index
    %c0_61 = arith.constant 0 : index
    %49 = vector.load %arg1[%c0_58, %c0_59, %c1_60, %c0_61] : memref<1x4x7x28xbf16, #tpu.memory_space<vmem>>, vector<1x1x6x28xbf16>
    %50 = vector.shape_cast %49 : vector<1x1x6x28xbf16> to vector<6x28xbf16>
    %c3_62 = arith.constant 3 : index
    %c0_63 = arith.constant 0 : index
    %c0_64 = arith.constant 0 : index
    %51 = vector.load %arg2[%c3_62, %c0_63, %c0_64] : memref<5x28x512xbf16, #tpu.memory_space<vmem>>, vector<1x28x512xbf16>
    %52 = vector.shape_cast %51 : vector<1x28x512xbf16> to vector<28x512xbf16>
    %cst_65 = arith.constant dense<0.000000e+00> : vector<6x512xf32>
    %53 = tpu.matmul %50, %52, %cst_65 {dimension_numbers = #tpu.dot_dimension_numbers<[1], [0], [0], [1], [0, 0, 1, 1], [], []>} : vector<6x28xbf16>, vector<28x512xbf16>, vector<6x512xf32> -> vector<6x512xf32>
    %54 = arith.addf %48, %53 : vector<6x512xf32>
    %c0_66 = arith.constant 0 : index
    %c1_67 = arith.constant 1 : index
    %c1_68 = arith.constant 1 : index
    %c0_69 = arith.constant 0 : index
    %55 = vector.load %arg1[%c0_66, %c1_67, %c1_68, %c0_69] : memref<1x4x7x28xbf16, #tpu.memory_space<vmem>>, vector<1x1x6x28xbf16>
    %56 = vector.shape_cast %55 : vector<1x1x6x28xbf16> to vector<6x28xbf16>
    %c4_70 = arith.constant 4 : index
    %c0_71 = arith.constant 0 : index
    %c0_72 = arith.constant 0 : index
    %57 = vector.load %arg2[%c4_70, %c0_71, %c0_72] : memref<5x28x512xbf16, #tpu.memory_space<vmem>>, vector<1x28x512xbf16>
    %58 = vector.shape_cast %57 : vector<1x28x512xbf16> to vector<28x512xbf16>
    %cst_73 = arith.constant dense<0.000000e+00> : vector<6x512xf32>
    %59 = tpu.matmul %56, %58, %cst_73 {dimension_numbers = #tpu.dot_dimension_numbers<[1], [0], [0], [1], [0, 0, 1, 1], [], []>} : vector<6x28xbf16>, vector<28x512xbf16>, vector<6x512xf32> -> vector<6x512xf32>
    %60 = arith.addf %54, %59 : vector<6x512xf32>
    %61 = vector.extract_strided_slice %60 {offsets = [0, 0], sizes = [6, 256], strides = [1, 1]} : vector<6x512xf32> to vector<6x256xf32>
    %62 = vector.extract_strided_slice %60 {offsets = [0, 256], sizes = [6, 256], strides = [1, 1]} : vector<6x512xf32> to vector<6x256xf32>
    %63 = arith.maximumf %61, %62 : vector<6x256xf32>
    %64 = arith.maximumf %31, %63 : vector<6x256xf32>
    %c0_74 = arith.constant 0 : index
    %c0_75 = arith.constant 0 : index
    %65 = vector.load %arg3[%c0_74, %c0_75] : memref<1x256xf32, #tpu.memory_space<vmem>>, vector<1x256xf32>
    %66 = vector.broadcast %65 : vector<1x256xf32> to vector<6x256xf32>
    %67 = arith.addf %64, %66 : vector<6x256xf32>
    %cst_76 = arith.constant 0.000000e+00 : f32
    %68 = vector.broadcast %cst_76 : f32 to vector<6x256xf32>
    %69 = arith.maximumf %67, %68 : vector<6x256xf32>
    %70 = arith.truncf %69 : vector<6x256xf32> to vector<6x256xbf16>
    %c0_77 = arith.constant 0 : index
    %c2_78 = arith.constant 2 : index
    %c0_79 = arith.constant 0 : index
    %c0_80 = arith.constant 0 : index
    %71 = vector.load %arg1[%c0_77, %c2_78, %c0_79, %c0_80] : memref<1x4x7x28xbf16, #tpu.memory_space<vmem>>, vector<1x1x6x28xbf16>
    %72 = vector.shape_cast %71 : vector<1x1x6x28xbf16> to vector<6x28xbf16>
    %c0_81 = arith.constant 0 : index
    %c0_82 = arith.constant 0 : index
    %c0_83 = arith.constant 0 : index
    %73 = vector.load %arg2[%c0_81, %c0_82, %c0_83] : memref<5x28x512xbf16, #tpu.memory_space<vmem>>, vector<1x28x512xbf16>
    %74 = vector.shape_cast %73 : vector<1x28x512xbf16> to vector<28x512xbf16>
    %cst_84 = arith.constant dense<0.000000e+00> : vector<6x512xf32>
    %75 = tpu.matmul %72, %74, %cst_84 {dimension_numbers = #tpu.dot_dimension_numbers<[1], [0], [0], [1], [0, 0, 1, 1], [], []>} : vector<6x28xbf16>, vector<28x512xbf16>, vector<6x512xf32> -> vector<6x512xf32>
    %c0_85 = arith.constant 0 : index
    %c3_86 = arith.constant 3 : index
    %c0_87 = arith.constant 0 : index
    %c0_88 = arith.constant 0 : index
    %76 = vector.load %arg1[%c0_85, %c3_86, %c0_87, %c0_88] : memref<1x4x7x28xbf16, #tpu.memory_space<vmem>>, vector<1x1x6x28xbf16>
    %77 = vector.shape_cast %76 : vector<1x1x6x28xbf16> to vector<6x28xbf16>
    %c1_89 = arith.constant 1 : index
    %c0_90 = arith.constant 0 : index
    %c0_91 = arith.constant 0 : index
    %78 = vector.load %arg2[%c1_89, %c0_90, %c0_91] : memref<5x28x512xbf16, #tpu.memory_space<vmem>>, vector<1x28x512xbf16>
    %79 = vector.shape_cast %78 : vector<1x28x512xbf16> to vector<28x512xbf16>
    %cst_92 = arith.constant dense<0.000000e+00> : vector<6x512xf32>
    %80 = tpu.matmul %77, %79, %cst_92 {dimension_numbers = #tpu.dot_dimension_numbers<[1], [0], [0], [1], [0, 0, 1, 1], [], []>} : vector<6x28xbf16>, vector<28x512xbf16>, vector<6x512xf32> -> vector<6x512xf32>
    %81 = arith.addf %75, %80 : vector<6x512xf32>
    %c0_93 = arith.constant 0 : index
    %c0_94 = arith.constant 0 : index
    %c1_95 = arith.constant 1 : index
    %c0_96 = arith.constant 0 : index
    %82 = vector.load %arg1[%c0_93, %c0_94, %c1_95, %c0_96] : memref<1x4x7x28xbf16, #tpu.memory_space<vmem>>, vector<1x1x6x28xbf16>
    %83 = vector.shape_cast %82 : vector<1x1x6x28xbf16> to vector<6x28xbf16>
    %c2_97 = arith.constant 2 : index
    %c0_98 = arith.constant 0 : index
    %c0_99 = arith.constant 0 : index
    %84 = vector.load %arg2[%c2_97, %c0_98, %c0_99] : memref<5x28x512xbf16, #tpu.memory_space<vmem>>, vector<1x28x512xbf16>
    %85 = vector.shape_cast %84 : vector<1x28x512xbf16> to vector<28x512xbf16>
    %cst_100 = arith.constant dense<0.000000e+00> : vector<6x512xf32>
    %86 = tpu.matmul %83, %85, %cst_100 {dimension_numbers = #tpu.dot_dimension_numbers<[1], [0], [0], [1], [0, 0, 1, 1], [], []>} : vector<6x28xbf16>, vector<28x512xbf16>, vector<6x512xf32> -> vector<6x512xf32>
    %87 = arith.addf %81, %86 : vector<6x512xf32>
    %c0_101 = arith.constant 0 : index
    %c1_102 = arith.constant 1 : index
    %c1_103 = arith.constant 1 : index
    %c0_104 = arith.constant 0 : index
    %88 = vector.load %arg1[%c0_101, %c1_102, %c1_103, %c0_104] : memref<1x4x7x28xbf16, #tpu.memory_space<vmem>>, vector<1x1x6x28xbf16>
    %89 = vector.shape_cast %88 : vector<1x1x6x28xbf16> to vector<6x28xbf16>
    %c3_105 = arith.constant 3 : index
    %c0_106 = arith.constant 0 : index
    %c0_107 = arith.constant 0 : index
    %90 = vector.load %arg2[%c3_105, %c0_106, %c0_107] : memref<5x28x512xbf16, #tpu.memory_space<vmem>>, vector<1x28x512xbf16>
    %91 = vector.shape_cast %90 : vector<1x28x512xbf16> to vector<28x512xbf16>
    %cst_108 = arith.constant dense<0.000000e+00> : vector<6x512xf32>
    %92 = tpu.matmul %89, %91, %cst_108 {dimension_numbers = #tpu.dot_dimension_numbers<[1], [0], [0], [1], [0, 0, 1, 1], [], []>} : vector<6x28xbf16>, vector<28x512xbf16>, vector<6x512xf32> -> vector<6x512xf32>
    %93 = arith.addf %87, %92 : vector<6x512xf32>
    %c0_109 = arith.constant 0 : index
    %c2_110 = arith.constant 2 : index
    %c1_111 = arith.constant 1 : index
    %c0_112 = arith.constant 0 : index
    %94 = vector.load %arg1[%c0_109, %c2_110, %c1_111, %c0_112] : memref<1x4x7x28xbf16, #tpu.memory_space<vmem>>, vector<1x1x6x28xbf16>
    %95 = vector.shape_cast %94 : vector<1x1x6x28xbf16> to vector<6x28xbf16>
    %c4_113 = arith.constant 4 : index
    %c0_114 = arith.constant 0 : index
    %c0_115 = arith.constant 0 : index
    %96 = vector.load %arg2[%c4_113, %c0_114, %c0_115] : memref<5x28x512xbf16, #tpu.memory_space<vmem>>, vector<1x28x512xbf16>
    %97 = vector.shape_cast %96 : vector<1x28x512xbf16> to vector<28x512xbf16>
    %cst_116 = arith.constant dense<0.000000e+00> : vector<6x512xf32>
    %98 = tpu.matmul %95, %97, %cst_116 {dimension_numbers = #tpu.dot_dimension_numbers<[1], [0], [0], [1], [0, 0, 1, 1], [], []>} : vector<6x28xbf16>, vector<28x512xbf16>, vector<6x512xf32> -> vector<6x512xf32>
    %99 = arith.addf %93, %98 : vector<6x512xf32>
    %100 = vector.extract_strided_slice %99 {offsets = [0, 0], sizes = [6, 256], strides = [1, 1]} : vector<6x512xf32> to vector<6x256xf32>
    %101 = vector.extract_strided_slice %99 {offsets = [0, 256], sizes = [6, 256], strides = [1, 1]} : vector<6x512xf32> to vector<6x256xf32>
    %102 = arith.maximumf %100, %101 : vector<6x256xf32>
    %c0_117 = arith.constant 0 : index
    %c3_118 = arith.constant 3 : index
    %c0_119 = arith.constant 0 : index
    %c0_120 = arith.constant 0 : index
    %103 = vector.load %arg1[%c0_117, %c3_118, %c0_119, %c0_120] : memref<1x4x7x28xbf16, #tpu.memory_space<vmem>>, vector<1x1x6x28xbf16>
    %104 = vector.shape_cast %103 : vector<1x1x6x28xbf16> to vector<6x28xbf16>
    %c0_121 = arith.constant 0 : index
    %c0_122 = arith.constant 0 : index
    %c0_123 = arith.constant 0 : index
    %105 = vector.load %arg2[%c0_121, %c0_122, %c0_123] : memref<5x28x512xbf16, #tpu.memory_space<vmem>>, vector<1x28x512xbf16>
    %106 = vector.shape_cast %105 : vector<1x28x512xbf16> to vector<28x512xbf16>
    %cst_124 = arith.constant dense<0.000000e+00> : vector<6x512xf32>
    %107 = tpu.matmul %104, %106, %cst_124 {dimension_numbers = #tpu.dot_dimension_numbers<[1], [0], [0], [1], [0, 0, 1, 1], [], []>} : vector<6x28xbf16>, vector<28x512xbf16>, vector<6x512xf32> -> vector<6x512xf32>
    %c0_125 = arith.constant 0 : index
    %c0_126 = arith.constant 0 : index
    %c1_127 = arith.constant 1 : index
    %c0_128 = arith.constant 0 : index
    %108 = vector.load %arg1[%c0_125, %c0_126, %c1_127, %c0_128] : memref<1x4x7x28xbf16, #tpu.memory_space<vmem>>, vector<1x1x6x28xbf16>
    %109 = vector.shape_cast %108 : vector<1x1x6x28xbf16> to vector<6x28xbf16>
    %c1_129 = arith.constant 1 : index
    %c0_130 = arith.constant 0 : index
    %c0_131 = arith.constant 0 : index
    %110 = vector.load %arg2[%c1_129, %c0_130, %c0_131] : memref<5x28x512xbf16, #tpu.memory_space<vmem>>, vector<1x28x512xbf16>
    %111 = vector.shape_cast %110 : vector<1x28x512xbf16> to vector<28x512xbf16>
    %cst_132 = arith.constant dense<0.000000e+00> : vector<6x512xf32>
    %112 = tpu.matmul %109, %111, %cst_132 {dimension_numbers = #tpu.dot_dimension_numbers<[1], [0], [0], [1], [0, 0, 1, 1], [], []>} : vector<6x28xbf16>, vector<28x512xbf16>, vector<6x512xf32> -> vector<6x512xf32>
    %113 = arith.addf %107, %112 : vector<6x512xf32>
    %c0_133 = arith.constant 0 : index
    %c1_134 = arith.constant 1 : index
    %c1_135 = arith.constant 1 : index
    %c0_136 = arith.constant 0 : index
    %114 = vector.load %arg1[%c0_133, %c1_134, %c1_135, %c0_136] : memref<1x4x7x28xbf16, #tpu.memory_space<vmem>>, vector<1x1x6x28xbf16>
    %115 = vector.shape_cast %114 : vector<1x1x6x28xbf16> to vector<6x28xbf16>
    %c2_137 = arith.constant 2 : index
    %c0_138 = arith.constant 0 : index
    %c0_139 = arith.constant 0 : index
    %116 = vector.load %arg2[%c2_137, %c0_138, %c0_139] : memref<5x28x512xbf16, #tpu.memory_space<vmem>>, vector<1x28x512xbf16>
    %117 = vector.shape_cast %116 : vector<1x28x512xbf16> to vector<28x512xbf16>
    %cst_140 = arith.constant dense<0.000000e+00> : vector<6x512xf32>
    %118 = tpu.matmul %115, %117, %cst_140 {dimension_numbers = #tpu.dot_dimension_numbers<[1], [0], [0], [1], [0, 0, 1, 1], [], []>} : vector<6x28xbf16>, vector<28x512xbf16>, vector<6x512xf32> -> vector<6x512xf32>
    %119 = arith.addf %113, %118 : vector<6x512xf32>
    %c0_141 = arith.constant 0 : index
    %c2_142 = arith.constant 2 : index
    %c1_143 = arith.constant 1 : index
    %c0_144 = arith.constant 0 : index
    %120 = vector.load %arg1[%c0_141, %c2_142, %c1_143, %c0_144] : memref<1x4x7x28xbf16, #tpu.memory_space<vmem>>, vector<1x1x6x28xbf16>
    %121 = vector.shape_cast %120 : vector<1x1x6x28xbf16> to vector<6x28xbf16>
    %c3_145 = arith.constant 3 : index
    %c0_146 = arith.constant 0 : index
    %c0_147 = arith.constant 0 : index
    %122 = vector.load %arg2[%c3_145, %c0_146, %c0_147] : memref<5x28x512xbf16, #tpu.memory_space<vmem>>, vector<1x28x512xbf16>
    %123 = vector.shape_cast %122 : vector<1x28x512xbf16> to vector<28x512xbf16>
    %cst_148 = arith.constant dense<0.000000e+00> : vector<6x512xf32>
    %124 = tpu.matmul %121, %123, %cst_148 {dimension_numbers = #tpu.dot_dimension_numbers<[1], [0], [0], [1], [0, 0, 1, 1], [], []>} : vector<6x28xbf16>, vector<28x512xbf16>, vector<6x512xf32> -> vector<6x512xf32>
    %125 = arith.addf %119, %124 : vector<6x512xf32>
    %c0_149 = arith.constant 0 : index
    %c3_150 = arith.constant 3 : index
    %c1_151 = arith.constant 1 : index
    %c0_152 = arith.constant 0 : index
    %126 = vector.load %arg1[%c0_149, %c3_150, %c1_151, %c0_152] : memref<1x4x7x28xbf16, #tpu.memory_space<vmem>>, vector<1x1x6x28xbf16>
    %127 = vector.shape_cast %126 : vector<1x1x6x28xbf16> to vector<6x28xbf16>
    %c4_153 = arith.constant 4 : index
    %c0_154 = arith.constant 0 : index
    %c0_155 = arith.constant 0 : index
    %128 = vector.load %arg2[%c4_153, %c0_154, %c0_155] : memref<5x28x512xbf16, #tpu.memory_space<vmem>>, vector<1x28x512xbf16>
    %129 = vector.shape_cast %128 : vector<1x28x512xbf16> to vector<28x512xbf16>
    %cst_156 = arith.constant dense<0.000000e+00> : vector<6x512xf32>
    %130 = tpu.matmul %127, %129, %cst_156 {dimension_numbers = #tpu.dot_dimension_numbers<[1], [0], [0], [1], [0, 0, 1, 1], [], []>} : vector<6x28xbf16>, vector<28x512xbf16>, vector<6x512xf32> -> vector<6x512xf32>
    %131 = arith.addf %125, %130 : vector<6x512xf32>
    %132 = vector.extract_strided_slice %131 {offsets = [0, 0], sizes = [6, 256], strides = [1, 1]} : vector<6x512xf32> to vector<6x256xf32>
    %133 = vector.extract_strided_slice %131 {offsets = [0, 256], sizes = [6, 256], strides = [1, 1]} : vector<6x512xf32> to vector<6x256xf32>
    %134 = arith.maximumf %132, %133 : vector<6x256xf32>
    %135 = arith.maximumf %102, %134 : vector<6x256xf32>
    %c0_157 = arith.constant 0 : index
    %c0_158 = arith.constant 0 : index
    %136 = vector.load %arg3[%c0_157, %c0_158] : memref<1x256xf32, #tpu.memory_space<vmem>>, vector<1x256xf32>
    %137 = vector.broadcast %136 : vector<1x256xf32> to vector<6x256xf32>
    %138 = arith.addf %135, %137 : vector<6x256xf32>
    %cst_159 = arith.constant 0.000000e+00 : f32
    %139 = vector.broadcast %cst_159 : f32 to vector<6x256xf32>
    %140 = arith.maximumf %138, %139 : vector<6x256xf32>
    %141 = arith.truncf %140 : vector<6x256xf32> to vector<6x256xbf16>
    %cst_160 = arith.constant 0.000000e+00 : bf16
    %142 = vector.broadcast %cst_160 : bf16 to vector<1x256xbf16>
    %c0_161 = arith.constant 0 : index
    %c0_162 = arith.constant 0 : index
    %143 = vector.load %arg17[%c0_161, %c0_162] : memref<8x256xbf16, #tpu.memory_space<vmem>>, vector<1x256xbf16>
    tpu.vector_store %arg17[%c0_161, %c0_162], %142 {strides = array<i32>} : memref<8x256xbf16, #tpu.memory_space<vmem>>, vector<1x256xbf16>,
    %c7 = arith.constant 7 : index
    %c0_163 = arith.constant 0 : index
    %144 = vector.load %arg17[%c7, %c0_163] : memref<8x256xbf16, #tpu.memory_space<vmem>>, vector<1x256xbf16>
    tpu.vector_store %arg17[%c7, %c0_163], %142 {strides = array<i32>} : memref<8x256xbf16, #tpu.memory_space<vmem>>, vector<1x256xbf16>,
    %c0_164 = arith.constant 0 : index
    %c0_165 = arith.constant 0 : index
    %145 = vector.load %arg18[%c0_164, %c0_165] : memref<8x256xbf16, #tpu.memory_space<vmem>>, vector<1x256xbf16>
    tpu.vector_store %arg18[%c0_164, %c0_165], %142 {strides = array<i32>} : memref<8x256xbf16, #tpu.memory_space<vmem>>, vector<1x256xbf16>,
    %c7_166 = arith.constant 7 : index
    %c0_167 = arith.constant 0 : index
    %146 = vector.load %arg18[%c7_166, %c0_167] : memref<8x256xbf16, #tpu.memory_space<vmem>>, vector<1x256xbf16>
    tpu.vector_store %arg18[%c7_166, %c0_167], %142 {strides = array<i32>} : memref<8x256xbf16, #tpu.memory_space<vmem>>, vector<1x256xbf16>,
    %c1_168 = arith.constant 1 : index
    %c0_169 = arith.constant 0 : index
    %147 = vector.load %arg17[%c1_168, %c0_169] : memref<8x256xbf16, #tpu.memory_space<vmem>>, vector<6x256xbf16>
    tpu.vector_store %arg17[%c1_168, %c0_169], %70 {strides = array<i32>} : memref<8x256xbf16, #tpu.memory_space<vmem>>, vector<6x256xbf16>,
    %c1_170 = arith.constant 1 : index
    %c0_171 = arith.constant 0 : index
    %148 = vector.load %arg18[%c1_170, %c0_171] : memref<8x256xbf16, #tpu.memory_space<vmem>>, vector<6x256xbf16>
    tpu.vector_store %arg18[%c1_170, %c0_171], %141 {strides = array<i32>} : memref<8x256xbf16, #tpu.memory_space<vmem>>, vector<6x256xbf16>,
    %c0_172 = arith.constant 0 : index
    %c0_173 = arith.constant 0 : index
    %149 = vector.load %arg18[%c0_172, %c0_173] : memref<8x256xbf16, #tpu.memory_space<vmem>>, vector<6x256xbf16>
    %c0_174 = arith.constant 0 : index
    %c0_175 = arith.constant 0 : index
    %c0_176 = arith.constant 0 : index
    %150 = vector.load %arg4[%c0_174, %c0_175, %c0_176] : memref<3x256x256xbf16, #tpu.memory_space<vmem>>, vector<1x256x256xbf16>
    %151 = vector.shape_cast %150 : vector<1x256x256xbf16> to vector<256x256xbf16>
    %cst_177 = arith.constant dense<0.000000e+00> : vector<6x256xf32>
    %152 = tpu.matmul %149, %151, %cst_177 {dimension_numbers = #tpu.dot_dimension_numbers<[1], [0], [0], [1], [0, 0, 1, 1], [], []>} : vector<6x256xbf16>, vector<256x256xbf16>, vector<6x256xf32> -> vector<6x256xf32>
    %c1_178 = arith.constant 1 : index
    %c0_179 = arith.constant 0 : index
    %153 = vector.load %arg17[%c1_178, %c0_179] : memref<8x256xbf16, #tpu.memory_space<vmem>>, vector<6x256xbf16>
    %c1_180 = arith.constant 1 : index
    %c0_181 = arith.constant 0 : index
    %c0_182 = arith.constant 0 : index
    %154 = vector.load %arg4[%c1_180, %c0_181, %c0_182] : memref<3x256x256xbf16, #tpu.memory_space<vmem>>, vector<1x256x256xbf16>
    %155 = vector.shape_cast %154 : vector<1x256x256xbf16> to vector<256x256xbf16>
    %cst_183 = arith.constant dense<0.000000e+00> : vector<6x256xf32>
    %156 = tpu.matmul %153, %155, %cst_183 {dimension_numbers = #tpu.dot_dimension_numbers<[1], [0], [0], [1], [0, 0, 1, 1], [], []>} : vector<6x256xbf16>, vector<256x256xbf16>, vector<6x256xf32> -> vector<6x256xf32>
    %157 = arith.addf %152, %156 : vector<6x256xf32>
    %c1_184 = arith.constant 1 : index
    %c0_185 = arith.constant 0 : index
    %158 = vector.load %arg18[%c1_184, %c0_185] : memref<8x256xbf16, #tpu.memory_space<vmem>>, vector<6x256xbf16>
    %c2_186 = arith.constant 2 : index
    %c0_187 = arith.constant 0 : index
    %c0_188 = arith.constant 0 : index
    %159 = vector.load %arg4[%c2_186, %c0_187, %c0_188] : memref<3x256x256xbf16, #tpu.memory_space<vmem>>, vector<1x256x256xbf16>
    %160 = vector.shape_cast %159 : vector<1x256x256xbf16> to vector<256x256xbf16>
    %cst_189 = arith.constant dense<0.000000e+00> : vector<6x256xf32>
    %161 = tpu.matmul %158, %160, %cst_189 {dimension_numbers = #tpu.dot_dimension_numbers<[1], [0], [0], [1], [0, 0, 1, 1], [], []>} : vector<6x256xbf16>, vector<256x256xbf16>, vector<6x256xf32> -> vector<6x256xf32>
    %162 = arith.addf %157, %161 : vector<6x256xf32>
    %c0_190 = arith.constant 0 : index
    %c0_191 = arith.constant 0 : index
    %163 = vector.load %arg5[%c0_190, %c0_191] : memref<1x256xf32, #tpu.memory_space<vmem>>, vector<1x256xf32>
    %164 = vector.broadcast %163 : vector<1x256xf32> to vector<6x256xf32>
    %165 = arith.addf %162, %164 : vector<6x256xf32>
    %c1_192 = arith.constant 1 : index
    %c0_193 = arith.constant 0 : index
    %166 = vector.load %arg17[%c1_192, %c0_193] : memref<8x256xbf16, #tpu.memory_space<vmem>>, vector<6x256xbf16>
    %c0_194 = arith.constant 0 : index
    %c0_195 = arith.constant 0 : index
    %c0_196 = arith.constant 0 : index
    %167 = vector.load %arg4[%c0_194, %c0_195, %c0_196] : memref<3x256x256xbf16, #tpu.memory_space<vmem>>, vector<1x256x256xbf16>
    %168 = vector.shape_cast %167 : vector<1x256x256xbf16> to vector<256x256xbf16>
    %cst_197 = arith.constant dense<0.000000e+00> : vector<6x256xf32>
    %169 = tpu.matmul %166, %168, %cst_197 {dimension_numbers = #tpu.dot_dimension_numbers<[1], [0], [0], [1], [0, 0, 1, 1], [], []>} : vector<6x256xbf16>, vector<256x256xbf16>, vector<6x256xf32> -> vector<6x256xf32>
    %c1_198 = arith.constant 1 : index
    %c0_199 = arith.constant 0 : index
    %170 = vector.load %arg18[%c1_198, %c0_199] : memref<8x256xbf16, #tpu.memory_space<vmem>>, vector<6x256xbf16>
    %c1_200 = arith.constant 1 : index
    %c0_201 = arith.constant 0 : index
    %c0_202 = arith.constant 0 : index
    %171 = vector.load %arg4[%c1_200, %c0_201, %c0_202] : memref<3x256x256xbf16, #tpu.memory_space<vmem>>, vector<1x256x256xbf16>
    %172 = vector.shape_cast %171 : vector<1x256x256xbf16> to vector<256x256xbf16>
    %cst_203 = arith.constant dense<0.000000e+00> : vector<6x256xf32>
    %173 = tpu.matmul %170, %172, %cst_203 {dimension_numbers = #tpu.dot_dimension_numbers<[1], [0], [0], [1], [0, 0, 1, 1], [], []>} : vector<6x256xbf16>, vector<256x256xbf16>, vector<6x256xf32> -> vector<6x256xf32>
    %174 = arith.addf %169, %173 : vector<6x256xf32>
    %c2_204 = arith.constant 2 : index
    %c0_205 = arith.constant 0 : index
    %175 = vector.load %arg17[%c2_204, %c0_205] : memref<8x256xbf16, #tpu.memory_space<vmem>>, vector<6x256xbf16>
    %c2_206 = arith.constant 2 : index
    %c0_207 = arith.constant 0 : index
    %c0_208 = arith.constant 0 : index
    %176 = vector.load %arg4[%c2_206, %c0_207, %c0_208] : memref<3x256x256xbf16, #tpu.memory_space<vmem>>, vector<1x256x256xbf16>
    %177 = vector.shape_cast %176 : vector<1x256x256xbf16> to vector<256x256xbf16>
    %cst_209 = arith.constant dense<0.000000e+00> : vector<6x256xf32>
    %178 = tpu.matmul %175, %177, %cst_209 {dimension_numbers = #tpu.dot_dimension_numbers<[1], [0], [0], [1], [0, 0, 1, 1], [], []>} : vector<6x256xbf16>, vector<256x256xbf16>, vector<6x256xf32> -> vector<6x256xf32>
    %179 = arith.addf %174, %178 : vector<6x256xf32>
    %c0_210 = arith.constant 0 : index
    %c0_211 = arith.constant 0 : index
    %180 = vector.load %arg5[%c0_210, %c0_211] : memref<1x256xf32, #tpu.memory_space<vmem>>, vector<1x256xf32>
    %181 = vector.broadcast %180 : vector<1x256xf32> to vector<6x256xf32>
    %182 = arith.addf %179, %181 : vector<6x256xf32>
    %cst_212 = arith.constant 0.000000e+00 : f32
    %183 = vector.broadcast %cst_212 : f32 to vector<6x256xf32>
    %184 = arith.maximumf %165, %183 : vector<6x256xf32>
    %185 = arith.truncf %184 : vector<6x256xf32> to vector<6x256xbf16>
    %c1_213 = arith.constant 1 : index
    %c0_214 = arith.constant 0 : index
    %186 = vector.load %arg17[%c1_213, %c0_214] : memref<8x256xbf16, #tpu.memory_space<vmem>>, vector<6x256xbf16>
    tpu.vector_store %arg17[%c1_213, %c0_214], %185 {strides = array<i32>} : memref<8x256xbf16, #tpu.memory_space<vmem>>, vector<6x256xbf16>,
    %cst_215 = arith.constant 0.000000e+00 : f32
    %187 = vector.broadcast %cst_215 : f32 to vector<6x256xf32>
    %188 = arith.maximumf %182, %187 : vector<6x256xf32>
    %189 = arith.truncf %188 : vector<6x256xf32> to vector<6x256xbf16>
    %c1_216 = arith.constant 1 : index
    %c0_217 = arith.constant 0 : index
    %190 = vector.load %arg18[%c1_216, %c0_217] : memref<8x256xbf16, #tpu.memory_space<vmem>>, vector<6x256xbf16>
    tpu.vector_store %arg18[%c1_216, %c0_217], %189 {strides = array<i32>} : memref<8x256xbf16, #tpu.memory_space<vmem>>, vector<6x256xbf16>,
    %c0_218 = arith.constant 0 : index
    %c0_219 = arith.constant 0 : index
    %191 = vector.load %arg18[%c0_218, %c0_219] : memref<8x256xbf16, #tpu.memory_space<vmem>>, vector<6x256xbf16>
    %c0_220 = arith.constant 0 : index
    %c0_221 = arith.constant 0 : index
    %c0_222 = arith.constant 0 : index
    %192 = vector.load %arg6[%c0_220, %c0_221, %c0_222] : memref<3x256x256xbf16, #tpu.memory_space<vmem>>, vector<1x256x256xbf16>
    %193 = vector.shape_cast %192 : vector<1x256x256xbf16> to vector<256x256xbf16>
    %cst_223 = arith.constant dense<0.000000e+00> : vector<6x256xf32>
    %194 = tpu.matmul %191, %193, %cst_223 {dimension_numbers = #tpu.dot_dimension_numbers<[1], [0], [0], [1], [0, 0, 1, 1], [], []>} : vector<6x256xbf16>, vector<256x256xbf16>, vector<6x256xf32> -> vector<6x256xf32>
    %c1_224 = arith.constant 1 : index
    %c0_225 = arith.constant 0 : index
    %195 = vector.load %arg17[%c1_224, %c0_225] : memref<8x256xbf16, #tpu.memory_space<vmem>>, vector<6x256xbf16>
    %c1_226 = arith.constant 1 : index
    %c0_227 = arith.constant 0 : index
    %c0_228 = arith.constant 0 : index
    %196 = vector.load %arg6[%c1_226, %c0_227, %c0_228] : memref<3x256x256xbf16, #tpu.memory_space<vmem>>, vector<1x256x256xbf16>
    %197 = vector.shape_cast %196 : vector<1x256x256xbf16> to vector<256x256xbf16>
    %cst_229 = arith.constant dense<0.000000e+00> : vector<6x256xf32>
    %198 = tpu.matmul %195, %197, %cst_229 {dimension_numbers = #tpu.dot_dimension_numbers<[1], [0], [0], [1], [0, 0, 1, 1], [], []>} : vector<6x256xbf16>, vector<256x256xbf16>, vector<6x256xf32> -> vector<6x256xf32>
    %199 = arith.addf %194, %198 : vector<6x256xf32>
    %c1_230 = arith.constant 1 : index
    %c0_231 = arith.constant 0 : index
    %200 = vector.load %arg18[%c1_230, %c0_231] : memref<8x256xbf16, #tpu.memory_space<vmem>>, vector<6x256xbf16>
    %c2_232 = arith.constant 2 : index
    %c0_233 = arith.constant 0 : index
    %c0_234 = arith.constant 0 : index
    %201 = vector.load %arg6[%c2_232, %c0_233, %c0_234] : memref<3x256x256xbf16, #tpu.memory_space<vmem>>, vector<1x256x256xbf16>
    %202 = vector.shape_cast %201 : vector<1x256x256xbf16> to vector<256x256xbf16>
    %cst_235 = arith.constant dense<0.000000e+00> : vector<6x256xf32>
    %203 = tpu.matmul %200, %202, %cst_235 {dimension_numbers = #tpu.dot_dimension_numbers<[1], [0], [0], [1], [0, 0, 1, 1], [], []>} : vector<6x256xbf16>, vector<256x256xbf16>, vector<6x256xf32> -> vector<6x256xf32>
    %204 = arith.addf %199, %203 : vector<6x256xf32>
    %c0_236 = arith.constant 0 : index
    %c0_237 = arith.constant 0 : index
    %205 = vector.load %arg7[%c0_236, %c0_237] : memref<1x256xf32, #tpu.memory_space<vmem>>, vector<1x256xf32>
    %206 = vector.broadcast %205 : vector<1x256xf32> to vector<6x256xf32>
    %207 = arith.addf %204, %206 : vector<6x256xf32>
    %c1_238 = arith.constant 1 : index
    %c0_239 = arith.constant 0 : index
    %208 = vector.load %arg17[%c1_238, %c0_239] : memref<8x256xbf16, #tpu.memory_space<vmem>>, vector<6x256xbf16>
    %c0_240 = arith.constant 0 : index
    %c0_241 = arith.constant 0 : index
    %c0_242 = arith.constant 0 : index
    %209 = vector.load %arg6[%c0_240, %c0_241, %c0_242] : memref<3x256x256xbf16, #tpu.memory_space<vmem>>, vector<1x256x256xbf16>
    %210 = vector.shape_cast %209 : vector<1x256x256xbf16> to vector<256x256xbf16>
    %cst_243 = arith.constant dense<0.000000e+00> : vector<6x256xf32>
    %211 = tpu.matmul %208, %210, %cst_243 {dimension_numbers = #tpu.dot_dimension_numbers<[1], [0], [0], [1], [0, 0, 1, 1], [], []>} : vector<6x256xbf16>, vector<256x256xbf16>, vector<6x256xf32> -> vector<6x256xf32>
    %c1_244 = arith.constant 1 : index
    %c0_245 = arith.constant 0 : index
    %212 = vector.load %arg18[%c1_244, %c0_245] : memref<8x256xbf16, #tpu.memory_space<vmem>>, vector<6x256xbf16>
    %c1_246 = arith.constant 1 : index
    %c0_247 = arith.constant 0 : index
    %c0_248 = arith.constant 0 : index
    %213 = vector.load %arg6[%c1_246, %c0_247, %c0_248] : memref<3x256x256xbf16, #tpu.memory_space<vmem>>, vector<1x256x256xbf16>
    %214 = vector.shape_cast %213 : vector<1x256x256xbf16> to vector<256x256xbf16>
    %cst_249 = arith.constant dense<0.000000e+00> : vector<6x256xf32>
    %215 = tpu.matmul %212, %214, %cst_249 {dimension_numbers = #tpu.dot_dimension_numbers<[1], [0], [0], [1], [0, 0, 1, 1], [], []>} : vector<6x256xbf16>, vector<256x256xbf16>, vector<6x256xf32> -> vector<6x256xf32>
    %216 = arith.addf %211, %215 : vector<6x256xf32>
    %c2_250 = arith.constant 2 : index
    %c0_251 = arith.constant 0 : index
    %217 = vector.load %arg17[%c2_250, %c0_251] : memref<8x256xbf16, #tpu.memory_space<vmem>>, vector<6x256xbf16>
    %c2_252 = arith.constant 2 : index
    %c0_253 = arith.constant 0 : index
    %c0_254 = arith.constant 0 : index
    %218 = vector.load %arg6[%c2_252, %c0_253, %c0_254] : memref<3x256x256xbf16, #tpu.memory_space<vmem>>, vector<1x256x256xbf16>
    %219 = vector.shape_cast %218 : vector<1x256x256xbf16> to vector<256x256xbf16>
    %cst_255 = arith.constant dense<0.000000e+00> : vector<6x256xf32>
    %220 = tpu.matmul %217, %219, %cst_255 {dimension_numbers = #tpu.dot_dimension_numbers<[1], [0], [0], [1], [0, 0, 1, 1], [], []>} : vector<6x256xbf16>, vector<256x256xbf16>, vector<6x256xf32> -> vector<6x256xf32>
    %221 = arith.addf %216, %220 : vector<6x256xf32>
    %c0_256 = arith.constant 0 : index
    %c0_257 = arith.constant 0 : index
    %222 = vector.load %arg7[%c0_256, %c0_257] : memref<1x256xf32, #tpu.memory_space<vmem>>, vector<1x256xf32>
    %223 = vector.broadcast %222 : vector<1x256xf32> to vector<6x256xf32>
    %224 = arith.addf %221, %223 : vector<6x256xf32>
    %225 = arith.extf %70 : vector<6x256xbf16> to vector<6x256xf32>
    %226 = arith.addf %207, %225 : vector<6x256xf32>
    %cst_258 = arith.constant 0.000000e+00 : f32
    %227 = vector.broadcast %cst_258 : f32 to vector<6x256xf32>
    %228 = arith.maximumf %226, %227 : vector<6x256xf32>
    %229 = arith.truncf %228 : vector<6x256xf32> to vector<6x256xbf16>
    %230 = arith.extf %141 : vector<6x256xbf16> to vector<6x256xf32>
    %231 = arith.addf %224, %230 : vector<6x256xf32>
    %cst_259 = arith.constant 0.000000e+00 : f32
    %232 = vector.broadcast %cst_259 : f32 to vector<6x256xf32>
    %233 = arith.maximumf %231, %232 : vector<6x256xf32>
    %234 = arith.truncf %233 : vector<6x256xf32> to vector<6x256xbf16>
    %235 = vector.extract_strided_slice %229 {offsets = [0, 0], sizes = [4, 256], strides = [1, 1]} : vector<6x256xbf16> to vector<4x256xbf16>
    %c0_260 = arith.constant 0 : index
    %c0_261 = arith.constant 0 : index
    %c0_262 = arith.constant 0 : index
    %236 = vector.load %arg8[%c0_260, %c0_261, %c0_262] : memref<5x256x256xbf16, #tpu.memory_space<vmem>>, vector<1x256x256xbf16>
    %237 = vector.shape_cast %236 : vector<1x256x256xbf16> to vector<256x256xbf16>
    %cst_263 = arith.constant dense<0.000000e+00> : vector<4x256xf32>
    %238 = tpu.matmul %235, %237, %cst_263 {dimension_numbers = #tpu.dot_dimension_numbers<[1], [0], [0], [1], [0, 0, 1, 1], [], []>} : vector<4x256xbf16>, vector<256x256xbf16>, vector<4x256xf32> -> vector<4x256xf32>
    %239 = vector.extract_strided_slice %234 {offsets = [0, 0], sizes = [4, 256], strides = [1, 1]} : vector<6x256xbf16> to vector<4x256xbf16>
    %c1_264 = arith.constant 1 : index
    %c0_265 = arith.constant 0 : index
    %c0_266 = arith.constant 0 : index
    %240 = vector.load %arg8[%c1_264, %c0_265, %c0_266] : memref<5x256x256xbf16, #tpu.memory_space<vmem>>, vector<1x256x256xbf16>
    %241 = vector.shape_cast %240 : vector<1x256x256xbf16> to vector<256x256xbf16>
    %cst_267 = arith.constant dense<0.000000e+00> : vector<4x256xf32>
    %242 = tpu.matmul %239, %241, %cst_267 {dimension_numbers = #tpu.dot_dimension_numbers<[1], [0], [0], [1], [0, 0, 1, 1], [], []>} : vector<4x256xbf16>, vector<256x256xbf16>, vector<4x256xf32> -> vector<4x256xf32>
    %243 = arith.addf %238, %242 : vector<4x256xf32>
    %244 = vector.extract_strided_slice %229 {offsets = [1, 0], sizes = [4, 256], strides = [1, 1]} : vector<6x256xbf16> to vector<4x256xbf16>
    %c2_268 = arith.constant 2 : index
    %c0_269 = arith.constant 0 : index
    %c0_270 = arith.constant 0 : index
    %245 = vector.load %arg8[%c2_268, %c0_269, %c0_270] : memref<5x256x256xbf16, #tpu.memory_space<vmem>>, vector<1x256x256xbf16>
    %246 = vector.shape_cast %245 : vector<1x256x256xbf16> to vector<256x256xbf16>
    %cst_271 = arith.constant dense<0.000000e+00> : vector<4x256xf32>
    %247 = tpu.matmul %244, %246, %cst_271 {dimension_numbers = #tpu.dot_dimension_numbers<[1], [0], [0], [1], [0, 0, 1, 1], [], []>} : vector<4x256xbf16>, vector<256x256xbf16>, vector<4x256xf32> -> vector<4x256xf32>
    %248 = arith.addf %243, %247 : vector<4x256xf32>
    %249 = vector.extract_strided_slice %234 {offsets = [1, 0], sizes = [4, 256], strides = [1, 1]} : vector<6x256xbf16> to vector<4x256xbf16>
    %c3_272 = arith.constant 3 : index
    %c0_273 = arith.constant 0 : index
    %c0_274 = arith.constant 0 : index
    %250 = vector.load %arg8[%c3_272, %c0_273, %c0_274] : memref<5x256x256xbf16, #tpu.memory_space<vmem>>, vector<1x256x256xbf16>
    %251 = vector.shape_cast %250 : vector<1x256x256xbf16> to vector<256x256xbf16>
    %cst_275 = arith.constant dense<0.000000e+00> : vector<4x256xf32>
    %252 = tpu.matmul %249, %251, %cst_275 {dimension_numbers = #tpu.dot_dimension_numbers<[1], [0], [0], [1], [0, 0, 1, 1], [], []>} : vector<4x256xbf16>, vector<256x256xbf16>, vector<4x256xf32> -> vector<4x256xf32>
    %253 = arith.addf %248, %252 : vector<4x256xf32>
    %254 = vector.extract_strided_slice %229 {offsets = [2, 0], sizes = [4, 256], strides = [1, 1]} : vector<6x256xbf16> to vector<4x256xbf16>
    %c4_276 = arith.constant 4 : index
    %c0_277 = arith.constant 0 : index
    %c0_278 = arith.constant 0 : index
    %255 = vector.load %arg8[%c4_276, %c0_277, %c0_278] : memref<5x256x256xbf16, #tpu.memory_space<vmem>>, vector<1x256x256xbf16>
    %256 = vector.shape_cast %255 : vector<1x256x256xbf16> to vector<256x256xbf16>
    %cst_279 = arith.constant dense<0.000000e+00> : vector<4x256xf32>
    %257 = tpu.matmul %254, %256, %cst_279 {dimension_numbers = #tpu.dot_dimension_numbers<[1], [0], [0], [1], [0, 0, 1, 1], [], []>} : vector<4x256xbf16>, vector<256x256xbf16>, vector<4x256xf32> -> vector<4x256xf32>
    %258 = arith.addf %253, %257 : vector<4x256xf32>
    %259 = vector.extract_strided_slice %258 {offsets = [0, 0], sizes = [4, 128], strides = [1, 1]} : vector<4x256xf32> to vector<4x128xf32>
    %260 = vector.extract_strided_slice %258 {offsets = [0, 128], sizes = [4, 128], strides = [1, 1]} : vector<4x256xf32> to vector<4x128xf32>
    %261 = arith.maximumf %259, %260 : vector<4x128xf32>
    %262 = vector.extract_strided_slice %234 {offsets = [0, 0], sizes = [4, 256], strides = [1, 1]} : vector<6x256xbf16> to vector<4x256xbf16>
    %c0_280 = arith.constant 0 : index
    %c0_281 = arith.constant 0 : index
    %c0_282 = arith.constant 0 : index
    %263 = vector.load %arg8[%c0_280, %c0_281, %c0_282] : memref<5x256x256xbf16, #tpu.memory_space<vmem>>, vector<1x256x256xbf16>
    %264 = vector.shape_cast %263 : vector<1x256x256xbf16> to vector<256x256xbf16>
    %cst_283 = arith.constant dense<0.000000e+00> : vector<4x256xf32>
    %265 = tpu.matmul %262, %264, %cst_283 {dimension_numbers = #tpu.dot_dimension_numbers<[1], [0], [0], [1], [0, 0, 1, 1], [], []>} : vector<4x256xbf16>, vector<256x256xbf16>, vector<4x256xf32> -> vector<4x256xf32>
    %266 = vector.extract_strided_slice %229 {offsets = [1, 0], sizes = [4, 256], strides = [1, 1]} : vector<6x256xbf16> to vector<4x256xbf16>
    %c1_284 = arith.constant 1 : index
    %c0_285 = arith.constant 0 : index
    %c0_286 = arith.constant 0 : index
    %267 = vector.load %arg8[%c1_284, %c0_285, %c0_286] : memref<5x256x256xbf16, #tpu.memory_space<vmem>>, vector<1x256x256xbf16>
    %268 = vector.shape_cast %267 : vector<1x256x256xbf16> to vector<256x256xbf16>
    %cst_287 = arith.constant dense<0.000000e+00> : vector<4x256xf32>
    %269 = tpu.matmul %266, %268, %cst_287 {dimension_numbers = #tpu.dot_dimension_numbers<[1], [0], [0], [1], [0, 0, 1, 1], [], []>} : vector<4x256xbf16>, vector<256x256xbf16>, vector<4x256xf32> -> vector<4x256xf32>
    %270 = arith.addf %265, %269 : vector<4x256xf32>
    %271 = vector.extract_strided_slice %234 {offsets = [1, 0], sizes = [4, 256], strides = [1, 1]} : vector<6x256xbf16> to vector<4x256xbf16>
    %c2_288 = arith.constant 2 : index
    %c0_289 = arith.constant 0 : index
    %c0_290 = arith.constant 0 : index
    %272 = vector.load %arg8[%c2_288, %c0_289, %c0_290] : memref<5x256x256xbf16, #tpu.memory_space<vmem>>, vector<1x256x256xbf16>
    %273 = vector.shape_cast %272 : vector<1x256x256xbf16> to vector<256x256xbf16>
    %cst_291 = arith.constant dense<0.000000e+00> : vector<4x256xf32>
    %274 = tpu.matmul %271, %273, %cst_291 {dimension_numbers = #tpu.dot_dimension_numbers<[1], [0], [0], [1], [0, 0, 1, 1], [], []>} : vector<4x256xbf16>, vector<256x256xbf16>, vector<4x256xf32> -> vector<4x256xf32>
    %275 = arith.addf %270, %274 : vector<4x256xf32>
    %276 = vector.extract_strided_slice %229 {offsets = [2, 0], sizes = [4, 256], strides = [1, 1]} : vector<6x256xbf16> to vector<4x256xbf16>
    %c3_292 = arith.constant 3 : index
    %c0_293 = arith.constant 0 : index
    %c0_294 = arith.constant 0 : index
    %277 = vector.load %arg8[%c3_292, %c0_293, %c0_294] : memref<5x256x256xbf16, #tpu.memory_space<vmem>>, vector<1x256x256xbf16>
    %278 = vector.shape_cast %277 : vector<1x256x256xbf16> to vector<256x256xbf16>
    %cst_295 = arith.constant dense<0.000000e+00> : vector<4x256xf32>
    %279 = tpu.matmul %276, %278, %cst_295 {dimension_numbers = #tpu.dot_dimension_numbers<[1], [0], [0], [1], [0, 0, 1, 1], [], []>} : vector<4x256xbf16>, vector<256x256xbf16>, vector<4x256xf32> -> vector<4x256xf32>
    %280 = arith.addf %275, %279 : vector<4x256xf32>
    %281 = vector.extract_strided_slice %234 {offsets = [2, 0], sizes = [4, 256], strides = [1, 1]} : vector<6x256xbf16> to vector<4x256xbf16>
    %c4_296 = arith.constant 4 : index
    %c0_297 = arith.constant 0 : index
    %c0_298 = arith.constant 0 : index
    %282 = vector.load %arg8[%c4_296, %c0_297, %c0_298] : memref<5x256x256xbf16, #tpu.memory_space<vmem>>, vector<1x256x256xbf16>
    %283 = vector.shape_cast %282 : vector<1x256x256xbf16> to vector<256x256xbf16>
    %cst_299 = arith.constant dense<0.000000e+00> : vector<4x256xf32>
    %284 = tpu.matmul %281, %283, %cst_299 {dimension_numbers = #tpu.dot_dimension_numbers<[1], [0], [0], [1], [0, 0, 1, 1], [], []>} : vector<4x256xbf16>, vector<256x256xbf16>, vector<4x256xf32> -> vector<4x256xf32>
    %285 = arith.addf %280, %284 : vector<4x256xf32>
    %286 = vector.extract_strided_slice %285 {offsets = [0, 0], sizes = [4, 128], strides = [1, 1]} : vector<4x256xf32> to vector<4x128xf32>
    %287 = vector.extract_strided_slice %285 {offsets = [0, 128], sizes = [4, 128], strides = [1, 1]} : vector<4x256xf32> to vector<4x128xf32>
    %288 = arith.maximumf %286, %287 : vector<4x128xf32>
    %289 = arith.maximumf %261, %288 : vector<4x128xf32>
    %c0_300 = arith.constant 0 : index
    %c0_301 = arith.constant 0 : index
    %290 = vector.load %arg9[%c0_300, %c0_301] : memref<1x128xf32, #tpu.memory_space<vmem>>, vector<1x128xf32>
    %291 = vector.broadcast %290 : vector<1x128xf32> to vector<4x128xf32>
    %292 = arith.addf %289, %291 : vector<4x128xf32>
    %cst_302 = arith.constant 0.000000e+00 : f32
    %293 = vector.broadcast %cst_302 : f32 to vector<4x128xf32>
    %294 = arith.maximumf %292, %293 : vector<4x128xf32>
    %295 = arith.truncf %294 : vector<4x128xf32> to vector<4x128xbf16>
    %cst_303 = arith.constant 0.000000e+00 : bf16
    %296 = vector.broadcast %cst_303 : bf16 to vector<1x128xbf16>
    %c0_304 = arith.constant 0 : index
    %c0_305 = arith.constant 0 : index
    %297 = vector.load %arg19[%c0_304, %c0_305] : memref<6x128xbf16, #tpu.memory_space<vmem>>, vector<1x128xbf16>
    tpu.vector_store %arg19[%c0_304, %c0_305], %296 {strides = array<i32>} : memref<6x128xbf16, #tpu.memory_space<vmem>>, vector<1x128xbf16>,
    %c5 = arith.constant 5 : index
    %c0_306 = arith.constant 0 : index
    %298 = vector.load %arg19[%c5, %c0_306] : memref<6x128xbf16, #tpu.memory_space<vmem>>, vector<1x128xbf16>
    tpu.vector_store %arg19[%c5, %c0_306], %296 {strides = array<i32>} : memref<6x128xbf16, #tpu.memory_space<vmem>>, vector<1x128xbf16>,
    %c1_307 = arith.constant 1 : index
    %c0_308 = arith.constant 0 : index
    %299 = vector.load %arg19[%c1_307, %c0_308] : memref<6x128xbf16, #tpu.memory_space<vmem>>, vector<4x128xbf16>
    tpu.vector_store %arg19[%c1_307, %c0_308], %295 {strides = array<i32>} : memref<6x128xbf16, #tpu.memory_space<vmem>>, vector<4x128xbf16>,
    %c0_309 = arith.constant 0 : index
    %c0_310 = arith.constant 0 : index
    %300 = vector.load %arg19[%c0_309, %c0_310] : memref<6x128xbf16, #tpu.memory_space<vmem>>, vector<4x128xbf16>
    %c0_311 = arith.constant 0 : index
    %c0_312 = arith.constant 0 : index
    %c0_313 = arith.constant 0 : index
    %301 = vector.load %arg10[%c0_311, %c0_312, %c0_313] : memref<3x128x128xbf16, #tpu.memory_space<vmem>>, vector<1x128x128xbf16>
    %302 = vector.shape_cast %301 : vector<1x128x128xbf16> to vector<128x128xbf16>
    %cst_314 = arith.constant dense<0.000000e+00> : vector<4x128xf32>
    %303 = tpu.matmul %300, %302, %cst_314 {dimension_numbers = #tpu.dot_dimension_numbers<[1], [0], [0], [1], [0, 0, 1, 1], [], []>} : vector<4x128xbf16>, vector<128x128xbf16>, vector<4x128xf32> -> vector<4x128xf32>
    %c1_315 = arith.constant 1 : index
    %c0_316 = arith.constant 0 : index
    %304 = vector.load %arg19[%c1_315, %c0_316] : memref<6x128xbf16, #tpu.memory_space<vmem>>, vector<4x128xbf16>
    %c1_317 = arith.constant 1 : index
    %c0_318 = arith.constant 0 : index
    %c0_319 = arith.constant 0 : index
    %305 = vector.load %arg10[%c1_317, %c0_318, %c0_319] : memref<3x128x128xbf16, #tpu.memory_space<vmem>>, vector<1x128x128xbf16>
    %306 = vector.shape_cast %305 : vector<1x128x128xbf16> to vector<128x128xbf16>
    %cst_320 = arith.constant dense<0.000000e+00> : vector<4x128xf32>
    %307 = tpu.matmul %304, %306, %cst_320 {dimension_numbers = #tpu.dot_dimension_numbers<[1], [0], [0], [1], [0, 0, 1, 1], [], []>} : vector<4x128xbf16>, vector<128x128xbf16>, vector<4x128xf32> -> vector<4x128xf32>
    %308 = arith.addf %303, %307 : vector<4x128xf32>
    %c2_321 = arith.constant 2 : index
    %c0_322 = arith.constant 0 : index
    %309 = vector.load %arg19[%c2_321, %c0_322] : memref<6x128xbf16, #tpu.memory_space<vmem>>, vector<4x128xbf16>
    %c2_323 = arith.constant 2 : index
    %c0_324 = arith.constant 0 : index
    %c0_325 = arith.constant 0 : index
    %310 = vector.load %arg10[%c2_323, %c0_324, %c0_325] : memref<3x128x128xbf16, #tpu.memory_space<vmem>>, vector<1x128x128xbf16>
    %311 = vector.shape_cast %310 : vector<1x128x128xbf16> to vector<128x128xbf16>
    %cst_326 = arith.constant dense<0.000000e+00> : vector<4x128xf32>
    %312 = tpu.matmul %309, %311, %cst_326 {dimension_numbers = #tpu.dot_dimension_numbers<[1], [0], [0], [1], [0, 0, 1, 1], [], []>} : vector<4x128xbf16>, vector<128x128xbf16>, vector<4x128xf32> -> vector<4x128xf32>
    %313 = arith.addf %308, %312 : vector<4x128xf32>
    %c0_327 = arith.constant 0 : index
    %c0_328 = arith.constant 0 : index
    %314 = vector.load %arg11[%c0_327, %c0_328] : memref<1x128xf32, #tpu.memory_space<vmem>>, vector<1x128xf32>
    %315 = vector.broadcast %314 : vector<1x128xf32> to vector<4x128xf32>
    %316 = arith.addf %313, %315 : vector<4x128xf32>
    %cst_329 = arith.constant 0.000000e+00 : f32
    %317 = vector.broadcast %cst_329 : f32 to vector<4x128xf32>
    %318 = arith.maximumf %316, %317 : vector<4x128xf32>
    %319 = arith.truncf %318 : vector<4x128xf32> to vector<4x128xbf16>
    %c1_330 = arith.constant 1 : index
    %c0_331 = arith.constant 0 : index
    %320 = vector.load %arg19[%c1_330, %c0_331] : memref<6x128xbf16, #tpu.memory_space<vmem>>, vector<4x128xbf16>
    tpu.vector_store %arg19[%c1_330, %c0_331], %319 {strides = array<i32>} : memref<6x128xbf16, #tpu.memory_space<vmem>>, vector<4x128xbf16>,
    %c0_332 = arith.constant 0 : index
    %c0_333 = arith.constant 0 : index
    %321 = vector.load %arg19[%c0_332, %c0_333] : memref<6x128xbf16, #tpu.memory_space<vmem>>, vector<4x128xbf16>
    %c0_334 = arith.constant 0 : index
    %c0_335 = arith.constant 0 : index
    %c0_336 = arith.constant 0 : index
    %322 = vector.load %arg12[%c0_334, %c0_335, %c0_336] : memref<3x128x128xbf16, #tpu.memory_space<vmem>>, vector<1x128x128xbf16>
    %323 = vector.shape_cast %322 : vector<1x128x128xbf16> to vector<128x128xbf16>
    %cst_337 = arith.constant dense<0.000000e+00> : vector<4x128xf32>
    %324 = tpu.matmul %321, %323, %cst_337 {dimension_numbers = #tpu.dot_dimension_numbers<[1], [0], [0], [1], [0, 0, 1, 1], [], []>} : vector<4x128xbf16>, vector<128x128xbf16>, vector<4x128xf32> -> vector<4x128xf32>
    %c1_338 = arith.constant 1 : index
    %c0_339 = arith.constant 0 : index
    %325 = vector.load %arg19[%c1_338, %c0_339] : memref<6x128xbf16, #tpu.memory_space<vmem>>, vector<4x128xbf16>
    %c1_340 = arith.constant 1 : index
    %c0_341 = arith.constant 0 : index
    %c0_342 = arith.constant 0 : index
    %326 = vector.load %arg12[%c1_340, %c0_341, %c0_342] : memref<3x128x128xbf16, #tpu.memory_space<vmem>>, vector<1x128x128xbf16>
    %327 = vector.shape_cast %326 : vector<1x128x128xbf16> to vector<128x128xbf16>
    %cst_343 = arith.constant dense<0.000000e+00> : vector<4x128xf32>
    %328 = tpu.matmul %325, %327, %cst_343 {dimension_numbers = #tpu.dot_dimension_numbers<[1], [0], [0], [1], [0, 0, 1, 1], [], []>} : vector<4x128xbf16>, vector<128x128xbf16>, vector<4x128xf32> -> vector<4x128xf32>
    %329 = arith.addf %324, %328 : vector<4x128xf32>
    %c2_344 = arith.constant 2 : index
    %c0_345 = arith.constant 0 : index
    %330 = vector.load %arg19[%c2_344, %c0_345] : memref<6x128xbf16, #tpu.memory_space<vmem>>, vector<4x128xbf16>
    %c2_346 = arith.constant 2 : index
    %c0_347 = arith.constant 0 : index
    %c0_348 = arith.constant 0 : index
    %331 = vector.load %arg12[%c2_346, %c0_347, %c0_348] : memref<3x128x128xbf16, #tpu.memory_space<vmem>>, vector<1x128x128xbf16>
    %332 = vector.shape_cast %331 : vector<1x128x128xbf16> to vector<128x128xbf16>
    %cst_349 = arith.constant dense<0.000000e+00> : vector<4x128xf32>
    %333 = tpu.matmul %330, %332, %cst_349 {dimension_numbers = #tpu.dot_dimension_numbers<[1], [0], [0], [1], [0, 0, 1, 1], [], []>} : vector<4x128xbf16>, vector<128x128xbf16>, vector<4x128xf32> -> vector<4x128xf32>
    %334 = arith.addf %329, %333 : vector<4x128xf32>
    %c0_350 = arith.constant 0 : index
    %c0_351 = arith.constant 0 : index
    %335 = vector.load %arg13[%c0_350, %c0_351] : memref<1x128xf32, #tpu.memory_space<vmem>>, vector<1x128xf32>
    %336 = vector.broadcast %335 : vector<1x128xf32> to vector<4x128xf32>
    %337 = arith.addf %334, %336 : vector<4x128xf32>
    %338 = arith.extf %295 : vector<4x128xbf16> to vector<4x128xf32>
    %339 = arith.addf %337, %338 : vector<4x128xf32>
    %cst_352 = arith.constant 0.000000e+00 : f32
    %340 = vector.broadcast %cst_352 : f32 to vector<4x128xf32>
    %341 = arith.maximumf %339, %340 : vector<4x128xf32>
    %342 = arith.truncf %341 : vector<4x128xf32> to vector<4x128xbf16>
    %343 = vector.extract_strided_slice %342 {offsets = [0, 0], sizes = [1, 128], strides = [1, 1]} : vector<4x128xbf16> to vector<1x128xbf16>
    %c0_353 = arith.constant 0 : index
    %c0_354 = arith.constant 0 : index
    %c0_355 = arith.constant 0 : index
    %344 = vector.load %arg14[%c0_353, %c0_354, %c0_355] : memref<4x128x128xbf16, #tpu.memory_space<vmem>>, vector<1x128x128xbf16>
    %345 = vector.shape_cast %344 : vector<1x128x128xbf16> to vector<128x128xbf16>
    %cst_356 = arith.constant dense<0.000000e+00> : vector<1x128xf32>
    %346 = tpu.matmul %343, %345, %cst_356 {dimension_numbers = #tpu.dot_dimension_numbers<[1], [0], [0], [1], [0, 0, 1, 1], [], []>} : vector<1x128xbf16>, vector<128x128xbf16>, vector<1x128xf32> -> vector<1x128xf32>
    %347 = vector.extract_strided_slice %342 {offsets = [1, 0], sizes = [1, 128], strides = [1, 1]} : vector<4x128xbf16> to vector<1x128xbf16>
    %c1_357 = arith.constant 1 : index
    %c0_358 = arith.constant 0 : index
    %c0_359 = arith.constant 0 : index
    %348 = vector.load %arg14[%c1_357, %c0_358, %c0_359] : memref<4x128x128xbf16, #tpu.memory_space<vmem>>, vector<1x128x128xbf16>
    %349 = vector.shape_cast %348 : vector<1x128x128xbf16> to vector<128x128xbf16>
    %cst_360 = arith.constant dense<0.000000e+00> : vector<1x128xf32>
    %350 = tpu.matmul %347, %349, %cst_360 {dimension_numbers = #tpu.dot_dimension_numbers<[1], [0], [0], [1], [0, 0, 1, 1], [], []>} : vector<1x128xbf16>, vector<128x128xbf16>, vector<1x128xf32> -> vector<1x128xf32>
    %351 = arith.addf %346, %350 : vector<1x128xf32>
    %352 = vector.extract_strided_slice %342 {offsets = [2, 0], sizes = [1, 128], strides = [1, 1]} : vector<4x128xbf16> to vector<1x128xbf16>
    %c2_361 = arith.constant 2 : index
    %c0_362 = arith.constant 0 : index
    %c0_363 = arith.constant 0 : index
    %353 = vector.load %arg14[%c2_361, %c0_362, %c0_363] : memref<4x128x128xbf16, #tpu.memory_space<vmem>>, vector<1x128x128xbf16>
    %354 = vector.shape_cast %353 : vector<1x128x128xbf16> to vector<128x128xbf16>
    %cst_364 = arith.constant dense<0.000000e+00> : vector<1x128xf32>
    %355 = tpu.matmul %352, %354, %cst_364 {dimension_numbers = #tpu.dot_dimension_numbers<[1], [0], [0], [1], [0, 0, 1, 1], [], []>} : vector<1x128xbf16>, vector<128x128xbf16>, vector<1x128xf32> -> vector<1x128xf32>
    %356 = arith.addf %351, %355 : vector<1x128xf32>
    %357 = vector.extract_strided_slice %342 {offsets = [3, 0], sizes = [1, 128], strides = [1, 1]} : vector<4x128xbf16> to vector<1x128xbf16>
    %c3_365 = arith.constant 3 : index
    %c0_366 = arith.constant 0 : index
    %c0_367 = arith.constant 0 : index
    %358 = vector.load %arg14[%c3_365, %c0_366, %c0_367] : memref<4x128x128xbf16, #tpu.memory_space<vmem>>, vector<1x128x128xbf16>
    %359 = vector.shape_cast %358 : vector<1x128x128xbf16> to vector<128x128xbf16>
    %cst_368 = arith.constant dense<0.000000e+00> : vector<1x128xf32>
    %360 = tpu.matmul %357, %359, %cst_368 {dimension_numbers = #tpu.dot_dimension_numbers<[1], [0], [0], [1], [0, 0, 1, 1], [], []>} : vector<1x128xbf16>, vector<128x128xbf16>, vector<1x128xf32> -> vector<1x128xf32>
    %361 = arith.addf %356, %360 : vector<1x128xf32>
    %c0_369 = arith.constant 0 : index
    %c0_370 = arith.constant 0 : index
    %362 = vector.load %arg15[%c0_369, %c0_370] : memref<1x128xf32, #tpu.memory_space<vmem>>, vector<1x128xf32>
    %363 = arith.addf %361, %362 : vector<1x128xf32>
    %364 = tpu.iota {dimensions = array<i32: 1>} : vector<1x128xi32>
    %c10_i32 = arith.constant 10 : i32
    %365 = vector.broadcast %c10_i32 : i32 to vector<1x128xi32>
    %366 = arith.cmpi slt, %364, %365 : vector<1x128xi32>
    %cst_371 = arith.constant -1.000000e+30 : f32
    %367 = vector.broadcast %cst_371 : f32 to vector<1x128xf32>
    %368 = arith.select %366, %363, %367 : vector<1x128xi1>, vector<1x128xf32>
    %cst_372 = arith.constant dense<0xFF800000> : vector<1xf32>
    %369 = vector.multi_reduction <maximumf>, %368, %cst_372 [1] : vector<1x128xf32> to vector<1xf32>
    %370 = vector.shape_cast %369 : vector<1xf32> to vector<1x1xf32>
    %371 = vector.broadcast %370 : vector<1x1xf32> to vector<1x128xf32>
    %372 = arith.subf %368, %371 : vector<1x128xf32>
    %373 = math.exp %372 : vector<1x128xf32>
    %cst_373 = arith.constant dense<0.000000e+00> : vector<1xf32>
    %374 = vector.multi_reduction <add>, %373, %cst_373 [1] : vector<1x128xf32> to vector<1xf32>
    %375 = vector.shape_cast %374 : vector<1xf32> to vector<1x1xf32>
    %376 = math.log %375 : vector<1x1xf32>
    %377 = vector.broadcast %376 : vector<1x1xf32> to vector<1x128xf32>
    %378 = arith.subf %372, %377 : vector<1x128xf32>
    %379 = vector.shape_cast %378 : vector<1x128xf32> to vector<1x128xf32>
    %380 = vector.broadcast %379 : vector<1x128xf32> to vector<8x128xf32>
    %c0_374 = arith.constant 0 : index
    %c0_375 = arith.constant 0 : index
    %c0_376 = arith.constant 0 : index
    %381 = vector.load %arg16[%c0_374, %c0_375, %c0_376] : memref<1x8x128xf32, #tpu.memory_space<vmem>>, vector<1x8x128xf32>
    %382 = vector.shape_cast %381 : vector<1x8x128xf32> to vector<8x128xf32>
    %383 = vector.shape_cast %380 : vector<8x128xf32> to vector<1x8x128xf32>
    tpu.vector_store %arg16[%c0_374, %c0_375, %c0_376], %383 {strides = array<i32>} : memref<1x8x128xf32, #tpu.memory_space<vmem>>, vector<1x8x128xf32>,
    return
  }
  func.func @transform_0(%arg0: i32) -> (i32, i32, i32, i32) {
    %c0_i32 = arith.constant 0 : i32
    %c0_i32_0 = arith.constant 0 : i32
    %c0_i32_1 = arith.constant 0 : i32
    %c0_i32_2 = arith.constant 0 : i32
    return %arg0, %c0_i32, %c0_i32_0, %c0_i32_1 : i32, i32, i32, i32
  }
  func.func @transform_1(%arg0: i32) -> (i32, i32, i32) {
    %c0_i32 = arith.constant 0 : i32
    %c0_i32_0 = arith.constant 0 : i32
    %c0_i32_1 = arith.constant 0 : i32
    %c0_i32_2 = arith.constant 0 : i32
    return %c0_i32, %c0_i32_0, %c0_i32_1 : i32, i32, i32
  }
  func.func @transform_2(%arg0: i32) -> (i32, i32) {
    %c0_i32 = arith.constant 0 : i32
    %c0_i32_0 = arith.constant 0 : i32
    %c0_i32_1 = arith.constant 0 : i32
    return %c0_i32, %c0_i32_0 : i32, i32
  }
  func.func @transform_3(%arg0: i32) -> (i32, i32, i32) {
    %c0_i32 = arith.constant 0 : i32
    %c0_i32_0 = arith.constant 0 : i32
    %c0_i32_1 = arith.constant 0 : i32
    %c0_i32_2 = arith.constant 0 : i32
    return %c0_i32, %c0_i32_0, %c0_i32_1 : i32, i32, i32
  }
  func.func @transform_4(%arg0: i32) -> (i32, i32) {
    %c0_i32 = arith.constant 0 : i32
    %c0_i32_0 = arith.constant 0 : i32
    %c0_i32_1 = arith.constant 0 : i32
    return %c0_i32, %c0_i32_0 : i32, i32
  }
  func.func @transform_5(%arg0: i32) -> (i32, i32, i32) {
    %c0_i32 = arith.constant 0 : i32
    %c0_i32_0 = arith.constant 0 : i32
    %c0_i32_1 = arith.constant 0 : i32
    %c0_i32_2 = arith.constant 0 : i32
    return %c0_i32, %c0_i32_0, %c0_i32_1 : i32, i32, i32
  }
  func.func @transform_6(%arg0: i32) -> (i32, i32) {
    %c0_i32 = arith.constant 0 : i32
    %c0_i32_0 = arith.constant 0 : i32
    %c0_i32_1 = arith.constant 0 : i32
    return %c0_i32, %c0_i32_0 : i32, i32
  }
  func.func @transform_7(%arg0: i32) -> (i32, i32, i32) {
    %c0_i32 = arith.constant 0 : i32
    %c0_i32_0 = arith.constant 0 : i32
    %c0_i32_1 = arith.constant 0 : i32
    %c0_i32_2 = arith.constant 0 : i32
    return %c0_i32, %c0_i32_0, %c0_i32_1 : i32, i32, i32
  }
  func.func @transform_8(%arg0: i32) -> (i32, i32) {
    %c0_i32 = arith.constant 0 : i32
    %c0_i32_0 = arith.constant 0 : i32
    %c0_i32_1 = arith.constant 0 : i32
    return %c0_i32, %c0_i32_0 : i32, i32
  }
  func.func @transform_9(%arg0: i32) -> (i32, i32, i32) {
    %c0_i32 = arith.constant 0 : i32
    %c0_i32_0 = arith.constant 0 : i32
    %c0_i32_1 = arith.constant 0 : i32
    %c0_i32_2 = arith.constant 0 : i32
    return %c0_i32, %c0_i32_0, %c0_i32_1 : i32, i32, i32
  }
  func.func @transform_10(%arg0: i32) -> (i32, i32) {
    %c0_i32 = arith.constant 0 : i32
    %c0_i32_0 = arith.constant 0 : i32
    %c0_i32_1 = arith.constant 0 : i32
    return %c0_i32, %c0_i32_0 : i32, i32
  }
  func.func @transform_11(%arg0: i32) -> (i32, i32, i32) {
    %c0_i32 = arith.constant 0 : i32
    %c0_i32_0 = arith.constant 0 : i32
    %c0_i32_1 = arith.constant 0 : i32
    %c0_i32_2 = arith.constant 0 : i32
    return %c0_i32, %c0_i32_0, %c0_i32_1 : i32, i32, i32
  }
  func.func @transform_12(%arg0: i32) -> (i32, i32) {
    %c0_i32 = arith.constant 0 : i32
    %c0_i32_0 = arith.constant 0 : i32
    %c0_i32_1 = arith.constant 0 : i32
    return %c0_i32, %c0_i32_0 : i32, i32
  }
  func.func @transform_13(%arg0: i32) -> (i32, i32, i32) {
    %c0_i32 = arith.constant 0 : i32
    %c0_i32_0 = arith.constant 0 : i32
    %c0_i32_1 = arith.constant 0 : i32
    %c0_i32_2 = arith.constant 0 : i32
    return %c0_i32, %c0_i32_0, %c0_i32_1 : i32, i32, i32
  }
  func.func @transform_14(%arg0: i32) -> (i32, i32) {
    %c0_i32 = arith.constant 0 : i32
    %c0_i32_0 = arith.constant 0 : i32
    %c0_i32_1 = arith.constant 0 : i32
    return %c0_i32, %c0_i32_0 : i32, i32
  }
  func.func @transform_15(%arg0: i32) -> (i32, i32, i32) {
    %c0_i32 = arith.constant 0 : i32
    %c0_i32_0 = arith.constant 0 : i32
    %c0_i32_1 = arith.constant 0 : i32
    return %arg0, %c0_i32, %c0_i32_0 : i32, i32, i32
  }
}

</mosaic_0001>

<llo_original>
// kernel: fused_forward.1
$region0: #{fused_forward.1}
  #allocation0 [shape = 'u32[]', space=smem, size = 0x4, offset = 0x4, fixed_abs, tag = 'smem constant byte address 0x4 - core index']
  #allocation1 [shape = 'u32[144,128]{1,0:T(1,128)}', space=vmem, size = 0x12000, scoped, tag = 'internal scratch']
  #allocation2 [shape = 'bf16[8,256]{1,0:T(8,128)(2,1)}', space=vmem, size = 0x1000, scoped, tag = 'scratch operand']
  #allocation3 [shape = 'bf16[8,256]{1,0:T(8,128)(2,1)}', space=vmem, size = 0x1000, scoped, tag = 'scratch operand']
  #allocation4 [shape = 'bf16[6,128]{1,0:T(8,128)(2,1)}', space=vmem, size = 0x800, scoped, tag = 'scratch operand']
  %s0 = inlined_call_operand.vmem [shape: bf16[2,4,7,28], index: 0, kind: input, shape index: {}]
  %s1 = inlined_call_operand.hbm [shape: bf16[5,28,512], index: 1, kind: input, shape index: {}]
  %s2 = inlined_call_operand.vmem [shape: f32[1,256], index: 2, kind: input, shape index: {}]
  %s3 = inlined_call_operand.hbm [shape: bf16[3,256,256], index: 3, kind: input, shape index: {}]
  %s4 = inlined_call_operand.vmem [shape: f32[1,256], index: 4, kind: input, shape index: {}]
  %s5 = inlined_call_operand.hbm [shape: bf16[3,256,256], index: 5, kind: input, shape index: {}]
  %s6 = inlined_call_operand.vmem [shape: f32[1,256], index: 6, kind: input, shape index: {}]
  %s7 = inlined_call_operand.hbm [shape: bf16[5,256,256], index: 7, kind: input, shape index: {}]
  %s8 = inlined_call_operand.vmem [shape: f32[1,128], index: 8, kind: input, shape index: {}]
  %s9 = inlined_call_operand.vmem [shape: bf16[3,128,128], index: 9, kind: input, shape index: {}]
  %s10 = inlined_call_operand.vmem [shape: f32[1,128], index: 10, kind: input, shape index: {}]
  %s11 = inlined_call_operand.hbm [shape: bf16[3,128,128], index: 11, kind: input, shape index: {}]
  %s12 = inlined_call_operand.vmem [shape: f32[1,128], index: 12, kind: input, shape index: {}]
  %s13 = inlined_call_operand.hbm [shape: bf16[4,128,128], index: 13, kind: input, shape index: {}]
  %s14 = inlined_call_operand.vmem [shape: f32[1,128], index: 14, kind: input, shape index: {}]
  %s15 = inlined_call_operand.vmem [shape: f32[2,8,128], index: 15, kind: output, shape index: {}]
  %s16 = sld [smem:[#allocation0]]
  $region117: #{fused_forward.1} parent=0
    _
  %s18 = ssub.s32 1, %s16
  %s19 = scalar_select 0, %s18, %s16
  $region1: #{fused_forward.1} parent=0
    #allocation5 [shape = 'u8[163840]{0}', space=vmem, size = 0x28000, scoped, tag = 'input window, operand 1, single buffered']
    #allocation6 [shape = 's32[2]{0}', space=sflag, size = 0x8, scoped, tag = 'scoped memory for fused_forward.1']
    #allocation7 [shape = 'u8[393216]{0}', space=vmem, size = 0x60000, scoped, tag = 'input window, operand 3, single buffered']
    #allocation8 [shape = 's32[1]{0}', space=sflag, size = 0x4, scoped, tag = 'scoped memory for fused_forward.1']
    #allocation9 [shape = 'u8[393216]{0}', space=vmem, size = 0x60000, scoped, tag = 'input window, operand 5, single buffered']
    #allocation10 [shape = 'u8[655360]{0}', space=vmem, size = 0xa0000, scoped, tag = 'input window, operand 7, single buffered']
    #allocation11 [shape = 's32[1]{0}', space=sflag, size = 0x4, scoped, tag = 'scoped memory for fused_forward.1']
    #allocation12 [shape = 'u8[98304]{0}', space=vmem, size = 0x18000, scoped, tag = 'input window, operand 11, single buffered']
    #allocation13 [shape = 'u8[131072]{0}', space=vmem, size = 0x20000, scoped, tag = 'input window, operand 13, single buffered']
    #allocation14 [shape = 's32[1]{0}', space=sflag, size = 0x4, scoped, tag = 'scoped memory for fused_forward.1']
    %20 = vsyncpa [#allocation6], 0
    %21 = vsyncpa [#allocation8], 0
    %22 = vsyncpa [#allocation11], 0
    %23 = vsyncpa [#allocation14], 0
    loop: start=0, step=1, limit=4
    $region2: #{fused_forward.1} parent=1 // loop_pre_header
      _
    $region3: #{fused_forward.1} parent=1 // loop_header
      %s25 = sphi 0, %s29
      %p26 = scmp.ge.s32.totalorder %s25, 4
      %s35 = sphi 0, %s37
      %s38 = sphi 0, %s35
      %s39 = sphi 0, %s38
      %s55 = sphi 0, %s39
      %s59 = sphi 0, %s59
      %s61 = sphi 0, %s59
      %s62 = sphi 0, %s61
      %s76 = sphi 0, %s62
      %s80 = sphi 0, %s80
      %s82 = sphi 0, %s80
      %s83 = sphi 0, %s82
      %s97 = sphi 0, %s83
      %s101 = sphi 0, %s101
      %s103 = sphi 0, %s101
      %s104 = sphi 0, %s103
      %s118 = sphi 0, %s104
      %s122 = sphi 0, %s122
      %s124 = sphi 0, %s122
      %s125 = sphi 0, %s124
      %s139 = sphi 0, %s125
      %s143 = sphi 0, %s143
      %s145 = sphi 0, %s143
      %s146 = sphi 0, %s145
      %s160 = sphi 0, %s146
      %s164 = sphi 0, %s164
      %s166 = sphi 0, %s164
      %s167 = sphi 0, %s166
      %s181 = sphi 0, %s167
      %s185 = sphi 0, %s185
      %s187 = sphi 0, %s185
      %s188 = sphi 0, %s187
      %s202 = sphi 0, %s188
      %s206 = sphi 0, %s206
      %s208 = sphi 0, %s206
      %s209 = sphi 0, %s208
      %s223 = sphi 0, %s209
      %s227 = sphi 0, %s227
      %s229 = sphi 0, %s227
      %s230 = sphi 0, %s229
      %s244 = sphi 0, %s230
      %s248 = sphi 0, %s248
      %s250 = sphi 0, %s248
      %s251 = sphi 0, %s250
      %s265 = sphi 0, %s251
      %s269 = sphi 0, %s269
      %s271 = sphi 0, %s269
      %s272 = sphi 0, %s271
      %s286 = sphi 0, %s272
      %s290 = sphi 0, %s290
      %s292 = sphi 0, %s290
      %s293 = sphi 0, %s292
      %s307 = sphi 0, %s293
      %s311 = sphi 0, %s311
      %s313 = sphi 0, %s311
      %s314 = sphi 0, %s313
      %s328 = sphi 0, %s314
      %s332 = sphi 0, %s332
      %s334 = sphi 0, %s332
      %s335 = sphi 0, %s334
      %s349 = sphi 0, %s335
      %s355 = sphi 0, %s357
      %s358 = sphi 0, %s355
      %s359 = sphi 0, %s358
      %s375 = sphi 0, %s359
    $region4: #{fused_forward.1} parent=1 // loop_header_branch
      %28 = sbr.rel (%p26) target = $region8
    $region5: #{fused_forward.1} parent=1 // loop_body
      %s30 = ssub.s32 %s25, 1
      %s31 = ssub.s32 %s25, 2
      %s32 = sadd.s32 %s25, 1
      %s33 = ssub.s32 %s25, %s32
      %p34 = scmp.eq.s32.totalorder %s33, 0
      %s36 = sadd.s32 %s35, 1
      %s37 = scalar_select %p34, %s35, %s36
      %p40 = pneg %p34
      %p41 = scmp.eq.s32.totalorder %s25, 1
      %p42 = por %p40, %p41
      %p43 = scmp.ne.s32.totalorder %s35, %s38
      %p44 = scmp.eq.s32.totalorder %s25, 0
      %p45 = por %p43, %p44
      %p46 = scmp.ne.s32.totalorder %s35, %s38
      %p47 = scmp.eq.s32.totalorder %s30, 1
      %p48 = por %p46, %p47
      %p49 = scmp.ne.s32.totalorder %s38, %s39
      %p50 = scmp.eq.s32.totalorder %s30, 0
      %p51 = por %p49, %p50
      %p52 = scmp.ne.s32.totalorder %s38, %s39
      %p53 = scmp.eq.s32.totalorder %s31, 1
      %p54 = por %p52, %p53
      %p56 = scmp.ne.s32.totalorder %s39, %s55
      %p57 = scmp.eq.s32.totalorder %s31, 0
      %p58 = por %p56, %p57
      %s60 = sadd.s32 %s59, 1
      %p63 = scmp.eq.s32.totalorder %s25, 1
      %p64 = scmp.ne.s32.totalorder %s59, %s61
      %p65 = scmp.eq.s32.totalorder %s25, 0
      %p66 = por %p64, %p65
      %p67 = scmp.ne.s32.totalorder %s59, %s61
      %p68 = scmp.eq.s32.totalorder %s30, 1
      %p69 = por %p67, %p68
      %p70 = scmp.ne.s32.totalorder %s61, %s62
      %p71 = scmp.eq.s32.totalorder %s30, 0
      %p72 = por %p70, %p71
      %p73 = scmp.ne.s32.totalorder %s61, %s62
      %p74 = scmp.eq.s32.totalorder %s31, 1
      %p75 = por %p73, %p74
      %p77 = scmp.ne.s32.totalorder %s62, %s76
      %p78 = scmp.eq.s32.totalorder %s31, 0
      %p79 = por %p77, %p78
      %s81 = sadd.s32 %s80, 1
      %p84 = scmp.eq.s32.totalorder %s25, 1
      %p85 = scmp.ne.s32.totalorder %s80, %s82
      %p86 = scmp.eq.s32.totalorder %s25, 0
      %p87 = por %p85, %p86
      %p88 = scmp.ne.s32.totalorder %s80, %s82
      %p89 = scmp.eq.s32.totalorder %s30, 1
      %p90 = por %p88, %p89
      %p91 = scmp.ne.s32.totalorder %s82, %s83
      %p92 = scmp.eq.s32.totalorder %s30, 0
      %p93 = por %p91, %p92
      %p94 = scmp.ne.s32.totalorder %s82, %s83
      %p95 = scmp.eq.s32.totalorder %s31, 1
      %p96 = por %p94, %p95
      %p98 = scmp.ne.s32.totalorder %s83, %s97
      %p99 = scmp.eq.s32.totalorder %s31, 0
      %p100 = por %p98, %p99
      %s102 = sadd.s32 %s101, 1
      %p105 = scmp.eq.s32.totalorder %s25, 1
      %p106 = scmp.ne.s32.totalorder %s101, %s103
      %p107 = scmp.eq.s32.totalorder %s25, 0
      %p108 = por %p106, %p107
      %p109 = scmp.ne.s32.totalorder %s101, %s103
      %p110 = scmp.eq.s32.totalorder %s30, 1
      %p111 = por %p109, %p110
      %p112 = scmp.ne.s32.totalorder %s103, %s104
      %p113 = scmp.eq.s32.totalorder %s30, 0
      %p114 = por %p112, %p113
      %p115 = scmp.ne.s32.totalorder %s103, %s104
      %p116 = scmp.eq.s32.totalorder %s31, 1
      %p117 = por %p115, %p116
      %p119 = scmp.ne.s32.totalorder %s104, %s118
      %p120 = scmp.eq.s32.totalorder %s31, 0
      %p121 = por %p119, %p120
      %s123 = sadd.s32 %s122, 1
      %p126 = scmp.eq.s32.totalorder %s25, 1
      %p127 = scmp.ne.s32.totalorder %s122, %s124
      %p128 = scmp.eq.s32.totalorder %s25, 0
      %p129 = por %p127, %p128
      %p130 = scmp.ne.s32.totalorder %s122, %s124
      %p131 = scmp.eq.s32.totalorder %s30, 1
      %p132 = por %p130, %p131
      %p133 = scmp.ne.s32.totalorder %s124, %s125
      %p134 = scmp.eq.s32.totalorder %s30, 0
      %p135 = por %p133, %p134
      %p136 = scmp.ne.s32.totalorder %s124, %s125
      %p137 = scmp.eq.s32.totalorder %s31, 1
      %p138 = por %p136, %p137
      %p140 = scmp.ne.s32.totalorder %s125, %s139
      %p141 = scmp.eq.s32.totalorder %s31, 0
      %p142 = por %p140, %p141
      %s144 = sadd.s32 %s143, 1
      %p147 = scmp.eq.s32.totalorder %s25, 1
      %p148 = scmp.ne.s32.totalorder %s143, %s145
      %p149 = scmp.eq.s32.totalorder %s25, 0
      %p150 = por %p148, %p149
      %p151 = scmp.ne.s32.totalorder %s143, %s145
      %p152 = scmp.eq.s32.totalorder %s30, 1
      %p153 = por %p151, %p152
      %p154 = scmp.ne.s32.totalorder %s145, %s146
      %p155 = scmp.eq.s32.totalorder %s30, 0
      %p156 = por %p154, %p155
      %p157 = scmp.ne.s32.totalorder %s145, %s146
      %p158 = scmp.eq.s32.totalorder %s31, 1
      %p159 = por %p157, %p158
      %p161 = scmp.ne.s32.totalorder %s146, %s160
      %p162 = scmp.eq.s32.totalorder %s31, 0
      %p163 = por %p161, %p162
      %s165 = sadd.s32 %s164, 1
      %p168 = scmp.eq.s32.totalorder %s25, 1
      %p169 = scmp.ne.s32.totalorder %s164, %s166
      %p170 = scmp.eq.s32.totalorder %s25, 0
      %p171 = por %p169, %p170
      %p172 = scmp.ne.s32.totalorder %s164, %s166
      %p173 = scmp.eq.s32.totalorder %s30, 1
      %p174 = por %p172, %p173
      %p175 = scmp.ne.s32.totalorder %s166, %s167
      %p176 = scmp.eq.s32.totalorder %s30, 0
      %p177 = por %p175, %p176
      %p178 = scmp.ne.s32.totalorder %s166, %s167
      %p179 = scmp.eq.s32.totalorder %s31, 1
      %p180 = por %p178, %p179
      %p182 = scmp.ne.s32.totalorder %s167, %s181
      %p183 = scmp.eq.s32.totalorder %s31, 0
      %p184 = por %p182, %p183
      %s186 = sadd.s32 %s185, 1
      %p189 = scmp.eq.s32.totalorder %s25, 1
      %p190 = scmp.ne.s32.totalorder %s185, %s187
      %p191 = scmp.eq.s32.totalorder %s25, 0
      %p192 = por %p190, %p191
      %p193 = scmp.ne.s32.totalorder %s185, %s187
      %p194 = scmp.eq.s32.totalorder %s30, 1
      %p195 = por %p193, %p194
      %p196 = scmp.ne.s32.totalorder %s187, %s188
      %p197 = scmp.eq.s32.totalorder %s30, 0
      %p198 = por %p196, %p197
      %p199 = scmp.ne.s32.totalorder %s187, %s188
      %p200 = scmp.eq.s32.totalorder %s31, 1
      %p201 = por %p199, %p200
      %p203 = scmp.ne.s32.totalorder %s188, %s202
      %p204 = scmp.eq.s32.totalorder %s31, 0
      %p205 = por %p203, %p204
      %s207 = sadd.s32 %s206, 1
      %p210 = scmp.eq.s32.totalorder %s25, 1
      %p211 = scmp.ne.s32.totalorder %s206, %s208
      %p212 = scmp.eq.s32.totalorder %s25, 0
      %p213 = por %p211, %p212
      %p214 = scmp.ne.s32.totalorder %s206, %s208
      %p215 = scmp.eq.s32.totalorder %s30, 1
      %p216 = por %p214, %p215
      %p217 = scmp.ne.s32.totalorder %s208, %s209
      %p218 = scmp.eq.s32.totalorder %s30, 0
      %p219 = por %p217, %p218
      %p220 = scmp.ne.s32.totalorder %s208, %s209
      %p221 = scmp.eq.s32.totalorder %s31, 1
      %p222 = por %p220, %p221
      %p224 = scmp.ne.s32.totalorder %s209, %s223
      %p225 = scmp.eq.s32.totalorder %s31, 0
      %p226 = por %p224, %p225
      %s228 = sadd.s32 %s227, 1
      %p231 = scmp.eq.s32.totalorder %s25, 1
      %p232 = scmp.ne.s32.totalorder %s227, %s229
      %p233 = scmp.eq.s32.totalorder %s25, 0
      %p234 = por %p232, %p233
      %p235 = scmp.ne.s32.totalorder %s227, %s229
      %p236 = scmp.eq.s32.totalorder %s30, 1
      %p237 = por %p235, %p236
      %p238 = scmp.ne.s32.totalorder %s229, %s230
      %p239 = scmp.eq.s32.totalorder %s30, 0
      %p240 = por %p238, %p239
      %p241 = scmp.ne.s32.totalorder %s229, %s230
      %p242 = scmp.eq.s32.totalorder %s31, 1
      %p243 = por %p241, %p242
      %p245 = scmp.ne.s32.totalorder %s230, %s244
      %p246 = scmp.eq.s32.totalorder %s31, 0
      %p247 = por %p245, %p246
      %s249 = sadd.s32 %s248, 1
      %p252 = scmp.eq.s32.totalorder %s25, 1
      %p253 = scmp.ne.s32.totalorder %s248, %s250
      %p254 = scmp.eq.s32.totalorder %s25, 0
      %p255 = por %p253, %p254
      %p256 = scmp.ne.s32.totalorder %s248, %s250
      %p257 = scmp.eq.s32.totalorder %s30, 1
      %p258 = por %p256, %p257
      %p259 = scmp.ne.s32.totalorder %s250, %s251
      %p260 = scmp.eq.s32.totalorder %s30, 0
      %p261 = por %p259, %p260
      %p262 = scmp.ne.s32.totalorder %s250, %s251
      %p263 = scmp.eq.s32.totalorder %s31, 1
      %p264 = por %p262, %p263
      %p266 = scmp.ne.s32.totalorder %s251, %s265
      %p267 = scmp.eq.s32.totalorder %s31, 0
      %p268 = por %p266, %p267
      %s270 = sadd.s32 %s269, 1
      %p273 = scmp.eq.s32.totalorder %s25, 1
      %p274 = scmp.ne.s32.totalorder %s269, %s271
      %p275 = scmp.eq.s32.totalorder %s25, 0
      %p276 = por %p274, %p275
      %p277 = scmp.ne.s32.totalorder %s269, %s271
      %p278 = scmp.eq.s32.totalorder %s30, 1
      %p279 = por %p277, %p278
      %p280 = scmp.ne.s32.totalorder %s271, %s272
      %p281 = scmp.eq.s32.totalorder %s30, 0
      %p282 = por %p280, %p281
      %p283 = scmp.ne.s32.totalorder %s271, %s272
      %p284 = scmp.eq.s32.totalorder %s31, 1
      %p285 = por %p283, %p284
      %p287 = scmp.ne.s32.totalorder %s272, %s286
      %p288 = scmp.eq.s32.totalorder %s31, 0
      %p289 = por %p287, %p288
      %s291 = sadd.s32 %s290, 1
      %p294 = scmp.eq.s32.totalorder %s25, 1
      %p295 = scmp.ne.s32.totalorder %s290, %s292
      %p296 = scmp.eq.s32.totalorder %s25, 0
      %p297 = por %p295, %p296
      %p298 = scmp.ne.s32.totalorder %s290, %s292
      %p299 = scmp.eq.s32.totalorder %s30, 1
      %p300 = por %p298, %p299
      %p301 = scmp.ne.s32.totalorder %s292, %s293
      %p302 = scmp.eq.s32.totalorder %s30, 0
      %p303 = por %p301, %p302
      %p304 = scmp.ne.s32.totalorder %s292, %s293
      %p305 = scmp.eq.s32.totalorder %s31, 1
      %p306 = por %p304, %p305
      %p308 = scmp.ne.s32.totalorder %s293, %s307
      %p309 = scmp.eq.s32.totalorder %s31, 0
      %p310 = por %p308, %p309
      %s312 = sadd.s32 %s311, 1
      %p315 = scmp.eq.s32.totalorder %s25, 1
      %p316 = scmp.ne.s32.totalorder %s311, %s313
      %p317 = scmp.eq.s32.totalorder %s25, 0
      %p318 = por %p316, %p317
      %p319 = scmp.ne.s32.totalorder %s311, %s313
      %p320 = scmp.eq.s32.totalorder %s30, 1
      %p321 = por %p319, %p320
      %p322 = scmp.ne.s32.totalorder %s313, %s314
      %p323 = scmp.eq.s32.totalorder %s30, 0
      %p324 = por %p322, %p323
      %p325 = scmp.ne.s32.totalorder %s313, %s314
      %p326 = scmp.eq.s32.totalorder %s31, 1
      %p327 = por %p325, %p326
      %p329 = scmp.ne.s32.totalorder %s314, %s328
      %p330 = scmp.eq.s32.totalorder %s31, 0
      %p331 = por %p329, %p330
      %s333 = sadd.s32 %s332, 1
      %p336 = scmp.eq.s32.totalorder %s25, 1
      %p337 = scmp.ne.s32.totalorder %s332, %s334
      %p338 = scmp.eq.s32.totalorder %s25, 0
      %p339 = por %p337, %p338
      %p340 = scmp.ne.s32.totalorder %s332, %s334
      %p341 = scmp.eq.s32.totalorder %s30, 1
      %p342 = por %p340, %p341
      %p343 = scmp.ne.s32.totalorder %s334, %s335
      %p344 = scmp.eq.s32.totalorder %s30, 0
      %p345 = por %p343, %p344
      %p346 = scmp.ne.s32.totalorder %s334, %s335
      %p347 = scmp.eq.s32.totalorder %s31, 1
      %p348 = por %p346, %p347
      %p350 = scmp.ne.s32.totalorder %s335, %s349
      %p351 = scmp.eq.s32.totalorder %s31, 0
      %p352 = por %p350, %p351
      %s353 = ssub.s32 %s25, %s32
      %p354 = scmp.eq.s32.totalorder %s353, 0
      %s356 = sadd.s32 %s355, 1
      %s357 = scalar_select %p354, %s355, %s356
      %p360 = pneg %p354
      %p361 = scmp.eq.s32.totalorder %s25, 1
      %p362 = por %p360, %p361
      %p363 = scmp.ne.s32.totalorder %s355, %s358
      %p364 = scmp.eq.s32.totalorder %s25, 0
      %p365 = por %p363, %p364
      %p366 = scmp.ne.s32.totalorder %s355, %s358
      %p367 = scmp.eq.s32.totalorder %s30, 1
      %p368 = por %p366, %p367
      %p369 = scmp.ne.s32.totalorder %s358, %s359
      %p370 = scmp.eq.s32.totalorder %s30, 0
      %p371 = por %p369, %p370
      %p372 = scmp.ne.s32.totalorder %s358, %s359
      %p373 = scmp.eq.s32.totalorder %s31, 1
      %p374 = por %p372, %p373
      %p376 = scmp.ne.s32.totalorder %s359, %s375
      %p377 = scmp.eq.s32.totalorder %s31, 0
      %p378 = por %p376, %p377
      %p379 = scmp.le.s32.totalorder 1, %s25
      %p380 = scmp.lt.s32.totalorder %s25, 3
      %p381 = pnand %p379, %p380
      %p382 = pneg %p381
      // Predicated region
      $region9: #{fused_forward.1} parent=5 // pred_check
        _
      $region10: #{fused_forward.1} parent=5 // pred_check_branch
        %384 = sbr.rel (%p381) target = $region12
      $region11: #{fused_forward.1} parent=5 // pred_region
        %s385 = ssub.s32 %s25, 1
        // Predicated region
        $region13: #{fused_forward.1} parent=11 // pred_check
          %p386 = pneg %p72
        $region14: #{fused_forward.1} parent=11 // pred_check_branch
          %388 = sbr.rel (%p386) target = $region16
        $region15: #{fused_forward.1} parent=11 // pred_region
          %s390 = ssub.s32 5120, 5120
          %391 = vsyncadd [#allocation6], %s390
          %s392 = sshll.u32 [#allocation5], 4
          %s393 = int_to_ptr.vmem [resolvable:$true] %s392
          %398 = dma.hbm_to_vmem [thread:$0]  %s1, 5120, %s393, [#allocation6], 256, 256, 16
        $region16: #{fused_forward.1} parent=11 // pred_fallthru
          _
        // Predicated region
        $region17: #{fused_forward.1} parent=11 // pred_check
          %p399 = pneg %p93
        $region18: #{fused_forward.1} parent=11 // pred_check_branch
          %401 = sbr.rel (%p399) target = $region20
        $region19: #{fused_forward.1} parent=11 // pred_region
          _
        $region20: #{fused_forward.1} parent=11 // pred_fallthru
          _
        // Predicated region
        $region21: #{fused_forward.1} parent=11 // pred_check
          %p402 = pneg %p114
        $region22: #{fused_forward.1} parent=11 // pred_check_branch
          %404 = sbr.rel (%p402) target = $region24
        $region23: #{fused_forward.1} parent=11 // pred_region
          %s406 = ssub.s32 12288, 12288
          %407 = vsyncadd [#allocation8], %s406
          %s408 = sshll.u32 [#allocation7], 4
          %s409 = int_to_ptr.vmem [resolvable:$true] %s408
          %414 = dma.hbm_to_vmem [thread:$0]  %s3, 12288, %s409, [#allocation8], 128, 128, 8
        $region24: #{fused_forward.1} parent=11 // pred_fallthru
          _
        // Predicated region
        $region25: #{fused_forward.1} parent=11 // pred_check
          %p415 = pneg %p135
        $region26: #{fused_forward.1} parent=11 // pred_check_branch
          %417 = sbr.rel (%p415) target = $region28
        $region27: #{fused_forward.1} parent=11 // pred_region
          _
        $region28: #{fused_forward.1} parent=11 // pred_fallthru
          _
        // Predicated region
        $region29: #{fused_forward.1} parent=11 // pred_check
          %p418 = pneg %p156
        $region30: #{fused_forward.1} parent=11 // pred_check_branch
          %420 = sbr.rel (%p418) target = $region32
        $region31: #{fused_forward.1} parent=11 // pred_region
          %s422 = ssub.s32 12288, 12288
          %423 = vsyncadd [#allocation8], %s422
          %s424 = sshll.u32 [#allocation9], 4
          %s425 = int_to_ptr.vmem [resolvable:$true] %s424
          %430 = dma.hbm_to_vmem [thread:$0]  %s5, 12288, %s425, [#allocation8], 128, 128, 8
        $region32: #{fused_forward.1} parent=11 // pred_fallthru
          _
        // Predicated region
        $region33: #{fused_forward.1} parent=11 // pred_check
          %p431 = pneg %p177
        $region34: #{fused_forward.1} parent=11 // pred_check_branch
          %433 = sbr.rel (%p431) target = $region36
        $region35: #{fused_forward.1} parent=11 // pred_region
          _
        $region36: #{fused_forward.1} parent=11 // pred_fallthru
          _
        // Predicated region
        $region37: #{fused_forward.1} parent=11 // pred_check
          %p434 = pneg %p198
        $region38: #{fused_forward.1} parent=11 // pred_check_branch
          %436 = sbr.rel (%p434) target = $region40
        $region39: #{fused_forward.1} parent=11 // pred_region
          %s438 = ssub.s32 20480, 20480
          %439 = vsyncadd [#allocation11], %s438
          %s440 = sshll.u32 [#allocation10], 4
          %s441 = int_to_ptr.vmem [resolvable:$true] %s440
          %446 = dma.hbm_to_vmem [thread:$0]  %s7, 20480, %s441, [#allocation11], 128, 128, 8
        $region40: #{fused_forward.1} parent=11 // pred_fallthru
          _
        // Predicated region
        $region41: #{fused_forward.1} parent=11 // pred_check
          %p447 = pneg %p219
        $region42: #{fused_forward.1} parent=11 // pred_check_branch
          %449 = sbr.rel (%p447) target = $region44
        $region43: #{fused_forward.1} parent=11 // pred_region
          _
        $region44: #{fused_forward.1} parent=11 // pred_fallthru
          _
        // Predicated region
        $region45: #{fused_forward.1} parent=11 // pred_check
          %p450 = pneg %p240
        $region46: #{fused_forward.1} parent=11 // pred_check_branch
          %452 = sbr.rel (%p450) target = $region48
        $region47: #{fused_forward.1} parent=11 // pred_region
          _
        $region48: #{fused_forward.1} parent=11 // pred_fallthru
          _
        // Predicated region
        $region49: #{fused_forward.1} parent=11 // pred_check
          %p453 = pneg %p261
        $region50: #{fused_forward.1} parent=11 // pred_check_branch
          %455 = sbr.rel (%p453) target = $region52
        $region51: #{fused_forward.1} parent=11 // pred_region
          _
        $region52: #{fused_forward.1} parent=11 // pred_fallthru
          _
        // Predicated region
        $region53: #{fused_forward.1} parent=11 // pred_check
          %p456 = pneg %p282
        $region54: #{fused_forward.1} parent=11 // pred_check_branch
          %458 = sbr.rel (%p456) target = $region56
        $region55: #{fused_forward.1} parent=11 // pred_region
          %s460 = ssub.s32 3072, 3072
          %461 = vsyncadd [#allocation11], %s460
          %s462 = sshll.u32 [#allocation12], 4
          %s463 = int_to_ptr.vmem [resolvable:$true] %s462
          %468 = dma.hbm_to_vmem [thread:$0]  %s11, 3072, %s463, [#allocation11], 64, 64, 4
        $region56: #{fused_forward.1} parent=11 // pred_fallthru
          _
        // Predicated region
        $region57: #{fused_forward.1} parent=11 // pred_check
          %p469 = pneg %p303
        $region58: #{fused_forward.1} parent=11 // pred_check_branch
          %471 = sbr.rel (%p469) target = $region60
        $region59: #{fused_forward.1} parent=11 // pred_region
          _
        $region60: #{fused_forward.1} parent=11 // pred_fallthru
          _
        // Predicated region
        $region61: #{fused_forward.1} parent=11 // pred_check
          %p472 = pneg %p324
        $region62: #{fused_forward.1} parent=11 // pred_check_branch
          %474 = sbr.rel (%p472) target = $region64
        $region63: #{fused_forward.1} parent=11 // pred_region
          %s476 = ssub.s32 4096, 4096
          %477 = vsyncadd [#allocation14], %s476
          %s478 = sshll.u32 [#allocation13], 4
          %s479 = int_to_ptr.vmem [resolvable:$true] %s478
          %484 = dma.hbm_to_vmem [thread:$0]  %s13, 4096, %s479, [#allocation14], 64, 64, 4
        $region64: #{fused_forward.1} parent=11 // pred_fallthru
          _
        // Predicated region
        $region65: #{fused_forward.1} parent=11 // pred_check
          %p485 = pneg %p345
        $region66: #{fused_forward.1} parent=11 // pred_check_branch
          %487 = sbr.rel (%p485) target = $region68
        $region67: #{fused_forward.1} parent=11 // pred_region
          _
        $region68: #{fused_forward.1} parent=11 // pred_fallthru
          _
      $region12: #{fused_forward.1} parent=5 // pred_fallthru
        _
      %p488 = scmp.lt.s32.totalorder %s25, 2
      // Predicated region
      $region69: #{fused_forward.1} parent=5 // pred_check
        %p489 = pneg %p488
      $region70: #{fused_forward.1} parent=5 // pred_check_branch
        %491 = sbr.rel (%p489) target = $region72
      $region71: #{fused_forward.1} parent=5 // pred_region
        // Predicated region
        $region73: #{fused_forward.1} parent=71 // pred_check
          %p492 = pneg %p45
        $region74: #{fused_forward.1} parent=71 // pred_check_branch
          %494 = sbr.rel (%p492) target = $region76
        $region75: #{fused_forward.1} parent=71 // pred_region
          %p495 = scmp.lt.s32.totalorder %s25, 1
          %s496 = scalar_select %p495, %s25, 1
          %s497 = smul.addr %s496, 4
          %s498 = smul.addr %s497, 4
          %s499 = scalar_lea.vmem %s0, %s498
        $region76: #{fused_forward.1} parent=71 // pred_fallthru
          _
      $region72: #{fused_forward.1} parent=5 // pred_fallthru
        _
      %p500 = scmp.le.s32.totalorder 1, %s25
      %p501 = scmp.lt.s32.totalorder %s25, 3
      %p502 = pnand %p500, %p501
      %p503 = pneg %p502
      // Predicated region
      $region77: #{fused_forward.1} parent=5 // pred_check
        _
      $region78: #{fused_forward.1} parent=5 // pred_check_branch
        %505 = sbr.rel (%p502) target = $region80
      $region79: #{fused_forward.1} parent=5 // pred_region
        %s506 = ssub.s32 %s25, 1
        // Predicated region
        $region81: #{fused_forward.1} parent=79 // pred_check
          %p507 = pneg %p72
        $region82: #{fused_forward.1} parent=79 // pred_check_branch
          %509 = sbr.rel (%p507) target = $region84
        $region83: #{fused_forward.1} parent=79 // pred_region
          %510 = dma.done [#allocation6], 5120
        $region84: #{fused_forward.1} parent=79 // pred_fallthru
          _
        // Predicated region
        $region85: #{fused_forward.1} parent=79 // pred_check
          %p511 = pneg %p114
        $region86: #{fused_forward.1} parent=79 // pred_check_branch
          %513 = sbr.rel (%p511) target = $region88
        $region87: #{fused_forward.1} parent=79 // pred_region
          %514 = dma.done [#allocation8], 12288
        $region88: #{fused_forward.1} parent=79 // pred_fallthru
          _
        // Predicated region
        $region89: #{fused_forward.1} parent=79 // pred_check
          %p515 = pneg %p156
        $region90: #{fused_forward.1} parent=79 // pred_check_branch
          %517 = sbr.rel (%p515) target = $region92
        $region91: #{fused_forward.1} parent=79 // pred_region
          %518 = dma.done [#allocation8], 12288
        $region92: #{fused_forward.1} parent=79 // pred_fallthru
          _
        // Predicated region
        $region93: #{fused_forward.1} parent=79 // pred_check
          %p519 = pneg %p198
        $region94: #{fused_forward.1} parent=79 // pred_check_branch
          %521 = sbr.rel (%p519) target = $region96
        $region95: #{fused_forward.1} parent=79 // pred_region
          %522 = dma.done [#allocation11], 20480
        $region96: #{fused_forward.1} parent=79 // pred_fallthru
          _
        // Predicated region
        $region97: #{fused_forward.1} parent=79 // pred_check
          %p523 = pneg %p282
        $region98: #{fused_forward.1} parent=79 // pred_check_branch
          %525 = sbr.rel (%p523) target = $region100
        $region99: #{fused_forward.1} parent=79 // pred_region
          %526 = dma.done [#allocation11], 3072
        $region100: #{fused_forward.1} parent=79 // pred_fallthru
          _
        // Predicated region
        $region101: #{fused_forward.1} parent=79 // pred_check
          %p527 = pneg %p324
        $region102: #{fused_forward.1} parent=79 // pred_check_branch
          %529 = sbr.rel (%p527) target = $region104
        $region103: #{fused_forward.1} parent=79 // pred_region
          %530 = dma.done [#allocation14], 4096
        $region104: #{fused_forward.1} parent=79 // pred_fallthru
          _
        %p531 = scmp.lt.s32.totalorder %s30, 1
        %s532 = scalar_select %p531, %s30, 1
        %s533 = smul.addr %s532, 4
        %s534 = smul.addr %s533, 4
        %s535 = scalar_lea.vmem %s0, %s534
        %p536 = pneg %p51
        %p537 = pneg %p48
        %p538 = pneg %p72
        %p539 = pneg %p69
        %p540 = pneg %p93
        %p541 = pneg %p90
        %p542 = pneg %p114
        %p543 = pneg %p111
        %p544 = pneg %p135
        %p545 = pneg %p132
        %p546 = pneg %p156
        %p547 = pneg %p153
        %p548 = pneg %p177
        %p549 = pneg %p174
        %p550 = pneg %p198
        %p551 = pneg %p195
        %p552 = pneg %p219
        %p553 = pneg %p216
        %p554 = pneg %p240
        %p555 = pneg %p237
        %p556 = pneg %p261
        %p557 = pneg %p258
        %p558 = pneg %p282
        %p559 = pneg %p279
        %p560 = pneg %p303
        %p561 = pneg %p300
        %p562 = pneg %p324
        %p563 = pneg %p321
        %p564 = pneg %p345
        %p565 = pneg %p342
        %p566 = pneg %p371
        %p567 = pneg %p368
        %p568 = scmp.lt.s32.totalorder %s30, 1
        %s569 = scalar_select %p568, %s30, 1
        %s570 = smul.addr %s569, 8
        %s571 = scalar_lea.vmem %s15, %s570
        %p572 = scmp.lt.s32.totalorder %s30, 1
        %s573 = scalar_select %p572, %s30, 1
        %s574 = smul.addr %s573, 4
        %s575 = smul.addr %s574, 4
        %s576 = scalar_lea.vmem %s0, %s575
        %p577 = scmp.lt.s32.totalorder %s30, 1
        %s578 = scalar_select %p577, %s30, 1
        %s579 = smul.addr %s578, 8
        %s580 = scalar_lea.vmem %s15, %s579
        %v582 = vld [vmem:[%s576] sm:$0x7]
        %v583 = vld [vmem:[#allocation5] sm:$0xff]
        %v584 = vld [vmem:[#allocation5 + $0x8] sm:$0xff]
        %v585 = vld [vmem:[#allocation5 + $0x10] sm:$0xff]
        %v586 = vld [vmem:[#allocation5 + $0x18] sm:$0xff]
        %v587 = vld [vmem:[#allocation5 + $0x20] sm:$0xff]
        %v588 = vld [vmem:[#allocation5 + $0x28] sm:$0xff]
        %v589 = vld [vmem:[#allocation5 + $0x30] sm:$0x33]
        %v590 = vld [vmem:[#allocation5 + $0x38] sm:$0x33]
        %s591 = scalar_lea.vmem %s576, 4
        %v592 = vld [vmem:[%s591] sm:$0x7]
        %s593 = scalar_lea.vmem [#allocation5], 64
        %v594 = vld [vmem:[%s593] sm:$0xff]
        %v595 = vld [vmem:[%s593 + $0x8] sm:$0xff]
        %v596 = vld [vmem:[%s593 + $0x10] sm:$0xff]
        %v597 = vld [vmem:[%s593 + $0x18] sm:$0xff]
        %v598 = vld [vmem:[%s593 + $0x20] sm:$0xff]
        %v599 = vld [vmem:[%s593 + $0x28] sm:$0xff]
        %v600 = vld [vmem:[%s593 + $0x30] sm:$0x33]
        %v601 = vld [vmem:[%s593 + $0x38] sm:$0x33]
        %v610 = vunpack.c.l.b16 %v594
        %v611 = vunpack.c.h.b16 %v594
        %v612 = vunpack.c.l.b16 %v595
        %v613 = vunpack.c.h.b16 %v595
        %v614 = vunpack.c.l.b16 %v596
        %v615 = vunpack.c.h.b16 %v596
        %v616 = vunpack.c.l.b16 %v597
        %v617 = vunpack.c.h.b16 %v597
        %v618 = vunpack.c.l.b16 %v598
        %v619 = vunpack.c.h.b16 %v598
        %v620 = vunpack.c.l.b16 %v599
        %v621 = vunpack.c.h.b16 %v599
        %v622 = vunpack.c.l.b16 %v600
        %v623 = vunpack.c.h.b16 %v600
        %v624 = vunpack.c.l.b16 %v601
        %v625 = vunpack.c.h.b16 %v601
        %v626 = vpack.c.b16 %v614, %v610
        %v627 = vpack.c.b16 %v615, %v611
        %v628 = vpack.c.b16 %v616, %v612
        %v629 = vpack.c.b16 %v617, %v613
        %v630 = vpack.c.b16 %v622, %v618
        %v631 = vpack.c.b16 %v623, %v619
        %v632 = vpack.c.b16 %v624, %v620
        %v633 = vpack.c.b16 %v625, %v621
        %vm638 = vcmask 228352
        %v640 = vsel %vm638, %v592, 0
        %vm642 = vcmask 1045504
        %v644 = vsel %vm642, %v630, 0
        %v647 = vsel %vm642, %v631, 0
        %v650 = vsel %vm642, %v632, 0
        %v653 = vsel %vm642, %v633, 0
        %655 = vmatprep.subr.bf16.mxu0 0
        %656 = vmatpush1.bf16.msra.mxu0 0
        %657 = vmatprep.subr.bf16.mxu0 0
        %658 = vmatpush1.bf16.msra.mxu0 0
        %659 = vmatprep.subr.bf16.mxu0 0
        %660 = vmatpush1.bf16.msra.mxu0 0
        %661 = vmatprep.subr.bf16.mxu0 0
        %662 = vmatpush1.bf16.msra.mxu0 0
        %663 = vmatprep.subr.bf16.mxu0 0
        %664 = vmatpush1.bf16.msra.mxu0 0
        %665 = vmatprep.subr.bf16.mxu0 0
        %666 = vmatpush1.bf16.msra.mxu0 0
        %667 = vmatprep.subr.bf16.mxu0 %v647
        %668 = vmatpush1.bf16.msra.mxu0 %v644
        %669 = vmatprep.subr.bf16.mxu0 %v627
        %670 = vmatpush1.bf16.msra.mxu0 %v626
        %671 = vmatprep.subr.bf16.mxu0 0
        %672 = vmatpush2.bf16.msra.mxu0 0
        %673 = vmatprep.subr.bf16.mxu0 0
        %674 = vmatpush2.bf16.msra.mxu0 0
        %675 = vmatprep.subr.bf16.mxu0 0
        %676 = vmatpush2.bf16.msra.mxu0 0
        %677 = vmatprep.subr.bf16.mxu0 0
        %678 = vmatpush2.bf16.msra.mxu0 0
        %679 = vmatprep.subr.bf16.mxu0 0
        %680 = vmatpush2.bf16.msra.mxu0 0
        %681 = vmatprep.subr.bf16.mxu0 0
        %682 = vmatpush2.bf16.msra.mxu0 0
        %683 = vmatprep.subr.bf16.mxu0 0
        %684 = vmatpush2.bf16.msra.mxu0 0
        %685 = vmatprep.subr.bf16.mxu0 0
        %686 = vmatpush2.bf16.msra.mxu0 0
        %687 = vmatprep.mubr.bf16.mxu0 0
        %688 = vmatmul.mubr.bf16.gmra.mxu0 %v640
        %v689 = vpop.f32.mrf.mxu0
        %v690 = vadd.f32 0.0, %v689
        %v691 = vpop.f32.mrf.mxu0
        %v692 = vadd.f32 0.0, %v691
        %v693 = vpop.f32.mrf.mxu0
        %v694 = vpop.f32.mrf.mxu0
        %695 = vdwg.mxu0
        %696 = vmatprep.subr.bf16.mxu0 0
        %697 = vmatpush1.bf16.msra.mxu0 0
        %698 = vmatprep.subr.bf16.mxu0 0
        %699 = vmatpush1.bf16.msra.mxu0 0
        %700 = vmatprep.subr.bf16.mxu0 0
        %701 = vmatpush1.bf16.msra.mxu0 0
        %702 = vmatprep.subr.bf16.mxu0 0
        %703 = vmatpush1.bf16.msra.mxu0 0
        %704 = vmatprep.subr.bf16.mxu0 0
        %705 = vmatpush1.bf16.msra.mxu0 0
        %706 = vmatprep.subr.bf16.mxu0 0
        %707 = vmatpush1.bf16.msra.mxu0 0
        %708 = vmatprep.subr.bf16.mxu0 %v653
        %709 = vmatpush1.bf16.msra.mxu0 %v650
        %710 = vmatprep.subr.bf16.mxu0 %v629
        %711 = vmatpush1.bf16.msra.mxu0 %v628
        %712 = vmatprep.subr.bf16.mxu0 0
        %713 = vmatpush2.bf16.msra.mxu0 0
        %714 = vmatprep.subr.bf16.mxu0 0
        %715 = vmatpush2.bf16.msra.mxu0 0
        %716 = vmatprep.subr.bf16.mxu0 0
        %717 = vmatpush2.bf16.msra.mxu0 0
        %718 = vmatprep.subr.bf16.mxu0 0
        %719 = vmatpush2.bf16.msra.mxu0 0
        %720 = vmatprep.subr.bf16.mxu0 0
        %721 = vmatpush2.bf16.msra.mxu0 0
        %722 = vmatprep.subr.bf16.mxu0 0
        %723 = vmatpush2.bf16.msra.mxu0 0
        %724 = vmatprep.subr.bf16.mxu0 0
        %725 = vmatpush2.bf16.msra.mxu0 0
        %726 = vmatprep.subr.bf16.mxu0 0
        %727 = vmatpush2.bf16.msra.mxu0 0
        %728 = vmatprep.mubr.bf16.mxu0 0
        %729 = vmatmul.mubr.bf16.gmra.mxu0 %v640
        %v730 = vpop.f32.mrf.mxu0
        %v731 = vadd.f32 0.0, %v730
        %v732 = vpop.f32.mrf.mxu0
        %v733 = vadd.f32 0.0, %v732
        %v734 = vpop.f32.mrf.mxu0
        %v735 = vpop.f32.mrf.mxu0
        %736 = vdwg.mxu0
        %v745 = vunpack.c.l.b16 %v583
        %v746 = vunpack.c.h.b16 %v583
        %v747 = vunpack.c.l.b16 %v584
        %v748 = vunpack.c.h.b16 %v584
        %v749 = vunpack.c.l.b16 %v585
        %v750 = vunpack.c.h.b16 %v585
        %v751 = vunpack.c.l.b16 %v586
        %v752 = vunpack.c.h.b16 %v586
        %v753 = vunpack.c.l.b16 %v587
        %v754 = vunpack.c.h.b16 %v587
        %v755 = vunpack.c.l.b16 %v588
        %v756 = vunpack.c.h.b16 %v588
        %v757 = vunpack.c.l.b16 %v589
        %v758 = vunpack.c.h.b16 %v589
        %v759 = vunpack.c.l.b16 %v590
        %v760 = vunpack.c.h.b16 %v590
        %v761 = vpack.c.b16 %v749, %v745
        %v762 = vpack.c.b16 %v750, %v746
        %v763 = vpack.c.b16 %v751, %v747
        %v764 = vpack.c.b16 %v752, %v748
        %v765 = vpack.c.b16 %v757, %v753
        %v766 = vpack.c.b16 %v758, %v754
        %v767 = vpack.c.b16 %v759, %v755
        %v768 = vpack.c.b16 %v760, %v756
        %v774 = vsel %vm638, %v582, 0
        %v777 = vsel %vm642, %v765, 0
        %v780 = vsel %vm642, %v766, 0
        %v783 = vsel %vm642, %v767, 0
        %v786 = vsel %vm642, %v768, 0
        %788 = vmatprep.subr.bf16.mxu0 0
        %789 = vmatpush1.bf16.msra.mxu0 0
        %790 = vmatprep.subr.bf16.mxu0 0
        %791 = vmatpush1.bf16.msra.mxu0 0
        %792 = vmatprep.subr.bf16.mxu0 0
        %793 = vmatpush1.bf16.msra.mxu0 0
        %794 = vmatprep.subr.bf16.mxu0 0
        %795 = vmatpush1.bf16.msra.mxu0 0
        %796 = vmatprep.subr.bf16.mxu0 0
        %797 = vmatpush1.bf16.msra.mxu0 0
        %798 = vmatprep.subr.bf16.mxu0 0
        %799 = vmatpush1.bf16.msra.mxu0 0
        %800 = vmatprep.subr.bf16.mxu0 %v780
        %801 = vmatpush1.bf16.msra.mxu0 %v777
        %802 = vmatprep.subr.bf16.mxu0 %v762
        %803 = vmatpush1.bf16.msra.mxu0 %v761
        %804 = vmatprep.subr.bf16.mxu0 0
        %805 = vmatpush2.bf16.msra.mxu0 0
        %806 = vmatprep.subr.bf16.mxu0 0
        %807 = vmatpush2.bf16.msra.mxu0 0
        %808 = vmatprep.subr.bf16.mxu0 0
        %809 = vmatpush2.bf16.msra.mxu0 0
        %810 = vmatprep.subr.bf16.mxu0 0
        %811 = vmatpush2.bf16.msra.mxu0 0
        %812 = vmatprep.subr.bf16.mxu0 0
        %813 = vmatpush2.bf16.msra.mxu0 0
        %814 = vmatprep.subr.bf16.mxu0 0
        %815 = vmatpush2.bf16.msra.mxu0 0
        %816 = vmatprep.subr.bf16.mxu0 0
        %817 = vmatpush2.bf16.msra.mxu0 0
        %818 = vmatprep.subr.bf16.mxu0 0
        %819 = vmatpush2.bf16.msra.mxu0 0
        %820 = vmatprep.mubr.bf16.mxu0 0
        %821 = vmatmul.mubr.bf16.gmra.mxu0 %v774
        %v822 = vpop.f32.mrf.mxu0
        %v823 = vadd.f32 %v690, %v822
        %v824 = vpop.f32.mrf.mxu0
        %v825 = vadd.f32 %v692, %v824
        %v826 = vpop.f32.mrf.mxu0
        %v827 = vpop.f32.mrf.mxu0
        %828 = vdwg.mxu0
        %829 = vmatprep.subr.bf16.mxu0 0
        %830 = vmatpush1.bf16.msra.mxu0 0
        %831 = vmatprep.subr.bf16.mxu0 0
        %832 = vmatpush1.bf16.msra.mxu0 0
        %833 = vmatprep.subr.bf16.mxu0 0
        %834 = vmatpush1.bf16.msra.mxu0 0
        %835 = vmatprep.subr.bf16.mxu0 0
        %836 = vmatpush1.bf16.msra.mxu0 0
        %837 = vmatprep.subr.bf16.mxu0 0
        %838 = vmatpush1.bf16.msra.mxu0 0
        %839 = vmatprep.subr.bf16.mxu0 0
        %840 = vmatpush1.bf16.msra.mxu0 0
        %841 = vmatprep.subr.bf16.mxu0 %v786
        %842 = vmatpush1.bf16.msra.mxu0 %v783
        %843 = vmatprep.subr.bf16.mxu0 %v764
        %844 = vmatpush1.bf16.msra.mxu0 %v763
        %845 = vmatprep.subr.bf16.mxu0 0
        %846 = vmatpush2.bf16.msra.mxu0 0
        %847 = vmatprep.subr.bf16.mxu0 0
        %848 = vmatpush2.bf16.msra.mxu0 0
        %849 = vmatprep.subr.bf16.mxu0 0
        %850 = vmatpush2.bf16.msra.mxu0 0
        %851 = vmatprep.subr.bf16.mxu0 0
        %852 = vmatpush2.bf16.msra.mxu0 0
        %853 = vmatprep.subr.bf16.mxu0 0
        %854 = vmatpush2.bf16.msra.mxu0 0
        %855 = vmatprep.subr.bf16.mxu0 0
        %856 = vmatpush2.bf16.msra.mxu0 0
        %857 = vmatprep.subr.bf16.mxu0 0
        %858 = vmatpush2.bf16.msra.mxu0 0
        %859 = vmatprep.subr.bf16.mxu0 0
        %860 = vmatpush2.bf16.msra.mxu0 0
        %861 = vmatprep.mubr.bf16.mxu0 0
        %862 = vmatmul.mubr.bf16.gmra.mxu0 %v774
        %v863 = vpop.f32.mrf.mxu0
        %v864 = vadd.f32 %v731, %v863
        %v865 = vpop.f32.mrf.mxu0
        %v866 = vadd.f32 %v733, %v865
        %v867 = vpop.f32.mrf.mxu0
        %v868 = vpop.f32.mrf.mxu0
        %869 = vdwg.mxu0
        %s870 = scalar_lea.vmem %s576, 8
        %v871 = vld [vmem:[%s870] sm:$0x7]
        %s872 = scalar_lea.vmem [#allocation5], 128
        %v873 = vld [vmem:[%s872] sm:$0xff]
        %v874 = vld [vmem:[%s872 + $0x8] sm:$0xff]
        %v875 = vld [vmem:[%s872 + $0x10] sm:$0xff]
        %v876 = vld [vmem:[%s872 + $0x18] sm:$0xff]
        %v877 = vld [vmem:[%s872 + $0x20] sm:$0xff]
        %v878 = vld [vmem:[%s872 + $0x28] sm:$0xff]
        %v879 = vld [vmem:[%s872 + $0x30] sm:$0x33]
        %v880 = vld [vmem:[%s872 + $0x38] sm:$0x33]
        %v889 = vunpack.c.l.b16 %v873
        %v890 = vunpack.c.h.b16 %v873
        %v891 = vunpack.c.l.b16 %v874
        %v892 = vunpack.c.h.b16 %v874
        %v893 = vunpack.c.l.b16 %v875
        %v894 = vunpack.c.h.b16 %v875
        %v895 = vunpack.c.l.b16 %v876
        %v896 = vunpack.c.h.b16 %v876
        %v897 = vunpack.c.l.b16 %v877
        %v898 = vunpack.c.h.b16 %v877
        %v899 = vunpack.c.l.b16 %v878
        %v900 = vunpack.c.h.b16 %v878
        %v901 = vunpack.c.l.b16 %v879
        %v902 = vunpack.c.h.b16 %v879
        %v903 = vunpack.c.l.b16 %v880
        %v904 = vunpack.c.h.b16 %v880
        %v905 = vpack.c.b16 %v893, %v889
        %v906 = vpack.c.b16 %v894, %v890
        %v907 = vpack.c.b16 %v895, %v891
        %v908 = vpack.c.b16 %v896, %v892
        %v909 = vpack.c.b16 %v901, %v897
        %v910 = vpack.c.b16 %v902, %v898
        %v911 = vpack.c.b16 %v903, %v899
        %v912 = vpack.c.b16 %v904, %v900
        %v918 = vsel %vm638, %v871, 0
        %v921 = vsel %vm642, %v909, 0
        %v924 = vsel %vm642, %v910, 0
        %v927 = vsel %vm642, %v911, 0
        %v930 = vsel %vm642, %v912, 0
        %932 = vmatprep.subr.bf16.mxu0 0
        %933 = vmatpush1.bf16.msra.mxu0 0
        %934 = vmatprep.subr.bf16.mxu0 0
        %935 = vmatpush1.bf16.msra.mxu0 0
        %936 = vmatprep.subr.bf16.mxu0 0
        %937 = vmatpush1.bf16.msra.mxu0 0
        %938 = vmatprep.subr.bf16.mxu0 0
        %939 = vmatpush1.bf16.msra.mxu0 0
        %940 = vmatprep.subr.bf16.mxu0 0
        %941 = vmatpush1.bf16.msra.mxu0 0
        %942 = vmatprep.subr.bf16.mxu0 0
        %943 = vmatpush1.bf16.msra.mxu0 0
        %944 = vmatprep.subr.bf16.mxu0 %v924
        %945 = vmatpush1.bf16.msra.mxu0 %v921
        %946 = vmatprep.subr.bf16.mxu0 %v906
        %947 = vmatpush1.bf16.msra.mxu0 %v905
        %948 = vmatprep.subr.bf16.mxu0 0
        %949 = vmatpush2.bf16.msra.mxu0 0
        %950 = vmatprep.subr.bf16.mxu0 0
        %951 = vmatpush2.bf16.msra.mxu0 0
        %952 = vmatprep.subr.bf16.mxu0 0
        %953 = vmatpush2.bf16.msra.mxu0 0
        %954 = vmatprep.subr.bf16.mxu0 0
        %955 = vmatpush2.bf16.msra.mxu0 0
        %956 = vmatprep.subr.bf16.mxu0 0
        %957 = vmatpush2.bf16.msra.mxu0 0
        %958 = vmatprep.subr.bf16.mxu0 0
        %959 = vmatpush2.bf16.msra.mxu0 0
        %960 = vmatprep.subr.bf16.mxu0 0
        %961 = vmatpush2.bf16.msra.mxu0 0
        %962 = vmatprep.subr.bf16.mxu0 0
        %963 = vmatpush2.bf16.msra.mxu0 0
        %964 = vmatprep.mubr.bf16.mxu0 0
        %965 = vmatmul.mubr.bf16.gmra.mxu0 %v918
        %v966 = vpop.f32.mrf.mxu0
        %v967 = vadd.f32 0.0, %v966
        %v968 = vpop.f32.mrf.mxu0
        %v969 = vadd.f32 0.0, %v968
        %v970 = vpop.f32.mrf.mxu0
        %v971 = vpop.f32.mrf.mxu0
        %972 = vdwg.mxu0
        %973 = vmatprep.subr.bf16.mxu0 0
        %974 = vmatpush1.bf16.msra.mxu0 0
        %975 = vmatprep.subr.bf16.mxu0 0
        %976 = vmatpush1.bf16.msra.mxu0 0
        %977 = vmatprep.subr.bf16.mxu0 0
        %978 = vmatpush1.bf16.msra.mxu0 0
        %979 = vmatprep.subr.bf16.mxu0 0
        %980 = vmatpush1.bf16.msra.mxu0 0
        %981 = vmatprep.subr.bf16.mxu0 0
        %982 = vmatpush1.bf16.msra.mxu0 0
        %983 = vmatprep.subr.bf16.mxu0 0
        %984 = vmatpush1.bf16.msra.mxu0 0
        %985 = vmatprep.subr.bf16.mxu0 %v930
        %986 = vmatpush1.bf16.msra.mxu0 %v927
        %987 = vmatprep.subr.bf16.mxu0 %v908
        %988 = vmatpush1.bf16.msra.mxu0 %v907
        %989 = vmatprep.subr.bf16.mxu0 0
        %990 = vmatpush2.bf16.msra.mxu0 0
        %991 = vmatprep.subr.bf16.mxu0 0
        %992 = vmatpush2.bf16.msra.mxu0 0
        %993 = vmatprep.subr.bf16.mxu0 0
        %994 = vmatpush2.bf16.msra.mxu0 0
        %995 = vmatprep.subr.bf16.mxu0 0
        %996 = vmatpush2.bf16.msra.mxu0 0
        %997 = vmatprep.subr.bf16.mxu0 0
        %998 = vmatpush2.bf16.msra.mxu0 0
        %999 = vmatprep.subr.bf16.mxu0 0
        %1000 = vmatpush2.bf16.msra.mxu0 0
        %1001 = vmatprep.subr.bf16.mxu0 0
        %1002 = vmatpush2.bf16.msra.mxu0 0
        %1003 = vmatprep.subr.bf16.mxu0 0
        %1004 = vmatpush2.bf16.msra.mxu0 0
        %1005 = vmatprep.mubr.bf16.mxu0 0
        %1006 = vmatmul.mubr.bf16.gmra.mxu0 %v918
        %v1007 = vpop.f32.mrf.mxu0
        %v1008 = vadd.f32 0.0, %v1007
        %v1009 = vpop.f32.mrf.mxu0
        %v1010 = vadd.f32 0.0, %v1009
        %v1011 = vpop.f32.mrf.mxu0
        %v1012 = vpop.f32.mrf.mxu0
        %1013 = vdwg.mxu0
        %v1014 = vadd.f32 %v823, %v967
        %v1015 = vadd.f32 %v825, %v969
        %v1016 = vadd.f32 %v864, %v1008
        %v1017 = vadd.f32 %v866, %v1010
        %s1018 = scalar_lea.vmem %s576, 12
        %v1019 = vld [vmem:[%s1018] sm:$0x7]
        %s1020 = scalar_lea.vmem [#allocation5], 192
        %v1021 = vld [vmem:[%s1020] sm:$0xff]
        %v1022 = vld [vmem:[%s1020 + $0x8] sm:$0xff]
        %v1023 = vld [vmem:[%s1020 + $0x10] sm:$0xff]
        %v1024 = vld [vmem:[%s1020 + $0x18] sm:$0xff]
        %v1025 = vld [vmem:[%s1020 + $0x20] sm:$0xff]
        %v1026 = vld [vmem:[%s1020 + $0x28] sm:$0xff]
        %v1027 = vld [vmem:[%s1020 + $0x30] sm:$0x33]
        %v1028 = vld [vmem:[%s1020 + $0x38] sm:$0x33]
        %v1037 = vunpack.c.l.b16 %v1021
        %v1038 = vunpack.c.h.b16 %v1021
        %v1039 = vunpack.c.l.b16 %v1022
        %v1040 = vunpack.c.h.b16 %v1022
        %v1041 = vunpack.c.l.b16 %v1023
        %v1042 = vunpack.c.h.b16 %v1023
        %v1043 = vunpack.c.l.b16 %v1024
        %v1044 = vunpack.c.h.b16 %v1024
        %v1045 = vunpack.c.l.b16 %v1025
        %v1046 = vunpack.c.h.b16 %v1025
        %v1047 = vunpack.c.l.b16 %v1026
        %v1048 = vunpack.c.h.b16 %v1026
        %v1049 = vunpack.c.l.b16 %v1027
        %v1050 = vunpack.c.h.b16 %v1027
        %v1051 = vunpack.c.l.b16 %v1028
        %v1052 = vunpack.c.h.b16 %v1028
        %v1053 = vpack.c.b16 %v1041, %v1037
        %v1054 = vpack.c.b16 %v1042, %v1038
        %v1055 = vpack.c.b16 %v1043, %v1039
        %v1056 = vpack.c.b16 %v1044, %v1040
        %v1057 = vpack.c.b16 %v1049, %v1045
        %v1058 = vpack.c.b16 %v1050, %v1046
        %v1059 = vpack.c.b16 %v1051, %v1047
        %v1060 = vpack.c.b16 %v1052, %v1048
        %v1066 = vsel %vm638, %v1019, 0
        %v1069 = vsel %vm642, %v1057, 0
        %v1072 = vsel %vm642, %v1058, 0
        %v1075 = vsel %vm642, %v1059, 0
        %v1078 = vsel %vm642, %v1060, 0
        %1080 = vmatprep.subr.bf16.mxu0 0
        %1081 = vmatpush1.bf16.msra.mxu0 0
        %1082 = vmatprep.subr.bf16.mxu0 0
        %1083 = vmatpush1.bf16.msra.mxu0 0
        %1084 = vmatprep.subr.bf16.mxu0 0
        %1085 = vmatpush1.bf16.msra.mxu0 0
        %1086 = vmatprep.subr.bf16.mxu0 0
        %1087 = vmatpush1.bf16.msra.mxu0 0
        %1088 = vmatprep.subr.bf16.mxu0 0
        %1089 = vmatpush1.bf16.msra.mxu0 0
        %1090 = vmatprep.subr.bf16.mxu0 0
        %1091 = vmatpush1.bf16.msra.mxu0 0
        %1092 = vmatprep.subr.bf16.mxu0 %v1072
        %1093 = vmatpush1.bf16.msra.mxu0 %v1069
        %1094 = vmatprep.subr.bf16.mxu0 %v1054
        %1095 = vmatpush1.bf16.msra.mxu0 %v1053
        %1096 = vmatprep.subr.bf16.mxu0 0
        %1097 = vmatpush2.bf16.msra.mxu0 0
        %1098 = vmatprep.subr.bf16.mxu0 0
        %1099 = vmatpush2.bf16.msra.mxu0 0
        %1100 = vmatprep.subr.bf16.mxu0 0
        %1101 = vmatpush2.bf16.msra.mxu0 0
        %1102 = vmatprep.subr.bf16.mxu0 0
        %1103 = vmatpush2.bf16.msra.mxu0 0
        %1104 = vmatprep.subr.bf16.mxu0 0
        %1105 = vmatpush2.bf16.msra.mxu0 0
        %1106 = vmatprep.subr.bf16.mxu0 0
        %1107 = vmatpush2.bf16.msra.mxu0 0
        %1108 = vmatprep.subr.bf16.mxu0 0
        %1109 = vmatpush2.bf16.msra.mxu0 0
        %1110 = vmatprep.subr.bf16.mxu0 0
        %1111 = vmatpush2.bf16.msra.mxu0 0
        %1112 = vmatprep.mubr.bf16.mxu0 0
        %1113 = vmatmul.mubr.bf16.gmra.mxu0 %v1066
        %v1114 = vpop.f32.mrf.mxu0
        %v1115 = vadd.f32 0.0, %v1114
        %v1116 = vpop.f32.mrf.mxu0
        %v1117 = vadd.f32 0.0, %v1116
        %v1118 = vpop.f32.mrf.mxu0
        %v1119 = vpop.f32.mrf.mxu0
        %1120 = vdwg.mxu0
        %1121 = vmatprep.subr.bf16.mxu0 0
        %1122 = vmatpush1.bf16.msra.mxu0 0
        %1123 = vmatprep.subr.bf16.mxu0 0
        %1124 = vmatpush1.bf16.msra.mxu0 0
        %1125 = vmatprep.subr.bf16.mxu0 0
        %1126 = vmatpush1.bf16.msra.mxu0 0
        %1127 = vmatprep.subr.bf16.mxu0 0
        %1128 = vmatpush1.bf16.msra.mxu0 0
        %1129 = vmatprep.subr.bf16.mxu0 0
        %1130 = vmatpush1.bf16.msra.mxu0 0
        %1131 = vmatprep.subr.bf16.mxu0 0
        %1132 = vmatpush1.bf16.msra.mxu0 0
        %1133 = vmatprep.subr.bf16.mxu0 %v1078
        %1134 = vmatpush1.bf16.msra.mxu0 %v1075
        %1135 = vmatprep.subr.bf16.mxu0 %v1056
        %1136 = vmatpush1.bf16.msra.mxu0 %v1055
        %1137 = vmatprep.subr.bf16.mxu0 0
        %1138 = vmatpush2.bf16.msra.mxu0 0
        %1139 = vmatprep.subr.bf16.mxu0 0
        %1140 = vmatpush2.bf16.msra.mxu0 0
        %1141 = vmatprep.subr.bf16.mxu0 0
        %1142 = vmatpush2.bf16.msra.mxu0 0
        %1143 = vmatprep.subr.bf16.mxu0 0
        %1144 = vmatpush2.bf16.msra.mxu0 0
        %1145 = vmatprep.subr.bf16.mxu0 0
        %1146 = vmatpush2.bf16.msra.mxu0 0
        %1147 = vmatprep.subr.bf16.mxu0 0
        %1148 = vmatpush2.bf16.msra.mxu0 0
        %1149 = vmatprep.subr.bf16.mxu0 0
        %1150 = vmatpush2.bf16.msra.mxu0 0
        %1151 = vmatprep.subr.bf16.mxu0 0
        %1152 = vmatpush2.bf16.msra.mxu0 0
        %1153 = vmatprep.mubr.bf16.mxu0 0
        %1154 = vmatmul.mubr.bf16.gmra.mxu0 %v1066
        %v1155 = vpop.f32.mrf.mxu0
        %v1156 = vadd.f32 0.0, %v1155
        %v1157 = vpop.f32.mrf.mxu0
        %v1158 = vadd.f32 0.0, %v1157
        %v1159 = vpop.f32.mrf.mxu0
        %v1160 = vpop.f32.mrf.mxu0
        %1161 = vdwg.mxu0
        %v1162 = vadd.f32 %v1014, %v1115
        %v1163 = vadd.f32 %v1015, %v1117
        %v1164 = vadd.f32 %v1016, %v1156
        %v1165 = vadd.f32 %v1017, %v1158
        %v1166 = vld [vmem:[%s576] sm:$0xf]
        %s1167 = scalar_lea.vmem [#allocation5], 256
        %v1168 = vld [vmem:[%s1167] sm:$0xff]
        %v1169 = vld [vmem:[%s1167 + $0x8] sm:$0xff]
        %v1170 = vld [vmem:[%s1167 + $0x10] sm:$0xff]
        %v1171 = vld [vmem:[%s1167 + $0x18] sm:$0xff]
        %v1172 = vld [vmem:[%s1167 + $0x20] sm:$0xff]
        %v1173 = vld [vmem:[%s1167 + $0x28] sm:$0xff]
        %v1174 = vld [vmem:[%s1167 + $0x30] sm:$0x33]
        %v1175 = vld [vmem:[%s1167 + $0x38] sm:$0x33]
        %v1177 = vunpack.c.l.b16 %v1166
        %v1178 = vpack.c.b16 %v1177, %v1177
        %v1180 = vshrl.u32 %v1178, 16
        %v1182 = vshll.u32 %v1178, 16
        %v1184 = vrot.slane %v1182, 1
        %v1185 = vor.u32 %v1180, %v1184
        %v1194 = vunpack.c.l.b16 %v1168
        %v1195 = vunpack.c.h.b16 %v1168
        %v1196 = vunpack.c.l.b16 %v1169
        %v1197 = vunpack.c.h.b16 %v1169
        %v1198 = vunpack.c.l.b16 %v1170
        %v1199 = vunpack.c.h.b16 %v1170
        %v1200 = vunpack.c.l.b16 %v1171
        %v1201 = vunpack.c.h.b16 %v1171
        %v1202 = vunpack.c.l.b16 %v1172
        %v1203 = vunpack.c.h.b16 %v1172
        %v1204 = vunpack.c.l.b16 %v1173
        %v1205 = vunpack.c.h.b16 %v1173
        %v1206 = vunpack.c.l.b16 %v1174
        %v1207 = vunpack.c.h.b16 %v1174
        %v1208 = vunpack.c.l.b16 %v1175
        %v1209 = vunpack.c.h.b16 %v1175
        %v1210 = vpack.c.b16 %v1198, %v1194
        %v1211 = vpack.c.b16 %v1199, %v1195
        %v1212 = vpack.c.b16 %v1200, %v1196
        %v1213 = vpack.c.b16 %v1201, %v1197
        %v1214 = vpack.c.b16 %v1206, %v1202
        %v1215 = vpack.c.b16 %v1207, %v1203
        %v1216 = vpack.c.b16 %v1208, %v1204
        %v1217 = vpack.c.b16 %v1209, %v1205
        %v1223 = vsel %vm638, %v1185, 0
        %v1226 = vsel %vm642, %v1214, 0
        %v1229 = vsel %vm642, %v1215, 0
        %v1232 = vsel %vm642, %v1216, 0
        %v1235 = vsel %vm642, %v1217, 0
        %1237 = vmatprep.subr.bf16.mxu0 0
        %1238 = vmatpush1.bf16.msra.mxu0 0
        %1239 = vmatprep.subr.bf16.mxu0 0
        %1240 = vmatpush1.bf16.msra.mxu0 0
        %1241 = vmatprep.subr.bf16.mxu0 0
        %1242 = vmatpush1.bf16.msra.mxu0 0
        %1243 = vmatprep.subr.bf16.mxu0 0
        %1244 = vmatpush1.bf16.msra.mxu0 0
        %1245 = vmatprep.subr.bf16.mxu0 0
        %1246 = vmatpush1.bf16.msra.mxu0 0
        %1247 = vmatprep.subr.bf16.mxu0 0
        %1248 = vmatpush1.bf16.msra.mxu0 0
        %1249 = vmatprep.subr.bf16.mxu0 %v1229
        %1250 = vmatpush1.bf16.msra.mxu0 %v1226
        %1251 = vmatprep.subr.bf16.mxu0 %v1211
        %1252 = vmatpush1.bf16.msra.mxu0 %v1210
        %1253 = vmatprep.subr.bf16.mxu0 0
        %1254 = vmatpush2.bf16.msra.mxu0 0
        %1255 = vmatprep.subr.bf16.mxu0 0
        %1256 = vmatpush2.bf16.msra.mxu0 0
        %1257 = vmatprep.subr.bf16.mxu0 0
        %1258 = vmatpush2.bf16.msra.mxu0 0
        %1259 = vmatprep.subr.bf16.mxu0 0
        %1260 = vmatpush2.bf16.msra.mxu0 0
        %1261 = vmatprep.subr.bf16.mxu0 0
        %1262 = vmatpush2.bf16.msra.mxu0 0
        %1263 = vmatprep.subr.bf16.mxu0 0
        %1264 = vmatpush2.bf16.msra.mxu0 0
        %1265 = vmatprep.subr.bf16.mxu0 0
        %1266 = vmatpush2.bf16.msra.mxu0 0
        %1267 = vmatprep.subr.bf16.mxu0 0
        %1268 = vmatpush2.bf16.msra.mxu0 0
        %1269 = vmatprep.mubr.bf16.mxu0 0
        %1270 = vmatmul.mubr.bf16.gmra.mxu0 %v1223
        %v1271 = vpop.f32.mrf.mxu0
        %v1272 = vadd.f32 0.0, %v1271
        %v1273 = vpop.f32.mrf.mxu0
        %v1274 = vadd.f32 0.0, %v1273
        %v1275 = vpop.f32.mrf.mxu0
        %v1276 = vpop.f32.mrf.mxu0
        %1277 = vdwg.mxu0
        %1278 = vmatprep.subr.bf16.mxu0 0
        %1279 = vmatpush1.bf16.msra.mxu0 0
        %1280 = vmatprep.subr.bf16.mxu0 0
        %1281 = vmatpush1.bf16.msra.mxu0 0
        %1282 = vmatprep.subr.bf16.mxu0 0
        %1283 = vmatpush1.bf16.msra.mxu0 0
        %1284 = vmatprep.subr.bf16.mxu0 0
        %1285 = vmatpush1.bf16.msra.mxu0 0
        %1286 = vmatprep.subr.bf16.mxu0 0
        %1287 = vmatpush1.bf16.msra.mxu0 0
        %1288 = vmatprep.subr.bf16.mxu0 0
        %1289 = vmatpush1.bf16.msra.mxu0 0
        %1290 = vmatprep.subr.bf16.mxu0 %v1235
        %1291 = vmatpush1.bf16.msra.mxu0 %v1232
        %1292 = vmatprep.subr.bf16.mxu0 %v1213
        %1293 = vmatpush1.bf16.msra.mxu0 %v1212
        %1294 = vmatprep.subr.bf16.mxu0 0
        %1295 = vmatpush2.bf16.msra.mxu0 0
        %1296 = vmatprep.subr.bf16.mxu0 0
        %1297 = vmatpush2.bf16.msra.mxu0 0
        %1298 = vmatprep.subr.bf16.mxu0 0
        %1299 = vmatpush2.bf16.msra.mxu0 0
        %1300 = vmatprep.subr.bf16.mxu0 0
        %1301 = vmatpush2.bf16.msra.mxu0 0
        %1302 = vmatprep.subr.bf16.mxu0 0
        %1303 = vmatpush2.bf16.msra.mxu0 0
        %1304 = vmatprep.subr.bf16.mxu0 0
        %1305 = vmatpush2.bf16.msra.mxu0 0
        %1306 = vmatprep.subr.bf16.mxu0 0
        %1307 = vmatpush2.bf16.msra.mxu0 0
        %1308 = vmatprep.subr.bf16.mxu0 0
        %1309 = vmatpush2.bf16.msra.mxu0 0
        %1310 = vmatprep.mubr.bf16.mxu0 0
        %1311 = vmatmul.mubr.bf16.gmra.mxu0 %v1223
        %v1312 = vpop.f32.mrf.mxu0
        %v1313 = vadd.f32 0.0, %v1312
        %v1314 = vpop.f32.mrf.mxu0
        %v1315 = vadd.f32 0.0, %v1314
        %v1316 = vpop.f32.mrf.mxu0
        %v1317 = vpop.f32.mrf.mxu0
        %1318 = vdwg.mxu0
        %v1319 = vadd.f32 %v1162, %v1272
        %v1320 = vadd.f32 %v1163, %v1274
        %v1321 = vadd.f32 %v1164, %v1313
        %v1322 = vadd.f32 %v1165, %v1315
        %v1323 = vmax.f32 %v1319, %v1321
        %v1324 = vmax.f32 %v1320, %v1322
        %1325 = vmatprep.subr.bf16.mxu0 0
        %1326 = vmatpush1.bf16.msra.mxu0 0
        %1327 = vmatprep.subr.bf16.mxu0 0
        %1328 = vmatpush1.bf16.msra.mxu0 0
        %1329 = vmatprep.subr.bf16.mxu0 0
        %1330 = vmatpush1.bf16.msra.mxu0 0
        %1331 = vmatprep.subr.bf16.mxu0 0
        %1332 = vmatpush1.bf16.msra.mxu0 0
        %1333 = vmatprep.subr.bf16.mxu0 0
        %1334 = vmatpush1.bf16.msra.mxu0 0
        %1335 = vmatprep.subr.bf16.mxu0 0
        %1336 = vmatpush1.bf16.msra.mxu0 0
        %1337 = vmatprep.subr.bf16.mxu0 %v647
        %1338 = vmatpush1.bf16.msra.mxu0 %v644
        %1339 = vmatprep.subr.bf16.mxu0 %v627
        %1340 = vmatpush1.bf16.msra.mxu0 %v626
        %1341 = vmatprep.subr.bf16.mxu0 0
        %1342 = vmatpush2.bf16.msra.mxu0 0
        %1343 = vmatprep.subr.bf16.mxu0 0
        %1344 = vmatpush2.bf16.msra.mxu0 0
        %1345 = vmatprep.subr.bf16.mxu0 0
        %1346 = vmatpush2.bf16.msra.mxu0 0
        %1347 = vmatprep.subr.bf16.mxu0 0
        %1348 = vmatpush2.bf16.msra.mxu0 0
        %1349 = vmatprep.subr.bf16.mxu0 0
        %1350 = vmatpush2.bf16.msra.mxu0 0
        %1351 = vmatprep.subr.bf16.mxu0 0
        %1352 = vmatpush2.bf16.msra.mxu0 0
        %1353 = vmatprep.subr.bf16.mxu0 0
        %1354 = vmatpush2.bf16.msra.mxu0 0
        %1355 = vmatprep.subr.bf16.mxu0 0
        %1356 = vmatpush2.bf16.msra.mxu0 0
        %1357 = vmatprep.mubr.bf16.mxu0 0
        %1358 = vmatmul.mubr.bf16.gmra.mxu0 %v918
        %v1359 = vpop.f32.mrf.mxu0
        %v1360 = vadd.f32 0.0, %v1359
        %v1361 = vpop.f32.mrf.mxu0
        %v1362 = vadd.f32 0.0, %v1361
        %v1363 = vpop.f32.mrf.mxu0
        %v1364 = vpop.f32.mrf.mxu0
        %1365 = vdwg.mxu0
        %1366 = vmatprep.subr.bf16.mxu0 0
        %1367 = vmatpush1.bf16.msra.mxu0 0
        %1368 = vmatprep.subr.bf16.mxu0 0
        %1369 = vmatpush1.bf16.msra.mxu0 0
        %1370 = vmatprep.subr.bf16.mxu0 0
        %1371 = vmatpush1.bf16.msra.mxu0 0
        %1372 = vmatprep.subr.bf16.mxu0 0
        %1373 = vmatpush1.bf16.msra.mxu0 0
        %1374 = vmatprep.subr.bf16.mxu0 0
        %1375 = vmatpush1.bf16.msra.mxu0 0
        %1376 = vmatprep.subr.bf16.mxu0 0
        %1377 = vmatpush1.bf16.msra.mxu0 0
        %1378 = vmatprep.subr.bf16.mxu0 %v653
        %1379 = vmatpush1.bf16.msra.mxu0 %v650
        %1380 = vmatprep.subr.bf16.mxu0 %v629
        %1381 = vmatpush1.bf16.msra.mxu0 %v628
        %1382 = vmatprep.subr.bf16.mxu0 0
        %1383 = vmatpush2.bf16.msra.mxu0 0
        %1384 = vmatprep.subr.bf16.mxu0 0
        %1385 = vmatpush2.bf16.msra.mxu0 0
        %1386 = vmatprep.subr.bf16.mxu0 0
        %1387 = vmatpush2.bf16.msra.mxu0 0
        %1388 = vmatprep.subr.bf16.mxu0 0
        %1389 = vmatpush2.bf16.msra.mxu0 0
        %1390 = vmatprep.subr.bf16.mxu0 0
        %1391 = vmatpush2.bf16.msra.mxu0 0
        %1392 = vmatprep.subr.bf16.mxu0 0
        %1393 = vmatpush2.bf16.msra.mxu0 0
        %1394 = vmatprep.subr.bf16.mxu0 0
        %1395 = vmatpush2.bf16.msra.mxu0 0
        %1396 = vmatprep.subr.bf16.mxu0 0
        %1397 = vmatpush2.bf16.msra.mxu0 0
        %1398 = vmatprep.mubr.bf16.mxu0 0
        %1399 = vmatmul.mubr.bf16.gmra.mxu0 %v918
        %v1400 = vpop.f32.mrf.mxu0
        %v1401 = vadd.f32 0.0, %v1400
        %v1402 = vpop.f32.mrf.mxu0
        %v1403 = vadd.f32 0.0, %v1402
        %v1404 = vpop.f32.mrf.mxu0
        %v1405 = vpop.f32.mrf.mxu0
        %1406 = vdwg.mxu0
        %1407 = vmatprep.subr.bf16.mxu0 0
        %1408 = vmatpush1.bf16.msra.mxu0 0
        %1409 = vmatprep.subr.bf16.mxu0 0
        %1410 = vmatpush1.bf16.msra.mxu0 0
        %1411 = vmatprep.subr.bf16.mxu0 0
        %1412 = vmatpush1.bf16.msra.mxu0 0
        %1413 = vmatprep.subr.bf16.mxu0 0
        %1414 = vmatpush1.bf16.msra.mxu0 0
        %1415 = vmatprep.subr.bf16.mxu0 0
        %1416 = vmatpush1.bf16.msra.mxu0 0
        %1417 = vmatprep.subr.bf16.mxu0 0
        %1418 = vmatpush1.bf16.msra.mxu0 0
        %1419 = vmatprep.subr.bf16.mxu0 %v780
        %1420 = vmatpush1.bf16.msra.mxu0 %v777
        %1421 = vmatprep.subr.bf16.mxu0 %v762
        %1422 = vmatpush1.bf16.msra.mxu0 %v761
        %1423 = vmatprep.subr.bf16.mxu0 0
        %1424 = vmatpush2.bf16.msra.mxu0 0
        %1425 = vmatprep.subr.bf16.mxu0 0
        %1426 = vmatpush2.bf16.msra.mxu0 0
        %1427 = vmatprep.subr.bf16.mxu0 0
        %1428 = vmatpush2.bf16.msra.mxu0 0
        %1429 = vmatprep.subr.bf16.mxu0 0
        %1430 = vmatpush2.bf16.msra.mxu0 0
        %1431 = vmatprep.subr.bf16.mxu0 0
        %1432 = vmatpush2.bf16.msra.mxu0 0
        %1433 = vmatprep.subr.bf16.mxu0 0
        %1434 = vmatpush2.bf16.msra.mxu0 0
        %1435 = vmatprep.subr.bf16.mxu0 0
        %1436 = vmatpush2.bf16.msra.mxu0 0
        %1437 = vmatprep.subr.bf16.mxu0 0
        %1438 = vmatpush2.bf16.msra.mxu0 0
        %1439 = vmatprep.mubr.bf16.mxu0 0
        %1440 = vmatmul.mubr.bf16.gmra.mxu0 %v640
        %v1441 = vpop.f32.mrf.mxu0
        %v1442 = vadd.f32 %v1360, %v1441
        %v1443 = vpop.f32.mrf.mxu0
        %v1444 = vadd.f32 %v1362, %v1443
        %v1445 = vpop.f32.mrf.mxu0
        %v1446 = vpop.f32.mrf.mxu0
        %1447 = vdwg.mxu0
        %1448 = vmatprep.subr.bf16.mxu0 0
        %1449 = vmatpush1.bf16.msra.mxu0 0
        %1450 = vmatprep.subr.bf16.mxu0 0
        %1451 = vmatpush1.bf16.msra.mxu0 0
        %1452 = vmatprep.subr.bf16.mxu0 0
        %1453 = vmatpush1.bf16.msra.mxu0 0
        %1454 = vmatprep.subr.bf16.mxu0 0
        %1455 = vmatpush1.bf16.msra.mxu0 0
        %1456 = vmatprep.subr.bf16.mxu0 0
        %1457 = vmatpush1.bf16.msra.mxu0 0
        %1458 = vmatprep.subr.bf16.mxu0 0
        %1459 = vmatpush1.bf16.msra.mxu0 0
        %1460 = vmatprep.subr.bf16.mxu0 %v786
        %1461 = vmatpush1.bf16.msra.mxu0 %v783
        %1462 = vmatprep.subr.bf16.mxu0 %v764
        %1463 = vmatpush1.bf16.msra.mxu0 %v763
        %1464 = vmatprep.subr.bf16.mxu0 0
        %1465 = vmatpush2.bf16.msra.mxu0 0
        %1466 = vmatprep.subr.bf16.mxu0 0
        %1467 = vmatpush2.bf16.msra.mxu0 0
        %1468 = vmatprep.subr.bf16.mxu0 0
        %1469 = vmatpush2.bf16.msra.mxu0 0
        %1470 = vmatprep.subr.bf16.mxu0 0
        %1471 = vmatpush2.bf16.msra.mxu0 0
        %1472 = vmatprep.subr.bf16.mxu0 0
        %1473 = vmatpush2.bf16.msra.mxu0 0
        %1474 = vmatprep.subr.bf16.mxu0 0
        %1475 = vmatpush2.bf16.msra.mxu0 0
        %1476 = vmatprep.subr.bf16.mxu0 0
        %1477 = vmatpush2.bf16.msra.mxu0 0
        %1478 = vmatprep.subr.bf16.mxu0 0
        %1479 = vmatpush2.bf16.msra.mxu0 0
        %1480 = vmatprep.mubr.bf16.mxu0 0
        %1481 = vmatmul.mubr.bf16.gmra.mxu0 %v640
        %v1482 = vpop.f32.mrf.mxu0
        %v1483 = vadd.f32 %v1401, %v1482
        %v1484 = vpop.f32.mrf.mxu0
        %v1485 = vadd.f32 %v1403, %v1484
        %v1486 = vpop.f32.mrf.mxu0
        %v1487 = vpop.f32.mrf.mxu0
        %1488 = vdwg.mxu0
        %1489 = vmatprep.subr.bf16.mxu0 0
        %1490 = vmatpush1.bf16.msra.mxu0 0
        %1491 = vmatprep.subr.bf16.mxu0 0
        %1492 = vmatpush1.bf16.msra.mxu0 0
        %1493 = vmatprep.subr.bf16.mxu0 0
        %1494 = vmatpush1.bf16.msra.mxu0 0
        %1495 = vmatprep.subr.bf16.mxu0 0
        %1496 = vmatpush1.bf16.msra.mxu0 0
        %1497 = vmatprep.subr.bf16.mxu0 0
        %1498 = vmatpush1.bf16.msra.mxu0 0
        %1499 = vmatprep.subr.bf16.mxu0 0
        %1500 = vmatpush1.bf16.msra.mxu0 0
        %1501 = vmatprep.subr.bf16.mxu0 %v924
        %1502 = vmatpush1.bf16.msra.mxu0 %v921
        %1503 = vmatprep.subr.bf16.mxu0 %v906
        %1504 = vmatpush1.bf16.msra.mxu0 %v905
        %1505 = vmatprep.subr.bf16.mxu0 0
        %1506 = vmatpush2.bf16.msra.mxu0 0
        %1507 = vmatprep.subr.bf16.mxu0 0
        %1508 = vmatpush2.bf16.msra.mxu0 0
        %1509 = vmatprep.subr.bf16.mxu0 0
        %1510 = vmatpush2.bf16.msra.mxu0 0
        %1511 = vmatprep.subr.bf16.mxu0 0
        %1512 = vmatpush2.bf16.msra.mxu0 0
        %1513 = vmatprep.subr.bf16.mxu0 0
        %1514 = vmatpush2.bf16.msra.mxu0 0
        %1515 = vmatprep.subr.bf16.mxu0 0
        %1516 = vmatpush2.bf16.msra.mxu0 0
        %1517 = vmatprep.subr.bf16.mxu0 0
        %1518 = vmatpush2.bf16.msra.mxu0 0
        %1519 = vmatprep.subr.bf16.mxu0 0
        %1520 = vmatpush2.bf16.msra.mxu0 0
        %1521 = vmatprep.mubr.bf16.mxu0 0
        %1522 = vmatmul.mubr.bf16.gmra.mxu0 %v1066
        %v1523 = vpop.f32.mrf.mxu0
        %v1524 = vadd.f32 0.0, %v1523
        %v1525 = vpop.f32.mrf.mxu0
        %v1526 = vadd.f32 0.0, %v1525
        %v1527 = vpop.f32.mrf.mxu0
        %v1528 = vpop.f32.mrf.mxu0
        %1529 = vdwg.mxu0
        %1530 = vmatprep.subr.bf16.mxu0 0
        %1531 = vmatpush1.bf16.msra.mxu0 0
        %1532 = vmatprep.subr.bf16.mxu0 0
        %1533 = vmatpush1.bf16.msra.mxu0 0
        %1534 = vmatprep.subr.bf16.mxu0 0
        %1535 = vmatpush1.bf16.msra.mxu0 0
        %1536 = vmatprep.subr.bf16.mxu0 0
        %1537 = vmatpush1.bf16.msra.mxu0 0
        %1538 = vmatprep.subr.bf16.mxu0 0
        %1539 = vmatpush1.bf16.msra.mxu0 0
        %1540 = vmatprep.subr.bf16.mxu0 0
        %1541 = vmatpush1.bf16.msra.mxu0 0
        %1542 = vmatprep.subr.bf16.mxu0 %v930
        %1543 = vmatpush1.bf16.msra.mxu0 %v927
        %1544 = vmatprep.subr.bf16.mxu0 %v908
        %1545 = vmatpush1.bf16.msra.mxu0 %v907
        %1546 = vmatprep.subr.bf16.mxu0 0
        %1547 = vmatpush2.bf16.msra.mxu0 0
        %1548 = vmatprep.subr.bf16.mxu0 0
        %1549 = vmatpush2.bf16.msra.mxu0 0
        %1550 = vmatprep.subr.bf16.mxu0 0
        %1551 = vmatpush2.bf16.msra.mxu0 0
        %1552 = vmatprep.subr.bf16.mxu0 0
        %1553 = vmatpush2.bf16.msra.mxu0 0
        %1554 = vmatprep.subr.bf16.mxu0 0
        %1555 = vmatpush2.bf16.msra.mxu0 0
        %1556 = vmatprep.subr.bf16.mxu0 0
        %1557 = vmatpush2.bf16.msra.mxu0 0
        %1558 = vmatprep.subr.bf16.mxu0 0
        %1559 = vmatpush2.bf16.msra.mxu0 0
        %1560 = vmatprep.subr.bf16.mxu0 0
        %1561 = vmatpush2.bf16.msra.mxu0 0
        %1562 = vmatprep.mubr.bf16.mxu0 0
        %1563 = vmatmul.mubr.bf16.gmra.mxu0 %v1066
        %v1564 = vpop.f32.mrf.mxu0
        %v1565 = vadd.f32 0.0, %v1564
        %v1566 = vpop.f32.mrf.mxu0
        %v1567 = vadd.f32 0.0, %v1566
        %v1568 = vpop.f32.mrf.mxu0
        %v1569 = vpop.f32.mrf.mxu0
        %1570 = vdwg.mxu0
        %v1571 = vadd.f32 %v1442, %v1524
        %v1572 = vadd.f32 %v1444, %v1526
        %v1573 = vadd.f32 %v1483, %v1565
        %v1574 = vadd.f32 %v1485, %v1567
        %1575 = vmatprep.subr.bf16.mxu0 0
        %1576 = vmatpush1.bf16.msra.mxu0 0
        %1577 = vmatprep.subr.bf16.mxu0 0
        %1578 = vmatpush1.bf16.msra.mxu0 0
        %1579 = vmatprep.subr.bf16.mxu0 0
        %1580 = vmatpush1.bf16.msra.mxu0 0
        %1581 = vmatprep.subr.bf16.mxu0 0
        %1582 = vmatpush1.bf16.msra.mxu0 0
        %1583 = vmatprep.subr.bf16.mxu0 0
        %1584 = vmatpush1.bf16.msra.mxu0 0
        %1585 = vmatprep.subr.bf16.mxu0 0
        %1586 = vmatpush1.bf16.msra.mxu0 0
        %1587 = vmatprep.subr.bf16.mxu0 %v1072
        %1588 = vmatpush1.bf16.msra.mxu0 %v1069
        %1589 = vmatprep.subr.bf16.mxu0 %v1054
        %1590 = vmatpush1.bf16.msra.mxu0 %v1053
        %1591 = vmatprep.subr.bf16.mxu0 0
        %1592 = vmatpush2.bf16.msra.mxu0 0
        %1593 = vmatprep.subr.bf16.mxu0 0
        %1594 = vmatpush2.bf16.msra.mxu0 0
        %1595 = vmatprep.subr.bf16.mxu0 0
        %1596 = vmatpush2.bf16.msra.mxu0 0
        %1597 = vmatprep.subr.bf16.mxu0 0
        %1598 = vmatpush2.bf16.msra.mxu0 0
        %1599 = vmatprep.subr.bf16.mxu0 0
        %1600 = vmatpush2.bf16.msra.mxu0 0
        %1601 = vmatprep.subr.bf16.mxu0 0
        %1602 = vmatpush2.bf16.msra.mxu0 0
        %1603 = vmatprep.subr.bf16.mxu0 0
        %1604 = vmatpush2.bf16.msra.mxu0 0
        %1605 = vmatprep.subr.bf16.mxu0 0
        %1606 = vmatpush2.bf16.msra.mxu0 0
        %1607 = vmatprep.mubr.bf16.mxu0 0
        %1608 = vmatmul.mubr.bf16.gmra.mxu0 %v1223
        %v1609 = vpop.f32.mrf.mxu0
        %v1610 = vadd.f32 0.0, %v1609
        %v1611 = vpop.f32.mrf.mxu0
        %v1612 = vadd.f32 0.0, %v1611
        %v1613 = vpop.f32.mrf.mxu0
        %v1614 = vpop.f32.mrf.mxu0
        %1615 = vdwg.mxu0
        %1616 = vmatprep.subr.bf16.mxu0 0
        %1617 = vmatpush1.bf16.msra.mxu0 0
        %1618 = vmatprep.subr.bf16.mxu0 0
        %1619 = vmatpush1.bf16.msra.mxu0 0
        %1620 = vmatprep.subr.bf16.mxu0 0
        %1621 = vmatpush1.bf16.msra.mxu0 0
        %1622 = vmatprep.subr.bf16.mxu0 0
        %1623 = vmatpush1.bf16.msra.mxu0 0
        %1624 = vmatprep.subr.bf16.mxu0 0
        %1625 = vmatpush1.bf16.msra.mxu0 0
        %1626 = vmatprep.subr.bf16.mxu0 0
        %1627 = vmatpush1.bf16.msra.mxu0 0
        %1628 = vmatprep.subr.bf16.mxu0 %v1078
        %1629 = vmatpush1.bf16.msra.mxu0 %v1075
        %1630 = vmatprep.subr.bf16.mxu0 %v1056
        %1631 = vmatpush1.bf16.msra.mxu0 %v1055
        %1632 = vmatprep.subr.bf16.mxu0 0
        %1633 = vmatpush2.bf16.msra.mxu0 0
        %1634 = vmatprep.subr.bf16.mxu0 0
        %1635 = vmatpush2.bf16.msra.mxu0 0
        %1636 = vmatprep.subr.bf16.mxu0 0
        %1637 = vmatpush2.bf16.msra.mxu0 0
        %1638 = vmatprep.subr.bf16.mxu0 0
        %1639 = vmatpush2.bf16.msra.mxu0 0
        %1640 = vmatprep.subr.bf16.mxu0 0
        %1641 = vmatpush2.bf16.msra.mxu0 0
        %1642 = vmatprep.subr.bf16.mxu0 0
        %1643 = vmatpush2.bf16.msra.mxu0 0
        %1644 = vmatprep.subr.bf16.mxu0 0
        %1645 = vmatpush2.bf16.msra.mxu0 0
        %1646 = vmatprep.subr.bf16.mxu0 0
        %1647 = vmatpush2.bf16.msra.mxu0 0
        %1648 = vmatprep.mubr.bf16.mxu0 0
        %1649 = vmatmul.mubr.bf16.gmra.mxu0 %v1223
        %v1650 = vpop.f32.mrf.mxu0
        %v1651 = vadd.f32 0.0, %v1650
        %v1652 = vpop.f32.mrf.mxu0
        %v1653 = vadd.f32 0.0, %v1652
        %v1654 = vpop.f32.mrf.mxu0
        %v1655 = vpop.f32.mrf.mxu0
        %1656 = vdwg.mxu0
        %v1657 = vadd.f32 %v1571, %v1610
        %v1658 = vadd.f32 %v1572, %v1612
        %v1659 = vadd.f32 %v1573, %v1651
        %v1660 = vadd.f32 %v1574, %v1653
        %v1661 = vld [vmem:[%s591] sm:$0xf]
        %v1663 = vunpack.c.l.b16 %v1661
        %v1664 = vpack.c.b16 %v1663, %v1663
        %v1666 = vshrl.u32 %v1664, 16
        %v1668 = vshll.u32 %v1664, 16
        %v1670 = vrot.slane %v1668, 1
        %v1671 = vor.u32 %v1666, %v1670
        %v1673 = vsel %vm638, %v1671, 0
        %1675 = vmatprep.subr.bf16.mxu0 0
        %1676 = vmatpush1.bf16.msra.mxu0 0
        %1677 = vmatprep.subr.bf16.mxu0 0
        %1678 = vmatpush1.bf16.msra.mxu0 0
        %1679 = vmatprep.subr.bf16.mxu0 0
        %1680 = vmatpush1.bf16.msra.mxu0 0
        %1681 = vmatprep.subr.bf16.mxu0 0
        %1682 = vmatpush1.bf16.msra.mxu0 0
        %1683 = vmatprep.subr.bf16.mxu0 0
        %1684 = vmatpush1.bf16.msra.mxu0 0
        %1685 = vmatprep.subr.bf16.mxu0 0
        %1686 = vmatpush1.bf16.msra.mxu0 0
        %1687 = vmatprep.subr.bf16.mxu0 %v1229
        %1688 = vmatpush1.bf16.msra.mxu0 %v1226
        %1689 = vmatprep.subr.bf16.mxu0 %v1211
        %1690 = vmatpush1.bf16.msra.mxu0 %v1210
        %1691 = vmatprep.subr.bf16.mxu0 0
        %1692 = vmatpush2.bf16.msra.mxu0 0
        %1693 = vmatprep.subr.bf16.mxu0 0
        %1694 = vmatpush2.bf16.msra.mxu0 0
        %1695 = vmatprep.subr.bf16.mxu0 0
        %1696 = vmatpush2.bf16.msra.mxu0 0
        %1697 = vmatprep.subr.bf16.mxu0 0
        %1698 = vmatpush2.bf16.msra.mxu0 0
        %1699 = vmatprep.subr.bf16.mxu0 0
        %1700 = vmatpush2.bf16.msra.mxu0 0
        %1701 = vmatprep.subr.bf16.mxu0 0
        %1702 = vmatpush2.bf16.msra.mxu0 0
        %1703 = vmatprep.subr.bf16.mxu0 0
        %1704 = vmatpush2.bf16.msra.mxu0 0
        %1705 = vmatprep.subr.bf16.mxu0 0
        %1706 = vmatpush2.bf16.msra.mxu0 0
        %1707 = vmatprep.mubr.bf16.mxu0 0
        %1708 = vmatmul.mubr.bf16.gmra.mxu0 %v1673
        %v1709 = vpop.f32.mrf.mxu0
        %v1710 = vadd.f32 0.0, %v1709
        %v1711 = vpop.f32.mrf.mxu0
        %v1712 = vadd.f32 0.0, %v1711
        %v1713 = vpop.f32.mrf.mxu0
        %v1714 = vpop.f32.mrf.mxu0
        %1715 = vdwg.mxu0
        %1716 = vmatprep.subr.bf16.mxu0 0
        %1717 = vmatpush1.bf16.msra.mxu0 0
        %1718 = vmatprep.subr.bf16.mxu0 0
        %1719 = vmatpush1.bf16.msra.mxu0 0
        %1720 = vmatprep.subr.bf16.mxu0 0
        %1721 = vmatpush1.bf16.msra.mxu0 0
        %1722 = vmatprep.subr.bf16.mxu0 0
        %1723 = vmatpush1.bf16.msra.mxu0 0
        %1724 = vmatprep.subr.bf16.mxu0 0
        %1725 = vmatpush1.bf16.msra.mxu0 0
        %1726 = vmatprep.subr.bf16.mxu0 0
        %1727 = vmatpush1.bf16.msra.mxu0 0
        %1728 = vmatprep.subr.bf16.mxu0 %v1235
        %1729 = vmatpush1.bf16.msra.mxu0 %v1232
        %1730 = vmatprep.subr.bf16.mxu0 %v1213
        %1731 = vmatpush1.bf16.msra.mxu0 %v1212
        %1732 = vmatprep.subr.bf16.mxu0 0
        %1733 = vmatpush2.bf16.msra.mxu0 0
        %1734 = vmatprep.subr.bf16.mxu0 0
        %1735 = vmatpush2.bf16.msra.mxu0 0
        %1736 = vmatprep.subr.bf16.mxu0 0
        %1737 = vmatpush2.bf16.msra.mxu0 0
        %1738 = vmatprep.subr.bf16.mxu0 0
        %1739 = vmatpush2.bf16.msra.mxu0 0
        %1740 = vmatprep.subr.bf16.mxu0 0
        %1741 = vmatpush2.bf16.msra.mxu0 0
        %1742 = vmatprep.subr.bf16.mxu0 0
        %1743 = vmatpush2.bf16.msra.mxu0 0
        %1744 = vmatprep.subr.bf16.mxu0 0
        %1745 = vmatpush2.bf16.msra.mxu0 0
        %1746 = vmatprep.subr.bf16.mxu0 0
        %1747 = vmatpush2.bf16.msra.mxu0 0
        %1748 = vmatprep.mubr.bf16.mxu0 0
        %1749 = vmatmul.mubr.bf16.gmra.mxu0 %v1673
        %v1750 = vpop.f32.mrf.mxu0
        %v1751 = vadd.f32 0.0, %v1750
        %v1752 = vpop.f32.mrf.mxu0
        %v1753 = vadd.f32 0.0, %v1752
        %v1754 = vpop.f32.mrf.mxu0
        %v1755 = vpop.f32.mrf.mxu0
        %1756 = vdwg.mxu0
        %v1757 = vadd.f32 %v1657, %v1710
        %v1758 = vadd.f32 %v1658, %v1712
        %v1759 = vadd.f32 %v1659, %v1751
        %v1760 = vadd.f32 %v1660, %v1753
        %v1761 = vmax.f32 %v1757, %v1759
        %v1762 = vmax.f32 %v1758, %v1760
        %v1763 = vmax.f32 %v1323, %v1761
        %v1764 = vmax.f32 %v1324, %v1762
        %v1765 = vld [vmem:[%s2] sm:$0x3]
        %v1767 = vlaneseq
        %v1768 = vshrl.u32 %v1767, 7
        %v1769 = vsub.s32 0, %v1768
        %v1770 = vrot.slane %v1765, %v1769
        %v1771 = vlaneseq
        %v1772 = vshrl.u32 %v1771, 7
        %v1773 = vsub.s32 1, %v1772
        %v1774 = vrot.slane %v1765, %v1773
        %v1777 = vadd.f32 %v1763, %v1770
        %v1778 = vadd.f32 %v1764, %v1774
        %v1779 = vmax.f32 %v1777, 0.0
        %v1780 = vmax.f32 %v1778, 0.0
        %v1781 = vpack.c.bf16 %v1779, %v1779
        %v1782 = vpack.c.bf16 %v1780, %v1780
        %1783 = vmatprep.subr.bf16.mxu0 0
        %1784 = vmatpush1.bf16.msra.mxu0 0
        %1785 = vmatprep.subr.bf16.mxu0 0
        %1786 = vmatpush1.bf16.msra.mxu0 0
        %1787 = vmatprep.subr.bf16.mxu0 0
        %1788 = vmatpush1.bf16.msra.mxu0 0
        %1789 = vmatprep.subr.bf16.mxu0 0
        %1790 = vmatpush1.bf16.msra.mxu0 0
        %1791 = vmatprep.subr.bf16.mxu0 0
        %1792 = vmatpush1.bf16.msra.mxu0 0
        %1793 = vmatprep.subr.bf16.mxu0 0
        %1794 = vmatpush1.bf16.msra.mxu0 0
        %1795 = vmatprep.subr.bf16.mxu0 %v647
        %1796 = vmatpush1.bf16.msra.mxu0 %v644
        %1797 = vmatprep.subr.bf16.mxu0 %v627
        %1798 = vmatpush1.bf16.msra.mxu0 %v626
        %1799 = vmatprep.subr.bf16.mxu0 0
        %1800 = vmatpush2.bf16.msra.mxu0 0
        %1801 = vmatprep.subr.bf16.mxu0 0
        %1802 = vmatpush2.bf16.msra.mxu0 0
        %1803 = vmatprep.subr.bf16.mxu0 0
        %1804 = vmatpush2.bf16.msra.mxu0 0
        %1805 = vmatprep.subr.bf16.mxu0 0
        %1806 = vmatpush2.bf16.msra.mxu0 0
        %1807 = vmatprep.subr.bf16.mxu0 0
        %1808 = vmatpush2.bf16.msra.mxu0 0
        %1809 = vmatprep.subr.bf16.mxu0 0
        %1810 = vmatpush2.bf16.msra.mxu0 0
        %1811 = vmatprep.subr.bf16.mxu0 0
        %1812 = vmatpush2.bf16.msra.mxu0 0
        %1813 = vmatprep.subr.bf16.mxu0 0
        %1814 = vmatpush2.bf16.msra.mxu0 0
        %1815 = vmatprep.mubr.bf16.mxu0 0
        %1816 = vmatmul.mubr.bf16.gmra.mxu0 %v1066
        %v1817 = vpop.f32.mrf.mxu0
        %v1818 = vadd.f32 0.0, %v1817
        %v1819 = vpop.f32.mrf.mxu0
        %v1820 = vadd.f32 0.0, %v1819
        %v1821 = vpop.f32.mrf.mxu0
        %v1822 = vpop.f32.mrf.mxu0
        %1823 = vdwg.mxu0
        %1824 = vmatprep.subr.bf16.mxu0 0
        %1825 = vmatpush1.bf16.msra.mxu0 0
        %1826 = vmatprep.subr.bf16.mxu0 0
        %1827 = vmatpush1.bf16.msra.mxu0 0
        %1828 = vmatprep.subr.bf16.mxu0 0
        %1829 = vmatpush1.bf16.msra.mxu0 0
        %1830 = vmatprep.subr.bf16.mxu0 0
        %1831 = vmatpush1.bf16.msra.mxu0 0
        %1832 = vmatprep.subr.bf16.mxu0 0
        %1833 = vmatpush1.bf16.msra.mxu0 0
        %1834 = vmatprep.subr.bf16.mxu0 0
        %1835 = vmatpush1.bf16.msra.mxu0 0
        %1836 = vmatprep.subr.bf16.mxu0 %v653
        %1837 = vmatpush1.bf16.msra.mxu0 %v650
        %1838 = vmatprep.subr.bf16.mxu0 %v629
        %1839 = vmatpush1.bf16.msra.mxu0 %v628
        %1840 = vmatprep.subr.bf16.mxu0 0
        %1841 = vmatpush2.bf16.msra.mxu0 0
        %1842 = vmatprep.subr.bf16.mxu0 0
        %1843 = vmatpush2.bf16.msra.mxu0 0
        %1844 = vmatprep.subr.bf16.mxu0 0
        %1845 = vmatpush2.bf16.msra.mxu0 0
        %1846 = vmatprep.subr.bf16.mxu0 0
        %1847 = vmatpush2.bf16.msra.mxu0 0
        %1848 = vmatprep.subr.bf16.mxu0 0
        %1849 = vmatpush2.bf16.msra.mxu0 0
        %1850 = vmatprep.subr.bf16.mxu0 0
        %1851 = vmatpush2.bf16.msra.mxu0 0
        %1852 = vmatprep.subr.bf16.mxu0 0
        %1853 = vmatpush2.bf16.msra.mxu0 0
        %1854 = vmatprep.subr.bf16.mxu0 0
        %1855 = vmatpush2.bf16.msra.mxu0 0
        %1856 = vmatprep.mubr.bf16.mxu0 0
        %1857 = vmatmul.mubr.bf16.gmra.mxu0 %v1066
        %v1858 = vpop.f32.mrf.mxu0
        %v1859 = vadd.f32 0.0, %v1858
        %v1860 = vpop.f32.mrf.mxu0
        %v1861 = vadd.f32 0.0, %v1860
        %v1862 = vpop.f32.mrf.mxu0
        %v1863 = vpop.f32.mrf.mxu0
        %1864 = vdwg.mxu0
        %1865 = vmatprep.subr.bf16.mxu0 0
        %1866 = vmatpush1.bf16.msra.mxu0 0
        %1867 = vmatprep.subr.bf16.mxu0 0
        %1868 = vmatpush1.bf16.msra.mxu0 0
        %1869 = vmatprep.subr.bf16.mxu0 0
        %1870 = vmatpush1.bf16.msra.mxu0 0
        %1871 = vmatprep.subr.bf16.mxu0 0
        %1872 = vmatpush1.bf16.msra.mxu0 0
        %1873 = vmatprep.subr.bf16.mxu0 0
        %1874 = vmatpush1.bf16.msra.mxu0 0
        %1875 = vmatprep.subr.bf16.mxu0 0
        %1876 = vmatpush1.bf16.msra.mxu0 0
        %1877 = vmatprep.subr.bf16.mxu0 %v780
        %1878 = vmatpush1.bf16.msra.mxu0 %v777
        %1879 = vmatprep.subr.bf16.mxu0 %v762
        %1880 = vmatpush1.bf16.msra.mxu0 %v761
        %1881 = vmatprep.subr.bf16.mxu0 0
        %1882 = vmatpush2.bf16.msra.mxu0 0
        %1883 = vmatprep.subr.bf16.mxu0 0
        %1884 = vmatpush2.bf16.msra.mxu0 0
        %1885 = vmatprep.subr.bf16.mxu0 0
        %1886 = vmatpush2.bf16.msra.mxu0 0
        %1887 = vmatprep.subr.bf16.mxu0 0
        %1888 = vmatpush2.bf16.msra.mxu0 0
        %1889 = vmatprep.subr.bf16.mxu0 0
        %1890 = vmatpush2.bf16.msra.mxu0 0
        %1891 = vmatprep.subr.bf16.mxu0 0
        %1892 = vmatpush2.bf16.msra.mxu0 0
        %1893 = vmatprep.subr.bf16.mxu0 0
        %1894 = vmatpush2.bf16.msra.mxu0 0
        %1895 = vmatprep.subr.bf16.mxu0 0
        %1896 = vmatpush2.bf16.msra.mxu0 0
        %1897 = vmatprep.mubr.bf16.mxu0 0
        %1898 = vmatmul.mubr.bf16.gmra.mxu0 %v918
        %v1899 = vpop.f32.mrf.mxu0
        %v1900 = vadd.f32 %v1818, %v1899
        %v1901 = vpop.f32.mrf.mxu0
        %v1902 = vadd.f32 %v1820, %v1901
        %v1903 = vpop.f32.mrf.mxu0
        %v1904 = vpop.f32.mrf.mxu0
        %1905 = vdwg.mxu0
        %1906 = vmatprep.subr.bf16.mxu0 0
        %1907 = vmatpush1.bf16.msra.mxu0 0
        %1908 = vmatprep.subr.bf16.mxu0 0
        %1909 = vmatpush1.bf16.msra.mxu0 0
        %1910 = vmatprep.subr.bf16.mxu0 0
        %1911 = vmatpush1.bf16.msra.mxu0 0
        %1912 = vmatprep.subr.bf16.mxu0 0
        %1913 = vmatpush1.bf16.msra.mxu0 0
        %1914 = vmatprep.subr.bf16.mxu0 0
        %1915 = vmatpush1.bf16.msra.mxu0 0
        %1916 = vmatprep.subr.bf16.mxu0 0
        %1917 = vmatpush1.bf16.msra.mxu0 0
        %1918 = vmatprep.subr.bf16.mxu0 %v786
        %1919 = vmatpush1.bf16.msra.mxu0 %v783
        %1920 = vmatprep.subr.bf16.mxu0 %v764
        %1921 = vmatpush1.bf16.msra.mxu0 %v763
        %1922 = vmatprep.subr.bf16.mxu0 0
        %1923 = vmatpush2.bf16.msra.mxu0 0
        %1924 = vmatprep.subr.bf16.mxu0 0
        %1925 = vmatpush2.bf16.msra.mxu0 0
        %1926 = vmatprep.subr.bf16.mxu0 0
        %1927 = vmatpush2.bf16.msra.mxu0 0
        %1928 = vmatprep.subr.bf16.mxu0 0
        %1929 = vmatpush2.bf16.msra.mxu0 0
        %1930 = vmatprep.subr.bf16.mxu0 0
        %1931 = vmatpush2.bf16.msra.mxu0 0
        %1932 = vmatprep.subr.bf16.mxu0 0
        %1933 = vmatpush2.bf16.msra.mxu0 0
        %1934 = vmatprep.subr.bf16.mxu0 0
        %1935 = vmatpush2.bf16.msra.mxu0 0
        %1936 = vmatprep.subr.bf16.mxu0 0
        %1937 = vmatpush2.bf16.msra.mxu0 0
        %1938 = vmatprep.mubr.bf16.mxu0 0
        %1939 = vmatmul.mubr.bf16.gmra.mxu0 %v918
        %v1940 = vpop.f32.mrf.mxu0
        %v1941 = vadd.f32 %v1859, %v1940
        %v1942 = vpop.f32.mrf.mxu0
        %v1943 = vadd.f32 %v1861, %v1942
        %v1944 = vpop.f32.mrf.mxu0
        %v1945 = vpop.f32.mrf.mxu0
        %1946 = vdwg.mxu0
        %1947 = vmatprep.subr.bf16.mxu0 0
        %1948 = vmatpush1.bf16.msra.mxu0 0
        %1949 = vmatprep.subr.bf16.mxu0 0
        %1950 = vmatpush1.bf16.msra.mxu0 0
        %1951 = vmatprep.subr.bf16.mxu0 0
        %1952 = vmatpush1.bf16.msra.mxu0 0
        %1953 = vmatprep.subr.bf16.mxu0 0
        %1954 = vmatpush1.bf16.msra.mxu0 0
        %1955 = vmatprep.subr.bf16.mxu0 0
        %1956 = vmatpush1.bf16.msra.mxu0 0
        %1957 = vmatprep.subr.bf16.mxu0 0
        %1958 = vmatpush1.bf16.msra.mxu0 0
        %1959 = vmatprep.subr.bf16.mxu0 %v924
        %1960 = vmatpush1.bf16.msra.mxu0 %v921
        %1961 = vmatprep.subr.bf16.mxu0 %v906
        %1962 = vmatpush1.bf16.msra.mxu0 %v905
        %1963 = vmatprep.subr.bf16.mxu0 0
        %1964 = vmatpush2.bf16.msra.mxu0 0
        %1965 = vmatprep.subr.bf16.mxu0 0
        %1966 = vmatpush2.bf16.msra.mxu0 0
        %1967 = vmatprep.subr.bf16.mxu0 0
        %1968 = vmatpush2.bf16.msra.mxu0 0
        %1969 = vmatprep.subr.bf16.mxu0 0
        %1970 = vmatpush2.bf16.msra.mxu0 0
        %1971 = vmatprep.subr.bf16.mxu0 0
        %1972 = vmatpush2.bf16.msra.mxu0 0
        %1973 = vmatprep.subr.bf16.mxu0 0
        %1974 = vmatpush2.bf16.msra.mxu0 0
        %1975 = vmatprep.subr.bf16.mxu0 0
        %1976 = vmatpush2.bf16.msra.mxu0 0
        %1977 = vmatprep.subr.bf16.mxu0 0
        %1978 = vmatpush2.bf16.msra.mxu0 0
        %1979 = vmatprep.mubr.bf16.mxu0 0
        %1980 = vmatmul.mubr.bf16.gmra.mxu0 %v1223
        %v1981 = vpop.f32.mrf.mxu0
        %v1982 = vadd.f32 0.0, %v1981
        %v1983 = vpop.f32.mrf.mxu0
        %v1984 = vadd.f32 0.0, %v1983
        %v1985 = vpop.f32.mrf.mxu0
        %v1986 = vpop.f32.mrf.mxu0
        %1987 = vdwg.mxu0
        %1988 = vmatprep.subr.bf16.mxu0 0
        %1989 = vmatpush1.bf16.msra.mxu0 0
        %1990 = vmatprep.subr.bf16.mxu0 0
        %1991 = vmatpush1.bf16.msra.mxu0 0
        %1992 = vmatprep.subr.bf16.mxu0 0
        %1993 = vmatpush1.bf16.msra.mxu0 0
        %1994 = vmatprep.subr.bf16.mxu0 0
        %1995 = vmatpush1.bf16.msra.mxu0 0
        %1996 = vmatprep.subr.bf16.mxu0 0
        %1997 = vmatpush1.bf16.msra.mxu0 0
        %1998 = vmatprep.subr.bf16.mxu0 0
        %1999 = vmatpush1.bf16.msra.mxu0 0
        %2000 = vmatprep.subr.bf16.mxu0 %v930
        %2001 = vmatpush1.bf16.msra.mxu0 %v927
        %2002 = vmatprep.subr.bf16.mxu0 %v908
        %2003 = vmatpush1.bf16.msra.mxu0 %v907
        %2004 = vmatprep.subr.bf16.mxu0 0
        %2005 = vmatpush2.bf16.msra.mxu0 0
        %2006 = vmatprep.subr.bf16.mxu0 0
        %2007 = vmatpush2.bf16.msra.mxu0 0
        %2008 = vmatprep.subr.bf16.mxu0 0
        %2009 = vmatpush2.bf16.msra.mxu0 0
        %2010 = vmatprep.subr.bf16.mxu0 0
        %2011 = vmatpush2.bf16.msra.mxu0 0
        %2012 = vmatprep.subr.bf16.mxu0 0
        %2013 = vmatpush2.bf16.msra.mxu0 0
        %2014 = vmatprep.subr.bf16.mxu0 0
        %2015 = vmatpush2.bf16.msra.mxu0 0
        %2016 = vmatprep.subr.bf16.mxu0 0
        %2017 = vmatpush2.bf16.msra.mxu0 0
        %2018 = vmatprep.subr.bf16.mxu0 0
        %2019 = vmatpush2.bf16.msra.mxu0 0
        %2020 = vmatprep.mubr.bf16.mxu0 0
        %2021 = vmatmul.mubr.bf16.gmra.mxu0 %v1223
        %v2022 = vpop.f32.mrf.mxu0
        %v2023 = vadd.f32 0.0, %v2022
        %v2024 = vpop.f32.mrf.mxu0
        %v2025 = vadd.f32 0.0, %v2024
        %v2026 = vpop.f32.mrf.mxu0
        %v2027 = vpop.f32.mrf.mxu0
        %2028 = vdwg.mxu0
        %v2029 = vadd.f32 %v1900, %v1982
        %v2030 = vadd.f32 %v1902, %v1984
        %v2031 = vadd.f32 %v1941, %v2023
        %v2032 = vadd.f32 %v1943, %v2025
        %2033 = vmatprep.subr.bf16.mxu0 0
        %2034 = vmatpush1.bf16.msra.mxu0 0
        %2035 = vmatprep.subr.bf16.mxu0 0
        %2036 = vmatpush1.bf16.msra.mxu0 0
        %2037 = vmatprep.subr.bf16.mxu0 0
        %2038 = vmatpush1.bf16.msra.mxu0 0
        %2039 = vmatprep.subr.bf16.mxu0 0
        %2040 = vmatpush1.bf16.msra.mxu0 0
        %2041 = vmatprep.subr.bf16.mxu0 0
        %2042 = vmatpush1.bf16.msra.mxu0 0
        %2043 = vmatprep.subr.bf16.mxu0 0
        %2044 = vmatpush1.bf16.msra.mxu0 0
        %2045 = vmatprep.subr.bf16.mxu0 %v1072
        %2046 = vmatpush1.bf16.msra.mxu0 %v1069
        %2047 = vmatprep.subr.bf16.mxu0 %v1054
        %2048 = vmatpush1.bf16.msra.mxu0 %v1053
        %2049 = vmatprep.subr.bf16.mxu0 0
        %2050 = vmatpush2.bf16.msra.mxu0 0
        %2051 = vmatprep.subr.bf16.mxu0 0
        %2052 = vmatpush2.bf16.msra.mxu0 0
        %2053 = vmatprep.subr.bf16.mxu0 0
        %2054 = vmatpush2.bf16.msra.mxu0 0
        %2055 = vmatprep.subr.bf16.mxu0 0
        %2056 = vmatpush2.bf16.msra.mxu0 0
        %2057 = vmatprep.subr.bf16.mxu0 0
        %2058 = vmatpush2.bf16.msra.mxu0 0
        %2059 = vmatprep.subr.bf16.mxu0 0
        %2060 = vmatpush2.bf16.msra.mxu0 0
        %2061 = vmatprep.subr.bf16.mxu0 0
        %2062 = vmatpush2.bf16.msra.mxu0 0
        %2063 = vmatprep.subr.bf16.mxu0 0
        %2064 = vmatpush2.bf16.msra.mxu0 0
        %2065 = vmatprep.mubr.bf16.mxu0 0
        %2066 = vmatmul.mubr.bf16.gmra.mxu0 %v1673
        %v2067 = vpop.f32.mrf.mxu0
        %v2068 = vadd.f32 0.0, %v2067
        %v2069 = vpop.f32.mrf.mxu0
        %v2070 = vadd.f32 0.0, %v2069
        %v2071 = vpop.f32.mrf.mxu0
        %v2072 = vpop.f32.mrf.mxu0
        %2073 = vdwg.mxu0
        %2074 = vmatprep.subr.bf16.mxu0 0
        %2075 = vmatpush1.bf16.msra.mxu0 0
        %2076 = vmatprep.subr.bf16.mxu0 0
        %2077 = vmatpush1.bf16.msra.mxu0 0
        %2078 = vmatprep.subr.bf16.mxu0 0
        %2079 = vmatpush1.bf16.msra.mxu0 0
        %2080 = vmatprep.subr.bf16.mxu0 0
        %2081 = vmatpush1.bf16.msra.mxu0 0
        %2082 = vmatprep.subr.bf16.mxu0 0
        %2083 = vmatpush1.bf16.msra.mxu0 0
        %2084 = vmatprep.subr.bf16.mxu0 0
        %2085 = vmatpush1.bf16.msra.mxu0 0
        %2086 = vmatprep.subr.bf16.mxu0 %v1078
        %2087 = vmatpush1.bf16.msra.mxu0 %v1075
        %2088 = vmatprep.subr.bf16.mxu0 %v1056
        %2089 = vmatpush1.bf16.msra.mxu0 %v1055
        %2090 = vmatprep.subr.bf16.mxu0 0
        %2091 = vmatpush2.bf16.msra.mxu0 0
        %2092 = vmatprep.subr.bf16.mxu0 0
        %2093 = vmatpush2.bf16.msra.mxu0 0
        %2094 = vmatprep.subr.bf16.mxu0 0
        %2095 = vmatpush2.bf16.msra.mxu0 0
        %2096 = vmatprep.subr.bf16.mxu0 0
        %2097 = vmatpush2.bf16.msra.mxu0 0
        %2098 = vmatprep.subr.bf16.mxu0 0
        %2099 = vmatpush2.bf16.msra.mxu0 0
        %2100 = vmatprep.subr.bf16.mxu0 0
        %2101 = vmatpush2.bf16.msra.mxu0 0
        %2102 = vmatprep.subr.bf16.mxu0 0
        %2103 = vmatpush2.bf16.msra.mxu0 0
        %2104 = vmatprep.subr.bf16.mxu0 0
        %2105 = vmatpush2.bf16.msra.mxu0 0
        %2106 = vmatprep.mubr.bf16.mxu0 0
        %2107 = vmatmul.mubr.bf16.gmra.mxu0 %v1673
        %v2108 = vpop.f32.mrf.mxu0
        %v2109 = vadd.f32 0.0, %v2108
        %v2110 = vpop.f32.mrf.mxu0
        %v2111 = vadd.f32 0.0, %v2110
        %v2112 = vpop.f32.mrf.mxu0
        %v2113 = vpop.f32.mrf.mxu0
        %2114 = vdwg.mxu0
        %v2115 = vadd.f32 %v2029, %v2068
        %v2116 = vadd.f32 %v2030, %v2070
        %v2117 = vadd.f32 %v2031, %v2109
        %v2118 = vadd.f32 %v2032, %v2111
        %v2119 = vld [vmem:[%s870] sm:$0xf]
        %v2121 = vunpack.c.l.b16 %v2119
        %v2122 = vpack.c.b16 %v2121, %v2121
        %v2124 = vshrl.u32 %v2122, 16
        %v2126 = vshll.u32 %v2122, 16
        %v2128 = vrot.slane %v2126, 1
        %v2129 = vor.u32 %v2124, %v2128
        %v2131 = vsel %vm638, %v2129, 0
        %2133 = vmatprep.subr.bf16.mxu0 0
        %2134 = vmatpush1.bf16.msra.mxu0 0
        %2135 = vmatprep.subr.bf16.mxu0 0
        %2136 = vmatpush1.bf16.msra.mxu0 0
        %2137 = vmatprep.subr.bf16.mxu0 0
        %2138 = vmatpush1.bf16.msra.mxu0 0
        %2139 = vmatprep.subr.bf16.mxu0 0
        %2140 = vmatpush1.bf16.msra.mxu0 0
        %2141 = vmatprep.subr.bf16.mxu0 0
        %2142 = vmatpush1.bf16.msra.mxu0 0
        %2143 = vmatprep.subr.bf16.mxu0 0
        %2144 = vmatpush1.bf16.msra.mxu0 0
        %2145 = vmatprep.subr.bf16.mxu0 %v1229
        %2146 = vmatpush1.bf16.msra.mxu0 %v1226
        %2147 = vmatprep.subr.bf16.mxu0 %v1211
        %2148 = vmatpush1.bf16.msra.mxu0 %v1210
        %2149 = vmatprep.subr.bf16.mxu0 0
        %2150 = vmatpush2.bf16.msra.mxu0 0
        %2151 = vmatprep.subr.bf16.mxu0 0
        %2152 = vmatpush2.bf16.msra.mxu0 0
        %2153 = vmatprep.subr.bf16.mxu0 0
        %2154 = vmatpush2.bf16.msra.mxu0 0
        %2155 = vmatprep.subr.bf16.mxu0 0
        %2156 = vmatpush2.bf16.msra.mxu0 0
        %2157 = vmatprep.subr.bf16.mxu0 0
        %2158 = vmatpush2.bf16.msra.mxu0 0
        %2159 = vmatprep.subr.bf16.mxu0 0
        %2160 = vmatpush2.bf16.msra.mxu0 0
        %2161 = vmatprep.subr.bf16.mxu0 0
        %2162 = vmatpush2.bf16.msra.mxu0 0
        %2163 = vmatprep.subr.bf16.mxu0 0
        %2164 = vmatpush2.bf16.msra.mxu0 0
        %2165 = vmatprep.mubr.bf16.mxu0 0
        %2166 = vmatmul.mubr.bf16.gmra.mxu0 %v2131
        %v2167 = vpop.f32.mrf.mxu0
        %v2168 = vadd.f32 0.0, %v2167
        %v2169 = vpop.f32.mrf.mxu0
        %v2170 = vadd.f32 0.0, %v2169
        %v2171 = vpop.f32.mrf.mxu0
        %v2172 = vpop.f32.mrf.mxu0
        %2173 = vdwg.mxu0
        %2174 = vmatprep.subr.bf16.mxu0 0
        %2175 = vmatpush1.bf16.msra.mxu0 0
        %2176 = vmatprep.subr.bf16.mxu0 0
        %2177 = vmatpush1.bf16.msra.mxu0 0
        %2178 = vmatprep.subr.bf16.mxu0 0
        %2179 = vmatpush1.bf16.msra.mxu0 0
        %2180 = vmatprep.subr.bf16.mxu0 0
        %2181 = vmatpush1.bf16.msra.mxu0 0
        %2182 = vmatprep.subr.bf16.mxu0 0
        %2183 = vmatpush1.bf16.msra.mxu0 0
        %2184 = vmatprep.subr.bf16.mxu0 0
        %2185 = vmatpush1.bf16.msra.mxu0 0
        %2186 = vmatprep.subr.bf16.mxu0 %v1235
        %2187 = vmatpush1.bf16.msra.mxu0 %v1232
        %2188 = vmatprep.subr.bf16.mxu0 %v1213
        %2189 = vmatpush1.bf16.msra.mxu0 %v1212
        %2190 = vmatprep.subr.bf16.mxu0 0
        %2191 = vmatpush2.bf16.msra.mxu0 0
        %2192 = vmatprep.subr.bf16.mxu0 0
        %2193 = vmatpush2.bf16.msra.mxu0 0
        %2194 = vmatprep.subr.bf16.mxu0 0
        %2195 = vmatpush2.bf16.msra.mxu0 0
        %2196 = vmatprep.subr.bf16.mxu0 0
        %2197 = vmatpush2.bf16.msra.mxu0 0
        %2198 = vmatprep.subr.bf16.mxu0 0
        %2199 = vmatpush2.bf16.msra.mxu0 0
        %2200 = vmatprep.subr.bf16.mxu0 0
        %2201 = vmatpush2.bf16.msra.mxu0 0
        %2202 = vmatprep.subr.bf16.mxu0 0
        %2203 = vmatpush2.bf16.msra.mxu0 0
        %2204 = vmatprep.subr.bf16.mxu0 0
        %2205 = vmatpush2.bf16.msra.mxu0 0
        %2206 = vmatprep.mubr.bf16.mxu0 0
        %2207 = vmatmul.mubr.bf16.gmra.mxu0 %v2131
        %v2208 = vpop.f32.mrf.mxu0
        %v2209 = vadd.f32 0.0, %v2208
        %v2210 = vpop.f32.mrf.mxu0
        %v2211 = vadd.f32 0.0, %v2210
        %v2212 = vpop.f32.mrf.mxu0
        %v2213 = vpop.f32.mrf.mxu0
        %2214 = vdwg.mxu0
        %v2215 = vadd.f32 %v2115, %v2168
        %v2216 = vadd.f32 %v2116, %v2170
        %v2217 = vadd.f32 %v2117, %v2209
        %v2218 = vadd.f32 %v2118, %v2211
        %v2219 = vmax.f32 %v2215, %v2217
        %v2220 = vmax.f32 %v2216, %v2218
        %2221 = vmatprep.subr.bf16.mxu0 0
        %2222 = vmatpush1.bf16.msra.mxu0 0
        %2223 = vmatprep.subr.bf16.mxu0 0
        %2224 = vmatpush1.bf16.msra.mxu0 0
        %2225 = vmatprep.subr.bf16.mxu0 0
        %2226 = vmatpush1.bf16.msra.mxu0 0
        %2227 = vmatprep.subr.bf16.mxu0 0
        %2228 = vmatpush1.bf16.msra.mxu0 0
        %2229 = vmatprep.subr.bf16.mxu0 0
        %2230 = vmatpush1.bf16.msra.mxu0 0
        %2231 = vmatprep.subr.bf16.mxu0 0
        %2232 = vmatpush1.bf16.msra.mxu0 0
        %2233 = vmatprep.subr.bf16.mxu0 %v647
        %2234 = vmatpush1.bf16.msra.mxu0 %v644
        %2235 = vmatprep.subr.bf16.mxu0 %v627
        %2236 = vmatpush1.bf16.msra.mxu0 %v626
        %2237 = vmatprep.subr.bf16.mxu0 0
        %2238 = vmatpush2.bf16.msra.mxu0 0
        %2239 = vmatprep.subr.bf16.mxu0 0
        %2240 = vmatpush2.bf16.msra.mxu0 0
        %2241 = vmatprep.subr.bf16.mxu0 0
        %2242 = vmatpush2.bf16.msra.mxu0 0
        %2243 = vmatprep.subr.bf16.mxu0 0
        %2244 = vmatpush2.bf16.msra.mxu0 0
        %2245 = vmatprep.subr.bf16.mxu0 0
        %2246 = vmatpush2.bf16.msra.mxu0 0
        %2247 = vmatprep.subr.bf16.mxu0 0
        %2248 = vmatpush2.bf16.msra.mxu0 0
        %2249 = vmatprep.subr.bf16.mxu0 0
        %2250 = vmatpush2.bf16.msra.mxu0 0
        %2251 = vmatprep.subr.bf16.mxu0 0
        %2252 = vmatpush2.bf16.msra.mxu0 0
        %2253 = vmatprep.mubr.bf16.mxu0 0
        %2254 = vmatmul.mubr.bf16.gmra.mxu0 %v1223
        %v2255 = vpop.f32.mrf.mxu0
        %v2256 = vadd.f32 0.0, %v2255
        %v2257 = vpop.f32.mrf.mxu0
        %v2258 = vadd.f32 0.0, %v2257
        %v2259 = vpop.f32.mrf.mxu0
        %v2260 = vpop.f32.mrf.mxu0
        %2261 = vdwg.mxu0
        %2262 = vmatprep.subr.bf16.mxu0 0
        %2263 = vmatpush1.bf16.msra.mxu0 0
        %2264 = vmatprep.subr.bf16.mxu0 0
        %2265 = vmatpush1.bf16.msra.mxu0 0
        %2266 = vmatprep.subr.bf16.mxu0 0
        %2267 = vmatpush1.bf16.msra.mxu0 0
        %2268 = vmatprep.subr.bf16.mxu0 0
        %2269 = vmatpush1.bf16.msra.mxu0 0
        %2270 = vmatprep.subr.bf16.mxu0 0
        %2271 = vmatpush1.bf16.msra.mxu0 0
        %2272 = vmatprep.subr.bf16.mxu0 0
        %2273 = vmatpush1.bf16.msra.mxu0 0
        %2274 = vmatprep.subr.bf16.mxu0 %v653
        %2275 = vmatpush1.bf16.msra.mxu0 %v650
        %2276 = vmatprep.subr.bf16.mxu0 %v629
        %2277 = vmatpush1.bf16.msra.mxu0 %v628
        %2278 = vmatprep.subr.bf16.mxu0 0
        %2279 = vmatpush2.bf16.msra.mxu0 0
        %2280 = vmatprep.subr.bf16.mxu0 0
        %2281 = vmatpush2.bf16.msra.mxu0 0
        %2282 = vmatprep.subr.bf16.mxu0 0
        %2283 = vmatpush2.bf16.msra.mxu0 0
        %2284 = vmatprep.subr.bf16.mxu0 0
        %2285 = vmatpush2.bf16.msra.mxu0 0
        %2286 = vmatprep.subr.bf16.mxu0 0
        %2287 = vmatpush2.bf16.msra.mxu0 0
        %2288 = vmatprep.subr.bf16.mxu0 0
        %2289 = vmatpush2.bf16.msra.mxu0 0
        %2290 = vmatprep.subr.bf16.mxu0 0
        %2291 = vmatpush2.bf16.msra.mxu0 0
        %2292 = vmatprep.subr.bf16.mxu0 0
        %2293 = vmatpush2.bf16.msra.mxu0 0
        %2294 = vmatprep.mubr.bf16.mxu0 0
        %2295 = vmatmul.mubr.bf16.gmra.mxu0 %v1223
        %v2296 = vpop.f32.mrf.mxu0
        %v2297 = vadd.f32 0.0, %v2296
        %v2298 = vpop.f32.mrf.mxu0
        %v2299 = vadd.f32 0.0, %v2298
        %v2300 = vpop.f32.mrf.mxu0
        %v2301 = vpop.f32.mrf.mxu0
        %2302 = vdwg.mxu0
        %2303 = vmatprep.subr.bf16.mxu0 0
        %2304 = vmatpush1.bf16.msra.mxu0 0
        %2305 = vmatprep.subr.bf16.mxu0 0
        %2306 = vmatpush1.bf16.msra.mxu0 0
        %2307 = vmatprep.subr.bf16.mxu0 0
        %2308 = vmatpush1.bf16.msra.mxu0 0
        %2309 = vmatprep.subr.bf16.mxu0 0
        %2310 = vmatpush1.bf16.msra.mxu0 0
        %2311 = vmatprep.subr.bf16.mxu0 0
        %2312 = vmatpush1.bf16.msra.mxu0 0
        %2313 = vmatprep.subr.bf16.mxu0 0
        %2314 = vmatpush1.bf16.msra.mxu0 0
        %2315 = vmatprep.subr.bf16.mxu0 %v780
        %2316 = vmatpush1.bf16.msra.mxu0 %v777
        %2317 = vmatprep.subr.bf16.mxu0 %v762
        %2318 = vmatpush1.bf16.msra.mxu0 %v761
        %2319 = vmatprep.subr.bf16.mxu0 0
        %2320 = vmatpush2.bf16.msra.mxu0 0
        %2321 = vmatprep.subr.bf16.mxu0 0
        %2322 = vmatpush2.bf16.msra.mxu0 0
        %2323 = vmatprep.subr.bf16.mxu0 0
        %2324 = vmatpush2.bf16.msra.mxu0 0
        %2325 = vmatprep.subr.bf16.mxu0 0
        %2326 = vmatpush2.bf16.msra.mxu0 0
        %2327 = vmatprep.subr.bf16.mxu0 0
        %2328 = vmatpush2.bf16.msra.mxu0 0
        %2329 = vmatprep.subr.bf16.mxu0 0
        %2330 = vmatpush2.bf16.msra.mxu0 0
        %2331 = vmatprep.subr.bf16.mxu0 0
        %2332 = vmatpush2.bf16.msra.mxu0 0
        %2333 = vmatprep.subr.bf16.mxu0 0
        %2334 = vmatpush2.bf16.msra.mxu0 0
        %2335 = vmatprep.mubr.bf16.mxu0 0
        %2336 = vmatmul.mubr.bf16.gmra.mxu0 %v1066
        %v2337 = vpop.f32.mrf.mxu0
        %v2338 = vadd.f32 %v2256, %v2337
        %v2339 = vpop.f32.mrf.mxu0
        %v2340 = vadd.f32 %v2258, %v2339
        %v2341 = vpop.f32.mrf.mxu0
        %v2342 = vpop.f32.mrf.mxu0
        %2343 = vdwg.mxu0
        %2344 = vmatprep.subr.bf16.mxu0 0
        %2345 = vmatpush1.bf16.msra.mxu0 0
        %2346 = vmatprep.subr.bf16.mxu0 0
        %2347 = vmatpush1.bf16.msra.mxu0 0
        %2348 = vmatprep.subr.bf16.mxu0 0
        %2349 = vmatpush1.bf16.msra.mxu0 0
        %2350 = vmatprep.subr.bf16.mxu0 0
        %2351 = vmatpush1.bf16.msra.mxu0 0
        %2352 = vmatprep.subr.bf16.mxu0 0
        %2353 = vmatpush1.bf16.msra.mxu0 0
        %2354 = vmatprep.subr.bf16.mxu0 0
        %2355 = vmatpush1.bf16.msra.mxu0 0
        %2356 = vmatprep.subr.bf16.mxu0 %v786
        %2357 = vmatpush1.bf16.msra.mxu0 %v783
        %2358 = vmatprep.subr.bf16.mxu0 %v764
        %2359 = vmatpush1.bf16.msra.mxu0 %v763
        %2360 = vmatprep.subr.bf16.mxu0 0
        %2361 = vmatpush2.bf16.msra.mxu0 0
        %2362 = vmatprep.subr.bf16.mxu0 0
        %2363 = vmatpush2.bf16.msra.mxu0 0
        %2364 = vmatprep.subr.bf16.mxu0 0
        %2365 = vmatpush2.bf16.msra.mxu0 0
        %2366 = vmatprep.subr.bf16.mxu0 0
        %2367 = vmatpush2.bf16.msra.mxu0 0
        %2368 = vmatprep.subr.bf16.mxu0 0
        %2369 = vmatpush2.bf16.msra.mxu0 0
        %2370 = vmatprep.subr.bf16.mxu0 0
        %2371 = vmatpush2.bf16.msra.mxu0 0
        %2372 = vmatprep.subr.bf16.mxu0 0
        %2373 = vmatpush2.bf16.msra.mxu0 0
        %2374 = vmatprep.subr.bf16.mxu0 0
        %2375 = vmatpush2.bf16.msra.mxu0 0
        %2376 = vmatprep.mubr.bf16.mxu0 0
        %2377 = vmatmul.mubr.bf16.gmra.mxu0 %v1066
        %v2378 = vpop.f32.mrf.mxu0
        %v2379 = vadd.f32 %v2297, %v2378
        %v2380 = vpop.f32.mrf.mxu0
        %v2381 = vadd.f32 %v2299, %v2380
        %v2382 = vpop.f32.mrf.mxu0
        %v2383 = vpop.f32.mrf.mxu0
        %2384 = vdwg.mxu0
        %2385 = vmatprep.subr.bf16.mxu0 0
        %2386 = vmatpush1.bf16.msra.mxu0 0
        %2387 = vmatprep.subr.bf16.mxu0 0
        %2388 = vmatpush1.bf16.msra.mxu0 0
        %2389 = vmatprep.subr.bf16.mxu0 0
        %2390 = vmatpush1.bf16.msra.mxu0 0
        %2391 = vmatprep.subr.bf16.mxu0 0
        %2392 = vmatpush1.bf16.msra.mxu0 0
        %2393 = vmatprep.subr.bf16.mxu0 0
        %2394 = vmatpush1.bf16.msra.mxu0 0
        %2395 = vmatprep.subr.bf16.mxu0 0
        %2396 = vmatpush1.bf16.msra.mxu0 0
        %2397 = vmatprep.subr.bf16.mxu0 %v924
        %2398 = vmatpush1.bf16.msra.mxu0 %v921
        %2399 = vmatprep.subr.bf16.mxu0 %v906
        %2400 = vmatpush1.bf16.msra.mxu0 %v905
        %2401 = vmatprep.subr.bf16.mxu0 0
        %2402 = vmatpush2.bf16.msra.mxu0 0
        %2403 = vmatprep.subr.bf16.mxu0 0
        %2404 = vmatpush2.bf16.msra.mxu0 0
        %2405 = vmatprep.subr.bf16.mxu0 0
        %2406 = vmatpush2.bf16.msra.mxu0 0
        %2407 = vmatprep.subr.bf16.mxu0 0
        %2408 = vmatpush2.bf16.msra.mxu0 0
        %2409 = vmatprep.subr.bf16.mxu0 0
        %2410 = vmatpush2.bf16.msra.mxu0 0
        %2411 = vmatprep.subr.bf16.mxu0 0
        %2412 = vmatpush2.bf16.msra.mxu0 0
        %2413 = vmatprep.subr.bf16.mxu0 0
        %2414 = vmatpush2.bf16.msra.mxu0 0
        %2415 = vmatprep.subr.bf16.mxu0 0
        %2416 = vmatpush2.bf16.msra.mxu0 0
        %2417 = vmatprep.mubr.bf16.mxu0 0
        %2418 = vmatmul.mubr.bf16.gmra.mxu0 %v1673
        %v2419 = vpop.f32.mrf.mxu0
        %v2420 = vadd.f32 0.0, %v2419
        %v2421 = vpop.f32.mrf.mxu0
        %v2422 = vadd.f32 0.0, %v2421
        %v2423 = vpop.f32.mrf.mxu0
        %v2424 = vpop.f32.mrf.mxu0
        %2425 = vdwg.mxu0
        %2426 = vmatprep.subr.bf16.mxu0 0
        %2427 = vmatpush1.bf16.msra.mxu0 0
        %2428 = vmatprep.subr.bf16.mxu0 0
        %2429 = vmatpush1.bf16.msra.mxu0 0
        %2430 = vmatprep.subr.bf16.mxu0 0
        %2431 = vmatpush1.bf16.msra.mxu0 0
        %2432 = vmatprep.subr.bf16.mxu0 0
        %2433 = vmatpush1.bf16.msra.mxu0 0
        %2434 = vmatprep.subr.bf16.mxu0 0
        %2435 = vmatpush1.bf16.msra.mxu0 0
        %2436 = vmatprep.subr.bf16.mxu0 0
        %2437 = vmatpush1.bf16.msra.mxu0 0
        %2438 = vmatprep.subr.bf16.mxu0 %v930
        %2439 = vmatpush1.bf16.msra.mxu0 %v927
        %2440 = vmatprep.subr.bf16.mxu0 %v908
        %2441 = vmatpush1.bf16.msra.mxu0 %v907
        %2442 = vmatprep.subr.bf16.mxu0 0
        %2443 = vmatpush2.bf16.msra.mxu0 0
        %2444 = vmatprep.subr.bf16.mxu0 0
        %2445 = vmatpush2.bf16.msra.mxu0 0
        %2446 = vmatprep.subr.bf16.mxu0 0
        %2447 = vmatpush2.bf16.msra.mxu0 0
        %2448 = vmatprep.subr.bf16.mxu0 0
        %2449 = vmatpush2.bf16.msra.mxu0 0
        %2450 = vmatprep.subr.bf16.mxu0 0
        %2451 = vmatpush2.bf16.msra.mxu0 0
        %2452 = vmatprep.subr.bf16.mxu0 0
        %2453 = vmatpush2.bf16.msra.mxu0 0
        %2454 = vmatprep.subr.bf16.mxu0 0
        %2455 = vmatpush2.bf16.msra.mxu0 0
        %2456 = vmatprep.subr.bf16.mxu0 0
        %2457 = vmatpush2.bf16.msra.mxu0 0
        %2458 = vmatprep.mubr.bf16.mxu0 0
        %2459 = vmatmul.mubr.bf16.gmra.mxu0 %v1673
        %v2460 = vpop.f32.mrf.mxu0
        %v2461 = vadd.f32 0.0, %v2460
        %v2462 = vpop.f32.mrf.mxu0
        %v2463 = vadd.f32 0.0, %v2462
        %v2464 = vpop.f32.mrf.mxu0
        %v2465 = vpop.f32.mrf.mxu0
        %2466 = vdwg.mxu0
        %v2467 = vadd.f32 %v2338, %v2420
        %v2468 = vadd.f32 %v2340, %v2422
        %v2469 = vadd.f32 %v2379, %v2461
        %v2470 = vadd.f32 %v2381, %v2463
        %2471 = vmatprep.subr.bf16.mxu0 0
        %2472 = vmatpush1.bf16.msra.mxu0 0
        %2473 = vmatprep.subr.bf16.mxu0 0
        %2474 = vmatpush1.bf16.msra.mxu0 0
        %2475 = vmatprep.subr.bf16.mxu0 0
        %2476 = vmatpush1.bf16.msra.mxu0 0
        %2477 = vmatprep.subr.bf16.mxu0 0
        %2478 = vmatpush1.bf16.msra.mxu0 0
        %2479 = vmatprep.subr.bf16.mxu0 0
        %2480 = vmatpush1.bf16.msra.mxu0 0
        %2481 = vmatprep.subr.bf16.mxu0 0
        %2482 = vmatpush1.bf16.msra.mxu0 0
        %2483 = vmatprep.subr.bf16.mxu0 %v1072
        %2484 = vmatpush1.bf16.msra.mxu0 %v1069
        %2485 = vmatprep.subr.bf16.mxu0 %v1054
        %2486 = vmatpush1.bf16.msra.mxu0 %v1053
        %2487 = vmatprep.subr.bf16.mxu0 0
        %2488 = vmatpush2.bf16.msra.mxu0 0
        %2489 = vmatprep.subr.bf16.mxu0 0
        %2490 = vmatpush2.bf16.msra.mxu0 0
        %2491 = vmatprep.subr.bf16.mxu0 0
        %2492 = vmatpush2.bf16.msra.mxu0 0
        %2493 = vmatprep.subr.bf16.mxu0 0
        %2494 = vmatpush2.bf16.msra.mxu0 0
        %2495 = vmatprep.subr.bf16.mxu0 0
        %2496 = vmatpush2.bf16.msra.mxu0 0
        %2497 = vmatprep.subr.bf16.mxu0 0
        %2498 = vmatpush2.bf16.msra.mxu0 0
        %2499 = vmatprep.subr.bf16.mxu0 0
        %2500 = vmatpush2.bf16.msra.mxu0 0
        %2501 = vmatprep.subr.bf16.mxu0 0
        %2502 = vmatpush2.bf16.msra.mxu0 0
        %2503 = vmatprep.mubr.bf16.mxu0 0
        %2504 = vmatmul.mubr.bf16.gmra.mxu0 %v2131
        %v2505 = vpop.f32.mrf.mxu0
        %v2506 = vadd.f32 0.0, %v2505
        %v2507 = vpop.f32.mrf.mxu0
        %v2508 = vadd.f32 0.0, %v2507
        %v2509 = vpop.f32.mrf.mxu0
        %v2510 = vpop.f32.mrf.mxu0
        %2511 = vdwg.mxu0
        %2512 = vmatprep.subr.bf16.mxu0 0
        %2513 = vmatpush1.bf16.msra.mxu0 0
        %2514 = vmatprep.subr.bf16.mxu0 0
        %2515 = vmatpush1.bf16.msra.mxu0 0
        %2516 = vmatprep.subr.bf16.mxu0 0
        %2517 = vmatpush1.bf16.msra.mxu0 0
        %2518 = vmatprep.subr.bf16.mxu0 0
        %2519 = vmatpush1.bf16.msra.mxu0 0
        %2520 = vmatprep.subr.bf16.mxu0 0
        %2521 = vmatpush1.bf16.msra.mxu0 0
        %2522 = vmatprep.subr.bf16.mxu0 0
        %2523 = vmatpush1.bf16.msra.mxu0 0
        %2524 = vmatprep.subr.bf16.mxu0 %v1078
        %2525 = vmatpush1.bf16.msra.mxu0 %v1075
        %2526 = vmatprep.subr.bf16.mxu0 %v1056
        %2527 = vmatpush1.bf16.msra.mxu0 %v1055
        %2528 = vmatprep.subr.bf16.mxu0 0
        %2529 = vmatpush2.bf16.msra.mxu0 0
        %2530 = vmatprep.subr.bf16.mxu0 0
        %2531 = vmatpush2.bf16.msra.mxu0 0
        %2532 = vmatprep.subr.bf16.mxu0 0
        %2533 = vmatpush2.bf16.msra.mxu0 0
        %2534 = vmatprep.subr.bf16.mxu0 0
        %2535 = vmatpush2.bf16.msra.mxu0 0
        %2536 = vmatprep.subr.bf16.mxu0 0
        %2537 = vmatpush2.bf16.msra.mxu0 0
        %2538 = vmatprep.subr.bf16.mxu0 0
        %2539 = vmatpush2.bf16.msra.mxu0 0
        %2540 = vmatprep.subr.bf16.mxu0 0
        %2541 = vmatpush2.bf16.msra.mxu0 0
        %2542 = vmatprep.subr.bf16.mxu0 0
        %2543 = vmatpush2.bf16.msra.mxu0 0
        %2544 = vmatprep.mubr.bf16.mxu0 0
        %2545 = vmatmul.mubr.bf16.gmra.mxu0 %v2131
        %v2546 = vpop.f32.mrf.mxu0
        %v2547 = vadd.f32 0.0, %v2546
        %v2548 = vpop.f32.mrf.mxu0
        %v2549 = vadd.f32 0.0, %v2548
        %v2550 = vpop.f32.mrf.mxu0
        %v2551 = vpop.f32.mrf.mxu0
        %2552 = vdwg.mxu0
        %v2553 = vadd.f32 %v2467, %v2506
        %v2554 = vadd.f32 %v2468, %v2508
        %v2555 = vadd.f32 %v2469, %v2547
        %v2556 = vadd.f32 %v2470, %v2549
        %v2557 = vld [vmem:[%s1018] sm:$0xf]
        %v2559 = vunpack.c.l.b16 %v2557
        %v2560 = vpack.c.b16 %v2559, %v2559
        %v2562 = vshrl.u32 %v2560, 16
        %v2564 = vshll.u32 %v2560, 16
        %v2566 = vrot.slane %v2564, 1
        %v2567 = vor.u32 %v2562, %v2566
        %v2569 = vsel %vm638, %v2567, 0
        %2571 = vmatprep.subr.bf16.mxu0 0
        %2572 = vmatpush1.bf16.msra.mxu0 0
        %2573 = vmatprep.subr.bf16.mxu0 0
        %2574 = vmatpush1.bf16.msra.mxu0 0
        %2575 = vmatprep.subr.bf16.mxu0 0
        %2576 = vmatpush1.bf16.msra.mxu0 0
        %2577 = vmatprep.subr.bf16.mxu0 0
        %2578 = vmatpush1.bf16.msra.mxu0 0
        %2579 = vmatprep.subr.bf16.mxu0 0
        %2580 = vmatpush1.bf16.msra.mxu0 0
        %2581 = vmatprep.subr.bf16.mxu0 0
        %2582 = vmatpush1.bf16.msra.mxu0 0
        %2583 = vmatprep.subr.bf16.mxu0 %v1229
        %2584 = vmatpush1.bf16.msra.mxu0 %v1226
        %2585 = vmatprep.subr.bf16.mxu0 %v1211
        %2586 = vmatpush1.bf16.msra.mxu0 %v1210
        %2587 = vmatprep.subr.bf16.mxu0 0
        %2588 = vmatpush2.bf16.msra.mxu0 0
        %2589 = vmatprep.subr.bf16.mxu0 0
        %2590 = vmatpush2.bf16.msra.mxu0 0
        %2591 = vmatprep.subr.bf16.mxu0 0
        %2592 = vmatpush2.bf16.msra.mxu0 0
        %2593 = vmatprep.subr.bf16.mxu0 0
        %2594 = vmatpush2.bf16.msra.mxu0 0
        %2595 = vmatprep.subr.bf16.mxu0 0
        %2596 = vmatpush2.bf16.msra.mxu0 0
        %2597 = vmatprep.subr.bf16.mxu0 0
        %2598 = vmatpush2.bf16.msra.mxu0 0
        %2599 = vmatprep.subr.bf16.mxu0 0
        %2600 = vmatpush2.bf16.msra.mxu0 0
        %2601 = vmatprep.subr.bf16.mxu0 0
        %2602 = vmatpush2.bf16.msra.mxu0 0
        %2603 = vmatprep.mubr.bf16.mxu0 0
        %2604 = vmatmul.mubr.bf16.gmra.mxu0 %v2569
        %v2605 = vpop.f32.mrf.mxu0
        %v2606 = vadd.f32 0.0, %v2605
        %v2607 = vpop.f32.mrf.mxu0
        %v2608 = vadd.f32 0.0, %v2607
        %v2609 = vpop.f32.mrf.mxu0
        %v2610 = vpop.f32.mrf.mxu0
        %2611 = vdwg.mxu0
        %2612 = vmatprep.subr.bf16.mxu0 0
        %2613 = vmatpush1.bf16.msra.mxu0 0
        %2614 = vmatprep.subr.bf16.mxu0 0
        %2615 = vmatpush1.bf16.msra.mxu0 0
        %2616 = vmatprep.subr.bf16.mxu0 0
        %2617 = vmatpush1.bf16.msra.mxu0 0
        %2618 = vmatprep.subr.bf16.mxu0 0
        %2619 = vmatpush1.bf16.msra.mxu0 0
        %2620 = vmatprep.subr.bf16.mxu0 0
        %2621 = vmatpush1.bf16.msra.mxu0 0
        %2622 = vmatprep.subr.bf16.mxu0 0
        %2623 = vmatpush1.bf16.msra.mxu0 0
        %2624 = vmatprep.subr.bf16.mxu0 %v1235
        %2625 = vmatpush1.bf16.msra.mxu0 %v1232
        %2626 = vmatprep.subr.bf16.mxu0 %v1213
        %2627 = vmatpush1.bf16.msra.mxu0 %v1212
        %2628 = vmatprep.subr.bf16.mxu0 0
        %2629 = vmatpush2.bf16.msra.mxu0 0
        %2630 = vmatprep.subr.bf16.mxu0 0
        %2631 = vmatpush2.bf16.msra.mxu0 0
        %2632 = vmatprep.subr.bf16.mxu0 0
        %2633 = vmatpush2.bf16.msra.mxu0 0
        %2634 = vmatprep.subr.bf16.mxu0 0
        %2635 = vmatpush2.bf16.msra.mxu0 0
        %2636 = vmatprep.subr.bf16.mxu0 0
        %2637 = vmatpush2.bf16.msra.mxu0 0
        %2638 = vmatprep.subr.bf16.mxu0 0
        %2639 = vmatpush2.bf16.msra.mxu0 0
        %2640 = vmatprep.subr.bf16.mxu0 0
        %2641 = vmatpush2.bf16.msra.mxu0 0
        %2642 = vmatprep.subr.bf16.mxu0 0
        %2643 = vmatpush2.bf16.msra.mxu0 0
        %2644 = vmatprep.mubr.bf16.mxu0 0
        %2645 = vmatmul.mubr.bf16.gmra.mxu0 %v2569
        %v2646 = vpop.f32.mrf.mxu0
        %v2647 = vadd.f32 0.0, %v2646
        %v2648 = vpop.f32.mrf.mxu0
        %v2649 = vadd.f32 0.0, %v2648
        %v2650 = vpop.f32.mrf.mxu0
        %v2651 = vpop.f32.mrf.mxu0
        %2652 = vdwg.mxu0
        %v2653 = vadd.f32 %v2553, %v2606
        %v2654 = vadd.f32 %v2554, %v2608
        %v2655 = vadd.f32 %v2555, %v2647
        %v2656 = vadd.f32 %v2556, %v2649
        %v2657 = vmax.f32 %v2653, %v2655
        %v2658 = vmax.f32 %v2654, %v2656
        %v2659 = vmax.f32 %v2219, %v2657
        %v2660 = vmax.f32 %v2220, %v2658
        %v2661 = vadd.f32 %v2659, %v1770
        %v2662 = vadd.f32 %v2660, %v1774
        %v2663 = vmax.f32 %v2661, 0.0
        %v2664 = vmax.f32 %v2662, 0.0
        %v2665 = vpack.c.bf16 %v2663, %v2663
        %v2666 = vpack.c.bf16 %v2664, %v2664
        %vm2667 = vcmask 1040384
        %vm2668 = vsmask.f32 256
        %vm2669 = vmand %vm2667, %vm2668
        %vm2670 = vcmask 1044484
        %vm2671 = vsmask.f32 4352
        %vm2672 = vmand %vm2670, %vm2671
        %vm2673 = vmor %vm2672, %vm2669
        %v2674 = vld [vmem:[#allocation2] sm:$0x11]
        %v2675 = vsel %vm2673, 0, %v2674
        %2676 = vst [vmem:[#allocation2] sm:$0x11] %v2675
        %vm2677 = vcmask 1043459
        %vm2678 = vsmask.f32 7950
        %vm2679 = vmand %vm2677, %vm2678
        %vm2680 = vcmask 1047559
        %vm2681 = vsmask.f32 7966
        %vm2682 = vmand %vm2680, %vm2681
        %vm2683 = vmor %vm2682, %vm2679
        %v2684 = vld [vmem:[#allocation2] sm:$0x88]
        %v2685 = vsel %vm2683, 0, %v2684
        %2686 = vst [vmem:[#allocation2] sm:$0x88] %v2685
        %v2687 = vld [vmem:[#allocation3] sm:$0x11]
        %v2688 = vsel %vm2673, 0, %v2687
        %2689 = vst [vmem:[#allocation3] sm:$0x11] %v2688
        %v2690 = vld [vmem:[#allocation3] sm:$0x88]
        %v2691 = vsel %vm2683, 0, %v2690
        %2692 = vst [vmem:[#allocation3] sm:$0x88] %v2691
        %v2695 = vunpack.c.l.b16 %v1781
        %v2696 = vunpack.c.l.b16 %v1782
        %v2697 = vpack.c.b16 %v2696, %v2695
        %v2699 = vshrl.u32 %v2697, 16
        %v2701 = vrot.slane %v2699, 7
        %v2702 = vshll.u32 %v2697, 16
        %v2704 = vor.u32 %v2701, %v2702
        %vm2706 = vcmask 1043456
        %vm2707 = vsmask.f32 3330
        %vm2708 = vmand %vm2706, %vm2707
        %vm2709 = vcmask 1047556
        %vm2710 = vsmask.f32 7442
        %vm2711 = vmand %vm2709, %vm2710
        %vm2712 = vmor %vm2711, %vm2708
        %v2713 = vld [vmem:[#allocation2] sm:$0xff]
        %v2714 = vsel %vm2712, %v2704, %v2713
        %2715 = vst [vmem:[#allocation2] sm:$0xff] %v2714
        %v2718 = vunpack.c.l.b16 %v2665
        %v2719 = vunpack.c.l.b16 %v2666
        %v2720 = vpack.c.b16 %v2719, %v2718
        %v2722 = vshrl.u32 %v2720, 16
        %v2724 = vrot.slane %v2722, 7
        %v2725 = vshll.u32 %v2720, 16
        %v2727 = vor.u32 %v2724, %v2725
        %v2729 = vld [vmem:[#allocation3] sm:$0xff]
        %v2730 = vsel %vm2712, %v2727, %v2729
        %2731 = vst [vmem:[#allocation3] sm:$0xff] %v2730
        %v2732 = vld [vmem:[#allocation3] sm:$0x77]
        %v2733 = vld [vmem:[#allocation7] sm:$0xff]
        %v2734 = vld [vmem:[#allocation7 + $0x8] sm:$0xff]
        %v2735 = vld [vmem:[#allocation7 + $0x10] sm:$0xff]
        %v2736 = vld [vmem:[#allocation7 + $0x18] sm:$0xff]
        %v2737 = vld [vmem:[#allocation7 + $0x20] sm:$0xff]
        %v2738 = vld [vmem:[#allocation7 + $0x28] sm:$0xff]
        %v2739 = vld [vmem:[#allocation7 + $0x30] sm:$0xff]
        %v2740 = vld [vmem:[#allocation7 + $0x38] sm:$0xff]
        %v2741 = vld [vmem:[#allocation7 + $0x40] sm:$0xff]
        %v2742 = vld [vmem:[#allocation7 + $0x48] sm:$0xff]
        %v2743 = vld [vmem:[#allocation7 + $0x50] sm:$0xff]
        %v2744 = vld [vmem:[#allocation7 + $0x58] sm:$0xff]
        %v2745 = vld [vmem:[#allocation7 + $0x60] sm:$0xff]
        %v2746 = vld [vmem:[#allocation7 + $0x68] sm:$0xff]
        %v2747 = vld [vmem:[#allocation7 + $0x70] sm:$0xff]
        %v2748 = vld [vmem:[#allocation7 + $0x78] sm:$0xff]
        %v2749 = vld [vmem:[#allocation7 + $0x80] sm:$0xff]
        %v2750 = vld [vmem:[#allocation7 + $0x88] sm:$0xff]
        %v2751 = vld [vmem:[#allocation7 + $0x90] sm:$0xff]
        %v2752 = vld [vmem:[#allocation7 + $0x98] sm:$0xff]
        %v2753 = vld [vmem:[#allocation7 + $0xa0] sm:$0xff]
        %v2754 = vld [vmem:[#allocation7 + $0xa8] sm:$0xff]
        %v2755 = vld [vmem:[#allocation7 + $0xb0] sm:$0xff]
        %v2756 = vld [vmem:[#allocation7 + $0xb8] sm:$0xff]
        %v2757 = vld [vmem:[#allocation7 + $0xc0] sm:$0xff]
        %v2758 = vld [vmem:[#allocation7 + $0xc8] sm:$0xff]
        %v2759 = vld [vmem:[#allocation7 + $0xd0] sm:$0xff]
        %v2760 = vld [vmem:[#allocation7 + $0xd8] sm:$0xff]
        %v2761 = vld [vmem:[#allocation7 + $0xe0] sm:$0xff]
        %v2762 = vld [vmem:[#allocation7 + $0xe8] sm:$0xff]
        %v2763 = vld [vmem:[#allocation7 + $0xf0] sm:$0xff]
        %v2764 = vld [vmem:[#allocation7 + $0xf8] sm:$0xff]
        %v2765 = vld [vmem:[#allocation2] sm:$0xff]
        %s2766 = scalar_lea.vmem [#allocation7], 256
        %v2767 = vld [vmem:[%s2766] sm:$0xff]
        %v2768 = vld [vmem:[%s2766 + $0x8] sm:$0xff]
        %v2769 = vld [vmem:[%s2766 + $0x10] sm:$0xff]
        %v2770 = vld [vmem:[%s2766 + $0x18] sm:$0xff]
        %v2771 = vld [vmem:[%s2766 + $0x20] sm:$0xff]
        %v2772 = vld [vmem:[%s2766 + $0x28] sm:$0xff]
        %v2773 = vld [vmem:[%s2766 + $0x30] sm:$0xff]
        %v2774 = vld [vmem:[%s2766 + $0x38] sm:$0xff]
        %v2775 = vld [vmem:[%s2766 + $0x40] sm:$0xff]
        %v2776 = vld [vmem:[%s2766 + $0x48] sm:$0xff]
        %v2777 = vld [vmem:[%s2766 + $0x50] sm:$0xff]
        %v2778 = vld [vmem:[%s2766 + $0x58] sm:$0xff]
        %v2779 = vld [vmem:[%s2766 + $0x60] sm:$0xff]
        %v2780 = vld [vmem:[%s2766 + $0x68] sm:$0xff]
        %v2781 = vld [vmem:[%s2766 + $0x70] sm:$0xff]
        %v2782 = vld [vmem:[%s2766 + $0x78] sm:$0xff]
        %v2783 = vld [vmem:[%s2766 + $0x80] sm:$0xff]
        %v2784 = vld [vmem:[%s2766 + $0x88] sm:$0xff]
        %v2785 = vld [vmem:[%s2766 + $0x90] sm:$0xff]
        %v2786 = vld [vmem:[%s2766 + $0x98] sm:$0xff]
        %v2787 = vld [vmem:[%s2766 + $0xa0] sm:$0xff]
        %v2788 = vld [vmem:[%s2766 + $0xa8] sm:$0xff]
        %v2789 = vld [vmem:[%s2766 + $0xb0] sm:$0xff]
        %v2790 = vld [vmem:[%s2766 + $0xb8] sm:$0xff]
        %v2791 = vld [vmem:[%s2766 + $0xc0] sm:$0xff]
        %v2792 = vld [vmem:[%s2766 + $0xc8] sm:$0xff]
        %v2793 = vld [vmem:[%s2766 + $0xd0] sm:$0xff]
        %v2794 = vld [vmem:[%s2766 + $0xd8] sm:$0xff]
        %v2795 = vld [vmem:[%s2766 + $0xe0] sm:$0xff]
        %v2796 = vld [vmem:[%s2766 + $0xe8] sm:$0xff]
        %v2797 = vld [vmem:[%s2766 + $0xf0] sm:$0xff]
        %v2798 = vld [vmem:[%s2766 + $0xf8] sm:$0xff]
        %v2800 = vunpack.c.l.b16 %v2765
        %v2801 = vunpack.c.h.b16 %v2765
        %v2802 = vpack.c.b16 %v2800, %v2800
        %v2803 = vpack.c.b16 %v2801, %v2801
        %v2805 = vshrl.u32 %v2802, 16
        %v2807 = vshll.u32 %v2802, 16
        %v2809 = vrot.slane %v2807, 1
        %v2810 = vor.u32 %v2805, %v2809
        %v2812 = vshrl.u32 %v2803, 16
        %v2814 = vshll.u32 %v2803, 16
        %v2816 = vrot.slane %v2814, 1
        %v2817 = vor.u32 %v2812, %v2816
        %v2852 = vunpack.c.l.b16 %v2767
        %v2853 = vunpack.c.h.b16 %v2767
        %v2854 = vunpack.c.l.b16 %v2768
        %v2855 = vunpack.c.h.b16 %v2768
        %v2856 = vunpack.c.l.b16 %v2769
        %v2857 = vunpack.c.h.b16 %v2769
        %v2858 = vunpack.c.l.b16 %v2770
        %v2859 = vunpack.c.h.b16 %v2770
        %v2860 = vunpack.c.l.b16 %v2771
        %v2861 = vunpack.c.h.b16 %v2771
        %v2862 = vunpack.c.l.b16 %v2772
        %v2863 = vunpack.c.h.b16 %v2772
        %v2864 = vunpack.c.l.b16 %v2773
        %v2865 = vunpack.c.h.b16 %v2773
        %v2866 = vunpack.c.l.b16 %v2774
        %v2867 = vunpack.c.h.b16 %v2774
        %v2868 = vunpack.c.l.b16 %v2775
        %v2869 = vunpack.c.h.b16 %v2775
        %v2870 = vunpack.c.l.b16 %v2776
        %v2871 = vunpack.c.h.b16 %v2776
        %v2872 = vunpack.c.l.b16 %v2777
        %v2873 = vunpack.c.h.b16 %v2777
        %v2874 = vunpack.c.l.b16 %v2778
        %v2875 = vunpack.c.h.b16 %v2778
        %v2876 = vunpack.c.l.b16 %v2779
        %v2877 = vunpack.c.h.b16 %v2779
        %v2878 = vunpack.c.l.b16 %v2780
        %v2879 = vunpack.c.h.b16 %v2780
        %v2880 = vunpack.c.l.b16 %v2781
        %v2881 = vunpack.c.h.b16 %v2781
        %v2882 = vunpack.c.l.b16 %v2782
        %v2883 = vunpack.c.h.b16 %v2782
        %v2884 = vunpack.c.l.b16 %v2783
        %v2885 = vunpack.c.h.b16 %v2783
        %v2886 = vunpack.c.l.b16 %v2784
        %v2887 = vunpack.c.h.b16 %v2784
        %v2888 = vunpack.c.l.b16 %v2785
        %v2889 = vunpack.c.h.b16 %v2785
        %v2890 = vunpack.c.l.b16 %v2786
        %v2891 = vunpack.c.h.b16 %v2786
        %v2892 = vunpack.c.l.b16 %v2787
        %v2893 = vunpack.c.h.b16 %v2787
        %v2894 = vunpack.c.l.b16 %v2788
        %v2895 = vunpack.c.h.b16 %v2788
        %v2896 = vunpack.c.l.b16 %v2789
        %v2897 = vunpack.c.h.b16 %v2789
        %v2898 = vunpack.c.l.b16 %v2790
        %v2899 = vunpack.c.h.b16 %v2790
        %v2900 = vunpack.c.l.b16 %v2791
        %v2901 = vunpack.c.h.b16 %v2791
        %v2902 = vunpack.c.l.b16 %v2792
        %v2903 = vunpack.c.h.b16 %v2792
        %v2904 = vunpack.c.l.b16 %v2793
        %v2905 = vunpack.c.h.b16 %v2793
        %v2906 = vunpack.c.l.b16 %v2794
        %v2907 = vunpack.c.h.b16 %v2794
        %v2908 = vunpack.c.l.b16 %v2795
        %v2909 = vunpack.c.h.b16 %v2795
        %v2910 = vunpack.c.l.b16 %v2796
        %v2911 = vunpack.c.h.b16 %v2796
        %v2912 = vunpack.c.l.b16 %v2797
        %v2913 = vunpack.c.h.b16 %v2797
        %v2914 = vunpack.c.l.b16 %v2798
        %v2915 = vunpack.c.h.b16 %v2798
        %v2916 = vpack.c.b16 %v2854, %v2852
        %v2917 = vpack.c.b16 %v2855, %v2853
        %v2918 = vpack.c.b16 %v2858, %v2856
        %v2919 = vpack.c.b16 %v2859, %v2857
        %v2920 = vpack.c.b16 %v2862, %v2860
        %v2921 = vpack.c.b16 %v2863, %v2861
        %v2922 = vpack.c.b16 %v2866, %v2864
        %v2923 = vpack.c.b16 %v2867, %v2865
        %v2924 = vpack.c.b16 %v2870, %v2868
        %v2925 = vpack.c.b16 %v2871, %v2869
        %v2926 = vpack.c.b16 %v2874, %v2872
        %v2927 = vpack.c.b16 %v2875, %v2873
        %v2928 = vpack.c.b16 %v2878, %v2876
        %v2929 = vpack.c.b16 %v2879, %v2877
        %v2930 = vpack.c.b16 %v2882, %v2880
        %v2931 = vpack.c.b16 %v2883, %v2881
        %v2932 = vpack.c.b16 %v2886, %v2884
        %v2933 = vpack.c.b16 %v2887, %v2885
        %v2934 = vpack.c.b16 %v2890, %v2888
        %v2935 = vpack.c.b16 %v2891, %v2889
        %v2936 = vpack.c.b16 %v2894, %v2892
        %v2937 = vpack.c.b16 %v2895, %v2893
        %v2938 = vpack.c.b16 %v2898, %v2896
        %v2939 = vpack.c.b16 %v2899, %v2897
        %v2940 = vpack.c.b16 %v2902, %v2900
        %v2941 = vpack.c.b16 %v2903, %v2901
        %v2942 = vpack.c.b16 %v2906, %v2904
        %v2943 = vpack.c.b16 %v2907, %v2905
        %v2944 = vpack.c.b16 %v2910, %v2908
        %v2945 = vpack.c.b16 %v2911, %v2909
        %v2946 = vpack.c.b16 %v2914, %v2912
        %v2947 = vpack.c.b16 %v2915, %v2913
        %2980 = vmatprep.subr.bf16.mxu0 %v2931
        %2981 = vmatpush1.bf16.msra.mxu0 %v2930
        %2982 = vmatprep.subr.bf16.mxu0 %v2929
        %2983 = vmatpush1.bf16.msra.mxu0 %v2928
        %2984 = vmatprep.subr.bf16.mxu0 %v2927
        %2985 = vmatpush1.bf16.msra.mxu0 %v2926
        %2986 = vmatprep.subr.bf16.mxu0 %v2925
        %2987 = vmatpush1.bf16.msra.mxu0 %v2924
        %2988 = vmatprep.subr.bf16.mxu0 %v2923
        %2989 = vmatpush1.bf16.msra.mxu0 %v2922
        %2990 = vmatprep.subr.bf16.mxu0 %v2921
        %2991 = vmatpush1.bf16.msra.mxu0 %v2920
        %2992 = vmatprep.subr.bf16.mxu0 %v2919
        %2993 = vmatpush1.bf16.msra.mxu0 %v2918
        %2994 = vmatprep.subr.bf16.mxu0 %v2917
        %2995 = vmatpush1.bf16.msra.mxu0 %v2916
        %2996 = vmatprep.subr.bf16.mxu0 %v2947
        %2997 = vmatpush2.bf16.msra.mxu0 %v2946
        %2998 = vmatprep.subr.bf16.mxu0 %v2945
        %2999 = vmatpush2.bf16.msra.mxu0 %v2944
        %3000 = vmatprep.subr.bf16.mxu0 %v2943
        %3001 = vmatpush2.bf16.msra.mxu0 %v2942
        %3002 = vmatprep.subr.bf16.mxu0 %v2941
        %3003 = vmatpush2.bf16.msra.mxu0 %v2940
        %3004 = vmatprep.subr.bf16.mxu0 %v2939
        %3005 = vmatpush2.bf16.msra.mxu0 %v2938
        %3006 = vmatprep.subr.bf16.mxu0 %v2937
        %3007 = vmatpush2.bf16.msra.mxu0 %v2936
        %3008 = vmatprep.subr.bf16.mxu0 %v2935
        %3009 = vmatpush2.bf16.msra.mxu0 %v2934
        %3010 = vmatprep.subr.bf16.mxu0 %v2933
        %3011 = vmatpush2.bf16.msra.mxu0 %v2932
        %3012 = vmatprep.mubr.bf16.mxu0 %v2817
        %3013 = vmatmul.mubr.bf16.gmra.mxu0 %v2810
        %v3014 = vpop.f32.mrf.mxu0
        %v3015 = vadd.f32 0.0, %v3014
        %v3016 = vpop.f32.mrf.mxu0
        %v3017 = vadd.f32 0.0, %v3016
        %v3018 = vpop.f32.mrf.mxu0
        %v3019 = vpop.f32.mrf.mxu0
        %3020 = vdwg.mxu0
        %v3022 = vunpack.c.l.b16 %v2732
        %v3023 = vunpack.c.h.b16 %v2732
        %v3024 = vpack.c.b16 %v3022, %v3022
        %v3025 = vpack.c.b16 %v3023, %v3023
        %v3060 = vunpack.c.l.b16 %v2733
        %v3061 = vunpack.c.h.b16 %v2733
        %v3062 = vunpack.c.l.b16 %v2734
        %v3063 = vunpack.c.h.b16 %v2734
        %v3064 = vunpack.c.l.b16 %v2735
        %v3065 = vunpack.c.h.b16 %v2735
        %v3066 = vunpack.c.l.b16 %v2736
        %v3067 = vunpack.c.h.b16 %v2736
        %v3068 = vunpack.c.l.b16 %v2737
        %v3069 = vunpack.c.h.b16 %v2737
        %v3070 = vunpack.c.l.b16 %v2738
        %v3071 = vunpack.c.h.b16 %v2738
        %v3072 = vunpack.c.l.b16 %v2739
        %v3073 = vunpack.c.h.b16 %v2739
        %v3074 = vunpack.c.l.b16 %v2740
        %v3075 = vunpack.c.h.b16 %v2740
        %v3076 = vunpack.c.l.b16 %v2741
        %v3077 = vunpack.c.h.b16 %v2741
        %v3078 = vunpack.c.l.b16 %v2742
        %v3079 = vunpack.c.h.b16 %v2742
        %v3080 = vunpack.c.l.b16 %v2743
        %v3081 = vunpack.c.h.b16 %v2743
        %v3082 = vunpack.c.l.b16 %v2744
        %v3083 = vunpack.c.h.b16 %v2744
        %v3084 = vunpack.c.l.b16 %v2745
        %v3085 = vunpack.c.h.b16 %v2745
        %v3086 = vunpack.c.l.b16 %v2746
        %v3087 = vunpack.c.h.b16 %v2746
        %v3088 = vunpack.c.l.b16 %v2747
        %v3089 = vunpack.c.h.b16 %v2747
        %v3090 = vunpack.c.l.b16 %v2748
        %v3091 = vunpack.c.h.b16 %v2748
        %v3092 = vunpack.c.l.b16 %v2749
        %v3093 = vunpack.c.h.b16 %v2749
        %v3094 = vunpack.c.l.b16 %v2750
        %v3095 = vunpack.c.h.b16 %v2750
        %v3096 = vunpack.c.l.b16 %v2751
        %v3097 = vunpack.c.h.b16 %v2751
        %v3098 = vunpack.c.l.b16 %v2752
        %v3099 = vunpack.c.h.b16 %v2752
        %v3100 = vunpack.c.l.b16 %v2753
        %v3101 = vunpack.c.h.b16 %v2753
        %v3102 = vunpack.c.l.b16 %v2754
        %v3103 = vunpack.c.h.b16 %v2754
        %v3104 = vunpack.c.l.b16 %v2755
        %v3105 = vunpack.c.h.b16 %v2755
        %v3106 = vunpack.c.l.b16 %v2756
        %v3107 = vunpack.c.h.b16 %v2756
        %v3108 = vunpack.c.l.b16 %v2757
        %v3109 = vunpack.c.h.b16 %v2757
        %v3110 = vunpack.c.l.b16 %v2758
        %v3111 = vunpack.c.h.b16 %v2758
        %v3112 = vunpack.c.l.b16 %v2759
        %v3113 = vunpack.c.h.b16 %v2759
        %v3114 = vunpack.c.l.b16 %v2760
        %v3115 = vunpack.c.h.b16 %v2760
        %v3116 = vunpack.c.l.b16 %v2761
        %v3117 = vunpack.c.h.b16 %v2761
        %v3118 = vunpack.c.l.b16 %v2762
        %v3119 = vunpack.c.h.b16 %v2762
        %v3120 = vunpack.c.l.b16 %v2763
        %v3121 = vunpack.c.h.b16 %v2763
        %v3122 = vunpack.c.l.b16 %v2764
        %v3123 = vunpack.c.h.b16 %v2764
        %v3124 = vpack.c.b16 %v3062, %v3060
        %v3125 = vpack.c.b16 %v3063, %v3061
        %v3126 = vpack.c.b16 %v3066, %v3064
        %v3127 = vpack.c.b16 %v3067, %v3065
        %v3128 = vpack.c.b16 %v3070, %v3068
        %v3129 = vpack.c.b16 %v3071, %v3069
        %v3130 = vpack.c.b16 %v3074, %v3072
        %v3131 = vpack.c.b16 %v3075, %v3073
        %v3132 = vpack.c.b16 %v3078, %v3076
        %v3133 = vpack.c.b16 %v3079, %v3077
        %v3134 = vpack.c.b16 %v3082, %v3080
        %v3135 = vpack.c.b16 %v3083, %v3081
        %v3136 = vpack.c.b16 %v3086, %v3084
        %v3137 = vpack.c.b16 %v3087, %v3085
        %v3138 = vpack.c.b16 %v3090, %v3088
        %v3139 = vpack.c.b16 %v3091, %v3089
        %v3140 = vpack.c.b16 %v3094, %v3092
        %v3141 = vpack.c.b16 %v3095, %v3093
        %v3142 = vpack.c.b16 %v3098, %v3096
        %v3143 = vpack.c.b16 %v3099, %v3097
        %v3144 = vpack.c.b16 %v3102, %v3100
        %v3145 = vpack.c.b16 %v3103, %v3101
        %v3146 = vpack.c.b16 %v3106, %v3104
        %v3147 = vpack.c.b16 %v3107, %v3105
        %v3148 = vpack.c.b16 %v3110, %v3108
        %v3149 = vpack.c.b16 %v3111, %v3109
        %v3150 = vpack.c.b16 %v3114, %v3112
        %v3151 = vpack.c.b16 %v3115, %v3113
        %v3152 = vpack.c.b16 %v3118, %v3116
        %v3153 = vpack.c.b16 %v3119, %v3117
        %v3154 = vpack.c.b16 %v3122, %v3120
        %v3155 = vpack.c.b16 %v3123, %v3121
        %3188 = vmatprep.subr.bf16.mxu0 %v3139
        %3189 = vmatpush1.bf16.msra.mxu0 %v3138
        %3190 = vmatprep.subr.bf16.mxu0 %v3137
        %3191 = vmatpush1.bf16.msra.mxu0 %v3136
        %3192 = vmatprep.subr.bf16.mxu0 %v3135
        %3193 = vmatpush1.bf16.msra.mxu0 %v3134
        %3194 = vmatprep.subr.bf16.mxu0 %v3133
        %3195 = vmatpush1.bf16.msra.mxu0 %v3132
        %3196 = vmatprep.subr.bf16.mxu0 %v3131
        %3197 = vmatpush1.bf16.msra.mxu0 %v3130
        %3198 = vmatprep.subr.bf16.mxu0 %v3129
        %3199 = vmatpush1.bf16.msra.mxu0 %v3128
        %3200 = vmatprep.subr.bf16.mxu0 %v3127
        %3201 = vmatpush1.bf16.msra.mxu0 %v3126
        %3202 = vmatprep.subr.bf16.mxu0 %v3125
        %3203 = vmatpush1.bf16.msra.mxu0 %v3124
        %3204 = vmatprep.subr.bf16.mxu0 %v3155
        %3205 = vmatpush2.bf16.msra.mxu0 %v3154
        %3206 = vmatprep.subr.bf16.mxu0 %v3153
        %3207 = vmatpush2.bf16.msra.mxu0 %v3152
        %3208 = vmatprep.subr.bf16.mxu0 %v3151
        %3209 = vmatpush2.bf16.msra.mxu0 %v3150
        %3210 = vmatprep.subr.bf16.mxu0 %v3149
        %3211 = vmatpush2.bf16.msra.mxu0 %v3148
        %3212 = vmatprep.subr.bf16.mxu0 %v3147
        %3213 = vmatpush2.bf16.msra.mxu0 %v3146
        %3214 = vmatprep.subr.bf16.mxu0 %v3145
        %3215 = vmatpush2.bf16.msra.mxu0 %v3144
        %3216 = vmatprep.subr.bf16.mxu0 %v3143
        %3217 = vmatpush2.bf16.msra.mxu0 %v3142
        %3218 = vmatprep.subr.bf16.mxu0 %v3141
        %3219 = vmatpush2.bf16.msra.mxu0 %v3140
        %3220 = vmatprep.mubr.bf16.mxu0 %v3025
        %3221 = vmatmul.mubr.bf16.gmra.mxu0 %v3024
        %v3222 = vpop.f32.mrf.mxu0
        %v3223 = vadd.f32 %v3015, %v3222
        %v3224 = vpop.f32.mrf.mxu0
        %v3225 = vadd.f32 %v3017, %v3224
        %v3226 = vpop.f32.mrf.mxu0
        %v3227 = vpop.f32.mrf.mxu0
        %3228 = vdwg.mxu0
        %v3229 = vld [vmem:[#allocation3] sm:$0xff]
        %s3230 = scalar_lea.vmem [#allocation7], 512
        %v3231 = vld [vmem:[%s3230] sm:$0xff]
        %v3232 = vld [vmem:[%s3230 + $0x8] sm:$0xff]
        %v3233 = vld [vmem:[%s3230 + $0x10] sm:$0xff]
        %v3234 = vld [vmem:[%s3230 + $0x18] sm:$0xff]
        %v3235 = vld [vmem:[%s3230 + $0x20] sm:$0xff]
        %v3236 = vld [vmem:[%s3230 + $0x28] sm:$0xff]
        %v3237 = vld [vmem:[%s3230 + $0x30] sm:$0xff]
        %v3238 = vld [vmem:[%s3230 + $0x38] sm:$0xff]
        %v3239 = vld [vmem:[%s3230 + $0x40] sm:$0xff]
        %v3240 = vld [vmem:[%s3230 + $0x48] sm:$0xff]
        %v3241 = vld [vmem:[%s3230 + $0x50] sm:$0xff]
        %v3242 = vld [vmem:[%s3230 + $0x58] sm:$0xff]
        %v3243 = vld [vmem:[%s3230 + $0x60] sm:$0xff]
        %v3244 = vld [vmem:[%s3230 + $0x68] sm:$0xff]
        %v3245 = vld [vmem:[%s3230 + $0x70] sm:$0xff]
        %v3246 = vld [vmem:[%s3230 + $0x78] sm:$0xff]
        %v3247 = vld [vmem:[%s3230 + $0x80] sm:$0xff]
        %v3248 = vld [vmem:[%s3230 + $0x88] sm:$0xff]
        %v3249 = vld [vmem:[%s3230 + $0x90] sm:$0xff]
        %v3250 = vld [vmem:[%s3230 + $0x98] sm:$0xff]
        %v3251 = vld [vmem:[%s3230 + $0xa0] sm:$0xff]
        %v3252 = vld [vmem:[%s3230 + $0xa8] sm:$0xff]
        %v3253 = vld [vmem:[%s3230 + $0xb0] sm:$0xff]
        %v3254 = vld [vmem:[%s3230 + $0xb8] sm:$0xff]
        %v3255 = vld [vmem:[%s3230 + $0xc0] sm:$0xff]
        %v3256 = vld [vmem:[%s3230 + $0xc8] sm:$0xff]
        %v3257 = vld [vmem:[%s3230 + $0xd0] sm:$0xff]
        %v3258 = vld [vmem:[%s3230 + $0xd8] sm:$0xff]
        %v3259 = vld [vmem:[%s3230 + $0xe0] sm:$0xff]
        %v3260 = vld [vmem:[%s3230 + $0xe8] sm:$0xff]
        %v3261 = vld [vmem:[%s3230 + $0xf0] sm:$0xff]
        %v3262 = vld [vmem:[%s3230 + $0xf8] sm:$0xff]
        %v3264 = vunpack.c.l.b16 %v3229
        %v3265 = vunpack.c.h.b16 %v3229
        %v3266 = vpack.c.b16 %v3264, %v3264
        %v3267 = vpack.c.b16 %v3265, %v3265
        %v3269 = vshrl.u32 %v3266, 16
        %v3271 = vshll.u32 %v3266, 16
        %v3273 = vrot.slane %v3271, 1
        %v3274 = vor.u32 %v3269, %v3273
        %v3276 = vshrl.u32 %v3267, 16
        %v3278 = vshll.u32 %v3267, 16
        %v3280 = vrot.slane %v3278, 1
        %v3281 = vor.u32 %v3276, %v3280
        %v3316 = vunpack.c.l.b16 %v3231
        %v3317 = vunpack.c.h.b16 %v3231
        %v3318 = vunpack.c.l.b16 %v3232
        %v3319 = vunpack.c.h.b16 %v3232
        %v3320 = vunpack.c.l.b16 %v3233
        %v3321 = vunpack.c.h.b16 %v3233
        %v3322 = vunpack.c.l.b16 %v3234
        %v3323 = vunpack.c.h.b16 %v3234
        %v3324 = vunpack.c.l.b16 %v3235
        %v3325 = vunpack.c.h.b16 %v3235
        %v3326 = vunpack.c.l.b16 %v3236
        %v3327 = vunpack.c.h.b16 %v3236
        %v3328 = vunpack.c.l.b16 %v3237
        %v3329 = vunpack.c.h.b16 %v3237
        %v3330 = vunpack.c.l.b16 %v3238
        %v3331 = vunpack.c.h.b16 %v3238
        %v3332 = vunpack.c.l.b16 %v3239
        %v3333 = vunpack.c.h.b16 %v3239
        %v3334 = vunpack.c.l.b16 %v3240
        %v3335 = vunpack.c.h.b16 %v3240
        %v3336 = vunpack.c.l.b16 %v3241
        %v3337 = vunpack.c.h.b16 %v3241
        %v3338 = vunpack.c.l.b16 %v3242
        %v3339 = vunpack.c.h.b16 %v3242
        %v3340 = vunpack.c.l.b16 %v3243
        %v3341 = vunpack.c.h.b16 %v3243
        %v3342 = vunpack.c.l.b16 %v3244
        %v3343 = vunpack.c.h.b16 %v3244
        %v3344 = vunpack.c.l.b16 %v3245
        %v3345 = vunpack.c.h.b16 %v3245
        %v3346 = vunpack.c.l.b16 %v3246
        %v3347 = vunpack.c.h.b16 %v3246
        %v3348 = vunpack.c.l.b16 %v3247
        %v3349 = vunpack.c.h.b16 %v3247
        %v3350 = vunpack.c.l.b16 %v3248
        %v3351 = vunpack.c.h.b16 %v3248
        %v3352 = vunpack.c.l.b16 %v3249
        %v3353 = vunpack.c.h.b16 %v3249
        %v3354 = vunpack.c.l.b16 %v3250
        %v3355 = vunpack.c.h.b16 %v3250
        %v3356 = vunpack.c.l.b16 %v3251
        %v3357 = vunpack.c.h.b16 %v3251
        %v3358 = vunpack.c.l.b16 %v3252
        %v3359 = vunpack.c.h.b16 %v3252
        %v3360 = vunpack.c.l.b16 %v3253
        %v3361 = vunpack.c.h.b16 %v3253
        %v3362 = vunpack.c.l.b16 %v3254
        %v3363 = vunpack.c.h.b16 %v3254
        %v3364 = vunpack.c.l.b16 %v3255
        %v3365 = vunpack.c.h.b16 %v3255
        %v3366 = vunpack.c.l.b16 %v3256
        %v3367 = vunpack.c.h.b16 %v3256
        %v3368 = vunpack.c.l.b16 %v3257
        %v3369 = vunpack.c.h.b16 %v3257
        %v3370 = vunpack.c.l.b16 %v3258
        %v3371 = vunpack.c.h.b16 %v3258
        %v3372 = vunpack.c.l.b16 %v3259
        %v3373 = vunpack.c.h.b16 %v3259
        %v3374 = vunpack.c.l.b16 %v3260
        %v3375 = vunpack.c.h.b16 %v3260
        %v3376 = vunpack.c.l.b16 %v3261
        %v3377 = vunpack.c.h.b16 %v3261
        %v3378 = vunpack.c.l.b16 %v3262
        %v3379 = vunpack.c.h.b16 %v3262
        %v3380 = vpack.c.b16 %v3318, %v3316
        %v3381 = vpack.c.b16 %v3319, %v3317
        %v3382 = vpack.c.b16 %v3322, %v3320
        %v3383 = vpack.c.b16 %v3323, %v3321
        %v3384 = vpack.c.b16 %v3326, %v3324
        %v3385 = vpack.c.b16 %v3327, %v3325
        %v3386 = vpack.c.b16 %v3330, %v3328
        %v3387 = vpack.c.b16 %v3331, %v3329
        %v3388 = vpack.c.b16 %v3334, %v3332
        %v3389 = vpack.c.b16 %v3335, %v3333
        %v3390 = vpack.c.b16 %v3338, %v3336
        %v3391 = vpack.c.b16 %v3339, %v3337
        %v3392 = vpack.c.b16 %v3342, %v3340
        %v3393 = vpack.c.b16 %v3343, %v3341
        %v3394 = vpack.c.b16 %v3346, %v3344
        %v3395 = vpack.c.b16 %v3347, %v3345
        %v3396 = vpack.c.b16 %v3350, %v3348
        %v3397 = vpack.c.b16 %v3351, %v3349
        %v3398 = vpack.c.b16 %v3354, %v3352
        %v3399 = vpack.c.b16 %v3355, %v3353
        %v3400 = vpack.c.b16 %v3358, %v3356
        %v3401 = vpack.c.b16 %v3359, %v3357
        %v3402 = vpack.c.b16 %v3362, %v3360
        %v3403 = vpack.c.b16 %v3363, %v3361
        %v3404 = vpack.c.b16 %v3366, %v3364
        %v3405 = vpack.c.b16 %v3367, %v3365
        %v3406 = vpack.c.b16 %v3370, %v3368
        %v3407 = vpack.c.b16 %v3371, %v3369
        %v3408 = vpack.c.b16 %v3374, %v3372
        %v3409 = vpack.c.b16 %v3375, %v3373
        %v3410 = vpack.c.b16 %v3378, %v3376
        %v3411 = vpack.c.b16 %v3379, %v3377
        %3444 = vmatprep.subr.bf16.mxu0 %v3395
        %3445 = vmatpush1.bf16.msra.mxu0 %v3394
        %3446 = vmatprep.subr.bf16.mxu0 %v3393
        %3447 = vmatpush1.bf16.msra.mxu0 %v3392
        %3448 = vmatprep.subr.bf16.mxu0 %v3391
        %3449 = vmatpush1.bf16.msra.mxu0 %v3390
        %3450 = vmatprep.subr.bf16.mxu0 %v3389
        %3451 = vmatpush1.bf16.msra.mxu0 %v3388
        %3452 = vmatprep.subr.bf16.mxu0 %v3387
        %3453 = vmatpush1.bf16.msra.mxu0 %v3386
        %3454 = vmatprep.subr.bf16.mxu0 %v3385
        %3455 = vmatpush1.bf16.msra.mxu0 %v3384
        %3456 = vmatprep.subr.bf16.mxu0 %v3383
        %3457 = vmatpush1.bf16.msra.mxu0 %v3382
        %3458 = vmatprep.subr.bf16.mxu0 %v3381
        %3459 = vmatpush1.bf16.msra.mxu0 %v3380
        %3460 = vmatprep.subr.bf16.mxu0 %v3411
        %3461 = vmatpush2.bf16.msra.mxu0 %v3410
        %3462 = vmatprep.subr.bf16.mxu0 %v3409
        %3463 = vmatpush2.bf16.msra.mxu0 %v3408
        %3464 = vmatprep.subr.bf16.mxu0 %v3407
        %3465 = vmatpush2.bf16.msra.mxu0 %v3406
        %3466 = vmatprep.subr.bf16.mxu0 %v3405
        %3467 = vmatpush2.bf16.msra.mxu0 %v3404
        %3468 = vmatprep.subr.bf16.mxu0 %v3403
        %3469 = vmatpush2.bf16.msra.mxu0 %v3402
        %3470 = vmatprep.subr.bf16.mxu0 %v3401
        %3471 = vmatpush2.bf16.msra.mxu0 %v3400
        %3472 = vmatprep.subr.bf16.mxu0 %v3399
        %3473 = vmatpush2.bf16.msra.mxu0 %v3398
        %3474 = vmatprep.subr.bf16.mxu0 %v3397
        %3475 = vmatpush2.bf16.msra.mxu0 %v3396
        %3476 = vmatprep.mubr.bf16.mxu0 %v3281
        %3477 = vmatmul.mubr.bf16.gmra.mxu0 %v3274
        %v3478 = vpop.f32.mrf.mxu0
        %v3479 = vadd.f32 0.0, %v3478
        %v3480 = vpop.f32.mrf.mxu0
        %v3481 = vadd.f32 0.0, %v3480
        %v3482 = vpop.f32.mrf.mxu0
        %v3483 = vpop.f32.mrf.mxu0
        %3484 = vdwg.mxu0
        %v3485 = vadd.f32 %v3223, %v3479
        %v3486 = vadd.f32 %v3225, %v3481
        %v3487 = vld [vmem:[%s4] sm:$0x3]
        %v3489 = vlaneseq
        %v3490 = vshrl.u32 %v3489, 7
        %v3491 = vsub.s32 0, %v3490
        %v3492 = vrot.slane %v3487, %v3491
        %v3493 = vlaneseq
        %v3494 = vshrl.u32 %v3493, 7
        %v3495 = vsub.s32 1, %v3494
        %v3496 = vrot.slane %v3487, %v3495
        %v3499 = vadd.f32 %v3485, %v3492
        %v3500 = vadd.f32 %v3486, %v3496
        %3501 = vmatprep.subr.bf16.mxu0 %v2931
        %3502 = vmatpush1.bf16.msra.mxu0 %v2930
        %3503 = vmatprep.subr.bf16.mxu0 %v2929
        %3504 = vmatpush1.bf16.msra.mxu0 %v2928
        %3505 = vmatprep.subr.bf16.mxu0 %v2927
        %3506 = vmatpush1.bf16.msra.mxu0 %v2926
        %3507 = vmatprep.subr.bf16.mxu0 %v2925
        %3508 = vmatpush1.bf16.msra.mxu0 %v2924
        %3509 = vmatprep.subr.bf16.mxu0 %v2923
        %3510 = vmatpush1.bf16.msra.mxu0 %v2922
        %3511 = vmatprep.subr.bf16.mxu0 %v2921
        %3512 = vmatpush1.bf16.msra.mxu0 %v2920
        %3513 = vmatprep.subr.bf16.mxu0 %v2919
        %3514 = vmatpush1.bf16.msra.mxu0 %v2918
        %3515 = vmatprep.subr.bf16.mxu0 %v2917
        %3516 = vmatpush1.bf16.msra.mxu0 %v2916
        %3517 = vmatprep.subr.bf16.mxu0 %v2947
        %3518 = vmatpush2.bf16.msra.mxu0 %v2946
        %3519 = vmatprep.subr.bf16.mxu0 %v2945
        %3520 = vmatpush2.bf16.msra.mxu0 %v2944
        %3521 = vmatprep.subr.bf16.mxu0 %v2943
        %3522 = vmatpush2.bf16.msra.mxu0 %v2942
        %3523 = vmatprep.subr.bf16.mxu0 %v2941
        %3524 = vmatpush2.bf16.msra.mxu0 %v2940
        %3525 = vmatprep.subr.bf16.mxu0 %v2939
        %3526 = vmatpush2.bf16.msra.mxu0 %v2938
        %3527 = vmatprep.subr.bf16.mxu0 %v2937
        %3528 = vmatpush2.bf16.msra.mxu0 %v2936
        %3529 = vmatprep.subr.bf16.mxu0 %v2935
        %3530 = vmatpush2.bf16.msra.mxu0 %v2934
        %3531 = vmatprep.subr.bf16.mxu0 %v2933
        %3532 = vmatpush2.bf16.msra.mxu0 %v2932
        %3533 = vmatprep.mubr.bf16.mxu0 %v3281
        %3534 = vmatmul.mubr.bf16.gmra.mxu0 %v3274
        %v3535 = vpop.f32.mrf.mxu0
        %v3536 = vadd.f32 0.0, %v3535
        %v3537 = vpop.f32.mrf.mxu0
        %v3538 = vadd.f32 0.0, %v3537
        %v3539 = vpop.f32.mrf.mxu0
        %v3540 = vpop.f32.mrf.mxu0
        %3541 = vdwg.mxu0
        %3542 = vmatprep.subr.bf16.mxu0 %v3139
        %3543 = vmatpush1.bf16.msra.mxu0 %v3138
        %3544 = vmatprep.subr.bf16.mxu0 %v3137
        %3545 = vmatpush1.bf16.msra.mxu0 %v3136
        %3546 = vmatprep.subr.bf16.mxu0 %v3135
        %3547 = vmatpush1.bf16.msra.mxu0 %v3134
        %3548 = vmatprep.subr.bf16.mxu0 %v3133
        %3549 = vmatpush1.bf16.msra.mxu0 %v3132
        %3550 = vmatprep.subr.bf16.mxu0 %v3131
        %3551 = vmatpush1.bf16.msra.mxu0 %v3130
        %3552 = vmatprep.subr.bf16.mxu0 %v3129
        %3553 = vmatpush1.bf16.msra.mxu0 %v3128
        %3554 = vmatprep.subr.bf16.mxu0 %v3127
        %3555 = vmatpush1.bf16.msra.mxu0 %v3126
        %3556 = vmatprep.subr.bf16.mxu0 %v3125
        %3557 = vmatpush1.bf16.msra.mxu0 %v3124
        %3558 = vmatprep.subr.bf16.mxu0 %v3155
        %3559 = vmatpush2.bf16.msra.mxu0 %v3154
        %3560 = vmatprep.subr.bf16.mxu0 %v3153
        %3561 = vmatpush2.bf16.msra.mxu0 %v3152
        %3562 = vmatprep.subr.bf16.mxu0 %v3151
        %3563 = vmatpush2.bf16.msra.mxu0 %v3150
        %3564 = vmatprep.subr.bf16.mxu0 %v3149
        %3565 = vmatpush2.bf16.msra.mxu0 %v3148
        %3566 = vmatprep.subr.bf16.mxu0 %v3147
        %3567 = vmatpush2.bf16.msra.mxu0 %v3146
        %3568 = vmatprep.subr.bf16.mxu0 %v3145
        %3569 = vmatpush2.bf16.msra.mxu0 %v3144
        %3570 = vmatprep.subr.bf16.mxu0 %v3143
        %3571 = vmatpush2.bf16.msra.mxu0 %v3142
        %3572 = vmatprep.subr.bf16.mxu0 %v3141
        %3573 = vmatpush2.bf16.msra.mxu0 %v3140
        %3574 = vmatprep.mubr.bf16.mxu0 %v2817
        %3575 = vmatmul.mubr.bf16.gmra.mxu0 %v2810
        %v3576 = vpop.f32.mrf.mxu0
        %v3577 = vadd.f32 %v3536, %v3576
        %v3578 = vpop.f32.mrf.mxu0
        %v3579 = vadd.f32 %v3538, %v3578
        %v3580 = vpop.f32.mrf.mxu0
        %v3581 = vpop.f32.mrf.mxu0
        %3582 = vdwg.mxu0
        %v3583 = vld [vmem:[#allocation2] sm:$0xee]
        %v3585 = vunpack.c.l.b16 %v3583
        %v3586 = vunpack.c.h.b16 %v3583
        %v3587 = vpack.c.b16 %v3585, %v3585
        %v3588 = vpack.c.b16 %v3586, %v3586
        %v3589 = vrot.slane %v3587, 1
        %v3590 = vrot.slane %v3588, 1
        %3593 = vmatprep.subr.bf16.mxu0 %v3395
        %3594 = vmatpush1.bf16.msra.mxu0 %v3394
        %3595 = vmatprep.subr.bf16.mxu0 %v3393
        %3596 = vmatpush1.bf16.msra.mxu0 %v3392
        %3597 = vmatprep.subr.bf16.mxu0 %v3391
        %3598 = vmatpush1.bf16.msra.mxu0 %v3390
        %3599 = vmatprep.subr.bf16.mxu0 %v3389
        %3600 = vmatpush1.bf16.msra.mxu0 %v3388
        %3601 = vmatprep.subr.bf16.mxu0 %v3387
        %3602 = vmatpush1.bf16.msra.mxu0 %v3386
        %3603 = vmatprep.subr.bf16.mxu0 %v3385
        %3604 = vmatpush1.bf16.msra.mxu0 %v3384
        %3605 = vmatprep.subr.bf16.mxu0 %v3383
        %3606 = vmatpush1.bf16.msra.mxu0 %v3382
        %3607 = vmatprep.subr.bf16.mxu0 %v3381
        %3608 = vmatpush1.bf16.msra.mxu0 %v3380
        %3609 = vmatprep.subr.bf16.mxu0 %v3411
        %3610 = vmatpush2.bf16.msra.mxu0 %v3410
        %3611 = vmatprep.subr.bf16.mxu0 %v3409
        %3612 = vmatpush2.bf16.msra.mxu0 %v3408
        %3613 = vmatprep.subr.bf16.mxu0 %v3407
        %3614 = vmatpush2.bf16.msra.mxu0 %v3406
        %3615 = vmatprep.subr.bf16.mxu0 %v3405
        %3616 = vmatpush2.bf16.msra.mxu0 %v3404
        %3617 = vmatprep.subr.bf16.mxu0 %v3403
        %3618 = vmatpush2.bf16.msra.mxu0 %v3402
        %3619 = vmatprep.subr.bf16.mxu0 %v3401
        %3620 = vmatpush2.bf16.msra.mxu0 %v3400
        %3621 = vmatprep.subr.bf16.mxu0 %v3399
        %3622 = vmatpush2.bf16.msra.mxu0 %v3398
        %3623 = vmatprep.subr.bf16.mxu0 %v3397
        %3624 = vmatpush2.bf16.msra.mxu0 %v3396
        %3625 = vmatprep.mubr.bf16.mxu0 %v3590
        %3626 = vmatmul.mubr.bf16.gmra.mxu0 %v3589
        %v3627 = vpop.f32.mrf.mxu0
        %v3628 = vadd.f32 0.0, %v3627
        %v3629 = vpop.f32.mrf.mxu0
        %v3630 = vadd.f32 0.0, %v3629
        %v3631 = vpop.f32.mrf.mxu0
        %v3632 = vpop.f32.mrf.mxu0
        %3633 = vdwg.mxu0
        %v3634 = vadd.f32 %v3577, %v3628
        %v3635 = vadd.f32 %v3579, %v3630
        %v3636 = vadd.f32 %v3634, %v3492
        %v3637 = vadd.f32 %v3635, %v3496
        %v3638 = vmax.f32 %v3499, 0.0
        %v3639 = vmax.f32 %v3500, 0.0
        %v3640 = vpack.c.bf16 %v3638, %v3638
        %v3641 = vpack.c.bf16 %v3639, %v3639
        %v3644 = vunpack.c.l.b16 %v3640
        %v3645 = vunpack.c.l.b16 %v3641
        %v3646 = vpack.c.b16 %v3645, %v3644
        %v3648 = vshrl.u32 %v3646, 16
        %v3650 = vrot.slane %v3648, 7
        %v3651 = vshll.u32 %v3646, 16
        %v3653 = vor.u32 %v3650, %v3651
        %v3655 = vsel %vm2712, %v3653, %v2765
        %3656 = vst [vmem:[#allocation2] sm:$0xff] %v3655
        %v3657 = vmax.f32 %v3636, 0.0
        %v3658 = vmax.f32 %v3637, 0.0
        %v3659 = vpack.c.bf16 %v3657, %v3657
        %v3660 = vpack.c.bf16 %v3658, %v3658
        %v3663 = vunpack.c.l.b16 %v3659
        %v3664 = vunpack.c.l.b16 %v3660
        %v3665 = vpack.c.b16 %v3664, %v3663
        %v3667 = vshrl.u32 %v3665, 16
        %v3669 = vrot.slane %v3667, 7
        %v3670 = vshll.u32 %v3665, 16
        %v3672 = vor.u32 %v3669, %v3670
        %v3674 = vld [vmem:[#allocation3] sm:$0xff]
        %v3675 = vsel %vm2712, %v3672, %v3674
        %3676 = vst [vmem:[#allocation3] sm:$0xff] %v3675
        %v3677 = vld [vmem:[#allocation3] sm:$0x77]
        %v3678 = vld [vmem:[#allocation9] sm:$0xff]
        %v3679 = vld [vmem:[#allocation9 + $0x8] sm:$0xff]
        %v3680 = vld [vmem:[#allocation9 + $0x10] sm:$0xff]
        %v3681 = vld [vmem:[#allocation9 + $0x18] sm:$0xff]
        %v3682 = vld [vmem:[#allocation9 + $0x20] sm:$0xff]
        %v3683 = vld [vmem:[#allocation9 + $0x28] sm:$0xff]
        %v3684 = vld [vmem:[#allocation9 + $0x30] sm:$0xff]
        %v3685 = vld [vmem:[#allocation9 + $0x38] sm:$0xff]
        %v3686 = vld [vmem:[#allocation9 + $0x40] sm:$0xff]
        %v3687 = vld [vmem:[#allocation9 + $0x48] sm:$0xff]
        %v3688 = vld [vmem:[#allocation9 + $0x50] sm:$0xff]
        %v3689 = vld [vmem:[#allocation9 + $0x58] sm:$0xff]
        %v3690 = vld [vmem:[#allocation9 + $0x60] sm:$0xff]
        %v3691 = vld [vmem:[#allocation9 + $0x68] sm:$0xff]
        %v3692 = vld [vmem:[#allocation9 + $0x70] sm:$0xff]
        %v3693 = vld [vmem:[#allocation9 + $0x78] sm:$0xff]
        %v3694 = vld [vmem:[#allocation9 + $0x80] sm:$0xff]
        %v3695 = vld [vmem:[#allocation9 + $0x88] sm:$0xff]
        %v3696 = vld [vmem:[#allocation9 + $0x90] sm:$0xff]
        %v3697 = vld [vmem:[#allocation9 + $0x98] sm:$0xff]
        %v3698 = vld [vmem:[#allocation9 + $0xa0] sm:$0xff]
        %v3699 = vld [vmem:[#allocation9 + $0xa8] sm:$0xff]
        %v3700 = vld [vmem:[#allocation9 + $0xb0] sm:$0xff]
        %v3701 = vld [vmem:[#allocation9 + $0xb8] sm:$0xff]
        %v3702 = vld [vmem:[#allocation9 + $0xc0] sm:$0xff]
        %v3703 = vld [vmem:[#allocation9 + $0xc8] sm:$0xff]
        %v3704 = vld [vmem:[#allocation9 + $0xd0] sm:$0xff]
        %v3705 = vld [vmem:[#allocation9 + $0xd8] sm:$0xff]
        %v3706 = vld [vmem:[#allocation9 + $0xe0] sm:$0xff]
        %v3707 = vld [vmem:[#allocation9 + $0xe8] sm:$0xff]
        %v3708 = vld [vmem:[#allocation9 + $0xf0] sm:$0xff]
        %v3709 = vld [vmem:[#allocation9 + $0xf8] sm:$0xff]
        %v3710 = vld [vmem:[#allocation2] sm:$0xff]
        %s3711 = scalar_lea.vmem [#allocation9], 256
        %v3712 = vld [vmem:[%s3711] sm:$0xff]
        %v3713 = vld [vmem:[%s3711 + $0x8] sm:$0xff]
        %v3714 = vld [vmem:[%s3711 + $0x10] sm:$0xff]
        %v3715 = vld [vmem:[%s3711 + $0x18] sm:$0xff]
        %v3716 = vld [vmem:[%s3711 + $0x20] sm:$0xff]
        %v3717 = vld [vmem:[%s3711 + $0x28] sm:$0xff]
        %v3718 = vld [vmem:[%s3711 + $0x30] sm:$0xff]
        %v3719 = vld [vmem:[%s3711 + $0x38] sm:$0xff]
        %v3720 = vld [vmem:[%s3711 + $0x40] sm:$0xff]
        %v3721 = vld [vmem:[%s3711 + $0x48] sm:$0xff]
        %v3722 = vld [vmem:[%s3711 + $0x50] sm:$0xff]
        %v3723 = vld [vmem:[%s3711 + $0x58] sm:$0xff]
        %v3724 = vld [vmem:[%s3711 + $0x60] sm:$0xff]
        %v3725 = vld [vmem:[%s3711 + $0x68] sm:$0xff]
        %v3726 = vld [vmem:[%s3711 + $0x70] sm:$0xff]
        %v3727 = vld [vmem:[%s3711 + $0x78] sm:$0xff]
        %v3728 = vld [vmem:[%s3711 + $0x80] sm:$0xff]
        %v3729 = vld [vmem:[%s3711 + $0x88] sm:$0xff]
        %v3730 = vld [vmem:[%s3711 + $0x90] sm:$0xff]
        %v3731 = vld [vmem:[%s3711 + $0x98] sm:$0xff]
        %v3732 = vld [vmem:[%s3711 + $0xa0] sm:$0xff]
        %v3733 = vld [vmem:[%s3711 + $0xa8] sm:$0xff]
        %v3734 = vld [vmem:[%s3711 + $0xb0] sm:$0xff]
        %v3735 = vld [vmem:[%s3711 + $0xb8] sm:$0xff]
        %v3736 = vld [vmem:[%s3711 + $0xc0] sm:$0xff]
        %v3737 = vld [vmem:[%s3711 + $0xc8] sm:$0xff]
        %v3738 = vld [vmem:[%s3711 + $0xd0] sm:$0xff]
        %v3739 = vld [vmem:[%s3711 + $0xd8] sm:$0xff]
        %v3740 = vld [vmem:[%s3711 + $0xe0] sm:$0xff]
        %v3741 = vld [vmem:[%s3711 + $0xe8] sm:$0xff]
        %v3742 = vld [vmem:[%s3711 + $0xf0] sm:$0xff]
        %v3743 = vld [vmem:[%s3711 + $0xf8] sm:$0xff]
        %v3745 = vunpack.c.l.b16 %v3710
        %v3746 = vunpack.c.h.b16 %v3710
        %v3747 = vpack.c.b16 %v3745, %v3745
        %v3748 = vpack.c.b16 %v3746, %v3746
        %v3750 = vshrl.u32 %v3747, 16
        %v3752 = vshll.u32 %v3747, 16
        %v3754 = vrot.slane %v3752, 1
        %v3755 = vor.u32 %v3750, %v3754
        %v3757 = vshrl.u32 %v3748, 16
        %v3759 = vshll.u32 %v3748, 16
        %v3761 = vrot.slane %v3759, 1
        %v3762 = vor.u32 %v3757, %v3761
        %v3797 = vunpack.c.l.b16 %v3712
        %v3798 = vunpack.c.h.b16 %v3712
        %v3799 = vunpack.c.l.b16 %v3713
        %v3800 = vunpack.c.h.b16 %v3713
        %v3801 = vunpack.c.l.b16 %v3714
        %v3802 = vunpack.c.h.b16 %v3714
        %v3803 = vunpack.c.l.b16 %v3715
        %v3804 = vunpack.c.h.b16 %v3715
        %v3805 = vunpack.c.l.b16 %v3716
        %v3806 = vunpack.c.h.b16 %v3716
        %v3807 = vunpack.c.l.b16 %v3717
        %v3808 = vunpack.c.h.b16 %v3717
        %v3809 = vunpack.c.l.b16 %v3718
        %v3810 = vunpack.c.h.b16 %v3718
        %v3811 = vunpack.c.l.b16 %v3719
        %v3812 = vunpack.c.h.b16 %v3719
        %v3813 = vunpack.c.l.b16 %v3720
        %v3814 = vunpack.c.h.b16 %v3720
        %v3815 = vunpack.c.l.b16 %v3721
        %v3816 = vunpack.c.h.b16 %v3721
        %v3817 = vunpack.c.l.b16 %v3722
        %v3818 = vunpack.c.h.b16 %v3722
        %v3819 = vunpack.c.l.b16 %v3723
        %v3820 = vunpack.c.h.b16 %v3723
        %v3821 = vunpack.c.l.b16 %v3724
        %v3822 = vunpack.c.h.b16 %v3724
        %v3823 = vunpack.c.l.b16 %v3725
        %v3824 = vunpack.c.h.b16 %v3725
        %v3825 = vunpack.c.l.b16 %v3726
        %v3826 = vunpack.c.h.b16 %v3726
        %v3827 = vunpack.c.l.b16 %v3727
        %v3828 = vunpack.c.h.b16 %v3727
        %v3829 = vunpack.c.l.b16 %v3728
        %v3830 = vunpack.c.h.b16 %v3728
        %v3831 = vunpack.c.l.b16 %v3729
        %v3832 = vunpack.c.h.b16 %v3729
        %v3833 = vunpack.c.l.b16 %v3730
        %v3834 = vunpack.c.h.b16 %v3730
        %v3835 = vunpack.c.l.b16 %v3731
        %v3836 = vunpack.c.h.b16 %v3731
        %v3837 = vunpack.c.l.b16 %v3732
        %v3838 = vunpack.c.h.b16 %v3732
        %v3839 = vunpack.c.l.b16 %v3733
        %v3840 = vunpack.c.h.b16 %v3733
        %v3841 = vunpack.c.l.b16 %v3734
        %v3842 = vunpack.c.h.b16 %v3734
        %v3843 = vunpack.c.l.b16 %v3735
        %v3844 = vunpack.c.h.b16 %v3735
        %v3845 = vunpack.c.l.b16 %v3736
        %v3846 = vunpack.c.h.b16 %v3736
        %v3847 = vunpack.c.l.b16 %v3737
        %v3848 = vunpack.c.h.b16 %v3737
        %v3849 = vunpack.c.l.b16 %v3738
        %v3850 = vunpack.c.h.b16 %v3738
        %v3851 = vunpack.c.l.b16 %v3739
        %v3852 = vunpack.c.h.b16 %v3739
        %v3853 = vunpack.c.l.b16 %v3740
        %v3854 = vunpack.c.h.b16 %v3740
        %v3855 = vunpack.c.l.b16 %v3741
        %v3856 = vunpack.c.h.b16 %v3741
        %v3857 = vunpack.c.l.b16 %v3742
        %v3858 = vunpack.c.h.b16 %v3742
        %v3859 = vunpack.c.l.b16 %v3743
        %v3860 = vunpack.c.h.b16 %v3743
        %v3861 = vpack.c.b16 %v3799, %v3797
        %v3862 = vpack.c.b16 %v3800, %v3798
        %v3863 = vpack.c.b16 %v3803, %v3801
        %v3864 = vpack.c.b16 %v3804, %v3802
        %v3865 = vpack.c.b16 %v3807, %v3805
        %v3866 = vpack.c.b16 %v3808, %v3806
        %v3867 = vpack.c.b16 %v3811, %v3809
        %v3868 = vpack.c.b16 %v3812, %v3810
        %v3869 = vpack.c.b16 %v3815, %v3813
        %v3870 = vpack.c.b16 %v3816, %v3814
        %v3871 = vpack.c.b16 %v3819, %v3817
        %v3872 = vpack.c.b16 %v3820, %v3818
        %v3873 = vpack.c.b16 %v3823, %v3821
        %v3874 = vpack.c.b16 %v3824, %v3822
        %v3875 = vpack.c.b16 %v3827, %v3825
        %v3876 = vpack.c.b16 %v3828, %v3826
        %v3877 = vpack.c.b16 %v3831, %v3829
        %v3878 = vpack.c.b16 %v3832, %v3830
        %v3879 = vpack.c.b16 %v3835, %v3833
        %v3880 = vpack.c.b16 %v3836, %v3834
        %v3881 = vpack.c.b16 %v3839, %v3837
        %v3882 = vpack.c.b16 %v3840, %v3838
        %v3883 = vpack.c.b16 %v3843, %v3841
        %v3884 = vpack.c.b16 %v3844, %v3842
        %v3885 = vpack.c.b16 %v3847, %v3845
        %v3886 = vpack.c.b16 %v3848, %v3846
        %v3887 = vpack.c.b16 %v3851, %v3849
        %v3888 = vpack.c.b16 %v3852, %v3850
        %v3889 = vpack.c.b16 %v3855, %v3853
        %v3890 = vpack.c.b16 %v3856, %v3854
        %v3891 = vpack.c.b16 %v3859, %v3857
        %v3892 = vpack.c.b16 %v3860, %v3858
        %3925 = vmatprep.subr.bf16.mxu0 %v3876
        %3926 = vmatpush1.bf16.msra.mxu0 %v3875
        %3927 = vmatprep.subr.bf16.mxu0 %v3874
        %3928 = vmatpush1.bf16.msra.mxu0 %v3873
        %3929 = vmatprep.subr.bf16.mxu0 %v3872
        %3930 = vmatpush1.bf16.msra.mxu0 %v3871
        %3931 = vmatprep.subr.bf16.mxu0 %v3870
        %3932 = vmatpush1.bf16.msra.mxu0 %v3869
        %3933 = vmatprep.subr.bf16.mxu0 %v3868
        %3934 = vmatpush1.bf16.msra.mxu0 %v3867
        %3935 = vmatprep.subr.bf16.mxu0 %v3866
        %3936 = vmatpush1.bf16.msra.mxu0 %v3865
        %3937 = vmatprep.subr.bf16.mxu0 %v3864
        %3938 = vmatpush1.bf16.msra.mxu0 %v3863
        %3939 = vmatprep.subr.bf16.mxu0 %v3862
        %3940 = vmatpush1.bf16.msra.mxu0 %v3861
        %3941 = vmatprep.subr.bf16.mxu0 %v3892
        %3942 = vmatpush2.bf16.msra.mxu0 %v3891
        %3943 = vmatprep.subr.bf16.mxu0 %v3890
        %3944 = vmatpush2.bf16.msra.mxu0 %v3889
        %3945 = vmatprep.subr.bf16.mxu0 %v3888
        %3946 = vmatpush2.bf16.msra.mxu0 %v3887
        %3947 = vmatprep.subr.bf16.mxu0 %v3886
        %3948 = vmatpush2.bf16.msra.mxu0 %v3885
        %3949 = vmatprep.subr.bf16.mxu0 %v3884
        %3950 = vmatpush2.bf16.msra.mxu0 %v3883
        %3951 = vmatprep.subr.bf16.mxu0 %v3882
        %3952 = vmatpush2.bf16.msra.mxu0 %v3881
        %3953 = vmatprep.subr.bf16.mxu0 %v3880
        %3954 = vmatpush2.bf16.msra.mxu0 %v3879
        %3955 = vmatprep.subr.bf16.mxu0 %v3878
        %3956 = vmatpush2.bf16.msra.mxu0 %v3877
        %3957 = vmatprep.mubr.bf16.mxu0 %v3762
        %3958 = vmatmul.mubr.bf16.gmra.mxu0 %v3755
        %v3959 = vpop.f32.mrf.mxu0
        %v3960 = vadd.f32 0.0, %v3959
        %v3961 = vpop.f32.mrf.mxu0
        %v3962 = vadd.f32 0.0, %v3961
        %v3963 = vpop.f32.mrf.mxu0
        %v3964 = vpop.f32.mrf.mxu0
        %3965 = vdwg.mxu0
        %v3967 = vunpack.c.l.b16 %v3677
        %v3968 = vunpack.c.h.b16 %v3677
        %v3969 = vpack.c.b16 %v3967, %v3967
        %v3970 = vpack.c.b16 %v3968, %v3968
        %v4005 = vunpack.c.l.b16 %v3678
        %v4006 = vunpack.c.h.b16 %v3678
        %v4007 = vunpack.c.l.b16 %v3679
        %v4008 = vunpack.c.h.b16 %v3679
        %v4009 = vunpack.c.l.b16 %v3680
        %v4010 = vunpack.c.h.b16 %v3680
        %v4011 = vunpack.c.l.b16 %v3681
        %v4012 = vunpack.c.h.b16 %v3681
        %v4013 = vunpack.c.l.b16 %v3682
        %v4014 = vunpack.c.h.b16 %v3682
        %v4015 = vunpack.c.l.b16 %v3683
        %v4016 = vunpack.c.h.b16 %v3683
        %v4017 = vunpack.c.l.b16 %v3684
        %v4018 = vunpack.c.h.b16 %v3684
        %v4019 = vunpack.c.l.b16 %v3685
        %v4020 = vunpack.c.h.b16 %v3685
        %v4021 = vunpack.c.l.b16 %v3686
        %v4022 = vunpack.c.h.b16 %v3686
        %v4023 = vunpack.c.l.b16 %v3687
        %v4024 = vunpack.c.h.b16 %v3687
        %v4025 = vunpack.c.l.b16 %v3688
        %v4026 = vunpack.c.h.b16 %v3688
        %v4027 = vunpack.c.l.b16 %v3689
        %v4028 = vunpack.c.h.b16 %v3689
        %v4029 = vunpack.c.l.b16 %v3690
        %v4030 = vunpack.c.h.b16 %v3690
        %v4031 = vunpack.c.l.b16 %v3691
        %v4032 = vunpack.c.h.b16 %v3691
        %v4033 = vunpack.c.l.b16 %v3692
        %v4034 = vunpack.c.h.b16 %v3692
        %v4035 = vunpack.c.l.b16 %v3693
        %v4036 = vunpack.c.h.b16 %v3693
        %v4037 = vunpack.c.l.b16 %v3694
        %v4038 = vunpack.c.h.b16 %v3694
        %v4039 = vunpack.c.l.b16 %v3695
        %v4040 = vunpack.c.h.b16 %v3695
        %v4041 = vunpack.c.l.b16 %v3696
        %v4042 = vunpack.c.h.b16 %v3696
        %v4043 = vunpack.c.l.b16 %v3697
        %v4044 = vunpack.c.h.b16 %v3697
        %v4045 = vunpack.c.l.b16 %v3698
        %v4046 = vunpack.c.h.b16 %v3698
        %v4047 = vunpack.c.l.b16 %v3699
        %v4048 = vunpack.c.h.b16 %v3699
        %v4049 = vunpack.c.l.b16 %v3700
        %v4050 = vunpack.c.h.b16 %v3700
        %v4051 = vunpack.c.l.b16 %v3701
        %v4052 = vunpack.c.h.b16 %v3701
        %v4053 = vunpack.c.l.b16 %v3702
        %v4054 = vunpack.c.h.b16 %v3702
        %v4055 = vunpack.c.l.b16 %v3703
        %v4056 = vunpack.c.h.b16 %v3703
        %v4057 = vunpack.c.l.b16 %v3704
        %v4058 = vunpack.c.h.b16 %v3704
        %v4059 = vunpack.c.l.b16 %v3705
        %v4060 = vunpack.c.h.b16 %v3705
        %v4061 = vunpack.c.l.b16 %v3706
        %v4062 = vunpack.c.h.b16 %v3706
        %v4063 = vunpack.c.l.b16 %v3707
        %v4064 = vunpack.c.h.b16 %v3707
        %v4065 = vunpack.c.l.b16 %v3708
        %v4066 = vunpack.c.h.b16 %v3708
        %v4067 = vunpack.c.l.b16 %v3709
        %v4068 = vunpack.c.h.b16 %v3709
        %v4069 = vpack.c.b16 %v4007, %v4005
        %v4070 = vpack.c.b16 %v4008, %v4006
        %v4071 = vpack.c.b16 %v4011, %v4009
        %v4072 = vpack.c.b16 %v4012, %v4010
        %v4073 = vpack.c.b16 %v4015, %v4013
        %v4074 = vpack.c.b16 %v4016, %v4014
        %v4075 = vpack.c.b16 %v4019, %v4017
        %v4076 = vpack.c.b16 %v4020, %v4018
        %v4077 = vpack.c.b16 %v4023, %v4021
        %v4078 = vpack.c.b16 %v4024, %v4022
        %v4079 = vpack.c.b16 %v4027, %v4025
        %v4080 = vpack.c.b16 %v4028, %v4026
        %v4081 = vpack.c.b16 %v4031, %v4029
        %v4082 = vpack.c.b16 %v4032, %v4030
        %v4083 = vpack.c.b16 %v4035, %v4033
        %v4084 = vpack.c.b16 %v4036, %v4034
        %v4085 = vpack.c.b16 %v4039, %v4037
        %v4086 = vpack.c.b16 %v4040, %v4038
        %v4087 = vpack.c.b16 %v4043, %v4041
        %v4088 = vpack.c.b16 %v4044, %v4042
        %v4089 = vpack.c.b16 %v4047, %v4045
        %v4090 = vpack.c.b16 %v4048, %v4046
        %v4091 = vpack.c.b16 %v4051, %v4049
        %v4092 = vpack.c.b16 %v4052, %v4050
        %v4093 = vpack.c.b16 %v4055, %v4053
        %v4094 = vpack.c.b16 %v4056, %v4054
        %v4095 = vpack.c.b16 %v4059, %v4057
        %v4096 = vpack.c.b16 %v4060, %v4058
        %v4097 = vpack.c.b16 %v4063, %v4061
        %v4098 = vpack.c.b16 %v4064, %v4062
        %v4099 = vpack.c.b16 %v4067, %v4065
        %v4100 = vpack.c.b16 %v4068, %v4066
        %4133 = vmatprep.subr.bf16.mxu0 %v4084
        %4134 = vmatpush1.bf16.msra.mxu0 %v4083
        %4135 = vmatprep.subr.bf16.mxu0 %v4082
        %4136 = vmatpush1.bf16.msra.mxu0 %v4081
        %4137 = vmatprep.subr.bf16.mxu0 %v4080
        %4138 = vmatpush1.bf16.msra.mxu0 %v4079
        %4139 = vmatprep.subr.bf16.mxu0 %v4078
        %4140 = vmatpush1.bf16.msra.mxu0 %v4077
        %4141 = vmatprep.subr.bf16.mxu0 %v4076
        %4142 = vmatpush1.bf16.msra.mxu0 %v4075
        %4143 = vmatprep.subr.bf16.mxu0 %v4074
        %4144 = vmatpush1.bf16.msra.mxu0 %v4073
        %4145 = vmatprep.subr.bf16.mxu0 %v4072
        %4146 = vmatpush1.bf16.msra.mxu0 %v4071
        %4147 = vmatprep.subr.bf16.mxu0 %v4070
        %4148 = vmatpush1.bf16.msra.mxu0 %v4069
        %4149 = vmatprep.subr.bf16.mxu0 %v4100
        %4150 = vmatpush2.bf16.msra.mxu0 %v4099
        %4151 = vmatprep.subr.bf16.mxu0 %v4098
        %4152 = vmatpush2.bf16.msra.mxu0 %v4097
        %4153 = vmatprep.subr.bf16.mxu0 %v4096
        %4154 = vmatpush2.bf16.msra.mxu0 %v4095
        %4155 = vmatprep.subr.bf16.mxu0 %v4094
        %4156 = vmatpush2.bf16.msra.mxu0 %v4093
        %4157 = vmatprep.subr.bf16.mxu0 %v4092
        %4158 = vmatpush2.bf16.msra.mxu0 %v4091
        %4159 = vmatprep.subr.bf16.mxu0 %v4090
        %4160 = vmatpush2.bf16.msra.mxu0 %v4089
        %4161 = vmatprep.subr.bf16.mxu0 %v4088
        %4162 = vmatpush2.bf16.msra.mxu0 %v4087
        %4163 = vmatprep.subr.bf16.mxu0 %v4086
        %4164 = vmatpush2.bf16.msra.mxu0 %v4085
        %4165 = vmatprep.mubr.bf16.mxu0 %v3970
        %4166 = vmatmul.mubr.bf16.gmra.mxu0 %v3969
        %v4167 = vpop.f32.mrf.mxu0
        %v4168 = vadd.f32 %v3960, %v4167
        %v4169 = vpop.f32.mrf.mxu0
        %v4170 = vadd.f32 %v3962, %v4169
        %v4171 = vpop.f32.mrf.mxu0
        %v4172 = vpop.f32.mrf.mxu0
        %4173 = vdwg.mxu0
        %v4174 = vld [vmem:[#allocation3] sm:$0xff]
        %s4175 = scalar_lea.vmem [#allocation9], 512
        %v4176 = vld [vmem:[%s4175] sm:$0xff]
        %v4177 = vld [vmem:[%s4175 + $0x8] sm:$0xff]
        %v4178 = vld [vmem:[%s4175 + $0x10] sm:$0xff]
        %v4179 = vld [vmem:[%s4175 + $0x18] sm:$0xff]
        %v4180 = vld [vmem:[%s4175 + $0x20] sm:$0xff]
        %v4181 = vld [vmem:[%s4175 + $0x28] sm:$0xff]
        %v4182 = vld [vmem:[%s4175 + $0x30] sm:$0xff]
        %v4183 = vld [vmem:[%s4175 + $0x38] sm:$0xff]
        %v4184 = vld [vmem:[%s4175 + $0x40] sm:$0xff]
        %v4185 = vld [vmem:[%s4175 + $0x48] sm:$0xff]
        %v4186 = vld [vmem:[%s4175 + $0x50] sm:$0xff]
        %v4187 = vld [vmem:[%s4175 + $0x58] sm:$0xff]
        %v4188 = vld [vmem:[%s4175 + $0x60] sm:$0xff]
        %v4189 = vld [vmem:[%s4175 + $0x68] sm:$0xff]
        %v4190 = vld [vmem:[%s4175 + $0x70] sm:$0xff]
        %v4191 = vld [vmem:[%s4175 + $0x78] sm:$0xff]
        %v4192 = vld [vmem:[%s4175 + $0x80] sm:$0xff]
        %v4193 = vld [vmem:[%s4175 + $0x88] sm:$0xff]
        %v4194 = vld [vmem:[%s4175 + $0x90] sm:$0xff]
        %v4195 = vld [vmem:[%s4175 + $0x98] sm:$0xff]
        %v4196 = vld [vmem:[%s4175 + $0xa0] sm:$0xff]
        %v4197 = vld [vmem:[%s4175 + $0xa8] sm:$0xff]
        %v4198 = vld [vmem:[%s4175 + $0xb0] sm:$0xff]
        %v4199 = vld [vmem:[%s4175 + $0xb8] sm:$0xff]
        %v4200 = vld [vmem:[%s4175 + $0xc0] sm:$0xff]
        %v4201 = vld [vmem:[%s4175 + $0xc8] sm:$0xff]
        %v4202 = vld [vmem:[%s4175 + $0xd0] sm:$0xff]
        %v4203 = vld [vmem:[%s4175 + $0xd8] sm:$0xff]
        %v4204 = vld [vmem:[%s4175 + $0xe0] sm:$0xff]
        %v4205 = vld [vmem:[%s4175 + $0xe8] sm:$0xff]
        %v4206 = vld [vmem:[%s4175 + $0xf0] sm:$0xff]
        %v4207 = vld [vmem:[%s4175 + $0xf8] sm:$0xff]
        %v4209 = vunpack.c.l.b16 %v4174
        %v4210 = vunpack.c.h.b16 %v4174
        %v4211 = vpack.c.b16 %v4209, %v4209
        %v4212 = vpack.c.b16 %v4210, %v4210
        %v4214 = vshrl.u32 %v4211, 16
        %v4216 = vshll.u32 %v4211, 16
        %v4218 = vrot.slane %v4216, 1
        %v4219 = vor.u32 %v4214, %v4218
        %v4221 = vshrl.u32 %v4212, 16
        %v4223 = vshll.u32 %v4212, 16
        %v4225 = vrot.slane %v4223, 1
        %v4226 = vor.u32 %v4221, %v4225
        %v4261 = vunpack.c.l.b16 %v4176
        %v4262 = vunpack.c.h.b16 %v4176
        %v4263 = vunpack.c.l.b16 %v4177
        %v4264 = vunpack.c.h.b16 %v4177
        %v4265 = vunpack.c.l.b16 %v4178
        %v4266 = vunpack.c.h.b16 %v4178
        %v4267 = vunpack.c.l.b16 %v4179
        %v4268 = vunpack.c.h.b16 %v4179
        %v4269 = vunpack.c.l.b16 %v4180
        %v4270 = vunpack.c.h.b16 %v4180
        %v4271 = vunpack.c.l.b16 %v4181
        %v4272 = vunpack.c.h.b16 %v4181
        %v4273 = vunpack.c.l.b16 %v4182
        %v4274 = vunpack.c.h.b16 %v4182
        %v4275 = vunpack.c.l.b16 %v4183
        %v4276 = vunpack.c.h.b16 %v4183
        %v4277 = vunpack.c.l.b16 %v4184
        %v4278 = vunpack.c.h.b16 %v4184
        %v4279 = vunpack.c.l.b16 %v4185
        %v4280 = vunpack.c.h.b16 %v4185
        %v4281 = vunpack.c.l.b16 %v4186
        %v4282 = vunpack.c.h.b16 %v4186
        %v4283 = vunpack.c.l.b16 %v4187
        %v4284 = vunpack.c.h.b16 %v4187
        %v4285 = vunpack.c.l.b16 %v4188
        %v4286 = vunpack.c.h.b16 %v4188
        %v4287 = vunpack.c.l.b16 %v4189
        %v4288 = vunpack.c.h.b16 %v4189
        %v4289 = vunpack.c.l.b16 %v4190
        %v4290 = vunpack.c.h.b16 %v4190
        %v4291 = vunpack.c.l.b16 %v4191
        %v4292 = vunpack.c.h.b16 %v4191
        %v4293 = vunpack.c.l.b16 %v4192
        %v4294 = vunpack.c.h.b16 %v4192
        %v4295 = vunpack.c.l.b16 %v4193
        %v4296 = vunpack.c.h.b16 %v4193
        %v4297 = vunpack.c.l.b16 %v4194
        %v4298 = vunpack.c.h.b16 %v4194
        %v4299 = vunpack.c.l.b16 %v4195
        %v4300 = vunpack.c.h.b16 %v4195
        %v4301 = vunpack.c.l.b16 %v4196
        %v4302 = vunpack.c.h.b16 %v4196
        %v4303 = vunpack.c.l.b16 %v4197
        %v4304 = vunpack.c.h.b16 %v4197
        %v4305 = vunpack.c.l.b16 %v4198
        %v4306 = vunpack.c.h.b16 %v4198
        %v4307 = vunpack.c.l.b16 %v4199
        %v4308 = vunpack.c.h.b16 %v4199
        %v4309 = vunpack.c.l.b16 %v4200
        %v4310 = vunpack.c.h.b16 %v4200
        %v4311 = vunpack.c.l.b16 %v4201
        %v4312 = vunpack.c.h.b16 %v4201
        %v4313 = vunpack.c.l.b16 %v4202
        %v4314 = vunpack.c.h.b16 %v4202
        %v4315 = vunpack.c.l.b16 %v4203
        %v4316 = vunpack.c.h.b16 %v4203
        %v4317 = vunpack.c.l.b16 %v4204
        %v4318 = vunpack.c.h.b16 %v4204
        %v4319 = vunpack.c.l.b16 %v4205
        %v4320 = vunpack.c.h.b16 %v4205
        %v4321 = vunpack.c.l.b16 %v4206
        %v4322 = vunpack.c.h.b16 %v4206
        %v4323 = vunpack.c.l.b16 %v4207
        %v4324 = vunpack.c.h.b16 %v4207
        %v4325 = vpack.c.b16 %v4263, %v4261
        %v4326 = vpack.c.b16 %v4264, %v4262
        %v4327 = vpack.c.b16 %v4267, %v4265
        %v4328 = vpack.c.b16 %v4268, %v4266
        %v4329 = vpack.c.b16 %v4271, %v4269
        %v4330 = vpack.c.b16 %v4272, %v4270
        %v4331 = vpack.c.b16 %v4275, %v4273
        %v4332 = vpack.c.b16 %v4276, %v4274
        %v4333 = vpack.c.b16 %v4279, %v4277
        %v4334 = vpack.c.b16 %v4280, %v4278
        %v4335 = vpack.c.b16 %v4283, %v4281
        %v4336 = vpack.c.b16 %v4284, %v4282
        %v4337 = vpack.c.b16 %v4287, %v4285
        %v4338 = vpack.c.b16 %v4288, %v4286
        %v4339 = vpack.c.b16 %v4291, %v4289
        %v4340 = vpack.c.b16 %v4292, %v4290
        %v4341 = vpack.c.b16 %v4295, %v4293
        %v4342 = vpack.c.b16 %v4296, %v4294
        %v4343 = vpack.c.b16 %v4299, %v4297
        %v4344 = vpack.c.b16 %v4300, %v4298
        %v4345 = vpack.c.b16 %v4303, %v4301
        %v4346 = vpack.c.b16 %v4304, %v4302
        %v4347 = vpack.c.b16 %v4307, %v4305
        %v4348 = vpack.c.b16 %v4308, %v4306
        %v4349 = vpack.c.b16 %v4311, %v4309
        %v4350 = vpack.c.b16 %v4312, %v4310
        %v4351 = vpack.c.b16 %v4315, %v4313
        %v4352 = vpack.c.b16 %v4316, %v4314
        %v4353 = vpack.c.b16 %v4319, %v4317
        %v4354 = vpack.c.b16 %v4320, %v4318
        %v4355 = vpack.c.b16 %v4323, %v4321
        %v4356 = vpack.c.b16 %v4324, %v4322
        %4389 = vmatprep.subr.bf16.mxu0 %v4340
        %4390 = vmatpush1.bf16.msra.mxu0 %v4339
        %4391 = vmatprep.subr.bf16.mxu0 %v4338
        %4392 = vmatpush1.bf16.msra.mxu0 %v4337
        %4393 = vmatprep.subr.bf16.mxu0 %v4336
        %4394 = vmatpush1.bf16.msra.mxu0 %v4335
        %4395 = vmatprep.subr.bf16.mxu0 %v4334
        %4396 = vmatpush1.bf16.msra.mxu0 %v4333
        %4397 = vmatprep.subr.bf16.mxu0 %v4332
        %4398 = vmatpush1.bf16.msra.mxu0 %v4331
        %4399 = vmatprep.subr.bf16.mxu0 %v4330
        %4400 = vmatpush1.bf16.msra.mxu0 %v4329
        %4401 = vmatprep.subr.bf16.mxu0 %v4328
        %4402 = vmatpush1.bf16.msra.mxu0 %v4327
        %4403 = vmatprep.subr.bf16.mxu0 %v4326
        %4404 = vmatpush1.bf16.msra.mxu0 %v4325
        %4405 = vmatprep.subr.bf16.mxu0 %v4356
        %4406 = vmatpush2.bf16.msra.mxu0 %v4355
        %4407 = vmatprep.subr.bf16.mxu0 %v4354
        %4408 = vmatpush2.bf16.msra.mxu0 %v4353
        %4409 = vmatprep.subr.bf16.mxu0 %v4352
        %4410 = vmatpush2.bf16.msra.mxu0 %v4351
        %4411 = vmatprep.subr.bf16.mxu0 %v4350
        %4412 = vmatpush2.bf16.msra.mxu0 %v4349
        %4413 = vmatprep.subr.bf16.mxu0 %v4348
        %4414 = vmatpush2.bf16.msra.mxu0 %v4347
        %4415 = vmatprep.subr.bf16.mxu0 %v4346
        %4416 = vmatpush2.bf16.msra.mxu0 %v4345
        %4417 = vmatprep.subr.bf16.mxu0 %v4344
        %4418 = vmatpush2.bf16.msra.mxu0 %v4343
        %4419 = vmatprep.subr.bf16.mxu0 %v4342
        %4420 = vmatpush2.bf16.msra.mxu0 %v4341
        %4421 = vmatprep.mubr.bf16.mxu0 %v4226
        %4422 = vmatmul.mubr.bf16.gmra.mxu0 %v4219
        %v4423 = vpop.f32.mrf.mxu0
        %v4424 = vadd.f32 0.0, %v4423
        %v4425 = vpop.f32.mrf.mxu0
        %v4426 = vadd.f32 0.0, %v4425
        %v4427 = vpop.f32.mrf.mxu0
        %v4428 = vpop.f32.mrf.mxu0
        %4429 = vdwg.mxu0
        %v4430 = vadd.f32 %v4168, %v4424
        %v4431 = vadd.f32 %v4170, %v4426
        %v4432 = vld [vmem:[%s6] sm:$0x3]
        %v4434 = vlaneseq
        %v4435 = vshrl.u32 %v4434, 7
        %v4436 = vsub.s32 0, %v4435
        %v4437 = vrot.slane %v4432, %v4436
        %v4438 = vlaneseq
        %v4439 = vshrl.u32 %v4438, 7
        %v4440 = vsub.s32 1, %v4439
        %v4441 = vrot.slane %v4432, %v4440
        %v4444 = vadd.f32 %v4430, %v4437
        %v4445 = vadd.f32 %v4431, %v4441
        %4446 = vmatprep.subr.bf16.mxu0 %v3876
        %4447 = vmatpush1.bf16.msra.mxu0 %v3875
        %4448 = vmatprep.subr.bf16.mxu0 %v3874
        %4449 = vmatpush1.bf16.msra.mxu0 %v3873
        %4450 = vmatprep.subr.bf16.mxu0 %v3872
        %4451 = vmatpush1.bf16.msra.mxu0 %v3871
        %4452 = vmatprep.subr.bf16.mxu0 %v3870
        %4453 = vmatpush1.bf16.msra.mxu0 %v3869
        %4454 = vmatprep.subr.bf16.mxu0 %v3868
        %4455 = vmatpush1.bf16.msra.mxu0 %v3867
        %4456 = vmatprep.subr.bf16.mxu0 %v3866
        %4457 = vmatpush1.bf16.msra.mxu0 %v3865
        %4458 = vmatprep.subr.bf16.mxu0 %v3864
        %4459 = vmatpush1.bf16.msra.mxu0 %v3863
        %4460 = vmatprep.subr.bf16.mxu0 %v3862
        %4461 = vmatpush1.bf16.msra.mxu0 %v3861
        %4462 = vmatprep.subr.bf16.mxu0 %v3892
        %4463 = vmatpush2.bf16.msra.mxu0 %v3891
        %4464 = vmatprep.subr.bf16.mxu0 %v3890
        %4465 = vmatpush2.bf16.msra.mxu0 %v3889
        %4466 = vmatprep.subr.bf16.mxu0 %v3888
        %4467 = vmatpush2.bf16.msra.mxu0 %v3887
        %4468 = vmatprep.subr.bf16.mxu0 %v3886
        %4469 = vmatpush2.bf16.msra.mxu0 %v3885
        %4470 = vmatprep.subr.bf16.mxu0 %v3884
        %4471 = vmatpush2.bf16.msra.mxu0 %v3883
        %4472 = vmatprep.subr.bf16.mxu0 %v3882
        %4473 = vmatpush2.bf16.msra.mxu0 %v3881
        %4474 = vmatprep.subr.bf16.mxu0 %v3880
        %4475 = vmatpush2.bf16.msra.mxu0 %v3879
        %4476 = vmatprep.subr.bf16.mxu0 %v3878
        %4477 = vmatpush2.bf16.msra.mxu0 %v3877
        %4478 = vmatprep.mubr.bf16.mxu0 %v4226
        %4479 = vmatmul.mubr.bf16.gmra.mxu0 %v4219
        %v4480 = vpop.f32.mrf.mxu0
        %v4481 = vadd.f32 0.0, %v4480
        %v4482 = vpop.f32.mrf.mxu0
        %v4483 = vadd.f32 0.0, %v4482
        %v4484 = vpop.f32.mrf.mxu0
        %v4485 = vpop.f32.mrf.mxu0
        %4486 = vdwg.mxu0
        %4487 = vmatprep.subr.bf16.mxu0 %v4084
        %4488 = vmatpush1.bf16.msra.mxu0 %v4083
        %4489 = vmatprep.subr.bf16.mxu0 %v4082
        %4490 = vmatpush1.bf16.msra.mxu0 %v4081
        %4491 = vmatprep.subr.bf16.mxu0 %v4080
        %4492 = vmatpush1.bf16.msra.mxu0 %v4079
        %4493 = vmatprep.subr.bf16.mxu0 %v4078
        %4494 = vmatpush1.bf16.msra.mxu0 %v4077
        %4495 = vmatprep.subr.bf16.mxu0 %v4076
        %4496 = vmatpush1.bf16.msra.mxu0 %v4075
        %4497 = vmatprep.subr.bf16.mxu0 %v4074
        %4498 = vmatpush1.bf16.msra.mxu0 %v4073
        %4499 = vmatprep.subr.bf16.mxu0 %v4072
        %4500 = vmatpush1.bf16.msra.mxu0 %v4071
        %4501 = vmatprep.subr.bf16.mxu0 %v4070
        %4502 = vmatpush1.bf16.msra.mxu0 %v4069
        %4503 = vmatprep.subr.bf16.mxu0 %v4100
        %4504 = vmatpush2.bf16.msra.mxu0 %v4099
        %4505 = vmatprep.subr.bf16.mxu0 %v4098
        %4506 = vmatpush2.bf16.msra.mxu0 %v4097
        %4507 = vmatprep.subr.bf16.mxu0 %v4096
        %4508 = vmatpush2.bf16.msra.mxu0 %v4095
        %4509 = vmatprep.subr.bf16.mxu0 %v4094
        %4510 = vmatpush2.bf16.msra.mxu0 %v4093
        %4511 = vmatprep.subr.bf16.mxu0 %v4092
        %4512 = vmatpush2.bf16.msra.mxu0 %v4091
        %4513 = vmatprep.subr.bf16.mxu0 %v4090
        %4514 = vmatpush2.bf16.msra.mxu0 %v4089
        %4515 = vmatprep.subr.bf16.mxu0 %v4088
        %4516 = vmatpush2.bf16.msra.mxu0 %v4087
        %4517 = vmatprep.subr.bf16.mxu0 %v4086
        %4518 = vmatpush2.bf16.msra.mxu0 %v4085
        %4519 = vmatprep.mubr.bf16.mxu0 %v3762
        %4520 = vmatmul.mubr.bf16.gmra.mxu0 %v3755
        %v4521 = vpop.f32.mrf.mxu0
        %v4522 = vadd.f32 %v4481, %v4521
        %v4523 = vpop.f32.mrf.mxu0
        %v4524 = vadd.f32 %v4483, %v4523
        %v4525 = vpop.f32.mrf.mxu0
        %v4526 = vpop.f32.mrf.mxu0
        %4527 = vdwg.mxu0
        %v4528 = vld [vmem:[#allocation2] sm:$0xee]
        %v4530 = vunpack.c.l.b16 %v4528
        %v4531 = vunpack.c.h.b16 %v4528
        %v4532 = vpack.c.b16 %v4530, %v4530
        %v4533 = vpack.c.b16 %v4531, %v4531
        %v4534 = vrot.slane %v4532, 1
        %v4535 = vrot.slane %v4533, 1
        %4538 = vmatprep.subr.bf16.mxu0 %v4340
        %4539 = vmatpush1.bf16.msra.mxu0 %v4339
        %4540 = vmatprep.subr.bf16.mxu0 %v4338
        %4541 = vmatpush1.bf16.msra.mxu0 %v4337
        %4542 = vmatprep.subr.bf16.mxu0 %v4336
        %4543 = vmatpush1.bf16.msra.mxu0 %v4335
        %4544 = vmatprep.subr.bf16.mxu0 %v4334
        %4545 = vmatpush1.bf16.msra.mxu0 %v4333
        %4546 = vmatprep.subr.bf16.mxu0 %v4332
        %4547 = vmatpush1.bf16.msra.mxu0 %v4331
        %4548 = vmatprep.subr.bf16.mxu0 %v4330
        %4549 = vmatpush1.bf16.msra.mxu0 %v4329
        %4550 = vmatprep.subr.bf16.mxu0 %v4328
        %4551 = vmatpush1.bf16.msra.mxu0 %v4327
        %4552 = vmatprep.subr.bf16.mxu0 %v4326
        %4553 = vmatpush1.bf16.msra.mxu0 %v4325
        %4554 = vmatprep.subr.bf16.mxu0 %v4356
        %4555 = vmatpush2.bf16.msra.mxu0 %v4355
        %4556 = vmatprep.subr.bf16.mxu0 %v4354
        %4557 = vmatpush2.bf16.msra.mxu0 %v4353
        %4558 = vmatprep.subr.bf16.mxu0 %v4352
        %4559 = vmatpush2.bf16.msra.mxu0 %v4351
        %4560 = vmatprep.subr.bf16.mxu0 %v4350
        %4561 = vmatpush2.bf16.msra.mxu0 %v4349
        %4562 = vmatprep.subr.bf16.mxu0 %v4348
        %4563 = vmatpush2.bf16.msra.mxu0 %v4347
        %4564 = vmatprep.subr.bf16.mxu0 %v4346
        %4565 = vmatpush2.bf16.msra.mxu0 %v4345
        %4566 = vmatprep.subr.bf16.mxu0 %v4344
        %4567 = vmatpush2.bf16.msra.mxu0 %v4343
        %4568 = vmatprep.subr.bf16.mxu0 %v4342
        %4569 = vmatpush2.bf16.msra.mxu0 %v4341
        %4570 = vmatprep.mubr.bf16.mxu0 %v4535
        %4571 = vmatmul.mubr.bf16.gmra.mxu0 %v4534
        %v4572 = vpop.f32.mrf.mxu0
        %v4573 = vadd.f32 0.0, %v4572
        %v4574 = vpop.f32.mrf.mxu0
        %v4575 = vadd.f32 0.0, %v4574
        %v4576 = vpop.f32.mrf.mxu0
        %v4577 = vpop.f32.mrf.mxu0
        %4578 = vdwg.mxu0
        %v4579 = vadd.f32 %v4522, %v4573
        %v4580 = vadd.f32 %v4524, %v4575
        %v4581 = vadd.f32 %v4579, %v4437
        %v4582 = vadd.f32 %v4580, %v4441
        %v4583 = vunpack.c.l.bf16 %v1781
        %v4584 = vunpack.c.l.bf16 %v1782
        %v4585 = vadd.f32 %v4444, %v4583
        %v4586 = vadd.f32 %v4445, %v4584
        %v4587 = vmax.f32 %v4585, 0.0
        %v4588 = vmax.f32 %v4586, 0.0
        %v4589 = vpack.c.bf16 %v4587, %v4587
        %v4590 = vpack.c.bf16 %v4588, %v4588
        %v4591 = vunpack.c.l.bf16 %v2665
        %v4592 = vunpack.c.l.bf16 %v2666
        %v4593 = vadd.f32 %v4581, %v4591
        %v4594 = vadd.f32 %v4582, %v4592
        %v4595 = vmax.f32 %v4593, 0.0
        %v4596 = vmax.f32 %v4594, 0.0
        %v4597 = vpack.c.bf16 %v4595, %v4595
        %v4598 = vpack.c.bf16 %v4596, %v4596
        %v4599 = vld [vmem:[#allocation10] sm:$0xff]
        %v4600 = vld [vmem:[#allocation10 + $0x8] sm:$0xff]
        %v4601 = vld [vmem:[#allocation10 + $0x10] sm:$0xff]
        %v4602 = vld [vmem:[#allocation10 + $0x18] sm:$0xff]
        %v4603 = vld [vmem:[#allocation10 + $0x20] sm:$0xff]
        %v4604 = vld [vmem:[#allocation10 + $0x28] sm:$0xff]
        %v4605 = vld [vmem:[#allocation10 + $0x30] sm:$0xff]
        %v4606 = vld [vmem:[#allocation10 + $0x38] sm:$0xff]
        %v4607 = vld [vmem:[#allocation10 + $0x40] sm:$0xff]
        %v4608 = vld [vmem:[#allocation10 + $0x48] sm:$0xff]
        %v4609 = vld [vmem:[#allocation10 + $0x50] sm:$0xff]
        %v4610 = vld [vmem:[#allocation10 + $0x58] sm:$0xff]
        %v4611 = vld [vmem:[#allocation10 + $0x60] sm:$0xff]
        %v4612 = vld [vmem:[#allocation10 + $0x68] sm:$0xff]
        %v4613 = vld [vmem:[#allocation10 + $0x70] sm:$0xff]
        %v4614 = vld [vmem:[#allocation10 + $0x78] sm:$0xff]
        %v4615 = vld [vmem:[#allocation10 + $0x80] sm:$0xff]
        %v4616 = vld [vmem:[#allocation10 + $0x88] sm:$0xff]
        %v4617 = vld [vmem:[#allocation10 + $0x90] sm:$0xff]
        %v4618 = vld [vmem:[#allocation10 + $0x98] sm:$0xff]
        %v4619 = vld [vmem:[#allocation10 + $0xa0] sm:$0xff]
        %v4620 = vld [vmem:[#allocation10 + $0xa8] sm:$0xff]
        %v4621 = vld [vmem:[#allocation10 + $0xb0] sm:$0xff]
        %v4622 = vld [vmem:[#allocation10 + $0xb8] sm:$0xff]
        %v4623 = vld [vmem:[#allocation10 + $0xc0] sm:$0xff]
        %v4624 = vld [vmem:[#allocation10 + $0xc8] sm:$0xff]
        %v4625 = vld [vmem:[#allocation10 + $0xd0] sm:$0xff]
        %v4626 = vld [vmem:[#allocation10 + $0xd8] sm:$0xff]
        %v4627 = vld [vmem:[#allocation10 + $0xe0] sm:$0xff]
        %v4628 = vld [vmem:[#allocation10 + $0xe8] sm:$0xff]
        %v4629 = vld [vmem:[#allocation10 + $0xf0] sm:$0xff]
        %v4630 = vld [vmem:[#allocation10 + $0xf8] sm:$0xff]
        %s4631 = scalar_lea.vmem [#allocation10], 256
        %v4632 = vld [vmem:[%s4631] sm:$0xff]
        %v4633 = vld [vmem:[%s4631 + $0x8] sm:$0xff]
        %v4634 = vld [vmem:[%s4631 + $0x10] sm:$0xff]
        %v4635 = vld [vmem:[%s4631 + $0x18] sm:$0xff]
        %v4636 = vld [vmem:[%s4631 + $0x20] sm:$0xff]
        %v4637 = vld [vmem:[%s4631 + $0x28] sm:$0xff]
        %v4638 = vld [vmem:[%s4631 + $0x30] sm:$0xff]
        %v4639 = vld [vmem:[%s4631 + $0x38] sm:$0xff]
        %v4640 = vld [vmem:[%s4631 + $0x40] sm:$0xff]
        %v4641 = vld [vmem:[%s4631 + $0x48] sm:$0xff]
        %v4642 = vld [vmem:[%s4631 + $0x50] sm:$0xff]
        %v4643 = vld [vmem:[%s4631 + $0x58] sm:$0xff]
        %v4644 = vld [vmem:[%s4631 + $0x60] sm:$0xff]
        %v4645 = vld [vmem:[%s4631 + $0x68] sm:$0xff]
        %v4646 = vld [vmem:[%s4631 + $0x70] sm:$0xff]
        %v4647 = vld [vmem:[%s4631 + $0x78] sm:$0xff]
        %v4648 = vld [vmem:[%s4631 + $0x80] sm:$0xff]
        %v4649 = vld [vmem:[%s4631 + $0x88] sm:$0xff]
        %v4650 = vld [vmem:[%s4631 + $0x90] sm:$0xff]
        %v4651 = vld [vmem:[%s4631 + $0x98] sm:$0xff]
        %v4652 = vld [vmem:[%s4631 + $0xa0] sm:$0xff]
        %v4653 = vld [vmem:[%s4631 + $0xa8] sm:$0xff]
        %v4654 = vld [vmem:[%s4631 + $0xb0] sm:$0xff]
        %v4655 = vld [vmem:[%s4631 + $0xb8] sm:$0xff]
        %v4656 = vld [vmem:[%s4631 + $0xc0] sm:$0xff]
        %v4657 = vld [vmem:[%s4631 + $0xc8] sm:$0xff]
        %v4658 = vld [vmem:[%s4631 + $0xd0] sm:$0xff]
        %v4659 = vld [vmem:[%s4631 + $0xd8] sm:$0xff]
        %v4660 = vld [vmem:[%s4631 + $0xe0] sm:$0xff]
        %v4661 = vld [vmem:[%s4631 + $0xe8] sm:$0xff]
        %v4662 = vld [vmem:[%s4631 + $0xf0] sm:$0xff]
        %v4663 = vld [vmem:[%s4631 + $0xf8] sm:$0xff]
        %v4696 = vunpack.c.l.b16 %v4632
        %v4697 = vunpack.c.h.b16 %v4632
        %v4698 = vunpack.c.l.b16 %v4633
        %v4699 = vunpack.c.h.b16 %v4633
        %v4700 = vunpack.c.l.b16 %v4634
        %v4701 = vunpack.c.h.b16 %v4634
        %v4702 = vunpack.c.l.b16 %v4635
        %v4703 = vunpack.c.h.b16 %v4635
        %v4704 = vunpack.c.l.b16 %v4636
        %v4705 = vunpack.c.h.b16 %v4636
        %v4706 = vunpack.c.l.b16 %v4637
        %v4707 = vunpack.c.h.b16 %v4637
        %v4708 = vunpack.c.l.b16 %v4638
        %v4709 = vunpack.c.h.b16 %v4638
        %v4710 = vunpack.c.l.b16 %v4639
        %v4711 = vunpack.c.h.b16 %v4639
        %v4712 = vunpack.c.l.b16 %v4640
        %v4713 = vunpack.c.h.b16 %v4640
        %v4714 = vunpack.c.l.b16 %v4641
        %v4715 = vunpack.c.h.b16 %v4641
        %v4716 = vunpack.c.l.b16 %v4642
        %v4717 = vunpack.c.h.b16 %v4642
        %v4718 = vunpack.c.l.b16 %v4643
        %v4719 = vunpack.c.h.b16 %v4643
        %v4720 = vunpack.c.l.b16 %v4644
        %v4721 = vunpack.c.h.b16 %v4644
        %v4722 = vunpack.c.l.b16 %v4645
        %v4723 = vunpack.c.h.b16 %v4645
        %v4724 = vunpack.c.l.b16 %v4646
        %v4725 = vunpack.c.h.b16 %v4646
        %v4726 = vunpack.c.l.b16 %v4647
        %v4727 = vunpack.c.h.b16 %v4647
        %v4728 = vunpack.c.l.b16 %v4648
        %v4729 = vunpack.c.h.b16 %v4648
        %v4730 = vunpack.c.l.b16 %v4649
        %v4731 = vunpack.c.h.b16 %v4649
        %v4732 = vunpack.c.l.b16 %v4650
        %v4733 = vunpack.c.h.b16 %v4650
        %v4734 = vunpack.c.l.b16 %v4651
        %v4735 = vunpack.c.h.b16 %v4651
        %v4736 = vunpack.c.l.b16 %v4652
        %v4737 = vunpack.c.h.b16 %v4652
        %v4738 = vunpack.c.l.b16 %v4653
        %v4739 = vunpack.c.h.b16 %v4653
        %v4740 = vunpack.c.l.b16 %v4654
        %v4741 = vunpack.c.h.b16 %v4654
        %v4742 = vunpack.c.l.b16 %v4655
        %v4743 = vunpack.c.h.b16 %v4655
        %v4744 = vunpack.c.l.b16 %v4656
        %v4745 = vunpack.c.h.b16 %v4656
        %v4746 = vunpack.c.l.b16 %v4657
        %v4747 = vunpack.c.h.b16 %v4657
        %v4748 = vunpack.c.l.b16 %v4658
        %v4749 = vunpack.c.h.b16 %v4658
        %v4750 = vunpack.c.l.b16 %v4659
        %v4751 = vunpack.c.h.b16 %v4659
        %v4752 = vunpack.c.l.b16 %v4660
        %v4753 = vunpack.c.h.b16 %v4660
        %v4754 = vunpack.c.l.b16 %v4661
        %v4755 = vunpack.c.h.b16 %v4661
        %v4756 = vunpack.c.l.b16 %v4662
        %v4757 = vunpack.c.h.b16 %v4662
        %v4758 = vunpack.c.l.b16 %v4663
        %v4759 = vunpack.c.h.b16 %v4663
        %v4760 = vpack.c.b16 %v4698, %v4696
        %v4761 = vpack.c.b16 %v4699, %v4697
        %v4762 = vpack.c.b16 %v4702, %v4700
        %v4763 = vpack.c.b16 %v4703, %v4701
        %v4764 = vpack.c.b16 %v4706, %v4704
        %v4765 = vpack.c.b16 %v4707, %v4705
        %v4766 = vpack.c.b16 %v4710, %v4708
        %v4767 = vpack.c.b16 %v4711, %v4709
        %v4768 = vpack.c.b16 %v4714, %v4712
        %v4769 = vpack.c.b16 %v4715, %v4713
        %v4770 = vpack.c.b16 %v4718, %v4716
        %v4771 = vpack.c.b16 %v4719, %v4717
        %v4772 = vpack.c.b16 %v4722, %v4720
        %v4773 = vpack.c.b16 %v4723, %v4721
        %v4774 = vpack.c.b16 %v4726, %v4724
        %v4775 = vpack.c.b16 %v4727, %v4725
        %v4776 = vpack.c.b16 %v4730, %v4728
        %v4777 = vpack.c.b16 %v4731, %v4729
        %v4778 = vpack.c.b16 %v4734, %v4732
        %v4779 = vpack.c.b16 %v4735, %v4733
        %v4780 = vpack.c.b16 %v4738, %v4736
        %v4781 = vpack.c.b16 %v4739, %v4737
        %v4782 = vpack.c.b16 %v4742, %v4740
        %v4783 = vpack.c.b16 %v4743, %v4741
        %v4784 = vpack.c.b16 %v4746, %v4744
        %v4785 = vpack.c.b16 %v4747, %v4745
        %v4786 = vpack.c.b16 %v4750, %v4748
        %v4787 = vpack.c.b16 %v4751, %v4749
        %v4788 = vpack.c.b16 %v4754, %v4752
        %v4789 = vpack.c.b16 %v4755, %v4753
        %v4790 = vpack.c.b16 %v4758, %v4756
        %v4791 = vpack.c.b16 %v4759, %v4757
        %4824 = vmatprep.subr.bf16.mxu0 %v4775
        %4825 = vmatpush1.bf16.msra.mxu0 %v4774
        %4826 = vmatprep.subr.bf16.mxu0 %v4773
        %4827 = vmatpush1.bf16.msra.mxu0 %v4772
        %4828 = vmatprep.subr.bf16.mxu0 %v4771
        %4829 = vmatpush1.bf16.msra.mxu0 %v4770
        %4830 = vmatprep.subr.bf16.mxu0 %v4769
        %4831 = vmatpush1.bf16.msra.mxu0 %v4768
        %4832 = vmatprep.subr.bf16.mxu0 %v4767
        %4833 = vmatpush1.bf16.msra.mxu0 %v4766
        %4834 = vmatprep.subr.bf16.mxu0 %v4765
        %4835 = vmatpush1.bf16.msra.mxu0 %v4764
        %4836 = vmatprep.subr.bf16.mxu0 %v4763
        %4837 = vmatpush1.bf16.msra.mxu0 %v4762
        %4838 = vmatprep.subr.bf16.mxu0 %v4761
        %4839 = vmatpush1.bf16.msra.mxu0 %v4760
        %4840 = vmatprep.subr.bf16.mxu0 %v4791
        %4841 = vmatpush2.bf16.msra.mxu0 %v4790
        %4842 = vmatprep.subr.bf16.mxu0 %v4789
        %4843 = vmatpush2.bf16.msra.mxu0 %v4788
        %4844 = vmatprep.subr.bf16.mxu0 %v4787
        %4845 = vmatpush2.bf16.msra.mxu0 %v4786
        %4846 = vmatprep.subr.bf16.mxu0 %v4785
        %4847 = vmatpush2.bf16.msra.mxu0 %v4784
        %4848 = vmatprep.subr.bf16.mxu0 %v4783
        %4849 = vmatpush2.bf16.msra.mxu0 %v4782
        %4850 = vmatprep.subr.bf16.mxu0 %v4781
        %4851 = vmatpush2.bf16.msra.mxu0 %v4780
        %4852 = vmatprep.subr.bf16.mxu0 %v4779
        %4853 = vmatpush2.bf16.msra.mxu0 %v4778
        %4854 = vmatprep.subr.bf16.mxu0 %v4777
        %4855 = vmatpush2.bf16.msra.mxu0 %v4776
        %4856 = vmatprep.mubr.bf16.mxu0 %v4598
        %4857 = vmatmul.mubr.bf16.gmra.mxu0 %v4597
        %v4858 = vpop.f32.mrf.mxu0
        %v4859 = vadd.f32 0.0, %v4858
        %v4860 = vpop.f32.mrf.mxu0
        %v4861 = vadd.f32 0.0, %v4860
        %v4862 = vpop.f32.mrf.mxu0
        %v4863 = vpop.f32.mrf.mxu0
        %4864 = vdwg.mxu0
        %v4897 = vunpack.c.l.b16 %v4599
        %v4898 = vunpack.c.h.b16 %v4599
        %v4899 = vunpack.c.l.b16 %v4600
        %v4900 = vunpack.c.h.b16 %v4600
        %v4901 = vunpack.c.l.b16 %v4601
        %v4902 = vunpack.c.h.b16 %v4601
        %v4903 = vunpack.c.l.b16 %v4602
        %v4904 = vunpack.c.h.b16 %v4602
        %v4905 = vunpack.c.l.b16 %v4603
        %v4906 = vunpack.c.h.b16 %v4603
        %v4907 = vunpack.c.l.b16 %v4604
        %v4908 = vunpack.c.h.b16 %v4604
        %v4909 = vunpack.c.l.b16 %v4605
        %v4910 = vunpack.c.h.b16 %v4605
        %v4911 = vunpack.c.l.b16 %v4606
        %v4912 = vunpack.c.h.b16 %v4606
        %v4913 = vunpack.c.l.b16 %v4607
        %v4914 = vunpack.c.h.b16 %v4607
        %v4915 = vunpack.c.l.b16 %v4608
        %v4916 = vunpack.c.h.b16 %v4608
        %v4917 = vunpack.c.l.b16 %v4609
        %v4918 = vunpack.c.h.b16 %v4609
        %v4919 = vunpack.c.l.b16 %v4610
        %v4920 = vunpack.c.h.b16 %v4610
        %v4921 = vunpack.c.l.b16 %v4611
        %v4922 = vunpack.c.h.b16 %v4611
        %v4923 = vunpack.c.l.b16 %v4612
        %v4924 = vunpack.c.h.b16 %v4612
        %v4925 = vunpack.c.l.b16 %v4613
        %v4926 = vunpack.c.h.b16 %v4613
        %v4927 = vunpack.c.l.b16 %v4614
        %v4928 = vunpack.c.h.b16 %v4614
        %v4929 = vunpack.c.l.b16 %v4615
        %v4930 = vunpack.c.h.b16 %v4615
        %v4931 = vunpack.c.l.b16 %v4616
        %v4932 = vunpack.c.h.b16 %v4616
        %v4933 = vunpack.c.l.b16 %v4617
        %v4934 = vunpack.c.h.b16 %v4617
        %v4935 = vunpack.c.l.b16 %v4618
        %v4936 = vunpack.c.h.b16 %v4618
        %v4937 = vunpack.c.l.b16 %v4619
        %v4938 = vunpack.c.h.b16 %v4619
        %v4939 = vunpack.c.l.b16 %v4620
        %v4940 = vunpack.c.h.b16 %v4620
        %v4941 = vunpack.c.l.b16 %v4621
        %v4942 = vunpack.c.h.b16 %v4621
        %v4943 = vunpack.c.l.b16 %v4622
        %v4944 = vunpack.c.h.b16 %v4622
        %v4945 = vunpack.c.l.b16 %v4623
        %v4946 = vunpack.c.h.b16 %v4623
        %v4947 = vunpack.c.l.b16 %v4624
        %v4948 = vunpack.c.h.b16 %v4624
        %v4949 = vunpack.c.l.b16 %v4625
        %v4950 = vunpack.c.h.b16 %v4625
        %v4951 = vunpack.c.l.b16 %v4626
        %v4952 = vunpack.c.h.b16 %v4626
        %v4953 = vunpack.c.l.b16 %v4627
        %v4954 = vunpack.c.h.b16 %v4627
        %v4955 = vunpack.c.l.b16 %v4628
        %v4956 = vunpack.c.h.b16 %v4628
        %v4957 = vunpack.c.l.b16 %v4629
        %v4958 = vunpack.c.h.b16 %v4629
        %v4959 = vunpack.c.l.b16 %v4630
        %v4960 = vunpack.c.h.b16 %v4630
        %v4961 = vpack.c.b16 %v4899, %v4897
        %v4962 = vpack.c.b16 %v4900, %v4898
        %v4963 = vpack.c.b16 %v4903, %v4901
        %v4964 = vpack.c.b16 %v4904, %v4902
        %v4965 = vpack.c.b16 %v4907, %v4905
        %v4966 = vpack.c.b16 %v4908, %v4906
        %v4967 = vpack.c.b16 %v4911, %v4909
        %v4968 = vpack.c.b16 %v4912, %v4910
        %v4969 = vpack.c.b16 %v4915, %v4913
        %v4970 = vpack.c.b16 %v4916, %v4914
        %v4971 = vpack.c.b16 %v4919, %v4917
        %v4972 = vpack.c.b16 %v4920, %v4918
        %v4973 = vpack.c.b16 %v4923, %v4921
        %v4974 = vpack.c.b16 %v4924, %v4922
        %v4975 = vpack.c.b16 %v4927, %v4925
        %v4976 = vpack.c.b16 %v4928, %v4926
        %v4977 = vpack.c.b16 %v4931, %v4929
        %v4978 = vpack.c.b16 %v4932, %v4930
        %v4979 = vpack.c.b16 %v4935, %v4933
        %v4980 = vpack.c.b16 %v4936, %v4934
        %v4981 = vpack.c.b16 %v4939, %v4937
        %v4982 = vpack.c.b16 %v4940, %v4938
        %v4983 = vpack.c.b16 %v4943, %v4941
        %v4984 = vpack.c.b16 %v4944, %v4942
        %v4985 = vpack.c.b16 %v4947, %v4945
        %v4986 = vpack.c.b16 %v4948, %v4946
        %v4987 = vpack.c.b16 %v4951, %v4949
        %v4988 = vpack.c.b16 %v4952, %v4950
        %v4989 = vpack.c.b16 %v4955, %v4953
        %v4990 = vpack.c.b16 %v4956, %v4954
        %v4991 = vpack.c.b16 %v4959, %v4957
        %v4992 = vpack.c.b16 %v4960, %v4958
        %5025 = vmatprep.subr.bf16.mxu0 %v4976
        %5026 = vmatpush1.bf16.msra.mxu0 %v4975
        %5027 = vmatprep.subr.bf16.mxu0 %v4974
        %5028 = vmatpush1.bf16.msra.mxu0 %v4973
        %5029 = vmatprep.subr.bf16.mxu0 %v4972
        %5030 = vmatpush1.bf16.msra.mxu0 %v4971
        %5031 = vmatprep.subr.bf16.mxu0 %v4970
        %5032 = vmatpush1.bf16.msra.mxu0 %v4969
        %5033 = vmatprep.subr.bf16.mxu0 %v4968
        %5034 = vmatpush1.bf16.msra.mxu0 %v4967
        %5035 = vmatprep.subr.bf16.mxu0 %v4966
        %5036 = vmatpush1.bf16.msra.mxu0 %v4965
        %5037 = vmatprep.subr.bf16.mxu0 %v4964
        %5038 = vmatpush1.bf16.msra.mxu0 %v4963
        %5039 = vmatprep.subr.bf16.mxu0 %v4962
        %5040 = vmatpush1.bf16.msra.mxu0 %v4961
        %5041 = vmatprep.subr.bf16.mxu0 %v4992
        %5042 = vmatpush2.bf16.msra.mxu0 %v4991
        %5043 = vmatprep.subr.bf16.mxu0 %v4990
        %5044 = vmatpush2.bf16.msra.mxu0 %v4989
        %5045 = vmatprep.subr.bf16.mxu0 %v4988
        %5046 = vmatpush2.bf16.msra.mxu0 %v4987
        %5047 = vmatprep.subr.bf16.mxu0 %v4986
        %5048 = vmatpush2.bf16.msra.mxu0 %v4985
        %5049 = vmatprep.subr.bf16.mxu0 %v4984
        %5050 = vmatpush2.bf16.msra.mxu0 %v4983
        %5051 = vmatprep.subr.bf16.mxu0 %v4982
        %5052 = vmatpush2.bf16.msra.mxu0 %v4981
        %5053 = vmatprep.subr.bf16.mxu0 %v4980
        %5054 = vmatpush2.bf16.msra.mxu0 %v4979
        %5055 = vmatprep.subr.bf16.mxu0 %v4978
        %5056 = vmatpush2.bf16.msra.mxu0 %v4977
        %5057 = vmatprep.mubr.bf16.mxu0 %v4590
        %5058 = vmatmul.mubr.bf16.gmra.mxu0 %v4589
        %v5059 = vpop.f32.mrf.mxu0
        %v5060 = vadd.f32 %v4859, %v5059
        %v5061 = vpop.f32.mrf.mxu0
        %v5062 = vadd.f32 %v4861, %v5061
        %v5063 = vpop.f32.mrf.mxu0
        %v5064 = vpop.f32.mrf.mxu0
        %5065 = vdwg.mxu0
        %s5066 = scalar_lea.vmem [#allocation10], 512
        %v5067 = vld [vmem:[%s5066] sm:$0xff]
        %v5068 = vld [vmem:[%s5066 + $0x8] sm:$0xff]
        %v5069 = vld [vmem:[%s5066 + $0x10] sm:$0xff]
        %v5070 = vld [vmem:[%s5066 + $0x18] sm:$0xff]
        %v5071 = vld [vmem:[%s5066 + $0x20] sm:$0xff]
        %v5072 = vld [vmem:[%s5066 + $0x28] sm:$0xff]
        %v5073 = vld [vmem:[%s5066 + $0x30] sm:$0xff]
        %v5074 = vld [vmem:[%s5066 + $0x38] sm:$0xff]
        %v5075 = vld [vmem:[%s5066 + $0x40] sm:$0xff]
        %v5076 = vld [vmem:[%s5066 + $0x48] sm:$0xff]
        %v5077 = vld [vmem:[%s5066 + $0x50] sm:$0xff]
        %v5078 = vld [vmem:[%s5066 + $0x58] sm:$0xff]
        %v5079 = vld [vmem:[%s5066 + $0x60] sm:$0xff]
        %v5080 = vld [vmem:[%s5066 + $0x68] sm:$0xff]
        %v5081 = vld [vmem:[%s5066 + $0x70] sm:$0xff]
        %v5082 = vld [vmem:[%s5066 + $0x78] sm:$0xff]
        %v5083 = vld [vmem:[%s5066 + $0x80] sm:$0xff]
        %v5084 = vld [vmem:[%s5066 + $0x88] sm:$0xff]
        %v5085 = vld [vmem:[%s5066 + $0x90] sm:$0xff]
        %v5086 = vld [vmem:[%s5066 + $0x98] sm:$0xff]
        %v5087 = vld [vmem:[%s5066 + $0xa0] sm:$0xff]
        %v5088 = vld [vmem:[%s5066 + $0xa8] sm:$0xff]
        %v5089 = vld [vmem:[%s5066 + $0xb0] sm:$0xff]
        %v5090 = vld [vmem:[%s5066 + $0xb8] sm:$0xff]
        %v5091 = vld [vmem:[%s5066 + $0xc0] sm:$0xff]
        %v5092 = vld [vmem:[%s5066 + $0xc8] sm:$0xff]
        %v5093 = vld [vmem:[%s5066 + $0xd0] sm:$0xff]
        %v5094 = vld [vmem:[%s5066 + $0xd8] sm:$0xff]
        %v5095 = vld [vmem:[%s5066 + $0xe0] sm:$0xff]
        %v5096 = vld [vmem:[%s5066 + $0xe8] sm:$0xff]
        %v5097 = vld [vmem:[%s5066 + $0xf0] sm:$0xff]
        %v5098 = vld [vmem:[%s5066 + $0xf8] sm:$0xff]
        %v5100 = vshrl.u32 %v4589, 16
        %v5102 = vshll.u32 %v4589, 16
        %v5104 = vrot.slane %v5102, 1
        %v5105 = vor.u32 %v5100, %v5104
        %v5107 = vshrl.u32 %v4590, 16
        %v5109 = vshll.u32 %v4590, 16
        %v5111 = vrot.slane %v5109, 1
        %v5112 = vor.u32 %v5107, %v5111
        %v5147 = vunpack.c.l.b16 %v5067
        %v5148 = vunpack.c.h.b16 %v5067
        %v5149 = vunpack.c.l.b16 %v5068
        %v5150 = vunpack.c.h.b16 %v5068
        %v5151 = vunpack.c.l.b16 %v5069
        %v5152 = vunpack.c.h.b16 %v5069
        %v5153 = vunpack.c.l.b16 %v5070
        %v5154 = vunpack.c.h.b16 %v5070
        %v5155 = vunpack.c.l.b16 %v5071
        %v5156 = vunpack.c.h.b16 %v5071
        %v5157 = vunpack.c.l.b16 %v5072
        %v5158 = vunpack.c.h.b16 %v5072
        %v5159 = vunpack.c.l.b16 %v5073
        %v5160 = vunpack.c.h.b16 %v5073
        %v5161 = vunpack.c.l.b16 %v5074
        %v5162 = vunpack.c.h.b16 %v5074
        %v5163 = vunpack.c.l.b16 %v5075
        %v5164 = vunpack.c.h.b16 %v5075
        %v5165 = vunpack.c.l.b16 %v5076
        %v5166 = vunpack.c.h.b16 %v5076
        %v5167 = vunpack.c.l.b16 %v5077
        %v5168 = vunpack.c.h.b16 %v5077
        %v5169 = vunpack.c.l.b16 %v5078
        %v5170 = vunpack.c.h.b16 %v5078
        %v5171 = vunpack.c.l.b16 %v5079
        %v5172 = vunpack.c.h.b16 %v5079
        %v5173 = vunpack.c.l.b16 %v5080
        %v5174 = vunpack.c.h.b16 %v5080
        %v5175 = vunpack.c.l.b16 %v5081
        %v5176 = vunpack.c.h.b16 %v5081
        %v5177 = vunpack.c.l.b16 %v5082
        %v5178 = vunpack.c.h.b16 %v5082
        %v5179 = vunpack.c.l.b16 %v5083
        %v5180 = vunpack.c.h.b16 %v5083
        %v5181 = vunpack.c.l.b16 %v5084
        %v5182 = vunpack.c.h.b16 %v5084
        %v5183 = vunpack.c.l.b16 %v5085
        %v5184 = vunpack.c.h.b16 %v5085
        %v5185 = vunpack.c.l.b16 %v5086
        %v5186 = vunpack.c.h.b16 %v5086
        %v5187 = vunpack.c.l.b16 %v5087
        %v5188 = vunpack.c.h.b16 %v5087
        %v5189 = vunpack.c.l.b16 %v5088
        %v5190 = vunpack.c.h.b16 %v5088
        %v5191 = vunpack.c.l.b16 %v5089
        %v5192 = vunpack.c.h.b16 %v5089
        %v5193 = vunpack.c.l.b16 %v5090
        %v5194 = vunpack.c.h.b16 %v5090
        %v5195 = vunpack.c.l.b16 %v5091
        %v5196 = vunpack.c.h.b16 %v5091
        %v5197 = vunpack.c.l.b16 %v5092
        %v5198 = vunpack.c.h.b16 %v5092
        %v5199 = vunpack.c.l.b16 %v5093
        %v5200 = vunpack.c.h.b16 %v5093
        %v5201 = vunpack.c.l.b16 %v5094
        %v5202 = vunpack.c.h.b16 %v5094
        %v5203 = vunpack.c.l.b16 %v5095
        %v5204 = vunpack.c.h.b16 %v5095
        %v5205 = vunpack.c.l.b16 %v5096
        %v5206 = vunpack.c.h.b16 %v5096
        %v5207 = vunpack.c.l.b16 %v5097
        %v5208 = vunpack.c.h.b16 %v5097
        %v5209 = vunpack.c.l.b16 %v5098
        %v5210 = vunpack.c.h.b16 %v5098
        %v5211 = vpack.c.b16 %v5149, %v5147
        %v5212 = vpack.c.b16 %v5150, %v5148
        %v5213 = vpack.c.b16 %v5153, %v5151
        %v5214 = vpack.c.b16 %v5154, %v5152
        %v5215 = vpack.c.b16 %v5157, %v5155
        %v5216 = vpack.c.b16 %v5158, %v5156
        %v5217 = vpack.c.b16 %v5161, %v5159
        %v5218 = vpack.c.b16 %v5162, %v5160
        %v5219 = vpack.c.b16 %v5165, %v5163
        %v5220 = vpack.c.b16 %v5166, %v5164
        %v5221 = vpack.c.b16 %v5169, %v5167
        %v5222 = vpack.c.b16 %v5170, %v5168
        %v5223 = vpack.c.b16 %v5173, %v5171
        %v5224 = vpack.c.b16 %v5174, %v5172
        %v5225 = vpack.c.b16 %v5177, %v5175
        %v5226 = vpack.c.b16 %v5178, %v5176
        %v5227 = vpack.c.b16 %v5181, %v5179
        %v5228 = vpack.c.b16 %v5182, %v5180
        %v5229 = vpack.c.b16 %v5185, %v5183
        %v5230 = vpack.c.b16 %v5186, %v5184
        %v5231 = vpack.c.b16 %v5189, %v5187
        %v5232 = vpack.c.b16 %v5190, %v5188
        %v5233 = vpack.c.b16 %v5193, %v5191
        %v5234 = vpack.c.b16 %v5194, %v5192
        %v5235 = vpack.c.b16 %v5197, %v5195
        %v5236 = vpack.c.b16 %v5198, %v5196
        %v5237 = vpack.c.b16 %v5201, %v5199
        %v5238 = vpack.c.b16 %v5202, %v5200
        %v5239 = vpack.c.b16 %v5205, %v5203
        %v5240 = vpack.c.b16 %v5206, %v5204
        %v5241 = vpack.c.b16 %v5209, %v5207
        %v5242 = vpack.c.b16 %v5210, %v5208
        %5275 = vmatprep.subr.bf16.mxu0 %v5226
        %5276 = vmatpush1.bf16.msra.mxu0 %v5225
        %5277 = vmatprep.subr.bf16.mxu0 %v5224
        %5278 = vmatpush1.bf16.msra.mxu0 %v5223
        %5279 = vmatprep.subr.bf16.mxu0 %v5222
        %5280 = vmatpush1.bf16.msra.mxu0 %v5221
        %5281 = vmatprep.subr.bf16.mxu0 %v5220
        %5282 = vmatpush1.bf16.msra.mxu0 %v5219
        %5283 = vmatprep.subr.bf16.mxu0 %v5218
        %5284 = vmatpush1.bf16.msra.mxu0 %v5217
        %5285 = vmatprep.subr.bf16.mxu0 %v5216
        %5286 = vmatpush1.bf16.msra.mxu0 %v5215
        %5287 = vmatprep.subr.bf16.mxu0 %v5214
        %5288 = vmatpush1.bf16.msra.mxu0 %v5213
        %5289 = vmatprep.subr.bf16.mxu0 %v5212
        %5290 = vmatpush1.bf16.msra.mxu0 %v5211
        %5291 = vmatprep.subr.bf16.mxu0 %v5242
        %5292 = vmatpush2.bf16.msra.mxu0 %v5241
        %5293 = vmatprep.subr.bf16.mxu0 %v5240
        %5294 = vmatpush2.bf16.msra.mxu0 %v5239
        %5295 = vmatprep.subr.bf16.mxu0 %v5238
        %5296 = vmatpush2.bf16.msra.mxu0 %v5237
        %5297 = vmatprep.subr.bf16.mxu0 %v5236
        %5298 = vmatpush2.bf16.msra.mxu0 %v5235
        %5299 = vmatprep.subr.bf16.mxu0 %v5234
        %5300 = vmatpush2.bf16.msra.mxu0 %v5233
        %5301 = vmatprep.subr.bf16.mxu0 %v5232
        %5302 = vmatpush2.bf16.msra.mxu0 %v5231
        %5303 = vmatprep.subr.bf16.mxu0 %v5230
        %5304 = vmatpush2.bf16.msra.mxu0 %v5229
        %5305 = vmatprep.subr.bf16.mxu0 %v5228
        %5306 = vmatpush2.bf16.msra.mxu0 %v5227
        %5307 = vmatprep.mubr.bf16.mxu0 %v5112
        %5308 = vmatmul.mubr.bf16.gmra.mxu0 %v5105
        %v5309 = vpop.f32.mrf.mxu0
        %v5310 = vadd.f32 0.0, %v5309
        %v5311 = vpop.f32.mrf.mxu0
        %v5312 = vadd.f32 0.0, %v5311
        %v5313 = vpop.f32.mrf.mxu0
        %v5314 = vpop.f32.mrf.mxu0
        %5315 = vdwg.mxu0
        %v5316 = vadd.f32 %v5060, %v5310
        %v5317 = vadd.f32 %v5062, %v5312
        %s5318 = scalar_lea.vmem [#allocation10], 768
        %v5319 = vld [vmem:[%s5318] sm:$0xff]
        %v5320 = vld [vmem:[%s5318 + $0x8] sm:$0xff]
        %v5321 = vld [vmem:[%s5318 + $0x10] sm:$0xff]
        %v5322 = vld [vmem:[%s5318 + $0x18] sm:$0xff]
        %v5323 = vld [vmem:[%s5318 + $0x20] sm:$0xff]
        %v5324 = vld [vmem:[%s5318 + $0x28] sm:$0xff]
        %v5325 = vld [vmem:[%s5318 + $0x30] sm:$0xff]
        %v5326 = vld [vmem:[%s5318 + $0x38] sm:$0xff]
        %v5327 = vld [vmem:[%s5318 + $0x40] sm:$0xff]
        %v5328 = vld [vmem:[%s5318 + $0x48] sm:$0xff]
        %v5329 = vld [vmem:[%s5318 + $0x50] sm:$0xff]
        %v5330 = vld [vmem:[%s5318 + $0x58] sm:$0xff]
        %v5331 = vld [vmem:[%s5318 + $0x60] sm:$0xff]
        %v5332 = vld [vmem:[%s5318 + $0x68] sm:$0xff]
        %v5333 = vld [vmem:[%s5318 + $0x70] sm:$0xff]
        %v5334 = vld [vmem:[%s5318 + $0x78] sm:$0xff]
        %v5335 = vld [vmem:[%s5318 + $0x80] sm:$0xff]
        %v5336 = vld [vmem:[%s5318 + $0x88] sm:$0xff]
        %v5337 = vld [vmem:[%s5318 + $0x90] sm:$0xff]
        %v5338 = vld [vmem:[%s5318 + $0x98] sm:$0xff]
        %v5339 = vld [vmem:[%s5318 + $0xa0] sm:$0xff]
        %v5340 = vld [vmem:[%s5318 + $0xa8] sm:$0xff]
        %v5341 = vld [vmem:[%s5318 + $0xb0] sm:$0xff]
        %v5342 = vld [vmem:[%s5318 + $0xb8] sm:$0xff]
        %v5343 = vld [vmem:[%s5318 + $0xc0] sm:$0xff]
        %v5344 = vld [vmem:[%s5318 + $0xc8] sm:$0xff]
        %v5345 = vld [vmem:[%s5318 + $0xd0] sm:$0xff]
        %v5346 = vld [vmem:[%s5318 + $0xd8] sm:$0xff]
        %v5347 = vld [vmem:[%s5318 + $0xe0] sm:$0xff]
        %v5348 = vld [vmem:[%s5318 + $0xe8] sm:$0xff]
        %v5349 = vld [vmem:[%s5318 + $0xf0] sm:$0xff]
        %v5350 = vld [vmem:[%s5318 + $0xf8] sm:$0xff]
        %v5352 = vshrl.u32 %v4597, 16
        %v5354 = vshll.u32 %v4597, 16
        %v5356 = vrot.slane %v5354, 1
        %v5357 = vor.u32 %v5352, %v5356
        %v5359 = vshrl.u32 %v4598, 16
        %v5361 = vshll.u32 %v4598, 16
        %v5363 = vrot.slane %v5361, 1
        %v5364 = vor.u32 %v5359, %v5363
        %v5399 = vunpack.c.l.b16 %v5319
        %v5400 = vunpack.c.h.b16 %v5319
        %v5401 = vunpack.c.l.b16 %v5320
        %v5402 = vunpack.c.h.b16 %v5320
        %v5403 = vunpack.c.l.b16 %v5321
        %v5404 = vunpack.c.h.b16 %v5321
        %v5405 = vunpack.c.l.b16 %v5322
        %v5406 = vunpack.c.h.b16 %v5322
        %v5407 = vunpack.c.l.b16 %v5323
        %v5408 = vunpack.c.h.b16 %v5323
        %v5409 = vunpack.c.l.b16 %v5324
        %v5410 = vunpack.c.h.b16 %v5324
        %v5411 = vunpack.c.l.b16 %v5325
        %v5412 = vunpack.c.h.b16 %v5325
        %v5413 = vunpack.c.l.b16 %v5326
        %v5414 = vunpack.c.h.b16 %v5326
        %v5415 = vunpack.c.l.b16 %v5327
        %v5416 = vunpack.c.h.b16 %v5327
        %v5417 = vunpack.c.l.b16 %v5328
        %v5418 = vunpack.c.h.b16 %v5328
        %v5419 = vunpack.c.l.b16 %v5329
        %v5420 = vunpack.c.h.b16 %v5329
        %v5421 = vunpack.c.l.b16 %v5330
        %v5422 = vunpack.c.h.b16 %v5330
        %v5423 = vunpack.c.l.b16 %v5331
        %v5424 = vunpack.c.h.b16 %v5331
        %v5425 = vunpack.c.l.b16 %v5332
        %v5426 = vunpack.c.h.b16 %v5332
        %v5427 = vunpack.c.l.b16 %v5333
        %v5428 = vunpack.c.h.b16 %v5333
        %v5429 = vunpack.c.l.b16 %v5334
        %v5430 = vunpack.c.h.b16 %v5334
        %v5431 = vunpack.c.l.b16 %v5335
        %v5432 = vunpack.c.h.b16 %v5335
        %v5433 = vunpack.c.l.b16 %v5336
        %v5434 = vunpack.c.h.b16 %v5336
        %v5435 = vunpack.c.l.b16 %v5337
        %v5436 = vunpack.c.h.b16 %v5337
        %v5437 = vunpack.c.l.b16 %v5338
        %v5438 = vunpack.c.h.b16 %v5338
        %v5439 = vunpack.c.l.b16 %v5339
        %v5440 = vunpack.c.h.b16 %v5339
        %v5441 = vunpack.c.l.b16 %v5340
        %v5442 = vunpack.c.h.b16 %v5340
        %v5443 = vunpack.c.l.b16 %v5341
        %v5444 = vunpack.c.h.b16 %v5341
        %v5445 = vunpack.c.l.b16 %v5342
        %v5446 = vunpack.c.h.b16 %v5342
        %v5447 = vunpack.c.l.b16 %v5343
        %v5448 = vunpack.c.h.b16 %v5343
        %v5449 = vunpack.c.l.b16 %v5344
        %v5450 = vunpack.c.h.b16 %v5344
        %v5451 = vunpack.c.l.b16 %v5345
        %v5452 = vunpack.c.h.b16 %v5345
        %v5453 = vunpack.c.l.b16 %v5346
        %v5454 = vunpack.c.h.b16 %v5346
        %v5455 = vunpack.c.l.b16 %v5347
        %v5456 = vunpack.c.h.b16 %v5347
        %v5457 = vunpack.c.l.b16 %v5348
        %v5458 = vunpack.c.h.b16 %v5348
        %v5459 = vunpack.c.l.b16 %v5349
        %v5460 = vunpack.c.h.b16 %v5349
        %v5461 = vunpack.c.l.b16 %v5350
        %v5462 = vunpack.c.h.b16 %v5350
        %v5463 = vpack.c.b16 %v5401, %v5399
        %v5464 = vpack.c.b16 %v5402, %v5400
        %v5465 = vpack.c.b16 %v5405, %v5403
        %v5466 = vpack.c.b16 %v5406, %v5404
        %v5467 = vpack.c.b16 %v5409, %v5407
        %v5468 = vpack.c.b16 %v5410, %v5408
        %v5469 = vpack.c.b16 %v5413, %v5411
        %v5470 = vpack.c.b16 %v5414, %v5412
        %v5471 = vpack.c.b16 %v5417, %v5415
        %v5472 = vpack.c.b16 %v5418, %v5416
        %v5473 = vpack.c.b16 %v5421, %v5419
        %v5474 = vpack.c.b16 %v5422, %v5420
        %v5475 = vpack.c.b16 %v5425, %v5423
        %v5476 = vpack.c.b16 %v5426, %v5424
        %v5477 = vpack.c.b16 %v5429, %v5427
        %v5478 = vpack.c.b16 %v5430, %v5428
        %v5479 = vpack.c.b16 %v5433, %v5431
        %v5480 = vpack.c.b16 %v5434, %v5432
        %v5481 = vpack.c.b16 %v5437, %v5435
        %v5482 = vpack.c.b16 %v5438, %v5436
        %v5483 = vpack.c.b16 %v5441, %v5439
        %v5484 = vpack.c.b16 %v5442, %v5440
        %v5485 = vpack.c.b16 %v5445, %v5443
        %v5486 = vpack.c.b16 %v5446, %v5444
        %v5487 = vpack.c.b16 %v5449, %v5447
        %v5488 = vpack.c.b16 %v5450, %v5448
        %v5489 = vpack.c.b16 %v5453, %v5451
        %v5490 = vpack.c.b16 %v5454, %v5452
        %v5491 = vpack.c.b16 %v5457, %v5455
        %v5492 = vpack.c.b16 %v5458, %v5456
        %v5493 = vpack.c.b16 %v5461, %v5459
        %v5494 = vpack.c.b16 %v5462, %v5460
        %5527 = vmatprep.subr.bf16.mxu0 %v5478
        %5528 = vmatpush1.bf16.msra.mxu0 %v5477
        %5529 = vmatprep.subr.bf16.mxu0 %v5476
        %5530 = vmatpush1.bf16.msra.mxu0 %v5475
        %5531 = vmatprep.subr.bf16.mxu0 %v5474
        %5532 = vmatpush1.bf16.msra.mxu0 %v5473
        %5533 = vmatprep.subr.bf16.mxu0 %v5472
        %5534 = vmatpush1.bf16.msra.mxu0 %v5471
        %5535 = vmatprep.subr.bf16.mxu0 %v5470
        %5536 = vmatpush1.bf16.msra.mxu0 %v5469
        %5537 = vmatprep.subr.bf16.mxu0 %v5468
        %5538 = vmatpush1.bf16.msra.mxu0 %v5467
        %5539 = vmatprep.subr.bf16.mxu0 %v5466
        %5540 = vmatpush1.bf16.msra.mxu0 %v5465
        %5541 = vmatprep.subr.bf16.mxu0 %v5464
        %5542 = vmatpush1.bf16.msra.mxu0 %v5463
        %5543 = vmatprep.subr.bf16.mxu0 %v5494
        %5544 = vmatpush2.bf16.msra.mxu0 %v5493
        %5545 = vmatprep.subr.bf16.mxu0 %v5492
        %5546 = vmatpush2.bf16.msra.mxu0 %v5491
        %5547 = vmatprep.subr.bf16.mxu0 %v5490
        %5548 = vmatpush2.bf16.msra.mxu0 %v5489
        %5549 = vmatprep.subr.bf16.mxu0 %v5488
        %5550 = vmatpush2.bf16.msra.mxu0 %v5487
        %5551 = vmatprep.subr.bf16.mxu0 %v5486
        %5552 = vmatpush2.bf16.msra.mxu0 %v5485
        %5553 = vmatprep.subr.bf16.mxu0 %v5484
        %5554 = vmatpush2.bf16.msra.mxu0 %v5483
        %5555 = vmatprep.subr.bf16.mxu0 %v5482
        %5556 = vmatpush2.bf16.msra.mxu0 %v5481
        %5557 = vmatprep.subr.bf16.mxu0 %v5480
        %5558 = vmatpush2.bf16.msra.mxu0 %v5479
        %5559 = vmatprep.mubr.bf16.mxu0 %v5364
        %5560 = vmatmul.mubr.bf16.gmra.mxu0 %v5357
        %v5561 = vpop.f32.mrf.mxu0
        %v5562 = vadd.f32 0.0, %v5561
        %v5563 = vpop.f32.mrf.mxu0
        %v5564 = vadd.f32 0.0, %v5563
        %v5565 = vpop.f32.mrf.mxu0
        %v5566 = vpop.f32.mrf.mxu0
        %5567 = vdwg.mxu0
        %v5568 = vadd.f32 %v5316, %v5562
        %v5569 = vadd.f32 %v5317, %v5564
        %s5570 = scalar_lea.vmem [#allocation10], 1024
        %v5571 = vld [vmem:[%s5570] sm:$0xff]
        %v5572 = vld [vmem:[%s5570 + $0x8] sm:$0xff]
        %v5573 = vld [vmem:[%s5570 + $0x10] sm:$0xff]
        %v5574 = vld [vmem:[%s5570 + $0x18] sm:$0xff]
        %v5575 = vld [vmem:[%s5570 + $0x20] sm:$0xff]
        %v5576 = vld [vmem:[%s5570 + $0x28] sm:$0xff]
        %v5577 = vld [vmem:[%s5570 + $0x30] sm:$0xff]
        %v5578 = vld [vmem:[%s5570 + $0x38] sm:$0xff]
        %v5579 = vld [vmem:[%s5570 + $0x40] sm:$0xff]
        %v5580 = vld [vmem:[%s5570 + $0x48] sm:$0xff]
        %v5581 = vld [vmem:[%s5570 + $0x50] sm:$0xff]
        %v5582 = vld [vmem:[%s5570 + $0x58] sm:$0xff]
        %v5583 = vld [vmem:[%s5570 + $0x60] sm:$0xff]
        %v5584 = vld [vmem:[%s5570 + $0x68] sm:$0xff]
        %v5585 = vld [vmem:[%s5570 + $0x70] sm:$0xff]
        %v5586 = vld [vmem:[%s5570 + $0x78] sm:$0xff]
        %v5587 = vld [vmem:[%s5570 + $0x80] sm:$0xff]
        %v5588 = vld [vmem:[%s5570 + $0x88] sm:$0xff]
        %v5589 = vld [vmem:[%s5570 + $0x90] sm:$0xff]
        %v5590 = vld [vmem:[%s5570 + $0x98] sm:$0xff]
        %v5591 = vld [vmem:[%s5570 + $0xa0] sm:$0xff]
        %v5592 = vld [vmem:[%s5570 + $0xa8] sm:$0xff]
        %v5593 = vld [vmem:[%s5570 + $0xb0] sm:$0xff]
        %v5594 = vld [vmem:[%s5570 + $0xb8] sm:$0xff]
        %v5595 = vld [vmem:[%s5570 + $0xc0] sm:$0xff]
        %v5596 = vld [vmem:[%s5570 + $0xc8] sm:$0xff]
        %v5597 = vld [vmem:[%s5570 + $0xd0] sm:$0xff]
        %v5598 = vld [vmem:[%s5570 + $0xd8] sm:$0xff]
        %v5599 = vld [vmem:[%s5570 + $0xe0] sm:$0xff]
        %v5600 = vld [vmem:[%s5570 + $0xe8] sm:$0xff]
        %v5601 = vld [vmem:[%s5570 + $0xf0] sm:$0xff]
        %v5602 = vld [vmem:[%s5570 + $0xf8] sm:$0xff]
        %v5605 = vrot.slane %v4589, 1
        %v5606 = vrot.slane %v4590, 1
        %v5641 = vunpack.c.l.b16 %v5571
        %v5642 = vunpack.c.h.b16 %v5571
        %v5643 = vunpack.c.l.b16 %v5572
        %v5644 = vunpack.c.h.b16 %v5572
        %v5645 = vunpack.c.l.b16 %v5573
        %v5646 = vunpack.c.h.b16 %v5573
        %v5647 = vunpack.c.l.b16 %v5574
        %v5648 = vunpack.c.h.b16 %v5574
        %v5649 = vunpack.c.l.b16 %v5575
        %v5650 = vunpack.c.h.b16 %v5575
        %v5651 = vunpack.c.l.b16 %v5576
        %v5652 = vunpack.c.h.b16 %v5576
        %v5653 = vunpack.c.l.b16 %v5577
        %v5654 = vunpack.c.h.b16 %v5577
        %v5655 = vunpack.c.l.b16 %v5578
        %v5656 = vunpack.c.h.b16 %v5578
        %v5657 = vunpack.c.l.b16 %v5579
        %v5658 = vunpack.c.h.b16 %v5579
        %v5659 = vunpack.c.l.b16 %v5580
        %v5660 = vunpack.c.h.b16 %v5580
        %v5661 = vunpack.c.l.b16 %v5581
        %v5662 = vunpack.c.h.b16 %v5581
        %v5663 = vunpack.c.l.b16 %v5582
        %v5664 = vunpack.c.h.b16 %v5582
        %v5665 = vunpack.c.l.b16 %v5583
        %v5666 = vunpack.c.h.b16 %v5583
        %v5667 = vunpack.c.l.b16 %v5584
        %v5668 = vunpack.c.h.b16 %v5584
        %v5669 = vunpack.c.l.b16 %v5585
        %v5670 = vunpack.c.h.b16 %v5585
        %v5671 = vunpack.c.l.b16 %v5586
        %v5672 = vunpack.c.h.b16 %v5586
        %v5673 = vunpack.c.l.b16 %v5587
        %v5674 = vunpack.c.h.b16 %v5587
        %v5675 = vunpack.c.l.b16 %v5588
        %v5676 = vunpack.c.h.b16 %v5588
        %v5677 = vunpack.c.l.b16 %v5589
        %v5678 = vunpack.c.h.b16 %v5589
        %v5679 = vunpack.c.l.b16 %v5590
        %v5680 = vunpack.c.h.b16 %v5590
        %v5681 = vunpack.c.l.b16 %v5591
        %v5682 = vunpack.c.h.b16 %v5591
        %v5683 = vunpack.c.l.b16 %v5592
        %v5684 = vunpack.c.h.b16 %v5592
        %v5685 = vunpack.c.l.b16 %v5593
        %v5686 = vunpack.c.h.b16 %v5593
        %v5687 = vunpack.c.l.b16 %v5594
        %v5688 = vunpack.c.h.b16 %v5594
        %v5689 = vunpack.c.l.b16 %v5595
        %v5690 = vunpack.c.h.b16 %v5595
        %v5691 = vunpack.c.l.b16 %v5596
        %v5692 = vunpack.c.h.b16 %v5596
        %v5693 = vunpack.c.l.b16 %v5597
        %v5694 = vunpack.c.h.b16 %v5597
        %v5695 = vunpack.c.l.b16 %v5598
        %v5696 = vunpack.c.h.b16 %v5598
        %v5697 = vunpack.c.l.b16 %v5599
        %v5698 = vunpack.c.h.b16 %v5599
        %v5699 = vunpack.c.l.b16 %v5600
        %v5700 = vunpack.c.h.b16 %v5600
        %v5701 = vunpack.c.l.b16 %v5601
        %v5702 = vunpack.c.h.b16 %v5601
        %v5703 = vunpack.c.l.b16 %v5602
        %v5704 = vunpack.c.h.b16 %v5602
        %v5705 = vpack.c.b16 %v5643, %v5641
        %v5706 = vpack.c.b16 %v5644, %v5642
        %v5707 = vpack.c.b16 %v5647, %v5645
        %v5708 = vpack.c.b16 %v5648, %v5646
        %v5709 = vpack.c.b16 %v5651, %v5649
        %v5710 = vpack.c.b16 %v5652, %v5650
        %v5711 = vpack.c.b16 %v5655, %v5653
        %v5712 = vpack.c.b16 %v5656, %v5654
        %v5713 = vpack.c.b16 %v5659, %v5657
        %v5714 = vpack.c.b16 %v5660, %v5658
        %v5715 = vpack.c.b16 %v5663, %v5661
        %v5716 = vpack.c.b16 %v5664, %v5662
        %v5717 = vpack.c.b16 %v5667, %v5665
        %v5718 = vpack.c.b16 %v5668, %v5666
        %v5719 = vpack.c.b16 %v5671, %v5669
        %v5720 = vpack.c.b16 %v5672, %v5670
        %v5721 = vpack.c.b16 %v5675, %v5673
        %v5722 = vpack.c.b16 %v5676, %v5674
        %v5723 = vpack.c.b16 %v5679, %v5677
        %v5724 = vpack.c.b16 %v5680, %v5678
        %v5725 = vpack.c.b16 %v5683, %v5681
        %v5726 = vpack.c.b16 %v5684, %v5682
        %v5727 = vpack.c.b16 %v5687, %v5685
        %v5728 = vpack.c.b16 %v5688, %v5686
        %v5729 = vpack.c.b16 %v5691, %v5689
        %v5730 = vpack.c.b16 %v5692, %v5690
        %v5731 = vpack.c.b16 %v5695, %v5693
        %v5732 = vpack.c.b16 %v5696, %v5694
        %v5733 = vpack.c.b16 %v5699, %v5697
        %v5734 = vpack.c.b16 %v5700, %v5698
        %v5735 = vpack.c.b16 %v5703, %v5701
        %v5736 = vpack.c.b16 %v5704, %v5702
        %5769 = vmatprep.subr.bf16.mxu0 %v5720
        %5770 = vmatpush1.bf16.msra.mxu0 %v5719
        %5771 = vmatprep.subr.bf16.mxu0 %v5718
        %5772 = vmatpush1.bf16.msra.mxu0 %v5717
        %5773 = vmatprep.subr.bf16.mxu0 %v5716
        %5774 = vmatpush1.bf16.msra.mxu0 %v5715
        %5775 = vmatprep.subr.bf16.mxu0 %v5714
        %5776 = vmatpush1.bf16.msra.mxu0 %v5713
        %5777 = vmatprep.subr.bf16.mxu0 %v5712
        %5778 = vmatpush1.bf16.msra.mxu0 %v5711
        %5779 = vmatprep.subr.bf16.mxu0 %v5710
        %5780 = vmatpush1.bf16.msra.mxu0 %v5709
        %5781 = vmatprep.subr.bf16.mxu0 %v5708
        %5782 = vmatpush1.bf16.msra.mxu0 %v5707
        %5783 = vmatprep.subr.bf16.mxu0 %v5706
        %5784 = vmatpush1.bf16.msra.mxu0 %v5705
        %5785 = vmatprep.subr.bf16.mxu0 %v5736
        %5786 = vmatpush2.bf16.msra.mxu0 %v5735
        %5787 = vmatprep.subr.bf16.mxu0 %v5734
        %5788 = vmatpush2.bf16.msra.mxu0 %v5733
        %5789 = vmatprep.subr.bf16.mxu0 %v5732
        %5790 = vmatpush2.bf16.msra.mxu0 %v5731
        %5791 = vmatprep.subr.bf16.mxu0 %v5730
        %5792 = vmatpush2.bf16.msra.mxu0 %v5729
        %5793 = vmatprep.subr.bf16.mxu0 %v5728
        %5794 = vmatpush2.bf16.msra.mxu0 %v5727
        %5795 = vmatprep.subr.bf16.mxu0 %v5726
        %5796 = vmatpush2.bf16.msra.mxu0 %v5725
        %5797 = vmatprep.subr.bf16.mxu0 %v5724
        %5798 = vmatpush2.bf16.msra.mxu0 %v5723
        %5799 = vmatprep.subr.bf16.mxu0 %v5722
        %5800 = vmatpush2.bf16.msra.mxu0 %v5721
        %5801 = vmatprep.mubr.bf16.mxu0 %v5606
        %5802 = vmatmul.mubr.bf16.gmra.mxu0 %v5605
        %v5803 = vpop.f32.mrf.mxu0
        %v5804 = vadd.f32 0.0, %v5803
        %v5805 = vpop.f32.mrf.mxu0
        %v5806 = vadd.f32 0.0, %v5805
        %v5807 = vpop.f32.mrf.mxu0
        %v5808 = vpop.f32.mrf.mxu0
        %5809 = vdwg.mxu0
        %v5810 = vadd.f32 %v5568, %v5804
        %v5811 = vadd.f32 %v5569, %v5806
        %v5812 = vmax.f32 %v5810, %v5811
        %5813 = vmatprep.subr.bf16.mxu0 %v4775
        %5814 = vmatpush1.bf16.msra.mxu0 %v4774
        %5815 = vmatprep.subr.bf16.mxu0 %v4773
        %5816 = vmatpush1.bf16.msra.mxu0 %v4772
        %5817 = vmatprep.subr.bf16.mxu0 %v4771
        %5818 = vmatpush1.bf16.msra.mxu0 %v4770
        %5819 = vmatprep.subr.bf16.mxu0 %v4769
        %5820 = vmatpush1.bf16.msra.mxu0 %v4768
        %5821 = vmatprep.subr.bf16.mxu0 %v4767
        %5822 = vmatpush1.bf16.msra.mxu0 %v4766
        %5823 = vmatprep.subr.bf16.mxu0 %v4765
        %5824 = vmatpush1.bf16.msra.mxu0 %v4764
        %5825 = vmatprep.subr.bf16.mxu0 %v4763
        %5826 = vmatpush1.bf16.msra.mxu0 %v4762
        %5827 = vmatprep.subr.bf16.mxu0 %v4761
        %5828 = vmatpush1.bf16.msra.mxu0 %v4760
        %5829 = vmatprep.subr.bf16.mxu0 %v4791
        %5830 = vmatpush2.bf16.msra.mxu0 %v4790
        %5831 = vmatprep.subr.bf16.mxu0 %v4789
        %5832 = vmatpush2.bf16.msra.mxu0 %v4788
        %5833 = vmatprep.subr.bf16.mxu0 %v4787
        %5834 = vmatpush2.bf16.msra.mxu0 %v4786
        %5835 = vmatprep.subr.bf16.mxu0 %v4785
        %5836 = vmatpush2.bf16.msra.mxu0 %v4784
        %5837 = vmatprep.subr.bf16.mxu0 %v4783
        %5838 = vmatpush2.bf16.msra.mxu0 %v4782
        %5839 = vmatprep.subr.bf16.mxu0 %v4781
        %5840 = vmatpush2.bf16.msra.mxu0 %v4780
        %5841 = vmatprep.subr.bf16.mxu0 %v4779
        %5842 = vmatpush2.bf16.msra.mxu0 %v4778
        %5843 = vmatprep.subr.bf16.mxu0 %v4777
        %5844 = vmatpush2.bf16.msra.mxu0 %v4776
        %5845 = vmatprep.mubr.bf16.mxu0 %v5112
        %5846 = vmatmul.mubr.bf16.gmra.mxu0 %v5105
        %v5847 = vpop.f32.mrf.mxu0
        %v5848 = vadd.f32 0.0, %v5847
        %v5849 = vpop.f32.mrf.mxu0
        %v5850 = vadd.f32 0.0, %v5849
        %v5851 = vpop.f32.mrf.mxu0
        %v5852 = vpop.f32.mrf.mxu0
        %5853 = vdwg.mxu0
        %5854 = vmatprep.subr.bf16.mxu0 %v4976
        %5855 = vmatpush1.bf16.msra.mxu0 %v4975
        %5856 = vmatprep.subr.bf16.mxu0 %v4974
        %5857 = vmatpush1.bf16.msra.mxu0 %v4973
        %5858 = vmatprep.subr.bf16.mxu0 %v4972
        %5859 = vmatpush1.bf16.msra.mxu0 %v4971
        %5860 = vmatprep.subr.bf16.mxu0 %v4970
        %5861 = vmatpush1.bf16.msra.mxu0 %v4969
        %5862 = vmatprep.subr.bf16.mxu0 %v4968
        %5863 = vmatpush1.bf16.msra.mxu0 %v4967
        %5864 = vmatprep.subr.bf16.mxu0 %v4966
        %5865 = vmatpush1.bf16.msra.mxu0 %v4965
        %5866 = vmatprep.subr.bf16.mxu0 %v4964
        %5867 = vmatpush1.bf16.msra.mxu0 %v4963
        %5868 = vmatprep.subr.bf16.mxu0 %v4962
        %5869 = vmatpush1.bf16.msra.mxu0 %v4961
        %5870 = vmatprep.subr.bf16.mxu0 %v4992
        %5871 = vmatpush2.bf16.msra.mxu0 %v4991
        %5872 = vmatprep.subr.bf16.mxu0 %v4990
        %5873 = vmatpush2.bf16.msra.mxu0 %v4989
        %5874 = vmatprep.subr.bf16.mxu0 %v4988
        %5875 = vmatpush2.bf16.msra.mxu0 %v4987
        %5876 = vmatprep.subr.bf16.mxu0 %v4986
        %5877 = vmatpush2.bf16.msra.mxu0 %v4985
        %5878 = vmatprep.subr.bf16.mxu0 %v4984
        %5879 = vmatpush2.bf16.msra.mxu0 %v4983
        %5880 = vmatprep.subr.bf16.mxu0 %v4982
        %5881 = vmatpush2.bf16.msra.mxu0 %v4981
        %5882 = vmatprep.subr.bf16.mxu0 %v4980
        %5883 = vmatpush2.bf16.msra.mxu0 %v4979
        %5884 = vmatprep.subr.bf16.mxu0 %v4978
        %5885 = vmatpush2.bf16.msra.mxu0 %v4977
        %5886 = vmatprep.mubr.bf16.mxu0 %v4598
        %5887 = vmatmul.mubr.bf16.gmra.mxu0 %v4597
        %v5888 = vpop.f32.mrf.mxu0
        %v5889 = vadd.f32 %v5848, %v5888
        %v5890 = vpop.f32.mrf.mxu0
        %v5891 = vadd.f32 %v5850, %v5890
        %v5892 = vpop.f32.mrf.mxu0
        %v5893 = vpop.f32.mrf.mxu0
        %5894 = vdwg.mxu0
        %5895 = vmatprep.subr.bf16.mxu0 %v5226
        %5896 = vmatpush1.bf16.msra.mxu0 %v5225
        %5897 = vmatprep.subr.bf16.mxu0 %v5224
        %5898 = vmatpush1.bf16.msra.mxu0 %v5223
        %5899 = vmatprep.subr.bf16.mxu0 %v5222
        %5900 = vmatpush1.bf16.msra.mxu0 %v5221
        %5901 = vmatprep.subr.bf16.mxu0 %v5220
        %5902 = vmatpush1.bf16.msra.mxu0 %v5219
        %5903 = vmatprep.subr.bf16.mxu0 %v5218
        %5904 = vmatpush1.bf16.msra.mxu0 %v5217
        %5905 = vmatprep.subr.bf16.mxu0 %v5216
        %5906 = vmatpush1.bf16.msra.mxu0 %v5215
        %5907 = vmatprep.subr.bf16.mxu0 %v5214
        %5908 = vmatpush1.bf16.msra.mxu0 %v5213
        %5909 = vmatprep.subr.bf16.mxu0 %v5212
        %5910 = vmatpush1.bf16.msra.mxu0 %v5211
        %5911 = vmatprep.subr.bf16.mxu0 %v5242
        %5912 = vmatpush2.bf16.msra.mxu0 %v5241
        %5913 = vmatprep.subr.bf16.mxu0 %v5240
        %5914 = vmatpush2.bf16.msra.mxu0 %v5239
        %5915 = vmatprep.subr.bf16.mxu0 %v5238
        %5916 = vmatpush2.bf16.msra.mxu0 %v5237
        %5917 = vmatprep.subr.bf16.mxu0 %v5236
        %5918 = vmatpush2.bf16.msra.mxu0 %v5235
        %5919 = vmatprep.subr.bf16.mxu0 %v5234
        %5920 = vmatpush2.bf16.msra.mxu0 %v5233
        %5921 = vmatprep.subr.bf16.mxu0 %v5232
        %5922 = vmatpush2.bf16.msra.mxu0 %v5231
        %5923 = vmatprep.subr.bf16.mxu0 %v5230
        %5924 = vmatpush2.bf16.msra.mxu0 %v5229
        %5925 = vmatprep.subr.bf16.mxu0 %v5228
        %5926 = vmatpush2.bf16.msra.mxu0 %v5227
        %5927 = vmatprep.mubr.bf16.mxu0 %v5364
        %5928 = vmatmul.mubr.bf16.gmra.mxu0 %v5357
        %v5929 = vpop.f32.mrf.mxu0
        %v5930 = vadd.f32 0.0, %v5929
        %v5931 = vpop.f32.mrf.mxu0
        %v5932 = vadd.f32 0.0, %v5931
        %v5933 = vpop.f32.mrf.mxu0
        %v5934 = vpop.f32.mrf.mxu0
        %5935 = vdwg.mxu0
        %v5936 = vadd.f32 %v5889, %v5930
        %v5937 = vadd.f32 %v5891, %v5932
        %5938 = vmatprep.subr.bf16.mxu0 %v5478
        %5939 = vmatpush1.bf16.msra.mxu0 %v5477
        %5940 = vmatprep.subr.bf16.mxu0 %v5476
        %5941 = vmatpush1.bf16.msra.mxu0 %v5475
        %5942 = vmatprep.subr.bf16.mxu0 %v5474
        %5943 = vmatpush1.bf16.msra.mxu0 %v5473
        %5944 = vmatprep.subr.bf16.mxu0 %v5472
        %5945 = vmatpush1.bf16.msra.mxu0 %v5471
        %5946 = vmatprep.subr.bf16.mxu0 %v5470
        %5947 = vmatpush1.bf16.msra.mxu0 %v5469
        %5948 = vmatprep.subr.bf16.mxu0 %v5468
        %5949 = vmatpush1.bf16.msra.mxu0 %v5467
        %5950 = vmatprep.subr.bf16.mxu0 %v5466
        %5951 = vmatpush1.bf16.msra.mxu0 %v5465
        %5952 = vmatprep.subr.bf16.mxu0 %v5464
        %5953 = vmatpush1.bf16.msra.mxu0 %v5463
        %5954 = vmatprep.subr.bf16.mxu0 %v5494
        %5955 = vmatpush2.bf16.msra.mxu0 %v5493
        %5956 = vmatprep.subr.bf16.mxu0 %v5492
        %5957 = vmatpush2.bf16.msra.mxu0 %v5491
        %5958 = vmatprep.subr.bf16.mxu0 %v5490
        %5959 = vmatpush2.bf16.msra.mxu0 %v5489
        %5960 = vmatprep.subr.bf16.mxu0 %v5488
        %5961 = vmatpush2.bf16.msra.mxu0 %v5487
        %5962 = vmatprep.subr.bf16.mxu0 %v5486
        %5963 = vmatpush2.bf16.msra.mxu0 %v5485
        %5964 = vmatprep.subr.bf16.mxu0 %v5484
        %5965 = vmatpush2.bf16.msra.mxu0 %v5483
        %5966 = vmatprep.subr.bf16.mxu0 %v5482
        %5967 = vmatpush2.bf16.msra.mxu0 %v5481
        %5968 = vmatprep.subr.bf16.mxu0 %v5480
        %5969 = vmatpush2.bf16.msra.mxu0 %v5479
        %5970 = vmatprep.mubr.bf16.mxu0 %v5606
        %5971 = vmatmul.mubr.bf16.gmra.mxu0 %v5605
        %v5972 = vpop.f32.mrf.mxu0
        %v5973 = vadd.f32 0.0, %v5972
        %v5974 = vpop.f32.mrf.mxu0
        %v5975 = vadd.f32 0.0, %v5974
        %v5976 = vpop.f32.mrf.mxu0
        %v5977 = vpop.f32.mrf.mxu0
        %5978 = vdwg.mxu0
        %v5979 = vadd.f32 %v5936, %v5973
        %v5980 = vadd.f32 %v5937, %v5975
        %v5983 = vrot.slane %v4597, 1
        %v5984 = vrot.slane %v4598, 1
        %5987 = vmatprep.subr.bf16.mxu0 %v5720
        %5988 = vmatpush1.bf16.msra.mxu0 %v5719
        %5989 = vmatprep.subr.bf16.mxu0 %v5718
        %5990 = vmatpush1.bf16.msra.mxu0 %v5717
        %5991 = vmatprep.subr.bf16.mxu0 %v5716
        %5992 = vmatpush1.bf16.msra.mxu0 %v5715
        %5993 = vmatprep.subr.bf16.mxu0 %v5714
        %5994 = vmatpush1.bf16.msra.mxu0 %v5713
        %5995 = vmatprep.subr.bf16.mxu0 %v5712
        %5996 = vmatpush1.bf16.msra.mxu0 %v5711
        %5997 = vmatprep.subr.bf16.mxu0 %v5710
        %5998 = vmatpush1.bf16.msra.mxu0 %v5709
        %5999 = vmatprep.subr.bf16.mxu0 %v5708
        %6000 = vmatpush1.bf16.msra.mxu0 %v5707
        %6001 = vmatprep.subr.bf16.mxu0 %v5706
        %6002 = vmatpush1.bf16.msra.mxu0 %v5705
        %6003 = vmatprep.subr.bf16.mxu0 %v5736
        %6004 = vmatpush2.bf16.msra.mxu0 %v5735
        %6005 = vmatprep.subr.bf16.mxu0 %v5734
        %6006 = vmatpush2.bf16.msra.mxu0 %v5733
        %6007 = vmatprep.subr.bf16.mxu0 %v5732
        %6008 = vmatpush2.bf16.msra.mxu0 %v5731
        %6009 = vmatprep.subr.bf16.mxu0 %v5730
        %6010 = vmatpush2.bf16.msra.mxu0 %v5729
        %6011 = vmatprep.subr.bf16.mxu0 %v5728
        %6012 = vmatpush2.bf16.msra.mxu0 %v5727
        %6013 = vmatprep.subr.bf16.mxu0 %v5726
        %6014 = vmatpush2.bf16.msra.mxu0 %v5725
        %6015 = vmatprep.subr.bf16.mxu0 %v5724
        %6016 = vmatpush2.bf16.msra.mxu0 %v5723
        %6017 = vmatprep.subr.bf16.mxu0 %v5722
        %6018 = vmatpush2.bf16.msra.mxu0 %v5721
        %6019 = vmatprep.mubr.bf16.mxu0 %v5984
        %6020 = vmatmul.mubr.bf16.gmra.mxu0 %v5983
        %v6021 = vpop.f32.mrf.mxu0
        %v6022 = vadd.f32 0.0, %v6021
        %v6023 = vpop.f32.mrf.mxu0
        %v6024 = vadd.f32 0.0, %v6023
        %v6025 = vpop.f32.mrf.mxu0
        %v6026 = vpop.f32.mrf.mxu0
        %6027 = vdwg.mxu0
        %v6028 = vadd.f32 %v5979, %v6022
        %v6029 = vadd.f32 %v5980, %v6024
        %v6030 = vmax.f32 %v6028, %v6029
        %v6031 = vmax.f32 %v5812, %v6030
        %v6032 = vld [vmem:[%s8] sm:$0x1]
        %v6034 = vlaneseq
        %v6035 = vshrl.u32 %v6034, 7
        %v6036 = vsub.s32 0, %v6035
        %v6037 = vrot.slane %v6032, %v6036
        %v6039 = vadd.f32 %v6031, %v6037
        %v6040 = vmax.f32 %v6039, 0.0
        %v6041 = vpack.c.bf16 %v6040, %v6040
        %v6042 = vld [vmem:[#allocation4] sm:$0x1]
        %v6043 = vsel %vm2669, 0, %v6042
        %6044 = vst [vmem:[#allocation4] sm:$0x1] %v6043
        %vm6045 = vcmask 1042434
        %vm6046 = vsmask.f32 7946
        %vm6047 = vmand %vm6045, %vm6046
        %v6048 = vld [vmem:[#allocation4] sm:$0x4]
        %v6049 = vsel %vm6047, 0, %v6048
        %6050 = vst [vmem:[#allocation4] sm:$0x4] %v6049
        %v6052 = vunpack.c.l.b16 %v6041
        %v6053 = vpack.c.b16 %v6052, %v6052
        %v6055 = vshrl.u32 %v6053, 16
        %v6057 = vrot.slane %v6055, 7
        %v6058 = vshll.u32 %v6053, 16
        %v6060 = vor.u32 %v6057, %v6058
        %vm6062 = vcmask 1042432
        %vm6063 = vsmask.f32 2306
        %vm6064 = vmand %vm6062, %vm6063
        %v6065 = vld [vmem:[#allocation4] sm:$0x7]
        %v6066 = vsel %vm6064, %v6060, %v6065
        %6067 = vst [vmem:[#allocation4] sm:$0x7] %v6066
        %v6068 = vld [vmem:[#allocation4] sm:$0x3]
        %v6069 = vld [vmem:[%s9] sm:$0xf]
        %v6070 = vld [vmem:[%s9 + $0x4] sm:$0xf]
        %v6071 = vld [vmem:[%s9 + $0x8] sm:$0xf]
        %v6072 = vld [vmem:[%s9 + $0xc] sm:$0xf]
        %v6073 = vld [vmem:[%s9 + $0x10] sm:$0xf]
        %v6074 = vld [vmem:[%s9 + $0x14] sm:$0xf]
        %v6075 = vld [vmem:[%s9 + $0x18] sm:$0xf]
        %v6076 = vld [vmem:[%s9 + $0x1c] sm:$0xf]
        %v6077 = vld [vmem:[%s9 + $0x20] sm:$0xf]
        %v6078 = vld [vmem:[%s9 + $0x24] sm:$0xf]
        %v6079 = vld [vmem:[%s9 + $0x28] sm:$0xf]
        %v6080 = vld [vmem:[%s9 + $0x2c] sm:$0xf]
        %v6081 = vld [vmem:[%s9 + $0x30] sm:$0xf]
        %v6082 = vld [vmem:[%s9 + $0x34] sm:$0xf]
        %v6083 = vld [vmem:[%s9 + $0x38] sm:$0xf]
        %v6084 = vld [vmem:[%s9 + $0x3c] sm:$0xf]
        %v6085 = vld [vmem:[#allocation4] sm:$0x7]
        %s6086 = scalar_lea.vmem %s9, 64
        %v6087 = vld [vmem:[%s6086] sm:$0xf]
        %v6088 = vld [vmem:[%s6086 + $0x4] sm:$0xf]
        %v6089 = vld [vmem:[%s6086 + $0x8] sm:$0xf]
        %v6090 = vld [vmem:[%s6086 + $0xc] sm:$0xf]
        %v6091 = vld [vmem:[%s6086 + $0x10] sm:$0xf]
        %v6092 = vld [vmem:[%s6086 + $0x14] sm:$0xf]
        %v6093 = vld [vmem:[%s6086 + $0x18] sm:$0xf]
        %v6094 = vld [vmem:[%s6086 + $0x1c] sm:$0xf]
        %v6095 = vld [vmem:[%s6086 + $0x20] sm:$0xf]
        %v6096 = vld [vmem:[%s6086 + $0x24] sm:$0xf]
        %v6097 = vld [vmem:[%s6086 + $0x28] sm:$0xf]
        %v6098 = vld [vmem:[%s6086 + $0x2c] sm:$0xf]
        %v6099 = vld [vmem:[%s6086 + $0x30] sm:$0xf]
        %v6100 = vld [vmem:[%s6086 + $0x34] sm:$0xf]
        %v6101 = vld [vmem:[%s6086 + $0x38] sm:$0xf]
        %v6102 = vld [vmem:[%s6086 + $0x3c] sm:$0xf]
        %v6104 = vunpack.c.l.b16 %v6085
        %v6105 = vpack.c.b16 %v6104, %v6104
        %v6107 = vshrl.u32 %v6105, 16
        %v6109 = vshll.u32 %v6105, 16
        %v6111 = vrot.slane %v6109, 1
        %v6112 = vor.u32 %v6107, %v6111
        %v6130 = vunpack.c.l.b16 %v6087
        %v6131 = vunpack.c.l.b16 %v6088
        %v6132 = vunpack.c.l.b16 %v6089
        %v6133 = vunpack.c.l.b16 %v6090
        %v6134 = vunpack.c.l.b16 %v6091
        %v6135 = vunpack.c.l.b16 %v6092
        %v6136 = vunpack.c.l.b16 %v6093
        %v6137 = vunpack.c.l.b16 %v6094
        %v6138 = vunpack.c.l.b16 %v6095
        %v6139 = vunpack.c.l.b16 %v6096
        %v6140 = vunpack.c.l.b16 %v6097
        %v6141 = vunpack.c.l.b16 %v6098
        %v6142 = vunpack.c.l.b16 %v6099
        %v6143 = vunpack.c.l.b16 %v6100
        %v6144 = vunpack.c.l.b16 %v6101
        %v6145 = vunpack.c.l.b16 %v6102
        %v6146 = vpack.c.b16 %v6131, %v6130
        %v6147 = vpack.c.b16 %v6133, %v6132
        %v6148 = vpack.c.b16 %v6135, %v6134
        %v6149 = vpack.c.b16 %v6137, %v6136
        %v6150 = vpack.c.b16 %v6139, %v6138
        %v6151 = vpack.c.b16 %v6141, %v6140
        %v6152 = vpack.c.b16 %v6143, %v6142
        %v6153 = vpack.c.b16 %v6145, %v6144
        %6162 = vmatprep.subr.bf16.mxu0 0
        %6163 = vmatpush1.bf16.msra.mxu0 %v6153
        %6164 = vmatprep.subr.bf16.mxu0 0
        %6165 = vmatpush1.bf16.msra.mxu0 %v6152
        %6166 = vmatprep.subr.bf16.mxu0 0
        %6167 = vmatpush1.bf16.msra.mxu0 %v6151
        %6168 = vmatprep.subr.bf16.mxu0 0
        %6169 = vmatpush1.bf16.msra.mxu0 %v6150
        %6170 = vmatprep.subr.bf16.mxu0 0
        %6171 = vmatpush1.bf16.msra.mxu0 %v6149
        %6172 = vmatprep.subr.bf16.mxu0 0
        %6173 = vmatpush1.bf16.msra.mxu0 %v6148
        %6174 = vmatprep.subr.bf16.mxu0 0
        %6175 = vmatpush1.bf16.msra.mxu0 %v6147
        %6176 = vmatprep.subr.bf16.mxu0 0
        %6177 = vmatpush1.bf16.msra.mxu0 %v6146
        %6178 = vmatprep.subr.bf16.mxu0 0
        %6179 = vmatpush2.bf16.msra.mxu0 0
        %6180 = vmatprep.subr.bf16.mxu0 0
        %6181 = vmatpush2.bf16.msra.mxu0 0
        %6182 = vmatprep.subr.bf16.mxu0 0
        %6183 = vmatpush2.bf16.msra.mxu0 0
        %6184 = vmatprep.subr.bf16.mxu0 0
        %6185 = vmatpush2.bf16.msra.mxu0 0
        %6186 = vmatprep.subr.bf16.mxu0 0
        %6187 = vmatpush2.bf16.msra.mxu0 0
        %6188 = vmatprep.subr.bf16.mxu0 0
        %6189 = vmatpush2.bf16.msra.mxu0 0
        %6190 = vmatprep.subr.bf16.mxu0 0
        %6191 = vmatpush2.bf16.msra.mxu0 0
        %6192 = vmatprep.subr.bf16.mxu0 0
        %6193 = vmatpush2.bf16.msra.mxu0 0
        %6194 = vmatprep.mubr.bf16.mxu0 0
        %6195 = vmatmul.mubr.bf16.gmra.mxu0 %v6112
        %v6196 = vpop.f32.mrf.mxu0
        %v6197 = vadd.f32 0.0, %v6196
        %v6198 = vpop.f32.mrf.mxu0
        %v6199 = vpop.f32.mrf.mxu0
        %v6200 = vpop.f32.mrf.mxu0
        %6201 = vdwg.mxu0
        %v6218 = vunpack.c.l.b16 %v6069
        %v6219 = vunpack.c.l.b16 %v6070
        %v6220 = vunpack.c.l.b16 %v6071
        %v6221 = vunpack.c.l.b16 %v6072
        %v6222 = vunpack.c.l.b16 %v6073
        %v6223 = vunpack.c.l.b16 %v6074
        %v6224 = vunpack.c.l.b16 %v6075
        %v6225 = vunpack.c.l.b16 %v6076
        %v6226 = vunpack.c.l.b16 %v6077
        %v6227 = vunpack.c.l.b16 %v6078
        %v6228 = vunpack.c.l.b16 %v6079
        %v6229 = vunpack.c.l.b16 %v6080
        %v6230 = vunpack.c.l.b16 %v6081
        %v6231 = vunpack.c.l.b16 %v6082
        %v6232 = vunpack.c.l.b16 %v6083
        %v6233 = vunpack.c.l.b16 %v6084
        %v6234 = vpack.c.b16 %v6219, %v6218
        %v6235 = vpack.c.b16 %v6221, %v6220
        %v6236 = vpack.c.b16 %v6223, %v6222
        %v6237 = vpack.c.b16 %v6225, %v6224
        %v6238 = vpack.c.b16 %v6227, %v6226
        %v6239 = vpack.c.b16 %v6229, %v6228
        %v6240 = vpack.c.b16 %v6231, %v6230
        %v6241 = vpack.c.b16 %v6233, %v6232
        %6250 = vmatprep.subr.bf16.mxu0 0
        %6251 = vmatpush1.bf16.msra.mxu0 %v6241
        %6252 = vmatprep.subr.bf16.mxu0 0
        %6253 = vmatpush1.bf16.msra.mxu0 %v6240
        %6254 = vmatprep.subr.bf16.mxu0 0
        %6255 = vmatpush1.bf16.msra.mxu0 %v6239
        %6256 = vmatprep.subr.bf16.mxu0 0
        %6257 = vmatpush1.bf16.msra.mxu0 %v6238
        %6258 = vmatprep.subr.bf16.mxu0 0
        %6259 = vmatpush1.bf16.msra.mxu0 %v6237
        %6260 = vmatprep.subr.bf16.mxu0 0
        %6261 = vmatpush1.bf16.msra.mxu0 %v6236
        %6262 = vmatprep.subr.bf16.mxu0 0
        %6263 = vmatpush1.bf16.msra.mxu0 %v6235
        %6264 = vmatprep.subr.bf16.mxu0 0
        %6265 = vmatpush1.bf16.msra.mxu0 %v6234
        %6266 = vmatprep.subr.bf16.mxu0 0
        %6267 = vmatpush2.bf16.msra.mxu0 0
        %6268 = vmatprep.subr.bf16.mxu0 0
        %6269 = vmatpush2.bf16.msra.mxu0 0
        %6270 = vmatprep.subr.bf16.mxu0 0
        %6271 = vmatpush2.bf16.msra.mxu0 0
        %6272 = vmatprep.subr.bf16.mxu0 0
        %6273 = vmatpush2.bf16.msra.mxu0 0
        %6274 = vmatprep.subr.bf16.mxu0 0
        %6275 = vmatpush2.bf16.msra.mxu0 0
        %6276 = vmatprep.subr.bf16.mxu0 0
        %6277 = vmatpush2.bf16.msra.mxu0 0
        %6278 = vmatprep.subr.bf16.mxu0 0
        %6279 = vmatpush2.bf16.msra.mxu0 0
        %6280 = vmatprep.subr.bf16.mxu0 0
        %6281 = vmatpush2.bf16.msra.mxu0 0
        %6282 = vmatprep.mubr.bf16.mxu0 0
        %6283 = vmatmul.mubr.bf16.gmra.mxu0 %v6068
        %v6284 = vpop.f32.mrf.mxu0
        %v6285 = vadd.f32 %v6197, %v6284
        %v6286 = vpop.f32.mrf.mxu0
        %v6287 = vpop.f32.mrf.mxu0
        %v6288 = vpop.f32.mrf.mxu0
        %6289 = vdwg.mxu0
        %v6290 = vld [vmem:[#allocation4] sm:$0x6]
        %s6291 = scalar_lea.vmem %s9, 128
        %v6292 = vld [vmem:[%s6291] sm:$0xf]
        %v6293 = vld [vmem:[%s6291 + $0x4] sm:$0xf]
        %v6294 = vld [vmem:[%s6291 + $0x8] sm:$0xf]
        %v6295 = vld [vmem:[%s6291 + $0xc] sm:$0xf]
        %v6296 = vld [vmem:[%s6291 + $0x10] sm:$0xf]
        %v6297 = vld [vmem:[%s6291 + $0x14] sm:$0xf]
        %v6298 = vld [vmem:[%s6291 + $0x18] sm:$0xf]
        %v6299 = vld [vmem:[%s6291 + $0x1c] sm:$0xf]
        %v6300 = vld [vmem:[%s6291 + $0x20] sm:$0xf]
        %v6301 = vld [vmem:[%s6291 + $0x24] sm:$0xf]
        %v6302 = vld [vmem:[%s6291 + $0x28] sm:$0xf]
        %v6303 = vld [vmem:[%s6291 + $0x2c] sm:$0xf]
        %v6304 = vld [vmem:[%s6291 + $0x30] sm:$0xf]
        %v6305 = vld [vmem:[%s6291 + $0x34] sm:$0xf]
        %v6306 = vld [vmem:[%s6291 + $0x38] sm:$0xf]
        %v6307 = vld [vmem:[%s6291 + $0x3c] sm:$0xf]
        %v6309 = vunpack.c.l.b16 %v6290
        %v6310 = vpack.c.b16 %v6309, %v6309
        %v6311 = vrot.slane %v6310, 1
        %v6329 = vunpack.c.l.b16 %v6292
        %v6330 = vunpack.c.l.b16 %v6293
        %v6331 = vunpack.c.l.b16 %v6294
        %v6332 = vunpack.c.l.b16 %v6295
        %v6333 = vunpack.c.l.b16 %v6296
        %v6334 = vunpack.c.l.b16 %v6297
        %v6335 = vunpack.c.l.b16 %v6298
        %v6336 = vunpack.c.l.b16 %v6299
        %v6337 = vunpack.c.l.b16 %v6300
        %v6338 = vunpack.c.l.b16 %v6301
        %v6339 = vunpack.c.l.b16 %v6302
        %v6340 = vunpack.c.l.b16 %v6303
        %v6341 = vunpack.c.l.b16 %v6304
        %v6342 = vunpack.c.l.b16 %v6305
        %v6343 = vunpack.c.l.b16 %v6306
        %v6344 = vunpack.c.l.b16 %v6307
        %v6345 = vpack.c.b16 %v6330, %v6329
        %v6346 = vpack.c.b16 %v6332, %v6331
        %v6347 = vpack.c.b16 %v6334, %v6333
        %v6348 = vpack.c.b16 %v6336, %v6335
        %v6349 = vpack.c.b16 %v6338, %v6337
        %v6350 = vpack.c.b16 %v6340, %v6339
        %v6351 = vpack.c.b16 %v6342, %v6341
        %v6352 = vpack.c.b16 %v6344, %v6343
        %6361 = vmatprep.subr.bf16.mxu0 0
        %6362 = vmatpush1.bf16.msra.mxu0 %v6352
        %6363 = vmatprep.subr.bf16.mxu0 0
        %6364 = vmatpush1.bf16.msra.mxu0 %v6351
        %6365 = vmatprep.subr.bf16.mxu0 0
        %6366 = vmatpush1.bf16.msra.mxu0 %v6350
        %6367 = vmatprep.subr.bf16.mxu0 0
        %6368 = vmatpush1.bf16.msra.mxu0 %v6349
        %6369 = vmatprep.subr.bf16.mxu0 0
        %6370 = vmatpush1.bf16.msra.mxu0 %v6348
        %6371 = vmatprep.subr.bf16.mxu0 0
        %6372 = vmatpush1.bf16.msra.mxu0 %v6347
        %6373 = vmatprep.subr.bf16.mxu0 0
        %6374 = vmatpush1.bf16.msra.mxu0 %v6346
        %6375 = vmatprep.subr.bf16.mxu0 0
        %6376 = vmatpush1.bf16.msra.mxu0 %v6345
        %6377 = vmatprep.subr.bf16.mxu0 0
        %6378 = vmatpush2.bf16.msra.mxu0 0
        %6379 = vmatprep.subr.bf16.mxu0 0
        %6380 = vmatpush2.bf16.msra.mxu0 0
        %6381 = vmatprep.subr.bf16.mxu0 0
        %6382 = vmatpush2.bf16.msra.mxu0 0
        %6383 = vmatprep.subr.bf16.mxu0 0
        %6384 = vmatpush2.bf16.msra.mxu0 0
        %6385 = vmatprep.subr.bf16.mxu0 0
        %6386 = vmatpush2.bf16.msra.mxu0 0
        %6387 = vmatprep.subr.bf16.mxu0 0
        %6388 = vmatpush2.bf16.msra.mxu0 0
        %6389 = vmatprep.subr.bf16.mxu0 0
        %6390 = vmatpush2.bf16.msra.mxu0 0
        %6391 = vmatprep.subr.bf16.mxu0 0
        %6392 = vmatpush2.bf16.msra.mxu0 0
        %6393 = vmatprep.mubr.bf16.mxu0 0
        %6394 = vmatmul.mubr.bf16.gmra.mxu0 %v6311
        %v6395 = vpop.f32.mrf.mxu0
        %v6396 = vadd.f32 0.0, %v6395
        %v6397 = vpop.f32.mrf.mxu0
        %v6398 = vpop.f32.mrf.mxu0
        %v6399 = vpop.f32.mrf.mxu0
        %6400 = vdwg.mxu0
        %v6401 = vadd.f32 %v6285, %v6396
        %v6402 = vld [vmem:[%s10] sm:$0x1]
        %v6404 = vlaneseq
        %v6405 = vshrl.u32 %v6404, 7
        %v6406 = vsub.s32 0, %v6405
        %v6407 = vrot.slane %v6402, %v6406
        %v6409 = vadd.f32 %v6401, %v6407
        %v6410 = vmax.f32 %v6409, 0.0
        %v6411 = vpack.c.bf16 %v6410, %v6410
        %v6413 = vunpack.c.l.b16 %v6411
        %v6414 = vpack.c.b16 %v6413, %v6413
        %v6416 = vshrl.u32 %v6414, 16
        %v6418 = vrot.slane %v6416, 7
        %v6419 = vshll.u32 %v6414, 16
        %v6421 = vor.u32 %v6418, %v6419
        %v6423 = vsel %vm6064, %v6421, %v6085
        %6424 = vst [vmem:[#allocation4] sm:$0x7] %v6423
        %v6425 = vld [vmem:[#allocation4] sm:$0x3]
        %v6426 = vld [vmem:[#allocation12] sm:$0xf]
        %v6427 = vld [vmem:[#allocation12 + $0x4] sm:$0xf]
        %v6428 = vld [vmem:[#allocation12 + $0x8] sm:$0xf]
        %v6429 = vld [vmem:[#allocation12 + $0xc] sm:$0xf]
        %v6430 = vld [vmem:[#allocation12 + $0x10] sm:$0xf]
        %v6431 = vld [vmem:[#allocation12 + $0x14] sm:$0xf]
        %v6432 = vld [vmem:[#allocation12 + $0x18] sm:$0xf]
        %v6433 = vld [vmem:[#allocation12 + $0x1c] sm:$0xf]
        %v6434 = vld [vmem:[#allocation12 + $0x20] sm:$0xf]
        %v6435 = vld [vmem:[#allocation12 + $0x24] sm:$0xf]
        %v6436 = vld [vmem:[#allocation12 + $0x28] sm:$0xf]
        %v6437 = vld [vmem:[#allocation12 + $0x2c] sm:$0xf]
        %v6438 = vld [vmem:[#allocation12 + $0x30] sm:$0xf]
        %v6439 = vld [vmem:[#allocation12 + $0x34] sm:$0xf]
        %v6440 = vld [vmem:[#allocation12 + $0x38] sm:$0xf]
        %v6441 = vld [vmem:[#allocation12 + $0x3c] sm:$0xf]
        %v6442 = vld [vmem:[#allocation4] sm:$0x7]
        %s6443 = scalar_lea.vmem [#allocation12], 64
        %v6444 = vld [vmem:[%s6443] sm:$0xf]
        %v6445 = vld [vmem:[%s6443 + $0x4] sm:$0xf]
        %v6446 = vld [vmem:[%s6443 + $0x8] sm:$0xf]
        %v6447 = vld [vmem:[%s6443 + $0xc] sm:$0xf]
        %v6448 = vld [vmem:[%s6443 + $0x10] sm:$0xf]
        %v6449 = vld [vmem:[%s6443 + $0x14] sm:$0xf]
        %v6450 = vld [vmem:[%s6443 + $0x18] sm:$0xf]
        %v6451 = vld [vmem:[%s6443 + $0x1c] sm:$0xf]
        %v6452 = vld [vmem:[%s6443 + $0x20] sm:$0xf]
        %v6453 = vld [vmem:[%s6443 + $0x24] sm:$0xf]
        %v6454 = vld [vmem:[%s6443 + $0x28] sm:$0xf]
        %v6455 = vld [vmem:[%s6443 + $0x2c] sm:$0xf]
        %v6456 = vld [vmem:[%s6443 + $0x30] sm:$0xf]
        %v6457 = vld [vmem:[%s6443 + $0x34] sm:$0xf]
        %v6458 = vld [vmem:[%s6443 + $0x38] sm:$0xf]
        %v6459 = vld [vmem:[%s6443 + $0x3c] sm:$0xf]
        %v6461 = vunpack.c.l.b16 %v6442
        %v6462 = vpack.c.b16 %v6461, %v6461
        %v6464 = vshrl.u32 %v6462, 16
        %v6466 = vshll.u32 %v6462, 16
        %v6468 = vrot.slane %v6466, 1
        %v6469 = vor.u32 %v6464, %v6468
        %v6487 = vunpack.c.l.b16 %v6444
        %v6488 = vunpack.c.l.b16 %v6445
        %v6489 = vunpack.c.l.b16 %v6446
        %v6490 = vunpack.c.l.b16 %v6447
        %v6491 = vunpack.c.l.b16 %v6448
        %v6492 = vunpack.c.l.b16 %v6449
        %v6493 = vunpack.c.l.b16 %v6450
        %v6494 = vunpack.c.l.b16 %v6451
        %v6495 = vunpack.c.l.b16 %v6452
        %v6496 = vunpack.c.l.b16 %v6453
        %v6497 = vunpack.c.l.b16 %v6454
        %v6498 = vunpack.c.l.b16 %v6455
        %v6499 = vunpack.c.l.b16 %v6456
        %v6500 = vunpack.c.l.b16 %v6457
        %v6501 = vunpack.c.l.b16 %v6458
        %v6502 = vunpack.c.l.b16 %v6459
        %v6503 = vpack.c.b16 %v6488, %v6487
        %v6504 = vpack.c.b16 %v6490, %v6489
        %v6505 = vpack.c.b16 %v6492, %v6491
        %v6506 = vpack.c.b16 %v6494, %v6493
        %v6507 = vpack.c.b16 %v6496, %v6495
        %v6508 = vpack.c.b16 %v6498, %v6497
        %v6509 = vpack.c.b16 %v6500, %v6499
        %v6510 = vpack.c.b16 %v6502, %v6501
        %6519 = vmatprep.subr.bf16.mxu0 0
        %6520 = vmatpush1.bf16.msra.mxu0 %v6510
        %6521 = vmatprep.subr.bf16.mxu0 0
        %6522 = vmatpush1.bf16.msra.mxu0 %v6509
        %6523 = vmatprep.subr.bf16.mxu0 0
        %6524 = vmatpush1.bf16.msra.mxu0 %v6508
        %6525 = vmatprep.subr.bf16.mxu0 0
        %6526 = vmatpush1.bf16.msra.mxu0 %v6507
        %6527 = vmatprep.subr.bf16.mxu0 0
        %6528 = vmatpush1.bf16.msra.mxu0 %v6506
        %6529 = vmatprep.subr.bf16.mxu0 0
        %6530 = vmatpush1.bf16.msra.mxu0 %v6505
        %6531 = vmatprep.subr.bf16.mxu0 0
        %6532 = vmatpush1.bf16.msra.mxu0 %v6504
        %6533 = vmatprep.subr.bf16.mxu0 0
        %6534 = vmatpush1.bf16.msra.mxu0 %v6503
        %6535 = vmatprep.subr.bf16.mxu0 0
        %6536 = vmatpush2.bf16.msra.mxu0 0
        %6537 = vmatprep.subr.bf16.mxu0 0
        %6538 = vmatpush2.bf16.msra.mxu0 0
        %6539 = vmatprep.subr.bf16.mxu0 0
        %6540 = vmatpush2.bf16.msra.mxu0 0
        %6541 = vmatprep.subr.bf16.mxu0 0
        %6542 = vmatpush2.bf16.msra.mxu0 0
        %6543 = vmatprep.subr.bf16.mxu0 0
        %6544 = vmatpush2.bf16.msra.mxu0 0
        %6545 = vmatprep.subr.bf16.mxu0 0
        %6546 = vmatpush2.bf16.msra.mxu0 0
        %6547 = vmatprep.subr.bf16.mxu0 0
        %6548 = vmatpush2.bf16.msra.mxu0 0
        %6549 = vmatprep.subr.bf16.mxu0 0
        %6550 = vmatpush2.bf16.msra.mxu0 0
        %6551 = vmatprep.mubr.bf16.mxu0 0
        %6552 = vmatmul.mubr.bf16.gmra.mxu0 %v6469
        %v6553 = vpop.f32.mrf.mxu0
        %v6554 = vadd.f32 0.0, %v6553
        %v6555 = vpop.f32.mrf.mxu0
        %v6556 = vpop.f32.mrf.mxu0
        %v6557 = vpop.f32.mrf.mxu0
        %6558 = vdwg.mxu0
        %v6575 = vunpack.c.l.b16 %v6426
        %v6576 = vunpack.c.l.b16 %v6427
        %v6577 = vunpack.c.l.b16 %v6428
        %v6578 = vunpack.c.l.b16 %v6429
        %v6579 = vunpack.c.l.b16 %v6430
        %v6580 = vunpack.c.l.b16 %v6431
        %v6581 = vunpack.c.l.b16 %v6432
        %v6582 = vunpack.c.l.b16 %v6433
        %v6583 = vunpack.c.l.b16 %v6434
        %v6584 = vunpack.c.l.b16 %v6435
        %v6585 = vunpack.c.l.b16 %v6436
        %v6586 = vunpack.c.l.b16 %v6437
        %v6587 = vunpack.c.l.b16 %v6438
        %v6588 = vunpack.c.l.b16 %v6439
        %v6589 = vunpack.c.l.b16 %v6440
        %v6590 = vunpack.c.l.b16 %v6441
        %v6591 = vpack.c.b16 %v6576, %v6575
        %v6592 = vpack.c.b16 %v6578, %v6577
        %v6593 = vpack.c.b16 %v6580, %v6579
        %v6594 = vpack.c.b16 %v6582, %v6581
        %v6595 = vpack.c.b16 %v6584, %v6583
        %v6596 = vpack.c.b16 %v6586, %v6585
        %v6597 = vpack.c.b16 %v6588, %v6587
        %v6598 = vpack.c.b16 %v6590, %v6589
        %6607 = vmatprep.subr.bf16.mxu0 0
        %6608 = vmatpush1.bf16.msra.mxu0 %v6598
        %6609 = vmatprep.subr.bf16.mxu0 0
        %6610 = vmatpush1.bf16.msra.mxu0 %v6597
        %6611 = vmatprep.subr.bf16.mxu0 0
        %6612 = vmatpush1.bf16.msra.mxu0 %v6596
        %6613 = vmatprep.subr.bf16.mxu0 0
        %6614 = vmatpush1.bf16.msra.mxu0 %v6595
        %6615 = vmatprep.subr.bf16.mxu0 0
        %6616 = vmatpush1.bf16.msra.mxu0 %v6594
        %6617 = vmatprep.subr.bf16.mxu0 0
        %6618 = vmatpush1.bf16.msra.mxu0 %v6593
        %6619 = vmatprep.subr.bf16.mxu0 0
        %6620 = vmatpush1.bf16.msra.mxu0 %v6592
        %6621 = vmatprep.subr.bf16.mxu0 0
        %6622 = vmatpush1.bf16.msra.mxu0 %v6591
        %6623 = vmatprep.subr.bf16.mxu0 0
        %6624 = vmatpush2.bf16.msra.mxu0 0
        %6625 = vmatprep.subr.bf16.mxu0 0
        %6626 = vmatpush2.bf16.msra.mxu0 0
        %6627 = vmatprep.subr.bf16.mxu0 0
        %6628 = vmatpush2.bf16.msra.mxu0 0
        %6629 = vmatprep.subr.bf16.mxu0 0
        %6630 = vmatpush2.bf16.msra.mxu0 0
        %6631 = vmatprep.subr.bf16.mxu0 0
        %6632 = vmatpush2.bf16.msra.mxu0 0
        %6633 = vmatprep.subr.bf16.mxu0 0
        %6634 = vmatpush2.bf16.msra.mxu0 0
        %6635 = vmatprep.subr.bf16.mxu0 0
        %6636 = vmatpush2.bf16.msra.mxu0 0
        %6637 = vmatprep.subr.bf16.mxu0 0
        %6638 = vmatpush2.bf16.msra.mxu0 0
        %6639 = vmatprep.mubr.bf16.mxu0 0
        %6640 = vmatmul.mubr.bf16.gmra.mxu0 %v6425
        %v6641 = vpop.f32.mrf.mxu0
        %v6642 = vadd.f32 %v6554, %v6641
        %v6643 = vpop.f32.mrf.mxu0
        %v6644 = vpop.f32.mrf.mxu0
        %v6645 = vpop.f32.mrf.mxu0
        %6646 = vdwg.mxu0
        %v6647 = vld [vmem:[#allocation4] sm:$0x6]
        %s6648 = scalar_lea.vmem [#allocation12], 128
        %v6649 = vld [vmem:[%s6648] sm:$0xf]
        %v6650 = vld [vmem:[%s6648 + $0x4] sm:$0xf]
        %v6651 = vld [vmem:[%s6648 + $0x8] sm:$0xf]
        %v6652 = vld [vmem:[%s6648 + $0xc] sm:$0xf]
        %v6653 = vld [vmem:[%s6648 + $0x10] sm:$0xf]
        %v6654 = vld [vmem:[%s6648 + $0x14] sm:$0xf]
        %v6655 = vld [vmem:[%s6648 + $0x18] sm:$0xf]
        %v6656 = vld [vmem:[%s6648 + $0x1c] sm:$0xf]
        %v6657 = vld [vmem:[%s6648 + $0x20] sm:$0xf]
        %v6658 = vld [vmem:[%s6648 + $0x24] sm:$0xf]
        %v6659 = vld [vmem:[%s6648 + $0x28] sm:$0xf]
        %v6660 = vld [vmem:[%s6648 + $0x2c] sm:$0xf]
        %v6661 = vld [vmem:[%s6648 + $0x30] sm:$0xf]
        %v6662 = vld [vmem:[%s6648 + $0x34] sm:$0xf]
        %v6663 = vld [vmem:[%s6648 + $0x38] sm:$0xf]
        %v6664 = vld [vmem:[%s6648 + $0x3c] sm:$0xf]
        %v6666 = vunpack.c.l.b16 %v6647
        %v6667 = vpack.c.b16 %v6666, %v6666
        %v6668 = vrot.slane %v6667, 1
        %v6686 = vunpack.c.l.b16 %v6649
        %v6687 = vunpack.c.l.b16 %v6650
        %v6688 = vunpack.c.l.b16 %v6651
        %v6689 = vunpack.c.l.b16 %v6652
        %v6690 = vunpack.c.l.b16 %v6653
        %v6691 = vunpack.c.l.b16 %v6654
        %v6692 = vunpack.c.l.b16 %v6655
        %v6693 = vunpack.c.l.b16 %v6656
        %v6694 = vunpack.c.l.b16 %v6657
        %v6695 = vunpack.c.l.b16 %v6658
        %v6696 = vunpack.c.l.b16 %v6659
        %v6697 = vunpack.c.l.b16 %v6660
        %v6698 = vunpack.c.l.b16 %v6661
        %v6699 = vunpack.c.l.b16 %v6662
        %v6700 = vunpack.c.l.b16 %v6663
        %v6701 = vunpack.c.l.b16 %v6664
        %v6702 = vpack.c.b16 %v6687, %v6686
        %v6703 = vpack.c.b16 %v6689, %v6688
        %v6704 = vpack.c.b16 %v6691, %v6690
        %v6705 = vpack.c.b16 %v6693, %v6692
        %v6706 = vpack.c.b16 %v6695, %v6694
        %v6707 = vpack.c.b16 %v6697, %v6696
        %v6708 = vpack.c.b16 %v6699, %v6698
        %v6709 = vpack.c.b16 %v6701, %v6700
        %6718 = vmatprep.subr.bf16.mxu0 0
        %6719 = vmatpush1.bf16.msra.mxu0 %v6709
        %6720 = vmatprep.subr.bf16.mxu0 0
        %6721 = vmatpush1.bf16.msra.mxu0 %v6708
        %6722 = vmatprep.subr.bf16.mxu0 0
        %6723 = vmatpush1.bf16.msra.mxu0 %v6707
        %6724 = vmatprep.subr.bf16.mxu0 0
        %6725 = vmatpush1.bf16.msra.mxu0 %v6706
        %6726 = vmatprep.subr.bf16.mxu0 0
        %6727 = vmatpush1.bf16.msra.mxu0 %v6705
        %6728 = vmatprep.subr.bf16.mxu0 0
        %6729 = vmatpush1.bf16.msra.mxu0 %v6704
        %6730 = vmatprep.subr.bf16.mxu0 0
        %6731 = vmatpush1.bf16.msra.mxu0 %v6703
        %6732 = vmatprep.subr.bf16.mxu0 0
        %6733 = vmatpush1.bf16.msra.mxu0 %v6702
        %6734 = vmatprep.subr.bf16.mxu0 0
        %6735 = vmatpush2.bf16.msra.mxu0 0
        %6736 = vmatprep.subr.bf16.mxu0 0
        %6737 = vmatpush2.bf16.msra.mxu0 0
        %6738 = vmatprep.subr.bf16.mxu0 0
        %6739 = vmatpush2.bf16.msra.mxu0 0
        %6740 = vmatprep.subr.bf16.mxu0 0
        %6741 = vmatpush2.bf16.msra.mxu0 0
        %6742 = vmatprep.subr.bf16.mxu0 0
        %6743 = vmatpush2.bf16.msra.mxu0 0
        %6744 = vmatprep.subr.bf16.mxu0 0
        %6745 = vmatpush2.bf16.msra.mxu0 0
        %6746 = vmatprep.subr.bf16.mxu0 0
        %6747 = vmatpush2.bf16.msra.mxu0 0
        %6748 = vmatprep.subr.bf16.mxu0 0
        %6749 = vmatpush2.bf16.msra.mxu0 0
        %6750 = vmatprep.mubr.bf16.mxu0 0
        %6751 = vmatmul.mubr.bf16.gmra.mxu0 %v6668
        %v6752 = vpop.f32.mrf.mxu0
        %v6753 = vadd.f32 0.0, %v6752
        %v6754 = vpop.f32.mrf.mxu0
        %v6755 = vpop.f32.mrf.mxu0
        %v6756 = vpop.f32.mrf.mxu0
        %6757 = vdwg.mxu0
        %v6758 = vadd.f32 %v6642, %v6753
        %v6759 = vld [vmem:[%s12] sm:$0x1]
        %v6761 = vlaneseq
        %v6762 = vshrl.u32 %v6761, 7
        %v6763 = vsub.s32 0, %v6762
        %v6764 = vrot.slane %v6759, %v6763
        %v6766 = vadd.f32 %v6758, %v6764
        %v6767 = vunpack.c.l.bf16 %v6041
        %v6768 = vadd.f32 %v6766, %v6767
        %v6769 = vmax.f32 %v6768, 0.0
        %v6770 = vpack.c.bf16 %v6769, %v6769
        %v6771 = vld [vmem:[#allocation13] sm:$0xf]
        %v6772 = vld [vmem:[#allocation13 + $0x4] sm:$0xf]
        %v6773 = vld [vmem:[#allocation13 + $0x8] sm:$0xf]
        %v6774 = vld [vmem:[#allocation13 + $0xc] sm:$0xf]
        %v6775 = vld [vmem:[#allocation13 + $0x10] sm:$0xf]
        %v6776 = vld [vmem:[#allocation13 + $0x14] sm:$0xf]
        %v6777 = vld [vmem:[#allocation13 + $0x18] sm:$0xf]
        %v6778 = vld [vmem:[#allocation13 + $0x1c] sm:$0xf]
        %v6779 = vld [vmem:[#allocation13 + $0x20] sm:$0xf]
        %v6780 = vld [vmem:[#allocation13 + $0x24] sm:$0xf]
        %v6781 = vld [vmem:[#allocation13 + $0x28] sm:$0xf]
        %v6782 = vld [vmem:[#allocation13 + $0x2c] sm:$0xf]
        %v6783 = vld [vmem:[#allocation13 + $0x30] sm:$0xf]
        %v6784 = vld [vmem:[#allocation13 + $0x34] sm:$0xf]
        %v6785 = vld [vmem:[#allocation13 + $0x38] sm:$0xf]
        %v6786 = vld [vmem:[#allocation13 + $0x3c] sm:$0xf]
        %s6787 = scalar_lea.vmem [#allocation13], 64
        %v6788 = vld [vmem:[%s6787] sm:$0xf]
        %v6789 = vld [vmem:[%s6787 + $0x4] sm:$0xf]
        %v6790 = vld [vmem:[%s6787 + $0x8] sm:$0xf]
        %v6791 = vld [vmem:[%s6787 + $0xc] sm:$0xf]
        %v6792 = vld [vmem:[%s6787 + $0x10] sm:$0xf]
        %v6793 = vld [vmem:[%s6787 + $0x14] sm:$0xf]
        %v6794 = vld [vmem:[%s6787 + $0x18] sm:$0xf]
        %v6795 = vld [vmem:[%s6787 + $0x1c] sm:$0xf]
        %v6796 = vld [vmem:[%s6787 + $0x20] sm:$0xf]
        %v6797 = vld [vmem:[%s6787 + $0x24] sm:$0xf]
        %v6798 = vld [vmem:[%s6787 + $0x28] sm:$0xf]
        %v6799 = vld [vmem:[%s6787 + $0x2c] sm:$0xf]
        %v6800 = vld [vmem:[%s6787 + $0x30] sm:$0xf]
        %v6801 = vld [vmem:[%s6787 + $0x34] sm:$0xf]
        %v6802 = vld [vmem:[%s6787 + $0x38] sm:$0xf]
        %v6803 = vld [vmem:[%s6787 + $0x3c] sm:$0xf]
        %v6805 = vshrl.u32 %v6770, 16
        %v6824 = vunpack.c.l.b16 %v6788
        %v6825 = vunpack.c.l.b16 %v6789
        %v6826 = vunpack.c.l.b16 %v6790
        %v6827 = vunpack.c.l.b16 %v6791
        %v6828 = vunpack.c.l.b16 %v6792
        %v6829 = vunpack.c.l.b16 %v6793
        %v6830 = vunpack.c.l.b16 %v6794
        %v6831 = vunpack.c.l.b16 %v6795
        %v6832 = vunpack.c.l.b16 %v6796
        %v6833 = vunpack.c.l.b16 %v6797
        %v6834 = vunpack.c.l.b16 %v6798
        %v6835 = vunpack.c.l.b16 %v6799
        %v6836 = vunpack.c.l.b16 %v6800
        %v6837 = vunpack.c.l.b16 %v6801
        %v6838 = vunpack.c.l.b16 %v6802
        %v6839 = vunpack.c.l.b16 %v6803
        %v6840 = vpack.c.b16 %v6825, %v6824
        %v6841 = vpack.c.b16 %v6827, %v6826
        %v6842 = vpack.c.b16 %v6829, %v6828
        %v6843 = vpack.c.b16 %v6831, %v6830
        %v6844 = vpack.c.b16 %v6833, %v6832
        %v6845 = vpack.c.b16 %v6835, %v6834
        %v6846 = vpack.c.b16 %v6837, %v6836
        %v6847 = vpack.c.b16 %v6839, %v6838
        %6856 = vmatprep.subr.bf16.mxu0 0
        %6857 = vmatpush1.bf16.msra.mxu0 %v6847
        %6858 = vmatprep.subr.bf16.mxu0 0
        %6859 = vmatpush1.bf16.msra.mxu0 %v6846
        %6860 = vmatprep.subr.bf16.mxu0 0
        %6861 = vmatpush1.bf16.msra.mxu0 %v6845
        %6862 = vmatprep.subr.bf16.mxu0 0
        %6863 = vmatpush1.bf16.msra.mxu0 %v6844
        %6864 = vmatprep.subr.bf16.mxu0 0
        %6865 = vmatpush1.bf16.msra.mxu0 %v6843
        %6866 = vmatprep.subr.bf16.mxu0 0
        %6867 = vmatpush1.bf16.msra.mxu0 %v6842
        %6868 = vmatprep.subr.bf16.mxu0 0
        %6869 = vmatpush1.bf16.msra.mxu0 %v6841
        %6870 = vmatprep.subr.bf16.mxu0 0
        %6871 = vmatpush1.bf16.msra.mxu0 %v6840
        %6872 = vmatprep.subr.bf16.mxu0 0
        %6873 = vmatpush2.bf16.msra.mxu0 0
        %6874 = vmatprep.subr.bf16.mxu0 0
        %6875 = vmatpush2.bf16.msra.mxu0 0
        %6876 = vmatprep.subr.bf16.mxu0 0
        %6877 = vmatpush2.bf16.msra.mxu0 0
        %6878 = vmatprep.subr.bf16.mxu0 0
        %6879 = vmatpush2.bf16.msra.mxu0 0
        %6880 = vmatprep.subr.bf16.mxu0 0
        %6881 = vmatpush2.bf16.msra.mxu0 0
        %6882 = vmatprep.subr.bf16.mxu0 0
        %6883 = vmatpush2.bf16.msra.mxu0 0
        %6884 = vmatprep.subr.bf16.mxu0 0
        %6885 = vmatpush2.bf16.msra.mxu0 0
        %6886 = vmatprep.subr.bf16.mxu0 0
        %6887 = vmatpush2.bf16.msra.mxu0 0
        %6888 = vmatprep.mubr.bf16.mxu0 0
        %6889 = vmatmul.mubr.bf16.gmra.mxu0 %v6805
        %v6890 = vpop.f32.mrf.mxu0
        %v6891 = vadd.f32 0.0, %v6890
        %v6892 = vpop.f32.mrf.mxu0
        %v6893 = vpop.f32.mrf.mxu0
        %v6894 = vpop.f32.mrf.mxu0
        %6895 = vdwg.mxu0
        %v6912 = vunpack.c.l.b16 %v6771
        %v6913 = vunpack.c.l.b16 %v6772
        %v6914 = vunpack.c.l.b16 %v6773
        %v6915 = vunpack.c.l.b16 %v6774
        %v6916 = vunpack.c.l.b16 %v6775
        %v6917 = vunpack.c.l.b16 %v6776
        %v6918 = vunpack.c.l.b16 %v6777
        %v6919 = vunpack.c.l.b16 %v6778
        %v6920 = vunpack.c.l.b16 %v6779
        %v6921 = vunpack.c.l.b16 %v6780
        %v6922 = vunpack.c.l.b16 %v6781
        %v6923 = vunpack.c.l.b16 %v6782
        %v6924 = vunpack.c.l.b16 %v6783
        %v6925 = vunpack.c.l.b16 %v6784
        %v6926 = vunpack.c.l.b16 %v6785
        %v6927 = vunpack.c.l.b16 %v6786
        %v6928 = vpack.c.b16 %v6913, %v6912
        %v6929 = vpack.c.b16 %v6915, %v6914
        %v6930 = vpack.c.b16 %v6917, %v6916
        %v6931 = vpack.c.b16 %v6919, %v6918
        %v6932 = vpack.c.b16 %v6921, %v6920
        %v6933 = vpack.c.b16 %v6923, %v6922
        %v6934 = vpack.c.b16 %v6925, %v6924
        %v6935 = vpack.c.b16 %v6927, %v6926
        %6944 = vmatprep.subr.bf16.mxu0 0
        %6945 = vmatpush1.bf16.msra.mxu0 %v6935
        %6946 = vmatprep.subr.bf16.mxu0 0
        %6947 = vmatpush1.bf16.msra.mxu0 %v6934
        %6948 = vmatprep.subr.bf16.mxu0 0
        %6949 = vmatpush1.bf16.msra.mxu0 %v6933
        %6950 = vmatprep.subr.bf16.mxu0 0
        %6951 = vmatpush1.bf16.msra.mxu0 %v6932
        %6952 = vmatprep.subr.bf16.mxu0 0
        %6953 = vmatpush1.bf16.msra.mxu0 %v6931
        %6954 = vmatprep.subr.bf16.mxu0 0
        %6955 = vmatpush1.bf16.msra.mxu0 %v6930
        %6956 = vmatprep.subr.bf16.mxu0 0
        %6957 = vmatpush1.bf16.msra.mxu0 %v6929
        %6958 = vmatprep.subr.bf16.mxu0 0
        %6959 = vmatpush1.bf16.msra.mxu0 %v6928
        %6960 = vmatprep.subr.bf16.mxu0 0
        %6961 = vmatpush2.bf16.msra.mxu0 0
        %6962 = vmatprep.subr.bf16.mxu0 0
        %6963 = vmatpush2.bf16.msra.mxu0 0
        %6964 = vmatprep.subr.bf16.mxu0 0
        %6965 = vmatpush2.bf16.msra.mxu0 0
        %6966 = vmatprep.subr.bf16.mxu0 0
        %6967 = vmatpush2.bf16.msra.mxu0 0
        %6968 = vmatprep.subr.bf16.mxu0 0
        %6969 = vmatpush2.bf16.msra.mxu0 0
        %6970 = vmatprep.subr.bf16.mxu0 0
        %6971 = vmatpush2.bf16.msra.mxu0 0
        %6972 = vmatprep.subr.bf16.mxu0 0
        %6973 = vmatpush2.bf16.msra.mxu0 0
        %6974 = vmatprep.subr.bf16.mxu0 0
        %6975 = vmatpush2.bf16.msra.mxu0 0
        %6976 = vmatprep.mubr.bf16.mxu0 0
        %6977 = vmatmul.mubr.bf16.gmra.mxu0 %v6770
        %v6978 = vpop.f32.mrf.mxu0
        %v6979 = vadd.f32 %v6891, %v6978
        %v6980 = vpop.f32.mrf.mxu0
        %v6981 = vpop.f32.mrf.mxu0
        %v6982 = vpop.f32.mrf.mxu0
        %6983 = vdwg.mxu0
        %s6984 = scalar_lea.vmem [#allocation13], 128
        %v6985 = vld [vmem:[%s6984] sm:$0xf]
        %v6986 = vld [vmem:[%s6984 + $0x4] sm:$0xf]
        %v6987 = vld [vmem:[%s6984 + $0x8] sm:$0xf]
        %v6988 = vld [vmem:[%s6984 + $0xc] sm:$0xf]
        %v6989 = vld [vmem:[%s6984 + $0x10] sm:$0xf]
        %v6990 = vld [vmem:[%s6984 + $0x14] sm:$0xf]
        %v6991 = vld [vmem:[%s6984 + $0x18] sm:$0xf]
        %v6992 = vld [vmem:[%s6984 + $0x1c] sm:$0xf]
        %v6993 = vld [vmem:[%s6984 + $0x20] sm:$0xf]
        %v6994 = vld [vmem:[%s6984 + $0x24] sm:$0xf]
        %v6995 = vld [vmem:[%s6984 + $0x28] sm:$0xf]
        %v6996 = vld [vmem:[%s6984 + $0x2c] sm:$0xf]
        %v6997 = vld [vmem:[%s6984 + $0x30] sm:$0xf]
        %v6998 = vld [vmem:[%s6984 + $0x34] sm:$0xf]
        %v6999 = vld [vmem:[%s6984 + $0x38] sm:$0xf]
        %v7000 = vld [vmem:[%s6984 + $0x3c] sm:$0xf]
        %v7002 = vrot.slane %v6770, 1
        %v7020 = vunpack.c.l.b16 %v6985
        %v7021 = vunpack.c.l.b16 %v6986
        %v7022 = vunpack.c.l.b16 %v6987
        %v7023 = vunpack.c.l.b16 %v6988
        %v7024 = vunpack.c.l.b16 %v6989
        %v7025 = vunpack.c.l.b16 %v6990
        %v7026 = vunpack.c.l.b16 %v6991
        %v7027 = vunpack.c.l.b16 %v6992
        %v7028 = vunpack.c.l.b16 %v6993
        %v7029 = vunpack.c.l.b16 %v6994
        %v7030 = vunpack.c.l.b16 %v6995
        %v7031 = vunpack.c.l.b16 %v6996
        %v7032 = vunpack.c.l.b16 %v6997
        %v7033 = vunpack.c.l.b16 %v6998
        %v7034 = vunpack.c.l.b16 %v6999
        %v7035 = vunpack.c.l.b16 %v7000
        %v7036 = vpack.c.b16 %v7021, %v7020
        %v7037 = vpack.c.b16 %v7023, %v7022
        %v7038 = vpack.c.b16 %v7025, %v7024
        %v7039 = vpack.c.b16 %v7027, %v7026
        %v7040 = vpack.c.b16 %v7029, %v7028
        %v7041 = vpack.c.b16 %v7031, %v7030
        %v7042 = vpack.c.b16 %v7033, %v7032
        %v7043 = vpack.c.b16 %v7035, %v7034
        %7052 = vmatprep.subr.bf16.mxu0 0
        %7053 = vmatpush1.bf16.msra.mxu0 %v7043
        %7054 = vmatprep.subr.bf16.mxu0 0
        %7055 = vmatpush1.bf16.msra.mxu0 %v7042
        %7056 = vmatprep.subr.bf16.mxu0 0
        %7057 = vmatpush1.bf16.msra.mxu0 %v7041
        %7058 = vmatprep.subr.bf16.mxu0 0
        %7059 = vmatpush1.bf16.msra.mxu0 %v7040
        %7060 = vmatprep.subr.bf16.mxu0 0
        %7061 = vmatpush1.bf16.msra.mxu0 %v7039
        %7062 = vmatprep.subr.bf16.mxu0 0
        %7063 = vmatpush1.bf16.msra.mxu0 %v7038
        %7064 = vmatprep.subr.bf16.mxu0 0
        %7065 = vmatpush1.bf16.msra.mxu0 %v7037
        %7066 = vmatprep.subr.bf16.mxu0 0
        %7067 = vmatpush1.bf16.msra.mxu0 %v7036
        %7068 = vmatprep.subr.bf16.mxu0 0
        %7069 = vmatpush2.bf16.msra.mxu0 0
        %7070 = vmatprep.subr.bf16.mxu0 0
        %7071 = vmatpush2.bf16.msra.mxu0 0
        %7072 = vmatprep.subr.bf16.mxu0 0
        %7073 = vmatpush2.bf16.msra.mxu0 0
        %7074 = vmatprep.subr.bf16.mxu0 0
        %7075 = vmatpush2.bf16.msra.mxu0 0
        %7076 = vmatprep.subr.bf16.mxu0 0
        %7077 = vmatpush2.bf16.msra.mxu0 0
        %7078 = vmatprep.subr.bf16.mxu0 0
        %7079 = vmatpush2.bf16.msra.mxu0 0
        %7080 = vmatprep.subr.bf16.mxu0 0
        %7081 = vmatpush2.bf16.msra.mxu0 0
        %7082 = vmatprep.subr.bf16.mxu0 0
        %7083 = vmatpush2.bf16.msra.mxu0 0
        %7084 = vmatprep.mubr.bf16.mxu0 0
        %7085 = vmatmul.mubr.bf16.gmra.mxu0 %v7002
        %v7086 = vpop.f32.mrf.mxu0
        %v7087 = vadd.f32 0.0, %v7086
        %v7088 = vpop.f32.mrf.mxu0
        %v7089 = vpop.f32.mrf.mxu0
        %v7090 = vpop.f32.mrf.mxu0
        %7091 = vdwg.mxu0
        %v7092 = vadd.f32 %v6979, %v7087
        %s7093 = scalar_lea.vmem [#allocation13], 192
        %v7094 = vld [vmem:[%s7093] sm:$0xf]
        %v7095 = vld [vmem:[%s7093 + $0x4] sm:$0xf]
        %v7096 = vld [vmem:[%s7093 + $0x8] sm:$0xf]
        %v7097 = vld [vmem:[%s7093 + $0xc] sm:$0xf]
        %v7098 = vld [vmem:[%s7093 + $0x10] sm:$0xf]
        %v7099 = vld [vmem:[%s7093 + $0x14] sm:$0xf]
        %v7100 = vld [vmem:[%s7093 + $0x18] sm:$0xf]
        %v7101 = vld [vmem:[%s7093 + $0x1c] sm:$0xf]
        %v7102 = vld [vmem:[%s7093 + $0x20] sm:$0xf]
        %v7103 = vld [vmem:[%s7093 + $0x24] sm:$0xf]
        %v7104 = vld [vmem:[%s7093 + $0x28] sm:$0xf]
        %v7105 = vld [vmem:[%s7093 + $0x2c] sm:$0xf]
        %v7106 = vld [vmem:[%s7093 + $0x30] sm:$0xf]
        %v7107 = vld [vmem:[%s7093 + $0x34] sm:$0xf]
        %v7108 = vld [vmem:[%s7093 + $0x38] sm:$0xf]
        %v7109 = vld [vmem:[%s7093 + $0x3c] sm:$0xf]
        %v7110 = vrot.slane %v6805, 1
        %v7128 = vunpack.c.l.b16 %v7094
        %v7129 = vunpack.c.l.b16 %v7095
        %v7130 = vunpack.c.l.b16 %v7096
        %v7131 = vunpack.c.l.b16 %v7097
        %v7132 = vunpack.c.l.b16 %v7098
        %v7133 = vunpack.c.l.b16 %v7099
        %v7134 = vunpack.c.l.b16 %v7100
        %v7135 = vunpack.c.l.b16 %v7101
        %v7136 = vunpack.c.l.b16 %v7102
        %v7137 = vunpack.c.l.b16 %v7103
        %v7138 = vunpack.c.l.b16 %v7104
        %v7139 = vunpack.c.l.b16 %v7105
        %v7140 = vunpack.c.l.b16 %v7106
        %v7141 = vunpack.c.l.b16 %v7107
        %v7142 = vunpack.c.l.b16 %v7108
        %v7143 = vunpack.c.l.b16 %v7109
        %v7144 = vpack.c.b16 %v7129, %v7128
        %v7145 = vpack.c.b16 %v7131, %v7130
        %v7146 = vpack.c.b16 %v7133, %v7132
        %v7147 = vpack.c.b16 %v7135, %v7134
        %v7148 = vpack.c.b16 %v7137, %v7136
        %v7149 = vpack.c.b16 %v7139, %v7138
        %v7150 = vpack.c.b16 %v7141, %v7140
        %v7151 = vpack.c.b16 %v7143, %v7142
        %7160 = vmatprep.subr.bf16.mxu0 0
        %7161 = vmatpush1.bf16.msra.mxu0 %v7151
        %7162 = vmatprep.subr.bf16.mxu0 0
        %7163 = vmatpush1.bf16.msra.mxu0 %v7150
        %7164 = vmatprep.subr.bf16.mxu0 0
        %7165 = vmatpush1.bf16.msra.mxu0 %v7149
        %7166 = vmatprep.subr.bf16.mxu0 0
        %7167 = vmatpush1.bf16.msra.mxu0 %v7148
        %7168 = vmatprep.subr.bf16.mxu0 0
        %7169 = vmatpush1.bf16.msra.mxu0 %v7147
        %7170 = vmatprep.subr.bf16.mxu0 0
        %7171 = vmatpush1.bf16.msra.mxu0 %v7146
        %7172 = vmatprep.subr.bf16.mxu0 0
        %7173 = vmatpush1.bf16.msra.mxu0 %v7145
        %7174 = vmatprep.subr.bf16.mxu0 0
        %7175 = vmatpush1.bf16.msra.mxu0 %v7144
        %7176 = vmatprep.subr.bf16.mxu0 0
        %7177 = vmatpush2.bf16.msra.mxu0 0
        %7178 = vmatprep.subr.bf16.mxu0 0
        %7179 = vmatpush2.bf16.msra.mxu0 0
        %7180 = vmatprep.subr.bf16.mxu0 0
        %7181 = vmatpush2.bf16.msra.mxu0 0
        %7182 = vmatprep.subr.bf16.mxu0 0
        %7183 = vmatpush2.bf16.msra.mxu0 0
        %7184 = vmatprep.subr.bf16.mxu0 0
        %7185 = vmatpush2.bf16.msra.mxu0 0
        %7186 = vmatprep.subr.bf16.mxu0 0
        %7187 = vmatpush2.bf16.msra.mxu0 0
        %7188 = vmatprep.subr.bf16.mxu0 0
        %7189 = vmatpush2.bf16.msra.mxu0 0
        %7190 = vmatprep.subr.bf16.mxu0 0
        %7191 = vmatpush2.bf16.msra.mxu0 0
        %7192 = vmatprep.mubr.bf16.mxu0 0
        %7193 = vmatmul.mubr.bf16.gmra.mxu0 %v7110
        %v7194 = vpop.f32.mrf.mxu0
        %v7195 = vadd.f32 0.0, %v7194
        %v7196 = vpop.f32.mrf.mxu0
        %v7197 = vpop.f32.mrf.mxu0
        %v7198 = vpop.f32.mrf.mxu0
        %7199 = vdwg.mxu0
        %v7200 = vadd.f32 %v7092, %v7195
        %v7201 = vld [vmem:[%s14] sm:$0x1]
        %v7202 = vadd.f32 %v7200, %v7201
        %v7203 = vlaneseq
        %v7204 = vand.u32 %v7203, 127
        %vm7205 = vcmp.lt.s32.totalorder %v7204, 10
        %v7206 = vsel %vm7205, %v7202, -1e+30
        %vm7207 = vcmask 1040384
        %v7208 = vsel %vm7207, %v7206, -inf
        %7209 = vmax.xlane.f32.xlu0 %v7208
        %v7210 = vpop.xlane.xlu0 %7209
        %v7211 = vsub.f32 %v7206, %v7210
        %v7212 = vmul.f32 %v7211, 1.442695
        %v7213 = vpow.pop %v7212
        %v7214 = vsel %vm7207, %v7213, 0.0
        %7215 = vadd.xlane.f32.xlu0 %v7214
        %v7216 = vpop.xlane.xlu0 %7215
        %v7217 = vlog2.pop %v7216
        %v7218 = vmul.f32 %v7217, 0.6931472
        %v7219 = vsub.f32 %v7211, %v7218
        %v7220 = vlaneseq
        %v7221 = vshrl.u32 %v7220, 7
        %v7222 = vsub.s32 0, %v7221
        %v7223 = vrot.slane %v7219, %v7222
        %7224 = vst [vmem:[%s580] sm:$0xff] %v7223
        %p7225 = scmp.lt.s32.totalorder %s30, 1
        %s7226 = scalar_select %p7225, %s30, 1
        %s7227 = smul.addr %s7226, 8
        %s7228 = scalar_lea.vmem %s15, %s7227
        // Predicated region
        $region105: #{fused_forward.1} parent=79 // pred_check
          %p7229 = pneg %p368
        $region106: #{fused_forward.1} parent=79 // pred_check_branch
          %7231 = sbr.rel (%p7229) target = $region108
        $region107: #{fused_forward.1} parent=79 // pred_region
          _
        $region108: #{fused_forward.1} parent=79 // pred_fallthru
          _
      $region80: #{fused_forward.1} parent=5 // pred_fallthru
        _
      %p7232 = scmp.le.s32.totalorder 2, %s25
      // Predicated region
      $region109: #{fused_forward.1} parent=5 // pred_check
        %p7233 = pneg %p7232
      $region110: #{fused_forward.1} parent=5 // pred_check_branch
        %7235 = sbr.rel (%p7233) target = $region112
      $region111: #{fused_forward.1} parent=5 // pred_region
        %s7236 = ssub.s32 %s25, 2
        // Predicated region
        $region113: #{fused_forward.1} parent=111 // pred_check
          %p7237 = pneg %p374
        $region114: #{fused_forward.1} parent=111 // pred_check_branch
          %7239 = sbr.rel (%p7237) target = $region116
        $region115: #{fused_forward.1} parent=111 // pred_region
          %p7240 = scmp.lt.s32.totalorder %s31, 1
          %s7241 = scalar_select %p7240, %s31, 1
          %s7242 = smul.addr %s7241, 8
          %s7243 = scalar_lea.vmem %s15, %s7242
        $region116: #{fused_forward.1} parent=111 // pred_fallthru
          _
      $region112: #{fused_forward.1} parent=5 // pred_fallthru
        _
    $region6: #{fused_forward.1} parent=1 // loop_footer
      %s29 = sadd.s32 1, %s25
    $region7: #{fused_forward.1} parent=1 // loop_footer_branch
      %24 = sbr.rel target = $region3
    $region8: #{fused_forward.1} parent=1 // loop_exit
      _
    %7244 = vsyncpa [#allocation6], 1
    %s7245 = scalar_lea.sflag [#allocation6], 1
    %7246 = vsyncpa %s7245, 1
    %7247 = vsyncpa [#allocation8], 1
    %7248 = vsyncpa [#allocation11], 1
    %7249 = vsyncpa [#allocation14], 1

</llo_original>
